<compile_context>
chip_gen: v5e
topology: v5e:2x2
jax: 0.10.0
libtpu: 0.0.40
codegen_flags: <defaults>
</compile_context>

<pallas_src>
import math

import jax
import jax.numpy as jnp
from jax.experimental import pallas as pl
from jax.experimental.pallas import tpu as pltpu

NUM_CLASS = 8
CONV_CO, KH, KW = 3, 3, 5
HIDDEN = 50
HP = 128                      # per-gate padded width (one 128-lane slot per gate)
CNN_FEAT = 3 * 2 * 3          # 18


# --------------------------------------------------------------------------
# Fused kernel: conv -> maxpool -> relu -> flatten -> 2-layer LSTM -> linear
#               -> log_softmax, all in VMEM, single program.
# --------------------------------------------------------------------------
def _make_kernel(B, S):
    N = B * S

    def kernel(x_ref, cw_ref, cb_ref, wih1_ref, whh1_ref, b1_ref,
               w2_ref, b2_ref, h0_ref, c0_ref, wl_ref, bl_ref, out_ref):
        # x_ref : (N, H, W) f32 VMEM, rows already in time-major (s, b) order
        # cw/cb : conv weights (45,) / bias (3,) in SMEM
        # wih1  : (18, 4*HP)  whh1: (HP, 4*HP)  b1: (1, 4*HP)   (gate-padded)
        # w2    : (2*HP, 4*HP) = concat([Wih2_pad; Whh2_pad])   b2: (1, 4*HP)
        # h0/c0 : (2, B, HP)   wl: (HP, NUM_CLASS)  bl: (1, NUM_CLASS)
        # out   : (B, NUM_CLASS) log-probs
        _, Hh, Ww = x_ref.shape
        Ho, Wo = Hh - KH + 1, Ww - KW + 1
        Ph, Pw = Ho // 2, Wo // 2
        x = x_ref[...]                                           # (N, H, W)

        # ---- CNN: conv(1->3,(3,5)) + bias -> 2x2 maxpool -> relu, flatten (c,ph,pw)
        # TODO(synk): nn.Dropout2d(p=0.8) is train-mode only; eval semantics (identity) here.
        pieces = []
        for co in range(CONV_CO):
            acc = jnp.zeros((N, Ho, Wo), jnp.float32)
            for kh in range(KH):
                for kw in range(KW):
                    acc = acc + x[:, kh:kh + Ho, kw:kw + Wo] * cw_ref[co * KH * KW + kh * KW + kw]
            acc = acc + cb_ref[co]
            for ph in range(Ph):                                 # vectorized row-max
                rm = jnp.maximum(acc[:, 2 * ph, :], acc[:, 2 * ph + 1, :])   # (N, Wo)
                for pw in range(Pw):
                    pieces.append(jnp.maximum(rm[:, 2 * pw:2 * pw + 1],
                                              rm[:, 2 * pw + 1:2 * pw + 2]))  # (N, 1)
        feat = jnp.maximum(jnp.concatenate(pieces, axis=1), 0.0)  # (N, 18), time-major rows

        # ---- Hoisted layer-1 input projection: all timesteps in one matmul
        g1x = jnp.dot(feat, wih1_ref[...],
                      preferred_element_type=jnp.float32) + b1_ref[...]      # (N, 4*HP)

        whh1 = whh1_ref[...]
        w2 = w2_ref[...]
        b2 = b2_ref[...]
        h1, c1 = h0_ref[0], c0_ref[0]                            # (B, HP) each
        h2, c2 = h0_ref[1], c0_ref[1]

        def lstm_gates(g, c):
            # 128-lane-aligned gate slices (torch order: i, f, g, o)
            i = jax.nn.sigmoid(g[:, 0 * HP:1 * HP])
            f = jax.nn.sigmoid(g[:, 1 * HP:2 * HP])
            gg = jnp.tanh(g[:, 2 * HP:3 * HP])
            o = jax.nn.sigmoid(g[:, 3 * HP:4 * HP])
            c_new = f * c + i * gg
            return o * jnp.tanh(c_new), c_new

        # ---- fully unrolled recurrence (S is small & static)
        # TODO(synk): nn.LSTM inter-layer dropout (p=0.8) is train-mode only; eval semantics here.
        for t in range(S):
            g1 = g1x[t * B:(t + 1) * B, :] + jnp.dot(h1, whh1,
                                                     preferred_element_type=jnp.float32)
            h1, c1 = lstm_gates(g1, c1)
            g2 = jnp.dot(jnp.concatenate([h1, h2], axis=1), w2,
                         preferred_element_type=jnp.float32) + b2
            h2, c2 = lstm_gates(g2, c2)

        # ---- Linear head + log_softmax (padding rows of wl are zero)
        logits = jnp.dot(h2, wl_ref[...],
                         preferred_element_type=jnp.float32) + bl_ref[...]   # (B, NUM_CLASS)
        m = jnp.max(logits, axis=1, keepdims=True)
        z = logits - m
        out_ref[...] = z - jnp.log(jnp.sum(jnp.exp(z), axis=1, keepdims=True))

    return kernel


def _fused_pallas(c_in_tm, B, S, params):
    vmem = pl.BlockSpec(memory_space=pltpu.MemorySpace.VMEM)
    smem = pl.BlockSpec(memory_space=pltpu.MemorySpace.SMEM)
    return pl.pallas_call(
        _make_kernel(B, S),
        out_shape=jax.ShapeDtypeStruct((B, NUM_CLASS), jnp.float32),
        in_specs=[vmem, smem, smem] + [vmem] * 9,
        out_specs=vmem,
    )(c_in_tm, params['conv_w'], params['conv_b'],
      params['wih1'], params['whh1'], params['b1'],
      params['w2'], params['b2'], params['h0'], params['c0'],
      params['wl'], params['bl'])


# --------------------------------------------------------------------------
# Full forward (glue reshapes reproduce torch's row-major .view exactly;
# the only extra host op is a tiny row permutation of the input to time-major,
# which makes every in-kernel per-step slice contiguous).
# --------------------------------------------------------------------------
@jax.jit
def cnn_lstm_forward(x, params):
    B, T, C, H, W, S = x.shape
    assert C == 1 and T == 1, "LSTM input_size=18 implies timesteps==1, C==1"
    N = B * S
    c_in = x.reshape(B * T * S, C, H, W)[:, 0]                    # == torch .view, row n = b*S + s
    c_in_tm = c_in.reshape(B, S, H, W).transpose(1, 0, 2, 3).reshape(N, H, W)   # row r = s*B + b
    return _fused_pallas(c_in_tm, B, S, params)                   # (B, num_class) log-probs


# --------------------------------------------------------------------------
# Deterministic synthetic parameter init (shapes from the module __init__),
# stored in the padded / fused layouts the kernel consumes.
# --------------------------------------------------------------------------
def init_params(key, batch):
    ks = jax.random.split(key, 12)

    def u(k, shape, scale):
        return jax.random.uniform(k, shape, jnp.float32, -scale, scale)

    kc = 1.0 / math.sqrt(1 * KH * KW)
    conv_w = u(ks[0], (CONV_CO, 1, KH, KW), kc)
    conv_b = u(ks[1], (CONV_CO,), kc)

    kh = 1.0 / math.sqrt(HIDDEN)
    wih1 = u(ks[2], (4 * HIDDEN, CNN_FEAT), kh)
    whh1 = u(ks[3], (4 * HIDDEN, HIDDEN), kh)
    bih1 = u(ks[4], (4 * HIDDEN,), kh)
    bhh1 = u(ks[5], (4 * HIDDEN,), kh)
    wih2 = u(ks[6], (4 * HIDDEN, HIDDEN), kh)
    whh2 = u(ks[7], (4 * HIDDEN, HIDDEN), kh)
    bih2 = u(ks[8], (4 * HIDDEN,), kh)
    bhh2 = u(ks[9], (4 * HIDDEN,), kh)
    wl = u(ks[10], (NUM_CLASS, HIDDEN), kh)
    bl = u(ks[11], (NUM_CLASS,), kh)

    def pad_gate_cols(w_t):     # (rows, 4*HIDDEN) -> (rows, 4*HP): gate g -> lanes [g*HP, g*HP+50)
        out = jnp.zeros((w_t.shape[0], 4 * HP), jnp.float32)
        for g in range(4):
            out = out.at[:, g * HP:g * HP + HIDDEN].set(w_t[:, g * HIDDEN:(g + 1) * HIDDEN])
        return out

    def pad_rows(w, rows):      # zero-pad leading (input) dim
        return jnp.zeros((rows, w.shape[1]), jnp.float32).at[:w.shape[0]].set(w)

    wih1_p = pad_gate_cols(wih1.T)                        # (18, 512)
    whh1_p = pad_rows(pad_gate_cols(whh1.T), HP)          # (128, 512)
    b1_p = pad_gate_cols((bih1 + bhh1)[None, :])          # (1, 512)
    w2_p = jnp.concatenate([pad_rows(pad_gate_cols(wih2.T), HP),
                            pad_rows(pad_gate_cols(whh2.T), HP)], axis=0)   # (256, 512)
    b2_p = pad_gate_cols((bih2 + bhh2)[None, :])          # (1, 512)
    wl_p = pad_rows(wl.T, HP)                             # (128, 8)

    return {
        'conv_w': conv_w.reshape(-1),                     # (45,), order (co, ci, kh, kw)
        'conv_b': conv_b,                                 # (3,)
        'wih1': wih1_p, 'whh1': whh1_p, 'b1': b1_p,
        'w2': w2_p, 'b2': b2_p,
        'wl': wl_p, 'bl': bl[None, :],
        # init_hidden(h, c): deterministic zero initial states, padded 50 -> 128 lanes
        'h0': jnp.zeros((2, batch, HP), jnp.float32),
        'c0': jnp.zeros((2, batch, HP), jnp.float32),
    }


if __name__ == "__main__":
    key = jax.random.PRNGKey(0)
    kx, kp = jax.random.split(key)
    B, T, C, H, W, S = 2, 1, 1, 6, 10, 8                  # small shapes consistent with forward
    x = jax.random.normal(kx, (B, T, C, H, W, S), jnp.float32)
    params = init_params(kp, B)

    out = cnn_lstm_forward(x, params)
    out = jax.block_until_ready(out)
    assert out.shape == (B, NUM_CLASS) and out.dtype == jnp.float32
    # log_softmax sanity: probabilities sum to 1 per row
    assert jnp.allclose(jnp.sum(jnp.exp(out), axis=1), 1.0, atol=1e-3)
    print("KERNEL_OK")
</pallas_src>

<mosaic_0001>
module attributes {stable_mosaic.version = 11 : i64} {
  func.func @kernel(%arg0: memref<16x6x10xf32, #tpu.memory_space<vmem>>, %arg1: memref<45xf32, #tpu.memory_space<smem>>, %arg2: memref<3xf32, #tpu.memory_space<smem>>, %arg3: memref<18x512xf32, #tpu.memory_space<vmem>>, %arg4: memref<128x512xf32, #tpu.memory_space<vmem>>, %arg5: memref<1x512xf32, #tpu.memory_space<vmem>>, %arg6: memref<256x512xf32, #tpu.memory_space<vmem>>, %arg7: memref<1x512xf32, #tpu.memory_space<vmem>>, %arg8: memref<2x2x128xf32, #tpu.memory_space<vmem>>, %arg9: memref<2x2x128xf32, #tpu.memory_space<vmem>>, %arg10: memref<128x8xf32, #tpu.memory_space<vmem>>, %arg11: memref<1x8xf32, #tpu.memory_space<vmem>>, %arg12: memref<2x8xf32, #tpu.memory_space<vmem>>) attributes {dimension_semantics = [], scalar_prefetch = 0 : i64, scratch_operands = 0 : i64, tpu.core_type = #tpu.core_type<tc>} {
    %c0 = arith.constant 0 : index
    %c0_0 = arith.constant 0 : index
    %c0_1 = arith.constant 0 : index
    %0 = vector.load %arg0[%c0, %c0_0, %c0_1] : memref<16x6x10xf32, #tpu.memory_space<vmem>>, vector<16x6x10xf32>
    %cst = arith.constant 0.000000e+00 : f32
    %1 = vector.broadcast %cst : f32 to vector<16x4x6xf32>
    %2 = vector.extract_strided_slice %0 {offsets = [0, 0, 0], sizes = [16, 4, 6], strides = [1, 1, 1]} : vector<16x6x10xf32> to vector<16x4x6xf32>
    %c0_2 = arith.constant 0 : index
    %3 = memref.load %arg1[%c0_2] : memref<45xf32, #tpu.memory_space<smem>>
    %4 = vector.broadcast %3 : f32 to vector<16x4x6xf32>
    %5 = arith.mulf %2, %4 : vector<16x4x6xf32>
    %6 = arith.addf %1, %5 : vector<16x4x6xf32>
    %7 = vector.extract_strided_slice %0 {offsets = [0, 0, 1], sizes = [16, 4, 6], strides = [1, 1, 1]} : vector<16x6x10xf32> to vector<16x4x6xf32>
    %c1 = arith.constant 1 : index
    %8 = memref.load %arg1[%c1] : memref<45xf32, #tpu.memory_space<smem>>
    %9 = vector.broadcast %8 : f32 to vector<16x4x6xf32>
    %10 = arith.mulf %7, %9 : vector<16x4x6xf32>
    %11 = arith.addf %6, %10 : vector<16x4x6xf32>
    %12 = vector.extract_strided_slice %0 {offsets = [0, 0, 2], sizes = [16, 4, 6], strides = [1, 1, 1]} : vector<16x6x10xf32> to vector<16x4x6xf32>
    %c2 = arith.constant 2 : index
    %13 = memref.load %arg1[%c2] : memref<45xf32, #tpu.memory_space<smem>>
    %14 = vector.broadcast %13 : f32 to vector<16x4x6xf32>
    %15 = arith.mulf %12, %14 : vector<16x4x6xf32>
    %16 = arith.addf %11, %15 : vector<16x4x6xf32>
    %17 = vector.extract_strided_slice %0 {offsets = [0, 0, 3], sizes = [16, 4, 6], strides = [1, 1, 1]} : vector<16x6x10xf32> to vector<16x4x6xf32>
    %c3 = arith.constant 3 : index
    %18 = memref.load %arg1[%c3] : memref<45xf32, #tpu.memory_space<smem>>
    %19 = vector.broadcast %18 : f32 to vector<16x4x6xf32>
    %20 = arith.mulf %17, %19 : vector<16x4x6xf32>
    %21 = arith.addf %16, %20 : vector<16x4x6xf32>
    %22 = vector.extract_strided_slice %0 {offsets = [0, 0, 4], sizes = [16, 4, 6], strides = [1, 1, 1]} : vector<16x6x10xf32> to vector<16x4x6xf32>
    %c4 = arith.constant 4 : index
    %23 = memref.load %arg1[%c4] : memref<45xf32, #tpu.memory_space<smem>>
    %24 = vector.broadcast %23 : f32 to vector<16x4x6xf32>
    %25 = arith.mulf %22, %24 : vector<16x4x6xf32>
    %26 = arith.addf %21, %25 : vector<16x4x6xf32>
    %27 = vector.extract_strided_slice %0 {offsets = [0, 1, 0], sizes = [16, 4, 6], strides = [1, 1, 1]} : vector<16x6x10xf32> to vector<16x4x6xf32>
    %c5 = arith.constant 5 : index
    %28 = memref.load %arg1[%c5] : memref<45xf32, #tpu.memory_space<smem>>
    %29 = vector.broadcast %28 : f32 to vector<16x4x6xf32>
    %30 = arith.mulf %27, %29 : vector<16x4x6xf32>
    %31 = arith.addf %26, %30 : vector<16x4x6xf32>
    %32 = vector.extract_strided_slice %0 {offsets = [0, 1, 1], sizes = [16, 4, 6], strides = [1, 1, 1]} : vector<16x6x10xf32> to vector<16x4x6xf32>
    %c6 = arith.constant 6 : index
    %33 = memref.load %arg1[%c6] : memref<45xf32, #tpu.memory_space<smem>>
    %34 = vector.broadcast %33 : f32 to vector<16x4x6xf32>
    %35 = arith.mulf %32, %34 : vector<16x4x6xf32>
    %36 = arith.addf %31, %35 : vector<16x4x6xf32>
    %37 = vector.extract_strided_slice %0 {offsets = [0, 1, 2], sizes = [16, 4, 6], strides = [1, 1, 1]} : vector<16x6x10xf32> to vector<16x4x6xf32>
    %c7 = arith.constant 7 : index
    %38 = memref.load %arg1[%c7] : memref<45xf32, #tpu.memory_space<smem>>
    %39 = vector.broadcast %38 : f32 to vector<16x4x6xf32>
    %40 = arith.mulf %37, %39 : vector<16x4x6xf32>
    %41 = arith.addf %36, %40 : vector<16x4x6xf32>
    %42 = vector.extract_strided_slice %0 {offsets = [0, 1, 3], sizes = [16, 4, 6], strides = [1, 1, 1]} : vector<16x6x10xf32> to vector<16x4x6xf32>
    %c8 = arith.constant 8 : index
    %43 = memref.load %arg1[%c8] : memref<45xf32, #tpu.memory_space<smem>>
    %44 = vector.broadcast %43 : f32 to vector<16x4x6xf32>
    %45 = arith.mulf %42, %44 : vector<16x4x6xf32>
    %46 = arith.addf %41, %45 : vector<16x4x6xf32>
    %47 = vector.extract_strided_slice %0 {offsets = [0, 1, 4], sizes = [16, 4, 6], strides = [1, 1, 1]} : vector<16x6x10xf32> to vector<16x4x6xf32>
    %c9 = arith.constant 9 : index
    %48 = memref.load %arg1[%c9] : memref<45xf32, #tpu.memory_space<smem>>
    %49 = vector.broadcast %48 : f32 to vector<16x4x6xf32>
    %50 = arith.mulf %47, %49 : vector<16x4x6xf32>
    %51 = arith.addf %46, %50 : vector<16x4x6xf32>
    %52 = vector.extract_strided_slice %0 {offsets = [0, 2, 0], sizes = [16, 4, 6], strides = [1, 1, 1]} : vector<16x6x10xf32> to vector<16x4x6xf32>
    %c10 = arith.constant 10 : index
    %53 = memref.load %arg1[%c10] : memref<45xf32, #tpu.memory_space<smem>>
    %54 = vector.broadcast %53 : f32 to vector<16x4x6xf32>
    %55 = arith.mulf %52, %54 : vector<16x4x6xf32>
    %56 = arith.addf %51, %55 : vector<16x4x6xf32>
    %57 = vector.extract_strided_slice %0 {offsets = [0, 2, 1], sizes = [16, 4, 6], strides = [1, 1, 1]} : vector<16x6x10xf32> to vector<16x4x6xf32>
    %c11 = arith.constant 11 : index
    %58 = memref.load %arg1[%c11] : memref<45xf32, #tpu.memory_space<smem>>
    %59 = vector.broadcast %58 : f32 to vector<16x4x6xf32>
    %60 = arith.mulf %57, %59 : vector<16x4x6xf32>
    %61 = arith.addf %56, %60 : vector<16x4x6xf32>
    %62 = vector.extract_strided_slice %0 {offsets = [0, 2, 2], sizes = [16, 4, 6], strides = [1, 1, 1]} : vector<16x6x10xf32> to vector<16x4x6xf32>
    %c12 = arith.constant 12 : index
    %63 = memref.load %arg1[%c12] : memref<45xf32, #tpu.memory_space<smem>>
    %64 = vector.broadcast %63 : f32 to vector<16x4x6xf32>
    %65 = arith.mulf %62, %64 : vector<16x4x6xf32>
    %66 = arith.addf %61, %65 : vector<16x4x6xf32>
    %67 = vector.extract_strided_slice %0 {offsets = [0, 2, 3], sizes = [16, 4, 6], strides = [1, 1, 1]} : vector<16x6x10xf32> to vector<16x4x6xf32>
    %c13 = arith.constant 13 : index
    %68 = memref.load %arg1[%c13] : memref<45xf32, #tpu.memory_space<smem>>
    %69 = vector.broadcast %68 : f32 to vector<16x4x6xf32>
    %70 = arith.mulf %67, %69 : vector<16x4x6xf32>
    %71 = arith.addf %66, %70 : vector<16x4x6xf32>
    %72 = vector.extract_strided_slice %0 {offsets = [0, 2, 4], sizes = [16, 4, 6], strides = [1, 1, 1]} : vector<16x6x10xf32> to vector<16x4x6xf32>
    %c14 = arith.constant 14 : index
    %73 = memref.load %arg1[%c14] : memref<45xf32, #tpu.memory_space<smem>>
    %74 = vector.broadcast %73 : f32 to vector<16x4x6xf32>
    %75 = arith.mulf %72, %74 : vector<16x4x6xf32>
    %76 = arith.addf %71, %75 : vector<16x4x6xf32>
    %c0_3 = arith.constant 0 : index
    %77 = memref.load %arg2[%c0_3] : memref<3xf32, #tpu.memory_space<smem>>
    %78 = vector.broadcast %77 : f32 to vector<16x4x6xf32>
    %79 = arith.addf %76, %78 : vector<16x4x6xf32>
    %80 = vector.extract_strided_slice %79 {offsets = [0, 0, 0], sizes = [16, 1, 6], strides = [1, 1, 1]} : vector<16x4x6xf32> to vector<16x1x6xf32>
    %81 = vector.shape_cast %80 : vector<16x1x6xf32> to vector<16x6xf32>
    %82 = vector.extract_strided_slice %79 {offsets = [0, 1, 0], sizes = [16, 1, 6], strides = [1, 1, 1]} : vector<16x4x6xf32> to vector<16x1x6xf32>
    %83 = vector.shape_cast %82 : vector<16x1x6xf32> to vector<16x6xf32>
    %84 = arith.maximumf %81, %83 : vector<16x6xf32>
    %85 = vector.extract_strided_slice %84 {offsets = [0, 0], sizes = [16, 1], strides = [1, 1]} : vector<16x6xf32> to vector<16x1xf32>
    %86 = vector.extract_strided_slice %84 {offsets = [0, 1], sizes = [16, 1], strides = [1, 1]} : vector<16x6xf32> to vector<16x1xf32>
    %87 = arith.maximumf %85, %86 : vector<16x1xf32>
    %88 = vector.extract_strided_slice %84 {offsets = [0, 2], sizes = [16, 1], strides = [1, 1]} : vector<16x6xf32> to vector<16x1xf32>
    %89 = vector.extract_strided_slice %84 {offsets = [0, 3], sizes = [16, 1], strides = [1, 1]} : vector<16x6xf32> to vector<16x1xf32>
    %90 = arith.maximumf %88, %89 : vector<16x1xf32>
    %91 = vector.extract_strided_slice %84 {offsets = [0, 4], sizes = [16, 1], strides = [1, 1]} : vector<16x6xf32> to vector<16x1xf32>
    %92 = vector.extract_strided_slice %84 {offsets = [0, 5], sizes = [16, 1], strides = [1, 1]} : vector<16x6xf32> to vector<16x1xf32>
    %93 = arith.maximumf %91, %92 : vector<16x1xf32>
    %94 = vector.extract_strided_slice %79 {offsets = [0, 2, 0], sizes = [16, 1, 6], strides = [1, 1, 1]} : vector<16x4x6xf32> to vector<16x1x6xf32>
    %95 = vector.shape_cast %94 : vector<16x1x6xf32> to vector<16x6xf32>
    %96 = vector.extract_strided_slice %79 {offsets = [0, 3, 0], sizes = [16, 1, 6], strides = [1, 1, 1]} : vector<16x4x6xf32> to vector<16x1x6xf32>
    %97 = vector.shape_cast %96 : vector<16x1x6xf32> to vector<16x6xf32>
    %98 = arith.maximumf %95, %97 : vector<16x6xf32>
    %99 = vector.extract_strided_slice %98 {offsets = [0, 0], sizes = [16, 1], strides = [1, 1]} : vector<16x6xf32> to vector<16x1xf32>
    %100 = vector.extract_strided_slice %98 {offsets = [0, 1], sizes = [16, 1], strides = [1, 1]} : vector<16x6xf32> to vector<16x1xf32>
    %101 = arith.maximumf %99, %100 : vector<16x1xf32>
    %102 = vector.extract_strided_slice %98 {offsets = [0, 2], sizes = [16, 1], strides = [1, 1]} : vector<16x6xf32> to vector<16x1xf32>
    %103 = vector.extract_strided_slice %98 {offsets = [0, 3], sizes = [16, 1], strides = [1, 1]} : vector<16x6xf32> to vector<16x1xf32>
    %104 = arith.maximumf %102, %103 : vector<16x1xf32>
    %105 = vector.extract_strided_slice %98 {offsets = [0, 4], sizes = [16, 1], strides = [1, 1]} : vector<16x6xf32> to vector<16x1xf32>
    %106 = vector.extract_strided_slice %98 {offsets = [0, 5], sizes = [16, 1], strides = [1, 1]} : vector<16x6xf32> to vector<16x1xf32>
    %107 = arith.maximumf %105, %106 : vector<16x1xf32>
    %cst_4 = arith.constant 0.000000e+00 : f32
    %108 = vector.broadcast %cst_4 : f32 to vector<16x4x6xf32>
    %109 = vector.extract_strided_slice %0 {offsets = [0, 0, 0], sizes = [16, 4, 6], strides = [1, 1, 1]} : vector<16x6x10xf32> to vector<16x4x6xf32>
    %c15 = arith.constant 15 : index
    %110 = memref.load %arg1[%c15] : memref<45xf32, #tpu.memory_space<smem>>
    %111 = vector.broadcast %110 : f32 to vector<16x4x6xf32>
    %112 = arith.mulf %109, %111 : vector<16x4x6xf32>
    %113 = arith.addf %108, %112 : vector<16x4x6xf32>
    %114 = vector.extract_strided_slice %0 {offsets = [0, 0, 1], sizes = [16, 4, 6], strides = [1, 1, 1]} : vector<16x6x10xf32> to vector<16x4x6xf32>
    %c16 = arith.constant 16 : index
    %115 = memref.load %arg1[%c16] : memref<45xf32, #tpu.memory_space<smem>>
    %116 = vector.broadcast %115 : f32 to vector<16x4x6xf32>
    %117 = arith.mulf %114, %116 : vector<16x4x6xf32>
    %118 = arith.addf %113, %117 : vector<16x4x6xf32>
    %119 = vector.extract_strided_slice %0 {offsets = [0, 0, 2], sizes = [16, 4, 6], strides = [1, 1, 1]} : vector<16x6x10xf32> to vector<16x4x6xf32>
    %c17 = arith.constant 17 : index
    %120 = memref.load %arg1[%c17] : memref<45xf32, #tpu.memory_space<smem>>
    %121 = vector.broadcast %120 : f32 to vector<16x4x6xf32>
    %122 = arith.mulf %119, %121 : vector<16x4x6xf32>
    %123 = arith.addf %118, %122 : vector<16x4x6xf32>
    %124 = vector.extract_strided_slice %0 {offsets = [0, 0, 3], sizes = [16, 4, 6], strides = [1, 1, 1]} : vector<16x6x10xf32> to vector<16x4x6xf32>
    %c18 = arith.constant 18 : index
    %125 = memref.load %arg1[%c18] : memref<45xf32, #tpu.memory_space<smem>>
    %126 = vector.broadcast %125 : f32 to vector<16x4x6xf32>
    %127 = arith.mulf %124, %126 : vector<16x4x6xf32>
    %128 = arith.addf %123, %127 : vector<16x4x6xf32>
    %129 = vector.extract_strided_slice %0 {offsets = [0, 0, 4], sizes = [16, 4, 6], strides = [1, 1, 1]} : vector<16x6x10xf32> to vector<16x4x6xf32>
    %c19 = arith.constant 19 : index
    %130 = memref.load %arg1[%c19] : memref<45xf32, #tpu.memory_space<smem>>
    %131 = vector.broadcast %130 : f32 to vector<16x4x6xf32>
    %132 = arith.mulf %129, %131 : vector<16x4x6xf32>
    %133 = arith.addf %128, %132 : vector<16x4x6xf32>
    %134 = vector.extract_strided_slice %0 {offsets = [0, 1, 0], sizes = [16, 4, 6], strides = [1, 1, 1]} : vector<16x6x10xf32> to vector<16x4x6xf32>
    %c20 = arith.constant 20 : index
    %135 = memref.load %arg1[%c20] : memref<45xf32, #tpu.memory_space<smem>>
    %136 = vector.broadcast %135 : f32 to vector<16x4x6xf32>
    %137 = arith.mulf %134, %136 : vector<16x4x6xf32>
    %138 = arith.addf %133, %137 : vector<16x4x6xf32>
    %139 = vector.extract_strided_slice %0 {offsets = [0, 1, 1], sizes = [16, 4, 6], strides = [1, 1, 1]} : vector<16x6x10xf32> to vector<16x4x6xf32>
    %c21 = arith.constant 21 : index
    %140 = memref.load %arg1[%c21] : memref<45xf32, #tpu.memory_space<smem>>
    %141 = vector.broadcast %140 : f32 to vector<16x4x6xf32>
    %142 = arith.mulf %139, %141 : vector<16x4x6xf32>
    %143 = arith.addf %138, %142 : vector<16x4x6xf32>
    %144 = vector.extract_strided_slice %0 {offsets = [0, 1, 2], sizes = [16, 4, 6], strides = [1, 1, 1]} : vector<16x6x10xf32> to vector<16x4x6xf32>
    %c22 = arith.constant 22 : index
    %145 = memref.load %arg1[%c22] : memref<45xf32, #tpu.memory_space<smem>>
    %146 = vector.broadcast %145 : f32 to vector<16x4x6xf32>
    %147 = arith.mulf %144, %146 : vector<16x4x6xf32>
    %148 = arith.addf %143, %147 : vector<16x4x6xf32>
    %149 = vector.extract_strided_slice %0 {offsets = [0, 1, 3], sizes = [16, 4, 6], strides = [1, 1, 1]} : vector<16x6x10xf32> to vector<16x4x6xf32>
    %c23 = arith.constant 23 : index
    %150 = memref.load %arg1[%c23] : memref<45xf32, #tpu.memory_space<smem>>
    %151 = vector.broadcast %150 : f32 to vector<16x4x6xf32>
    %152 = arith.mulf %149, %151 : vector<16x4x6xf32>
    %153 = arith.addf %148, %152 : vector<16x4x6xf32>
    %154 = vector.extract_strided_slice %0 {offsets = [0, 1, 4], sizes = [16, 4, 6], strides = [1, 1, 1]} : vector<16x6x10xf32> to vector<16x4x6xf32>
    %c24 = arith.constant 24 : index
    %155 = memref.load %arg1[%c24] : memref<45xf32, #tpu.memory_space<smem>>
    %156 = vector.broadcast %155 : f32 to vector<16x4x6xf32>
    %157 = arith.mulf %154, %156 : vector<16x4x6xf32>
    %158 = arith.addf %153, %157 : vector<16x4x6xf32>
    %159 = vector.extract_strided_slice %0 {offsets = [0, 2, 0], sizes = [16, 4, 6], strides = [1, 1, 1]} : vector<16x6x10xf32> to vector<16x4x6xf32>
    %c25 = arith.constant 25 : index
    %160 = memref.load %arg1[%c25] : memref<45xf32, #tpu.memory_space<smem>>
    %161 = vector.broadcast %160 : f32 to vector<16x4x6xf32>
    %162 = arith.mulf %159, %161 : vector<16x4x6xf32>
    %163 = arith.addf %158, %162 : vector<16x4x6xf32>
    %164 = vector.extract_strided_slice %0 {offsets = [0, 2, 1], sizes = [16, 4, 6], strides = [1, 1, 1]} : vector<16x6x10xf32> to vector<16x4x6xf32>
    %c26 = arith.constant 26 : index
    %165 = memref.load %arg1[%c26] : memref<45xf32, #tpu.memory_space<smem>>
    %166 = vector.broadcast %165 : f32 to vector<16x4x6xf32>
    %167 = arith.mulf %164, %166 : vector<16x4x6xf32>
    %168 = arith.addf %163, %167 : vector<16x4x6xf32>
    %169 = vector.extract_strided_slice %0 {offsets = [0, 2, 2], sizes = [16, 4, 6], strides = [1, 1, 1]} : vector<16x6x10xf32> to vector<16x4x6xf32>
    %c27 = arith.constant 27 : index
    %170 = memref.load %arg1[%c27] : memref<45xf32, #tpu.memory_space<smem>>
    %171 = vector.broadcast %170 : f32 to vector<16x4x6xf32>
    %172 = arith.mulf %169, %171 : vector<16x4x6xf32>
    %173 = arith.addf %168, %172 : vector<16x4x6xf32>
    %174 = vector.extract_strided_slice %0 {offsets = [0, 2, 3], sizes = [16, 4, 6], strides = [1, 1, 1]} : vector<16x6x10xf32> to vector<16x4x6xf32>
    %c28 = arith.constant 28 : index
    %175 = memref.load %arg1[%c28] : memref<45xf32, #tpu.memory_space<smem>>
    %176 = vector.broadcast %175 : f32 to vector<16x4x6xf32>
    %177 = arith.mulf %174, %176 : vector<16x4x6xf32>
    %178 = arith.addf %173, %177 : vector<16x4x6xf32>
    %179 = vector.extract_strided_slice %0 {offsets = [0, 2, 4], sizes = [16, 4, 6], strides = [1, 1, 1]} : vector<16x6x10xf32> to vector<16x4x6xf32>
    %c29 = arith.constant 29 : index
    %180 = memref.load %arg1[%c29] : memref<45xf32, #tpu.memory_space<smem>>
    %181 = vector.broadcast %180 : f32 to vector<16x4x6xf32>
    %182 = arith.mulf %179, %181 : vector<16x4x6xf32>
    %183 = arith.addf %178, %182 : vector<16x4x6xf32>
    %c1_5 = arith.constant 1 : index
    %184 = memref.load %arg2[%c1_5] : memref<3xf32, #tpu.memory_space<smem>>
    %185 = vector.broadcast %184 : f32 to vector<16x4x6xf32>
    %186 = arith.addf %183, %185 : vector<16x4x6xf32>
    %187 = vector.extract_strided_slice %186 {offsets = [0, 0, 0], sizes = [16, 1, 6], strides = [1, 1, 1]} : vector<16x4x6xf32> to vector<16x1x6xf32>
    %188 = vector.shape_cast %187 : vector<16x1x6xf32> to vector<16x6xf32>
    %189 = vector.extract_strided_slice %186 {offsets = [0, 1, 0], sizes = [16, 1, 6], strides = [1, 1, 1]} : vector<16x4x6xf32> to vector<16x1x6xf32>
    %190 = vector.shape_cast %189 : vector<16x1x6xf32> to vector<16x6xf32>
    %191 = arith.maximumf %188, %190 : vector<16x6xf32>
    %192 = vector.extract_strided_slice %191 {offsets = [0, 0], sizes = [16, 1], strides = [1, 1]} : vector<16x6xf32> to vector<16x1xf32>
    %193 = vector.extract_strided_slice %191 {offsets = [0, 1], sizes = [16, 1], strides = [1, 1]} : vector<16x6xf32> to vector<16x1xf32>
    %194 = arith.maximumf %192, %193 : vector<16x1xf32>
    %195 = vector.extract_strided_slice %191 {offsets = [0, 2], sizes = [16, 1], strides = [1, 1]} : vector<16x6xf32> to vector<16x1xf32>
    %196 = vector.extract_strided_slice %191 {offsets = [0, 3], sizes = [16, 1], strides = [1, 1]} : vector<16x6xf32> to vector<16x1xf32>
    %197 = arith.maximumf %195, %196 : vector<16x1xf32>
    %198 = vector.extract_strided_slice %191 {offsets = [0, 4], sizes = [16, 1], strides = [1, 1]} : vector<16x6xf32> to vector<16x1xf32>
    %199 = vector.extract_strided_slice %191 {offsets = [0, 5], sizes = [16, 1], strides = [1, 1]} : vector<16x6xf32> to vector<16x1xf32>
    %200 = arith.maximumf %198, %199 : vector<16x1xf32>
    %201 = vector.extract_strided_slice %186 {offsets = [0, 2, 0], sizes = [16, 1, 6], strides = [1, 1, 1]} : vector<16x4x6xf32> to vector<16x1x6xf32>
    %202 = vector.shape_cast %201 : vector<16x1x6xf32> to vector<16x6xf32>
    %203 = vector.extract_strided_slice %186 {offsets = [0, 3, 0], sizes = [16, 1, 6], strides = [1, 1, 1]} : vector<16x4x6xf32> to vector<16x1x6xf32>
    %204 = vector.shape_cast %203 : vector<16x1x6xf32> to vector<16x6xf32>
    %205 = arith.maximumf %202, %204 : vector<16x6xf32>
    %206 = vector.extract_strided_slice %205 {offsets = [0, 0], sizes = [16, 1], strides = [1, 1]} : vector<16x6xf32> to vector<16x1xf32>
    %207 = vector.extract_strided_slice %205 {offsets = [0, 1], sizes = [16, 1], strides = [1, 1]} : vector<16x6xf32> to vector<16x1xf32>
    %208 = arith.maximumf %206, %207 : vector<16x1xf32>
    %209 = vector.extract_strided_slice %205 {offsets = [0, 2], sizes = [16, 1], strides = [1, 1]} : vector<16x6xf32> to vector<16x1xf32>
    %210 = vector.extract_strided_slice %205 {offsets = [0, 3], sizes = [16, 1], strides = [1, 1]} : vector<16x6xf32> to vector<16x1xf32>
    %211 = arith.maximumf %209, %210 : vector<16x1xf32>
    %212 = vector.extract_strided_slice %205 {offsets = [0, 4], sizes = [16, 1], strides = [1, 1]} : vector<16x6xf32> to vector<16x1xf32>
    %213 = vector.extract_strided_slice %205 {offsets = [0, 5], sizes = [16, 1], strides = [1, 1]} : vector<16x6xf32> to vector<16x1xf32>
    %214 = arith.maximumf %212, %213 : vector<16x1xf32>
    %cst_6 = arith.constant 0.000000e+00 : f32
    %215 = vector.broadcast %cst_6 : f32 to vector<16x4x6xf32>
    %216 = vector.extract_strided_slice %0 {offsets = [0, 0, 0], sizes = [16, 4, 6], strides = [1, 1, 1]} : vector<16x6x10xf32> to vector<16x4x6xf32>
    %c30 = arith.constant 30 : index
    %217 = memref.load %arg1[%c30] : memref<45xf32, #tpu.memory_space<smem>>
    %218 = vector.broadcast %217 : f32 to vector<16x4x6xf32>
    %219 = arith.mulf %216, %218 : vector<16x4x6xf32>
    %220 = arith.addf %215, %219 : vector<16x4x6xf32>
    %221 = vector.extract_strided_slice %0 {offsets = [0, 0, 1], sizes = [16, 4, 6], strides = [1, 1, 1]} : vector<16x6x10xf32> to vector<16x4x6xf32>
    %c31 = arith.constant 31 : index
    %222 = memref.load %arg1[%c31] : memref<45xf32, #tpu.memory_space<smem>>
    %223 = vector.broadcast %222 : f32 to vector<16x4x6xf32>
    %224 = arith.mulf %221, %223 : vector<16x4x6xf32>
    %225 = arith.addf %220, %224 : vector<16x4x6xf32>
    %226 = vector.extract_strided_slice %0 {offsets = [0, 0, 2], sizes = [16, 4, 6], strides = [1, 1, 1]} : vector<16x6x10xf32> to vector<16x4x6xf32>
    %c32 = arith.constant 32 : index
    %227 = memref.load %arg1[%c32] : memref<45xf32, #tpu.memory_space<smem>>
    %228 = vector.broadcast %227 : f32 to vector<16x4x6xf32>
    %229 = arith.mulf %226, %228 : vector<16x4x6xf32>
    %230 = arith.addf %225, %229 : vector<16x4x6xf32>
    %231 = vector.extract_strided_slice %0 {offsets = [0, 0, 3], sizes = [16, 4, 6], strides = [1, 1, 1]} : vector<16x6x10xf32> to vector<16x4x6xf32>
    %c33 = arith.constant 33 : index
    %232 = memref.load %arg1[%c33] : memref<45xf32, #tpu.memory_space<smem>>
    %233 = vector.broadcast %232 : f32 to vector<16x4x6xf32>
    %234 = arith.mulf %231, %233 : vector<16x4x6xf32>
    %235 = arith.addf %230, %234 : vector<16x4x6xf32>
    %236 = vector.extract_strided_slice %0 {offsets = [0, 0, 4], sizes = [16, 4, 6], strides = [1, 1, 1]} : vector<16x6x10xf32> to vector<16x4x6xf32>
    %c34 = arith.constant 34 : index
    %237 = memref.load %arg1[%c34] : memref<45xf32, #tpu.memory_space<smem>>
    %238 = vector.broadcast %237 : f32 to vector<16x4x6xf32>
    %239 = arith.mulf %236, %238 : vector<16x4x6xf32>
    %240 = arith.addf %235, %239 : vector<16x4x6xf32>
    %241 = vector.extract_strided_slice %0 {offsets = [0, 1, 0], sizes = [16, 4, 6], strides = [1, 1, 1]} : vector<16x6x10xf32> to vector<16x4x6xf32>
    %c35 = arith.constant 35 : index
    %242 = memref.load %arg1[%c35] : memref<45xf32, #tpu.memory_space<smem>>
    %243 = vector.broadcast %242 : f32 to vector<16x4x6xf32>
    %244 = arith.mulf %241, %243 : vector<16x4x6xf32>
    %245 = arith.addf %240, %244 : vector<16x4x6xf32>
    %246 = vector.extract_strided_slice %0 {offsets = [0, 1, 1], sizes = [16, 4, 6], strides = [1, 1, 1]} : vector<16x6x10xf32> to vector<16x4x6xf32>
    %c36 = arith.constant 36 : index
    %247 = memref.load %arg1[%c36] : memref<45xf32, #tpu.memory_space<smem>>
    %248 = vector.broadcast %247 : f32 to vector<16x4x6xf32>
    %249 = arith.mulf %246, %248 : vector<16x4x6xf32>
    %250 = arith.addf %245, %249 : vector<16x4x6xf32>
    %251 = vector.extract_strided_slice %0 {offsets = [0, 1, 2], sizes = [16, 4, 6], strides = [1, 1, 1]} : vector<16x6x10xf32> to vector<16x4x6xf32>
    %c37 = arith.constant 37 : index
    %252 = memref.load %arg1[%c37] : memref<45xf32, #tpu.memory_space<smem>>
    %253 = vector.broadcast %252 : f32 to vector<16x4x6xf32>
    %254 = arith.mulf %251, %253 : vector<16x4x6xf32>
    %255 = arith.addf %250, %254 : vector<16x4x6xf32>
    %256 = vector.extract_strided_slice %0 {offsets = [0, 1, 3], sizes = [16, 4, 6], strides = [1, 1, 1]} : vector<16x6x10xf32> to vector<16x4x6xf32>
    %c38 = arith.constant 38 : index
    %257 = memref.load %arg1[%c38] : memref<45xf32, #tpu.memory_space<smem>>
    %258 = vector.broadcast %257 : f32 to vector<16x4x6xf32>
    %259 = arith.mulf %256, %258 : vector<16x4x6xf32>
    %260 = arith.addf %255, %259 : vector<16x4x6xf32>
    %261 = vector.extract_strided_slice %0 {offsets = [0, 1, 4], sizes = [16, 4, 6], strides = [1, 1, 1]} : vector<16x6x10xf32> to vector<16x4x6xf32>
    %c39 = arith.constant 39 : index
    %262 = memref.load %arg1[%c39] : memref<45xf32, #tpu.memory_space<smem>>
    %263 = vector.broadcast %262 : f32 to vector<16x4x6xf32>
    %264 = arith.mulf %261, %263 : vector<16x4x6xf32>
    %265 = arith.addf %260, %264 : vector<16x4x6xf32>
    %266 = vector.extract_strided_slice %0 {offsets = [0, 2, 0], sizes = [16, 4, 6], strides = [1, 1, 1]} : vector<16x6x10xf32> to vector<16x4x6xf32>
    %c40 = arith.constant 40 : index
    %267 = memref.load %arg1[%c40] : memref<45xf32, #tpu.memory_space<smem>>
    %268 = vector.broadcast %267 : f32 to vector<16x4x6xf32>
    %269 = arith.mulf %266, %268 : vector<16x4x6xf32>
    %270 = arith.addf %265, %269 : vector<16x4x6xf32>
    %271 = vector.extract_strided_slice %0 {offsets = [0, 2, 1], sizes = [16, 4, 6], strides = [1, 1, 1]} : vector<16x6x10xf32> to vector<16x4x6xf32>
    %c41 = arith.constant 41 : index
    %272 = memref.load %arg1[%c41] : memref<45xf32, #tpu.memory_space<smem>>
    %273 = vector.broadcast %272 : f32 to vector<16x4x6xf32>
    %274 = arith.mulf %271, %273 : vector<16x4x6xf32>
    %275 = arith.addf %270, %274 : vector<16x4x6xf32>
    %276 = vector.extract_strided_slice %0 {offsets = [0, 2, 2], sizes = [16, 4, 6], strides = [1, 1, 1]} : vector<16x6x10xf32> to vector<16x4x6xf32>
    %c42 = arith.constant 42 : index
    %277 = memref.load %arg1[%c42] : memref<45xf32, #tpu.memory_space<smem>>
    %278 = vector.broadcast %277 : f32 to vector<16x4x6xf32>
    %279 = arith.mulf %276, %278 : vector<16x4x6xf32>
    %280 = arith.addf %275, %279 : vector<16x4x6xf32>
    %281 = vector.extract_strided_slice %0 {offsets = [0, 2, 3], sizes = [16, 4, 6], strides = [1, 1, 1]} : vector<16x6x10xf32> to vector<16x4x6xf32>
    %c43 = arith.constant 43 : index
    %282 = memref.load %arg1[%c43] : memref<45xf32, #tpu.memory_space<smem>>
    %283 = vector.broadcast %282 : f32 to vector<16x4x6xf32>
    %284 = arith.mulf %281, %283 : vector<16x4x6xf32>
    %285 = arith.addf %280, %284 : vector<16x4x6xf32>
    %286 = vector.extract_strided_slice %0 {offsets = [0, 2, 4], sizes = [16, 4, 6], strides = [1, 1, 1]} : vector<16x6x10xf32> to vector<16x4x6xf32>
    %c44 = arith.constant 44 : index
    %287 = memref.load %arg1[%c44] : memref<45xf32, #tpu.memory_space<smem>>
    %288 = vector.broadcast %287 : f32 to vector<16x4x6xf32>
    %289 = arith.mulf %286, %288 : vector<16x4x6xf32>
    %290 = arith.addf %285, %289 : vector<16x4x6xf32>
    %c2_7 = arith.constant 2 : index
    %291 = memref.load %arg2[%c2_7] : memref<3xf32, #tpu.memory_space<smem>>
    %292 = vector.broadcast %291 : f32 to vector<16x4x6xf32>
    %293 = arith.addf %290, %292 : vector<16x4x6xf32>
    %294 = vector.extract_strided_slice %293 {offsets = [0, 0, 0], sizes = [16, 1, 6], strides = [1, 1, 1]} : vector<16x4x6xf32> to vector<16x1x6xf32>
    %295 = vector.shape_cast %294 : vector<16x1x6xf32> to vector<16x6xf32>
    %296 = vector.extract_strided_slice %293 {offsets = [0, 1, 0], sizes = [16, 1, 6], strides = [1, 1, 1]} : vector<16x4x6xf32> to vector<16x1x6xf32>
    %297 = vector.shape_cast %296 : vector<16x1x6xf32> to vector<16x6xf32>
    %298 = arith.maximumf %295, %297 : vector<16x6xf32>
    %299 = vector.extract_strided_slice %298 {offsets = [0, 0], sizes = [16, 1], strides = [1, 1]} : vector<16x6xf32> to vector<16x1xf32>
    %300 = vector.extract_strided_slice %298 {offsets = [0, 1], sizes = [16, 1], strides = [1, 1]} : vector<16x6xf32> to vector<16x1xf32>
    %301 = arith.maximumf %299, %300 : vector<16x1xf32>
    %302 = vector.extract_strided_slice %298 {offsets = [0, 2], sizes = [16, 1], strides = [1, 1]} : vector<16x6xf32> to vector<16x1xf32>
    %303 = vector.extract_strided_slice %298 {offsets = [0, 3], sizes = [16, 1], strides = [1, 1]} : vector<16x6xf32> to vector<16x1xf32>
    %304 = arith.maximumf %302, %303 : vector<16x1xf32>
    %305 = vector.extract_strided_slice %298 {offsets = [0, 4], sizes = [16, 1], strides = [1, 1]} : vector<16x6xf32> to vector<16x1xf32>
    %306 = vector.extract_strided_slice %298 {offsets = [0, 5], sizes = [16, 1], strides = [1, 1]} : vector<16x6xf32> to vector<16x1xf32>
    %307 = arith.maximumf %305, %306 : vector<16x1xf32>
    %308 = vector.extract_strided_slice %293 {offsets = [0, 2, 0], sizes = [16, 1, 6], strides = [1, 1, 1]} : vector<16x4x6xf32> to vector<16x1x6xf32>
    %309 = vector.shape_cast %308 : vector<16x1x6xf32> to vector<16x6xf32>
    %310 = vector.extract_strided_slice %293 {offsets = [0, 3, 0], sizes = [16, 1, 6], strides = [1, 1, 1]} : vector<16x4x6xf32> to vector<16x1x6xf32>
    %311 = vector.shape_cast %310 : vector<16x1x6xf32> to vector<16x6xf32>
    %312 = arith.maximumf %309, %311 : vector<16x6xf32>
    %313 = vector.extract_strided_slice %312 {offsets = [0, 0], sizes = [16, 1], strides = [1, 1]} : vector<16x6xf32> to vector<16x1xf32>
    %314 = vector.extract_strided_slice %312 {offsets = [0, 1], sizes = [16, 1], strides = [1, 1]} : vector<16x6xf32> to vector<16x1xf32>
    %315 = arith.maximumf %313, %314 : vector<16x1xf32>
    %316 = vector.extract_strided_slice %312 {offsets = [0, 2], sizes = [16, 1], strides = [1, 1]} : vector<16x6xf32> to vector<16x1xf32>
    %317 = vector.extract_strided_slice %312 {offsets = [0, 3], sizes = [16, 1], strides = [1, 1]} : vector<16x6xf32> to vector<16x1xf32>
    %318 = arith.maximumf %316, %317 : vector<16x1xf32>
    %319 = vector.extract_strided_slice %312 {offsets = [0, 4], sizes = [16, 1], strides = [1, 1]} : vector<16x6xf32> to vector<16x1xf32>
    %320 = vector.extract_strided_slice %312 {offsets = [0, 5], sizes = [16, 1], strides = [1, 1]} : vector<16x6xf32> to vector<16x1xf32>
    %321 = arith.maximumf %319, %320 : vector<16x1xf32>
    %322 = tpu.concatenate %87, %90, %93, %101, %104, %107, %194, %197, %200, %208, %211, %214, %301, %304, %307, %315 in 1 : vector<16x1xf32>, vector<16x1xf32>, vector<16x1xf32>, vector<16x1xf32>, vector<16x1xf32>, vector<16x1xf32>, vector<16x1xf32>, vector<16x1xf32>, vector<16x1xf32>, vector<16x1xf32>, vector<16x1xf32>, vector<16x1xf32>, vector<16x1xf32>, vector<16x1xf32>, vector<16x1xf32>, vector<16x1xf32> -> vector<16x16xf32>
    %323 = tpu.concatenate %318, %321 in 1 : vector<16x1xf32>, vector<16x1xf32> -> vector<16x2xf32>
    %324 = tpu.concatenate %322, %323 in 1 : vector<16x16xf32>, vector<16x2xf32> -> vector<16x18xf32>
    %cst_8 = arith.constant 0.000000e+00 : f32
    %325 = vector.broadcast %cst_8 : f32 to vector<16x18xf32>
    %326 = arith.maximumf %324, %325 : vector<16x18xf32>
    %c0_9 = arith.constant 0 : index
    %c0_10 = arith.constant 0 : index
    %327 = vector.load %arg3[%c0_9, %c0_10] : memref<18x512xf32, #tpu.memory_space<vmem>>, vector<18x512xf32>
    %cst_11 = arith.constant dense<0.000000e+00> : vector<16x512xf32>
    %328 = tpu.matmul %326, %327, %cst_11 {dimension_numbers = #tpu.dot_dimension_numbers<[1], [0], [0], [1], [0, 0, 1, 1], [], []>} : vector<16x18xf32>, vector<18x512xf32>, vector<16x512xf32> -> vector<16x512xf32>
    %c0_12 = arith.constant 0 : index
    %c0_13 = arith.constant 0 : index
    %329 = vector.load %arg5[%c0_12, %c0_13] : memref<1x512xf32, #tpu.memory_space<vmem>>, vector<1x512xf32>
    %330 = vector.broadcast %329 : vector<1x512xf32> to vector<16x512xf32>
    %331 = arith.addf %328, %330 : vector<16x512xf32>
    %c0_14 = arith.constant 0 : index
    %c0_15 = arith.constant 0 : index
    %332 = vector.load %arg4[%c0_14, %c0_15] : memref<128x512xf32, #tpu.memory_space<vmem>>, vector<128x512xf32>
    %c0_16 = arith.constant 0 : index
    %c0_17 = arith.constant 0 : index
    %333 = vector.load %arg6[%c0_16, %c0_17] : memref<256x512xf32, #tpu.memory_space<vmem>>, vector<256x512xf32>
    %c0_18 = arith.constant 0 : index
    %c0_19 = arith.constant 0 : index
    %334 = vector.load %arg7[%c0_18, %c0_19] : memref<1x512xf32, #tpu.memory_space<vmem>>, vector<1x512xf32>
    %c0_20 = arith.constant 0 : index
    %c0_21 = arith.constant 0 : index
    %c0_22 = arith.constant 0 : index
    %335 = vector.load %arg8[%c0_20, %c0_21, %c0_22] : memref<2x2x128xf32, #tpu.memory_space<vmem>>, vector<1x2x128xf32>
    %336 = vector.shape_cast %335 : vector<1x2x128xf32> to vector<2x128xf32>
    %c0_23 = arith.constant 0 : index
    %c0_24 = arith.constant 0 : index
    %c0_25 = arith.constant 0 : index
    %337 = vector.load %arg9[%c0_23, %c0_24, %c0_25] : memref<2x2x128xf32, #tpu.memory_space<vmem>>, vector<1x2x128xf32>
    %338 = vector.shape_cast %337 : vector<1x2x128xf32> to vector<2x128xf32>
    %c1_26 = arith.constant 1 : index
    %c0_27 = arith.constant 0 : index
    %c0_28 = arith.constant 0 : index
    %339 = vector.load %arg8[%c1_26, %c0_27, %c0_28] : memref<2x2x128xf32, #tpu.memory_space<vmem>>, vector<1x2x128xf32>
    %340 = vector.shape_cast %339 : vector<1x2x128xf32> to vector<2x128xf32>
    %c1_29 = arith.constant 1 : index
    %c0_30 = arith.constant 0 : index
    %c0_31 = arith.constant 0 : index
    %341 = vector.load %arg9[%c1_29, %c0_30, %c0_31] : memref<2x2x128xf32, #tpu.memory_space<vmem>>, vector<1x2x128xf32>
    %342 = vector.shape_cast %341 : vector<1x2x128xf32> to vector<2x128xf32>
    %343 = vector.extract_strided_slice %331 {offsets = [0, 0], sizes = [2, 512], strides = [1, 1]} : vector<16x512xf32> to vector<2x512xf32>
    %cst_32 = arith.constant dense<0.000000e+00> : vector<2x512xf32>
    %344 = tpu.matmul %336, %332, %cst_32 {dimension_numbers = #tpu.dot_dimension_numbers<[1], [0], [0], [1], [0, 0, 1, 1], [], []>} : vector<2x128xf32>, vector<128x512xf32>, vector<2x512xf32> -> vector<2x512xf32>
    %345 = arith.addf %343, %344 : vector<2x512xf32>
    %346 = vector.extract_strided_slice %345 {offsets = [0, 0], sizes = [2, 128], strides = [1, 1]} : vector<2x512xf32> to vector<2x128xf32>
    %347 = arith.negf %346 : vector<2x128xf32>
    %348 = math.exp %347 : vector<2x128xf32>
    %cst_33 = arith.constant 1.000000e+00 : f32
    %349 = vector.broadcast %cst_33 : f32 to vector<2x128xf32>
    %350 = arith.addf %349, %348 : vector<2x128xf32>
    %351 = arith.divf %349, %350 : vector<2x128xf32>
    %352 = vector.extract_strided_slice %345 {offsets = [0, 128], sizes = [2, 128], strides = [1, 1]} : vector<2x512xf32> to vector<2x128xf32>
    %353 = arith.negf %352 : vector<2x128xf32>
    %354 = math.exp %353 : vector<2x128xf32>
    %cst_34 = arith.constant 1.000000e+00 : f32
    %355 = vector.broadcast %cst_34 : f32 to vector<2x128xf32>
    %356 = arith.addf %355, %354 : vector<2x128xf32>
    %357 = arith.divf %355, %356 : vector<2x128xf32>
    %358 = vector.extract_strided_slice %345 {offsets = [0, 256], sizes = [2, 128], strides = [1, 1]} : vector<2x512xf32> to vector<2x128xf32>
    %359 = math.tanh %358 : vector<2x128xf32>
    %360 = vector.extract_strided_slice %345 {offsets = [0, 384], sizes = [2, 128], strides = [1, 1]} : vector<2x512xf32> to vector<2x128xf32>
    %361 = arith.negf %360 : vector<2x128xf32>
    %362 = math.exp %361 : vector<2x128xf32>
    %cst_35 = arith.constant 1.000000e+00 : f32
    %363 = vector.broadcast %cst_35 : f32 to vector<2x128xf32>
    %364 = arith.addf %363, %362 : vector<2x128xf32>
    %365 = arith.divf %363, %364 : vector<2x128xf32>
    %366 = arith.mulf %357, %338 : vector<2x128xf32>
    %367 = arith.mulf %351, %359 : vector<2x128xf32>
    %368 = arith.addf %366, %367 : vector<2x128xf32>
    %369 = math.tanh %368 : vector<2x128xf32>
    %370 = arith.mulf %365, %369 : vector<2x128xf32>
    %371 = tpu.concatenate %370, %340 in 1 : vector<2x128xf32>, vector<2x128xf32> -> vector<2x256xf32>
    %cst_36 = arith.constant dense<0.000000e+00> : vector<2x512xf32>
    %372 = tpu.matmul %371, %333, %cst_36 {dimension_numbers = #tpu.dot_dimension_numbers<[1], [0], [0], [1], [0, 0, 1, 1], [], []>} : vector<2x256xf32>, vector<256x512xf32>, vector<2x512xf32> -> vector<2x512xf32>
    %373 = vector.broadcast %334 : vector<1x512xf32> to vector<2x512xf32>
    %374 = arith.addf %372, %373 : vector<2x512xf32>
    %375 = vector.extract_strided_slice %374 {offsets = [0, 0], sizes = [2, 128], strides = [1, 1]} : vector<2x512xf32> to vector<2x128xf32>
    %376 = arith.negf %375 : vector<2x128xf32>
    %377 = math.exp %376 : vector<2x128xf32>
    %cst_37 = arith.constant 1.000000e+00 : f32
    %378 = vector.broadcast %cst_37 : f32 to vector<2x128xf32>
    %379 = arith.addf %378, %377 : vector<2x128xf32>
    %380 = arith.divf %378, %379 : vector<2x128xf32>
    %381 = vector.extract_strided_slice %374 {offsets = [0, 128], sizes = [2, 128], strides = [1, 1]} : vector<2x512xf32> to vector<2x128xf32>
    %382 = arith.negf %381 : vector<2x128xf32>
    %383 = math.exp %382 : vector<2x128xf32>
    %cst_38 = arith.constant 1.000000e+00 : f32
    %384 = vector.broadcast %cst_38 : f32 to vector<2x128xf32>
    %385 = arith.addf %384, %383 : vector<2x128xf32>
    %386 = arith.divf %384, %385 : vector<2x128xf32>
    %387 = vector.extract_strided_slice %374 {offsets = [0, 256], sizes = [2, 128], strides = [1, 1]} : vector<2x512xf32> to vector<2x128xf32>
    %388 = math.tanh %387 : vector<2x128xf32>
    %389 = vector.extract_strided_slice %374 {offsets = [0, 384], sizes = [2, 128], strides = [1, 1]} : vector<2x512xf32> to vector<2x128xf32>
    %390 = arith.negf %389 : vector<2x128xf32>
    %391 = math.exp %390 : vector<2x128xf32>
    %cst_39 = arith.constant 1.000000e+00 : f32
    %392 = vector.broadcast %cst_39 : f32 to vector<2x128xf32>
    %393 = arith.addf %392, %391 : vector<2x128xf32>
    %394 = arith.divf %392, %393 : vector<2x128xf32>
    %395 = arith.mulf %386, %342 : vector<2x128xf32>
    %396 = arith.mulf %380, %388 : vector<2x128xf32>
    %397 = arith.addf %395, %396 : vector<2x128xf32>
    %398 = math.tanh %397 : vector<2x128xf32>
    %399 = arith.mulf %394, %398 : vector<2x128xf32>
    %400 = vector.extract_strided_slice %331 {offsets = [2, 0], sizes = [2, 512], strides = [1, 1]} : vector<16x512xf32> to vector<2x512xf32>
    %cst_40 = arith.constant dense<0.000000e+00> : vector<2x512xf32>
    %401 = tpu.matmul %370, %332, %cst_40 {dimension_numbers = #tpu.dot_dimension_numbers<[1], [0], [0], [1], [0, 0, 1, 1], [], []>} : vector<2x128xf32>, vector<128x512xf32>, vector<2x512xf32> -> vector<2x512xf32>
    %402 = arith.addf %400, %401 : vector<2x512xf32>
    %403 = vector.extract_strided_slice %402 {offsets = [0, 0], sizes = [2, 128], strides = [1, 1]} : vector<2x512xf32> to vector<2x128xf32>
    %404 = arith.negf %403 : vector<2x128xf32>
    %405 = math.exp %404 : vector<2x128xf32>
    %cst_41 = arith.constant 1.000000e+00 : f32
    %406 = vector.broadcast %cst_41 : f32 to vector<2x128xf32>
    %407 = arith.addf %406, %405 : vector<2x128xf32>
    %408 = arith.divf %406, %407 : vector<2x128xf32>
    %409 = vector.extract_strided_slice %402 {offsets = [0, 128], sizes = [2, 128], strides = [1, 1]} : vector<2x512xf32> to vector<2x128xf32>
    %410 = arith.negf %409 : vector<2x128xf32>
    %411 = math.exp %410 : vector<2x128xf32>
    %cst_42 = arith.constant 1.000000e+00 : f32
    %412 = vector.broadcast %cst_42 : f32 to vector<2x128xf32>
    %413 = arith.addf %412, %411 : vector<2x128xf32>
    %414 = arith.divf %412, %413 : vector<2x128xf32>
    %415 = vector.extract_strided_slice %402 {offsets = [0, 256], sizes = [2, 128], strides = [1, 1]} : vector<2x512xf32> to vector<2x128xf32>
    %416 = math.tanh %415 : vector<2x128xf32>
    %417 = vector.extract_strided_slice %402 {offsets = [0, 384], sizes = [2, 128], strides = [1, 1]} : vector<2x512xf32> to vector<2x128xf32>
    %418 = arith.negf %417 : vector<2x128xf32>
    %419 = math.exp %418 : vector<2x128xf32>
    %cst_43 = arith.constant 1.000000e+00 : f32
    %420 = vector.broadcast %cst_43 : f32 to vector<2x128xf32>
    %421 = arith.addf %420, %419 : vector<2x128xf32>
    %422 = arith.divf %420, %421 : vector<2x128xf32>
    %423 = arith.mulf %414, %368 : vector<2x128xf32>
    %424 = arith.mulf %408, %416 : vector<2x128xf32>
    %425 = arith.addf %423, %424 : vector<2x128xf32>
    %426 = math.tanh %425 : vector<2x128xf32>
    %427 = arith.mulf %422, %426 : vector<2x128xf32>
    %428 = tpu.concatenate %427, %399 in 1 : vector<2x128xf32>, vector<2x128xf32> -> vector<2x256xf32>
    %cst_44 = arith.constant dense<0.000000e+00> : vector<2x512xf32>
    %429 = tpu.matmul %428, %333, %cst_44 {dimension_numbers = #tpu.dot_dimension_numbers<[1], [0], [0], [1], [0, 0, 1, 1], [], []>} : vector<2x256xf32>, vector<256x512xf32>, vector<2x512xf32> -> vector<2x512xf32>
    %430 = vector.broadcast %334 : vector<1x512xf32> to vector<2x512xf32>
    %431 = arith.addf %429, %430 : vector<2x512xf32>
    %432 = vector.extract_strided_slice %431 {offsets = [0, 0], sizes = [2, 128], strides = [1, 1]} : vector<2x512xf32> to vector<2x128xf32>
    %433 = arith.negf %432 : vector<2x128xf32>
    %434 = math.exp %433 : vector<2x128xf32>
    %cst_45 = arith.constant 1.000000e+00 : f32
    %435 = vector.broadcast %cst_45 : f32 to vector<2x128xf32>
    %436 = arith.addf %435, %434 : vector<2x128xf32>
    %437 = arith.divf %435, %436 : vector<2x128xf32>
    %438 = vector.extract_strided_slice %431 {offsets = [0, 128], sizes = [2, 128], strides = [1, 1]} : vector<2x512xf32> to vector<2x128xf32>
    %439 = arith.negf %438 : vector<2x128xf32>
    %440 = math.exp %439 : vector<2x128xf32>
    %cst_46 = arith.constant 1.000000e+00 : f32
    %441 = vector.broadcast %cst_46 : f32 to vector<2x128xf32>
    %442 = arith.addf %441, %440 : vector<2x128xf32>
    %443 = arith.divf %441, %442 : vector<2x128xf32>
    %444 = vector.extract_strided_slice %431 {offsets = [0, 256], sizes = [2, 128], strides = [1, 1]} : vector<2x512xf32> to vector<2x128xf32>
    %445 = math.tanh %444 : vector<2x128xf32>
    %446 = vector.extract_strided_slice %431 {offsets = [0, 384], sizes = [2, 128], strides = [1, 1]} : vector<2x512xf32> to vector<2x128xf32>
    %447 = arith.negf %446 : vector<2x128xf32>
    %448 = math.exp %447 : vector<2x128xf32>
    %cst_47 = arith.constant 1.000000e+00 : f32
    %449 = vector.broadcast %cst_47 : f32 to vector<2x128xf32>
    %450 = arith.addf %449, %448 : vector<2x128xf32>
    %451 = arith.divf %449, %450 : vector<2x128xf32>
    %452 = arith.mulf %443, %397 : vector<2x128xf32>
    %453 = arith.mulf %437, %445 : vector<2x128xf32>
    %454 = arith.addf %452, %453 : vector<2x128xf32>
    %455 = math.tanh %454 : vector<2x128xf32>
    %456 = arith.mulf %451, %455 : vector<2x128xf32>
    %457 = vector.extract_strided_slice %331 {offsets = [4, 0], sizes = [2, 512], strides = [1, 1]} : vector<16x512xf32> to vector<2x512xf32>
    %cst_48 = arith.constant dense<0.000000e+00> : vector<2x512xf32>
    %458 = tpu.matmul %427, %332, %cst_48 {dimension_numbers = #tpu.dot_dimension_numbers<[1], [0], [0], [1], [0, 0, 1, 1], [], []>} : vector<2x128xf32>, vector<128x512xf32>, vector<2x512xf32> -> vector<2x512xf32>
    %459 = arith.addf %457, %458 : vector<2x512xf32>
    %460 = vector.extract_strided_slice %459 {offsets = [0, 0], sizes = [2, 128], strides = [1, 1]} : vector<2x512xf32> to vector<2x128xf32>
    %461 = arith.negf %460 : vector<2x128xf32>
    %462 = math.exp %461 : vector<2x128xf32>
    %cst_49 = arith.constant 1.000000e+00 : f32
    %463 = vector.broadcast %cst_49 : f32 to vector<2x128xf32>
    %464 = arith.addf %463, %462 : vector<2x128xf32>
    %465 = arith.divf %463, %464 : vector<2x128xf32>
    %466 = vector.extract_strided_slice %459 {offsets = [0, 128], sizes = [2, 128], strides = [1, 1]} : vector<2x512xf32> to vector<2x128xf32>
    %467 = arith.negf %466 : vector<2x128xf32>
    %468 = math.exp %467 : vector<2x128xf32>
    %cst_50 = arith.constant 1.000000e+00 : f32
    %469 = vector.broadcast %cst_50 : f32 to vector<2x128xf32>
    %470 = arith.addf %469, %468 : vector<2x128xf32>
    %471 = arith.divf %469, %470 : vector<2x128xf32>
    %472 = vector.extract_strided_slice %459 {offsets = [0, 256], sizes = [2, 128], strides = [1, 1]} : vector<2x512xf32> to vector<2x128xf32>
    %473 = math.tanh %472 : vector<2x128xf32>
    %474 = vector.extract_strided_slice %459 {offsets = [0, 384], sizes = [2, 128], strides = [1, 1]} : vector<2x512xf32> to vector<2x128xf32>
    %475 = arith.negf %474 : vector<2x128xf32>
    %476 = math.exp %475 : vector<2x128xf32>
    %cst_51 = arith.constant 1.000000e+00 : f32
    %477 = vector.broadcast %cst_51 : f32 to vector<2x128xf32>
    %478 = arith.addf %477, %476 : vector<2x128xf32>
    %479 = arith.divf %477, %478 : vector<2x128xf32>
    %480 = arith.mulf %471, %425 : vector<2x128xf32>
    %481 = arith.mulf %465, %473 : vector<2x128xf32>
    %482 = arith.addf %480, %481 : vector<2x128xf32>
    %483 = math.tanh %482 : vector<2x128xf32>
    %484 = arith.mulf %479, %483 : vector<2x128xf32>
    %485 = tpu.concatenate %484, %456 in 1 : vector<2x128xf32>, vector<2x128xf32> -> vector<2x256xf32>
    %cst_52 = arith.constant dense<0.000000e+00> : vector<2x512xf32>
    %486 = tpu.matmul %485, %333, %cst_52 {dimension_numbers = #tpu.dot_dimension_numbers<[1], [0], [0], [1], [0, 0, 1, 1], [], []>} : vector<2x256xf32>, vector<256x512xf32>, vector<2x512xf32> -> vector<2x512xf32>
    %487 = vector.broadcast %334 : vector<1x512xf32> to vector<2x512xf32>
    %488 = arith.addf %486, %487 : vector<2x512xf32>
    %489 = vector.extract_strided_slice %488 {offsets = [0, 0], sizes = [2, 128], strides = [1, 1]} : vector<2x512xf32> to vector<2x128xf32>
    %490 = arith.negf %489 : vector<2x128xf32>
    %491 = math.exp %490 : vector<2x128xf32>
    %cst_53 = arith.constant 1.000000e+00 : f32
    %492 = vector.broadcast %cst_53 : f32 to vector<2x128xf32>
    %493 = arith.addf %492, %491 : vector<2x128xf32>
    %494 = arith.divf %492, %493 : vector<2x128xf32>
    %495 = vector.extract_strided_slice %488 {offsets = [0, 128], sizes = [2, 128], strides = [1, 1]} : vector<2x512xf32> to vector<2x128xf32>
    %496 = arith.negf %495 : vector<2x128xf32>
    %497 = math.exp %496 : vector<2x128xf32>
    %cst_54 = arith.constant 1.000000e+00 : f32
    %498 = vector.broadcast %cst_54 : f32 to vector<2x128xf32>
    %499 = arith.addf %498, %497 : vector<2x128xf32>
    %500 = arith.divf %498, %499 : vector<2x128xf32>
    %501 = vector.extract_strided_slice %488 {offsets = [0, 256], sizes = [2, 128], strides = [1, 1]} : vector<2x512xf32> to vector<2x128xf32>
    %502 = math.tanh %501 : vector<2x128xf32>
    %503 = vector.extract_strided_slice %488 {offsets = [0, 384], sizes = [2, 128], strides = [1, 1]} : vector<2x512xf32> to vector<2x128xf32>
    %504 = arith.negf %503 : vector<2x128xf32>
    %505 = math.exp %504 : vector<2x128xf32>
    %cst_55 = arith.constant 1.000000e+00 : f32
    %506 = vector.broadcast %cst_55 : f32 to vector<2x128xf32>
    %507 = arith.addf %506, %505 : vector<2x128xf32>
    %508 = arith.divf %506, %507 : vector<2x128xf32>
    %509 = arith.mulf %500, %454 : vector<2x128xf32>
    %510 = arith.mulf %494, %502 : vector<2x128xf32>
    %511 = arith.addf %509, %510 : vector<2x128xf32>
    %512 = math.tanh %511 : vector<2x128xf32>
    %513 = arith.mulf %508, %512 : vector<2x128xf32>
    %514 = vector.extract_strided_slice %331 {offsets = [6, 0], sizes = [2, 512], strides = [1, 1]} : vector<16x512xf32> to vector<2x512xf32>
    %cst_56 = arith.constant dense<0.000000e+00> : vector<2x512xf32>
    %515 = tpu.matmul %484, %332, %cst_56 {dimension_numbers = #tpu.dot_dimension_numbers<[1], [0], [0], [1], [0, 0, 1, 1], [], []>} : vector<2x128xf32>, vector<128x512xf32>, vector<2x512xf32> -> vector<2x512xf32>
    %516 = arith.addf %514, %515 : vector<2x512xf32>
    %517 = vector.extract_strided_slice %516 {offsets = [0, 0], sizes = [2, 128], strides = [1, 1]} : vector<2x512xf32> to vector<2x128xf32>
    %518 = arith.negf %517 : vector<2x128xf32>
    %519 = math.exp %518 : vector<2x128xf32>
    %cst_57 = arith.constant 1.000000e+00 : f32
    %520 = vector.broadcast %cst_57 : f32 to vector<2x128xf32>
    %521 = arith.addf %520, %519 : vector<2x128xf32>
    %522 = arith.divf %520, %521 : vector<2x128xf32>
    %523 = vector.extract_strided_slice %516 {offsets = [0, 128], sizes = [2, 128], strides = [1, 1]} : vector<2x512xf32> to vector<2x128xf32>
    %524 = arith.negf %523 : vector<2x128xf32>
    %525 = math.exp %524 : vector<2x128xf32>
    %cst_58 = arith.constant 1.000000e+00 : f32
    %526 = vector.broadcast %cst_58 : f32 to vector<2x128xf32>
    %527 = arith.addf %526, %525 : vector<2x128xf32>
    %528 = arith.divf %526, %527 : vector<2x128xf32>
    %529 = vector.extract_strided_slice %516 {offsets = [0, 256], sizes = [2, 128], strides = [1, 1]} : vector<2x512xf32> to vector<2x128xf32>
    %530 = math.tanh %529 : vector<2x128xf32>
    %531 = vector.extract_strided_slice %516 {offsets = [0, 384], sizes = [2, 128], strides = [1, 1]} : vector<2x512xf32> to vector<2x128xf32>
    %532 = arith.negf %531 : vector<2x128xf32>
    %533 = math.exp %532 : vector<2x128xf32>
    %cst_59 = arith.constant 1.000000e+00 : f32
    %534 = vector.broadcast %cst_59 : f32 to vector<2x128xf32>
    %535 = arith.addf %534, %533 : vector<2x128xf32>
    %536 = arith.divf %534, %535 : vector<2x128xf32>
    %537 = arith.mulf %528, %482 : vector<2x128xf32>
    %538 = arith.mulf %522, %530 : vector<2x128xf32>
    %539 = arith.addf %537, %538 : vector<2x128xf32>
    %540 = math.tanh %539 : vector<2x128xf32>
    %541 = arith.mulf %536, %540 : vector<2x128xf32>
    %542 = tpu.concatenate %541, %513 in 1 : vector<2x128xf32>, vector<2x128xf32> -> vector<2x256xf32>
    %cst_60 = arith.constant dense<0.000000e+00> : vector<2x512xf32>
    %543 = tpu.matmul %542, %333, %cst_60 {dimension_numbers = #tpu.dot_dimension_numbers<[1], [0], [0], [1], [0, 0, 1, 1], [], []>} : vector<2x256xf32>, vector<256x512xf32>, vector<2x512xf32> -> vector<2x512xf32>
    %544 = vector.broadcast %334 : vector<1x512xf32> to vector<2x512xf32>
    %545 = arith.addf %543, %544 : vector<2x512xf32>
    %546 = vector.extract_strided_slice %545 {offsets = [0, 0], sizes = [2, 128], strides = [1, 1]} : vector<2x512xf32> to vector<2x128xf32>
    %547 = arith.negf %546 : vector<2x128xf32>
    %548 = math.exp %547 : vector<2x128xf32>
    %cst_61 = arith.constant 1.000000e+00 : f32
    %549 = vector.broadcast %cst_61 : f32 to vector<2x128xf32>
    %550 = arith.addf %549, %548 : vector<2x128xf32>
    %551 = arith.divf %549, %550 : vector<2x128xf32>
    %552 = vector.extract_strided_slice %545 {offsets = [0, 128], sizes = [2, 128], strides = [1, 1]} : vector<2x512xf32> to vector<2x128xf32>
    %553 = arith.negf %552 : vector<2x128xf32>
    %554 = math.exp %553 : vector<2x128xf32>
    %cst_62 = arith.constant 1.000000e+00 : f32
    %555 = vector.broadcast %cst_62 : f32 to vector<2x128xf32>
    %556 = arith.addf %555, %554 : vector<2x128xf32>
    %557 = arith.divf %555, %556 : vector<2x128xf32>
    %558 = vector.extract_strided_slice %545 {offsets = [0, 256], sizes = [2, 128], strides = [1, 1]} : vector<2x512xf32> to vector<2x128xf32>
    %559 = math.tanh %558 : vector<2x128xf32>
    %560 = vector.extract_strided_slice %545 {offsets = [0, 384], sizes = [2, 128], strides = [1, 1]} : vector<2x512xf32> to vector<2x128xf32>
    %561 = arith.negf %560 : vector<2x128xf32>
    %562 = math.exp %561 : vector<2x128xf32>
    %cst_63 = arith.constant 1.000000e+00 : f32
    %563 = vector.broadcast %cst_63 : f32 to vector<2x128xf32>
    %564 = arith.addf %563, %562 : vector<2x128xf32>
    %565 = arith.divf %563, %564 : vector<2x128xf32>
    %566 = arith.mulf %557, %511 : vector<2x128xf32>
    %567 = arith.mulf %551, %559 : vector<2x128xf32>
    %568 = arith.addf %566, %567 : vector<2x128xf32>
    %569 = math.tanh %568 : vector<2x128xf32>
    %570 = arith.mulf %565, %569 : vector<2x128xf32>
    %571 = vector.extract_strided_slice %331 {offsets = [8, 0], sizes = [2, 512], strides = [1, 1]} : vector<16x512xf32> to vector<2x512xf32>
    %cst_64 = arith.constant dense<0.000000e+00> : vector<2x512xf32>
    %572 = tpu.matmul %541, %332, %cst_64 {dimension_numbers = #tpu.dot_dimension_numbers<[1], [0], [0], [1], [0, 0, 1, 1], [], []>} : vector<2x128xf32>, vector<128x512xf32>, vector<2x512xf32> -> vector<2x512xf32>
    %573 = arith.addf %571, %572 : vector<2x512xf32>
    %574 = vector.extract_strided_slice %573 {offsets = [0, 0], sizes = [2, 128], strides = [1, 1]} : vector<2x512xf32> to vector<2x128xf32>
    %575 = arith.negf %574 : vector<2x128xf32>
    %576 = math.exp %575 : vector<2x128xf32>
    %cst_65 = arith.constant 1.000000e+00 : f32
    %577 = vector.broadcast %cst_65 : f32 to vector<2x128xf32>
    %578 = arith.addf %577, %576 : vector<2x128xf32>
    %579 = arith.divf %577, %578 : vector<2x128xf32>
    %580 = vector.extract_strided_slice %573 {offsets = [0, 128], sizes = [2, 128], strides = [1, 1]} : vector<2x512xf32> to vector<2x128xf32>
    %581 = arith.negf %580 : vector<2x128xf32>
    %582 = math.exp %581 : vector<2x128xf32>
    %cst_66 = arith.constant 1.000000e+00 : f32
    %583 = vector.broadcast %cst_66 : f32 to vector<2x128xf32>
    %584 = arith.addf %583, %582 : vector<2x128xf32>
    %585 = arith.divf %583, %584 : vector<2x128xf32>
    %586 = vector.extract_strided_slice %573 {offsets = [0, 256], sizes = [2, 128], strides = [1, 1]} : vector<2x512xf32> to vector<2x128xf32>
    %587 = math.tanh %586 : vector<2x128xf32>
    %588 = vector.extract_strided_slice %573 {offsets = [0, 384], sizes = [2, 128], strides = [1, 1]} : vector<2x512xf32> to vector<2x128xf32>
    %589 = arith.negf %588 : vector<2x128xf32>
    %590 = math.exp %589 : vector<2x128xf32>
    %cst_67 = arith.constant 1.000000e+00 : f32
    %591 = vector.broadcast %cst_67 : f32 to vector<2x128xf32>
    %592 = arith.addf %591, %590 : vector<2x128xf32>
    %593 = arith.divf %591, %592 : vector<2x128xf32>
    %594 = arith.mulf %585, %539 : vector<2x128xf32>
    %595 = arith.mulf %579, %587 : vector<2x128xf32>
    %596 = arith.addf %594, %595 : vector<2x128xf32>
    %597 = math.tanh %596 : vector<2x128xf32>
    %598 = arith.mulf %593, %597 : vector<2x128xf32>
    %599 = tpu.concatenate %598, %570 in 1 : vector<2x128xf32>, vector<2x128xf32> -> vector<2x256xf32>
    %cst_68 = arith.constant dense<0.000000e+00> : vector<2x512xf32>
    %600 = tpu.matmul %599, %333, %cst_68 {dimension_numbers = #tpu.dot_dimension_numbers<[1], [0], [0], [1], [0, 0, 1, 1], [], []>} : vector<2x256xf32>, vector<256x512xf32>, vector<2x512xf32> -> vector<2x512xf32>
    %601 = vector.broadcast %334 : vector<1x512xf32> to vector<2x512xf32>
    %602 = arith.addf %600, %601 : vector<2x512xf32>
    %603 = vector.extract_strided_slice %602 {offsets = [0, 0], sizes = [2, 128], strides = [1, 1]} : vector<2x512xf32> to vector<2x128xf32>
    %604 = arith.negf %603 : vector<2x128xf32>
    %605 = math.exp %604 : vector<2x128xf32>
    %cst_69 = arith.constant 1.000000e+00 : f32
    %606 = vector.broadcast %cst_69 : f32 to vector<2x128xf32>
    %607 = arith.addf %606, %605 : vector<2x128xf32>
    %608 = arith.divf %606, %607 : vector<2x128xf32>
    %609 = vector.extract_strided_slice %602 {offsets = [0, 128], sizes = [2, 128], strides = [1, 1]} : vector<2x512xf32> to vector<2x128xf32>
    %610 = arith.negf %609 : vector<2x128xf32>
    %611 = math.exp %610 : vector<2x128xf32>
    %cst_70 = arith.constant 1.000000e+00 : f32
    %612 = vector.broadcast %cst_70 : f32 to vector<2x128xf32>
    %613 = arith.addf %612, %611 : vector<2x128xf32>
    %614 = arith.divf %612, %613 : vector<2x128xf32>
    %615 = vector.extract_strided_slice %602 {offsets = [0, 256], sizes = [2, 128], strides = [1, 1]} : vector<2x512xf32> to vector<2x128xf32>
    %616 = math.tanh %615 : vector<2x128xf32>
    %617 = vector.extract_strided_slice %602 {offsets = [0, 384], sizes = [2, 128], strides = [1, 1]} : vector<2x512xf32> to vector<2x128xf32>
    %618 = arith.negf %617 : vector<2x128xf32>
    %619 = math.exp %618 : vector<2x128xf32>
    %cst_71 = arith.constant 1.000000e+00 : f32
    %620 = vector.broadcast %cst_71 : f32 to vector<2x128xf32>
    %621 = arith.addf %620, %619 : vector<2x128xf32>
    %622 = arith.divf %620, %621 : vector<2x128xf32>
    %623 = arith.mulf %614, %568 : vector<2x128xf32>
    %624 = arith.mulf %608, %616 : vector<2x128xf32>
    %625 = arith.addf %623, %624 : vector<2x128xf32>
    %626 = math.tanh %625 : vector<2x128xf32>
    %627 = arith.mulf %622, %626 : vector<2x128xf32>
    %628 = vector.extract_strided_slice %331 {offsets = [10, 0], sizes = [2, 512], strides = [1, 1]} : vector<16x512xf32> to vector<2x512xf32>
    %cst_72 = arith.constant dense<0.000000e+00> : vector<2x512xf32>
    %629 = tpu.matmul %598, %332, %cst_72 {dimension_numbers = #tpu.dot_dimension_numbers<[1], [0], [0], [1], [0, 0, 1, 1], [], []>} : vector<2x128xf32>, vector<128x512xf32>, vector<2x512xf32> -> vector<2x512xf32>
    %630 = arith.addf %628, %629 : vector<2x512xf32>
    %631 = vector.extract_strided_slice %630 {offsets = [0, 0], sizes = [2, 128], strides = [1, 1]} : vector<2x512xf32> to vector<2x128xf32>
    %632 = arith.negf %631 : vector<2x128xf32>
    %633 = math.exp %632 : vector<2x128xf32>
    %cst_73 = arith.constant 1.000000e+00 : f32
    %634 = vector.broadcast %cst_73 : f32 to vector<2x128xf32>
    %635 = arith.addf %634, %633 : vector<2x128xf32>
    %636 = arith.divf %634, %635 : vector<2x128xf32>
    %637 = vector.extract_strided_slice %630 {offsets = [0, 128], sizes = [2, 128], strides = [1, 1]} : vector<2x512xf32> to vector<2x128xf32>
    %638 = arith.negf %637 : vector<2x128xf32>
    %639 = math.exp %638 : vector<2x128xf32>
    %cst_74 = arith.constant 1.000000e+00 : f32
    %640 = vector.broadcast %cst_74 : f32 to vector<2x128xf32>
    %641 = arith.addf %640, %639 : vector<2x128xf32>
    %642 = arith.divf %640, %641 : vector<2x128xf32>
    %643 = vector.extract_strided_slice %630 {offsets = [0, 256], sizes = [2, 128], strides = [1, 1]} : vector<2x512xf32> to vector<2x128xf32>
    %644 = math.tanh %643 : vector<2x128xf32>
    %645 = vector.extract_strided_slice %630 {offsets = [0, 384], sizes = [2, 128], strides = [1, 1]} : vector<2x512xf32> to vector<2x128xf32>
    %646 = arith.negf %645 : vector<2x128xf32>
    %647 = math.exp %646 : vector<2x128xf32>
    %cst_75 = arith.constant 1.000000e+00 : f32
    %648 = vector.broadcast %cst_75 : f32 to vector<2x128xf32>
    %649 = arith.addf %648, %647 : vector<2x128xf32>
    %650 = arith.divf %648, %649 : vector<2x128xf32>
    %651 = arith.mulf %642, %596 : vector<2x128xf32>
    %652 = arith.mulf %636, %644 : vector<2x128xf32>
    %653 = arith.addf %651, %652 : vector<2x128xf32>
    %654 = math.tanh %653 : vector<2x128xf32>
    %655 = arith.mulf %650, %654 : vector<2x128xf32>
    %656 = tpu.concatenate %655, %627 in 1 : vector<2x128xf32>, vector<2x128xf32> -> vector<2x256xf32>
    %cst_76 = arith.constant dense<0.000000e+00> : vector<2x512xf32>
    %657 = tpu.matmul %656, %333, %cst_76 {dimension_numbers = #tpu.dot_dimension_numbers<[1], [0], [0], [1], [0, 0, 1, 1], [], []>} : vector<2x256xf32>, vector<256x512xf32>, vector<2x512xf32> -> vector<2x512xf32>
    %658 = vector.broadcast %334 : vector<1x512xf32> to vector<2x512xf32>
    %659 = arith.addf %657, %658 : vector<2x512xf32>
    %660 = vector.extract_strided_slice %659 {offsets = [0, 0], sizes = [2, 128], strides = [1, 1]} : vector<2x512xf32> to vector<2x128xf32>
    %661 = arith.negf %660 : vector<2x128xf32>
    %662 = math.exp %661 : vector<2x128xf32>
    %cst_77 = arith.constant 1.000000e+00 : f32
    %663 = vector.broadcast %cst_77 : f32 to vector<2x128xf32>
    %664 = arith.addf %663, %662 : vector<2x128xf32>
    %665 = arith.divf %663, %664 : vector<2x128xf32>
    %666 = vector.extract_strided_slice %659 {offsets = [0, 128], sizes = [2, 128], strides = [1, 1]} : vector<2x512xf32> to vector<2x128xf32>
    %667 = arith.negf %666 : vector<2x128xf32>
    %668 = math.exp %667 : vector<2x128xf32>
    %cst_78 = arith.constant 1.000000e+00 : f32
    %669 = vector.broadcast %cst_78 : f32 to vector<2x128xf32>
    %670 = arith.addf %669, %668 : vector<2x128xf32>
    %671 = arith.divf %669, %670 : vector<2x128xf32>
    %672 = vector.extract_strided_slice %659 {offsets = [0, 256], sizes = [2, 128], strides = [1, 1]} : vector<2x512xf32> to vector<2x128xf32>
    %673 = math.tanh %672 : vector<2x128xf32>
    %674 = vector.extract_strided_slice %659 {offsets = [0, 384], sizes = [2, 128], strides = [1, 1]} : vector<2x512xf32> to vector<2x128xf32>
    %675 = arith.negf %674 : vector<2x128xf32>
    %676 = math.exp %675 : vector<2x128xf32>
    %cst_79 = arith.constant 1.000000e+00 : f32
    %677 = vector.broadcast %cst_79 : f32 to vector<2x128xf32>
    %678 = arith.addf %677, %676 : vector<2x128xf32>
    %679 = arith.divf %677, %678 : vector<2x128xf32>
    %680 = arith.mulf %671, %625 : vector<2x128xf32>
    %681 = arith.mulf %665, %673 : vector<2x128xf32>
    %682 = arith.addf %680, %681 : vector<2x128xf32>
    %683 = math.tanh %682 : vector<2x128xf32>
    %684 = arith.mulf %679, %683 : vector<2x128xf32>
    %685 = vector.extract_strided_slice %331 {offsets = [12, 0], sizes = [2, 512], strides = [1, 1]} : vector<16x512xf32> to vector<2x512xf32>
    %cst_80 = arith.constant dense<0.000000e+00> : vector<2x512xf32>
    %686 = tpu.matmul %655, %332, %cst_80 {dimension_numbers = #tpu.dot_dimension_numbers<[1], [0], [0], [1], [0, 0, 1, 1], [], []>} : vector<2x128xf32>, vector<128x512xf32>, vector<2x512xf32> -> vector<2x512xf32>
    %687 = arith.addf %685, %686 : vector<2x512xf32>
    %688 = vector.extract_strided_slice %687 {offsets = [0, 0], sizes = [2, 128], strides = [1, 1]} : vector<2x512xf32> to vector<2x128xf32>
    %689 = arith.negf %688 : vector<2x128xf32>
    %690 = math.exp %689 : vector<2x128xf32>
    %cst_81 = arith.constant 1.000000e+00 : f32
    %691 = vector.broadcast %cst_81 : f32 to vector<2x128xf32>
    %692 = arith.addf %691, %690 : vector<2x128xf32>
    %693 = arith.divf %691, %692 : vector<2x128xf32>
    %694 = vector.extract_strided_slice %687 {offsets = [0, 128], sizes = [2, 128], strides = [1, 1]} : vector<2x512xf32> to vector<2x128xf32>
    %695 = arith.negf %694 : vector<2x128xf32>
    %696 = math.exp %695 : vector<2x128xf32>
    %cst_82 = arith.constant 1.000000e+00 : f32
    %697 = vector.broadcast %cst_82 : f32 to vector<2x128xf32>
    %698 = arith.addf %697, %696 : vector<2x128xf32>
    %699 = arith.divf %697, %698 : vector<2x128xf32>
    %700 = vector.extract_strided_slice %687 {offsets = [0, 256], sizes = [2, 128], strides = [1, 1]} : vector<2x512xf32> to vector<2x128xf32>
    %701 = math.tanh %700 : vector<2x128xf32>
    %702 = vector.extract_strided_slice %687 {offsets = [0, 384], sizes = [2, 128], strides = [1, 1]} : vector<2x512xf32> to vector<2x128xf32>
    %703 = arith.negf %702 : vector<2x128xf32>
    %704 = math.exp %703 : vector<2x128xf32>
    %cst_83 = arith.constant 1.000000e+00 : f32
    %705 = vector.broadcast %cst_83 : f32 to vector<2x128xf32>
    %706 = arith.addf %705, %704 : vector<2x128xf32>
    %707 = arith.divf %705, %706 : vector<2x128xf32>
    %708 = arith.mulf %699, %653 : vector<2x128xf32>
    %709 = arith.mulf %693, %701 : vector<2x128xf32>
    %710 = arith.addf %708, %709 : vector<2x128xf32>
    %711 = math.tanh %710 : vector<2x128xf32>
    %712 = arith.mulf %707, %711 : vector<2x128xf32>
    %713 = tpu.concatenate %712, %684 in 1 : vector<2x128xf32>, vector<2x128xf32> -> vector<2x256xf32>
    %cst_84 = arith.constant dense<0.000000e+00> : vector<2x512xf32>
    %714 = tpu.matmul %713, %333, %cst_84 {dimension_numbers = #tpu.dot_dimension_numbers<[1], [0], [0], [1], [0, 0, 1, 1], [], []>} : vector<2x256xf32>, vector<256x512xf32>, vector<2x512xf32> -> vector<2x512xf32>
    %715 = vector.broadcast %334 : vector<1x512xf32> to vector<2x512xf32>
    %716 = arith.addf %714, %715 : vector<2x512xf32>
    %717 = vector.extract_strided_slice %716 {offsets = [0, 0], sizes = [2, 128], strides = [1, 1]} : vector<2x512xf32> to vector<2x128xf32>
    %718 = arith.negf %717 : vector<2x128xf32>
    %719 = math.exp %718 : vector<2x128xf32>
    %cst_85 = arith.constant 1.000000e+00 : f32
    %720 = vector.broadcast %cst_85 : f32 to vector<2x128xf32>
    %721 = arith.addf %720, %719 : vector<2x128xf32>
    %722 = arith.divf %720, %721 : vector<2x128xf32>
    %723 = vector.extract_strided_slice %716 {offsets = [0, 128], sizes = [2, 128], strides = [1, 1]} : vector<2x512xf32> to vector<2x128xf32>
    %724 = arith.negf %723 : vector<2x128xf32>
    %725 = math.exp %724 : vector<2x128xf32>
    %cst_86 = arith.constant 1.000000e+00 : f32
    %726 = vector.broadcast %cst_86 : f32 to vector<2x128xf32>
    %727 = arith.addf %726, %725 : vector<2x128xf32>
    %728 = arith.divf %726, %727 : vector<2x128xf32>
    %729 = vector.extract_strided_slice %716 {offsets = [0, 256], sizes = [2, 128], strides = [1, 1]} : vector<2x512xf32> to vector<2x128xf32>
    %730 = math.tanh %729 : vector<2x128xf32>
    %731 = vector.extract_strided_slice %716 {offsets = [0, 384], sizes = [2, 128], strides = [1, 1]} : vector<2x512xf32> to vector<2x128xf32>
    %732 = arith.negf %731 : vector<2x128xf32>
    %733 = math.exp %732 : vector<2x128xf32>
    %cst_87 = arith.constant 1.000000e+00 : f32
    %734 = vector.broadcast %cst_87 : f32 to vector<2x128xf32>
    %735 = arith.addf %734, %733 : vector<2x128xf32>
    %736 = arith.divf %734, %735 : vector<2x128xf32>
    %737 = arith.mulf %728, %682 : vector<2x128xf32>
    %738 = arith.mulf %722, %730 : vector<2x128xf32>
    %739 = arith.addf %737, %738 : vector<2x128xf32>
    %740 = math.tanh %739 : vector<2x128xf32>
    %741 = arith.mulf %736, %740 : vector<2x128xf32>
    %742 = vector.extract_strided_slice %331 {offsets = [14, 0], sizes = [2, 512], strides = [1, 1]} : vector<16x512xf32> to vector<2x512xf32>
    %cst_88 = arith.constant dense<0.000000e+00> : vector<2x512xf32>
    %743 = tpu.matmul %712, %332, %cst_88 {dimension_numbers = #tpu.dot_dimension_numbers<[1], [0], [0], [1], [0, 0, 1, 1], [], []>} : vector<2x128xf32>, vector<128x512xf32>, vector<2x512xf32> -> vector<2x512xf32>
    %744 = arith.addf %742, %743 : vector<2x512xf32>
    %745 = vector.extract_strided_slice %744 {offsets = [0, 0], sizes = [2, 128], strides = [1, 1]} : vector<2x512xf32> to vector<2x128xf32>
    %746 = arith.negf %745 : vector<2x128xf32>
    %747 = math.exp %746 : vector<2x128xf32>
    %cst_89 = arith.constant 1.000000e+00 : f32
    %748 = vector.broadcast %cst_89 : f32 to vector<2x128xf32>
    %749 = arith.addf %748, %747 : vector<2x128xf32>
    %750 = arith.divf %748, %749 : vector<2x128xf32>
    %751 = vector.extract_strided_slice %744 {offsets = [0, 128], sizes = [2, 128], strides = [1, 1]} : vector<2x512xf32> to vector<2x128xf32>
    %752 = arith.negf %751 : vector<2x128xf32>
    %753 = math.exp %752 : vector<2x128xf32>
    %cst_90 = arith.constant 1.000000e+00 : f32
    %754 = vector.broadcast %cst_90 : f32 to vector<2x128xf32>
    %755 = arith.addf %754, %753 : vector<2x128xf32>
    %756 = arith.divf %754, %755 : vector<2x128xf32>
    %757 = vector.extract_strided_slice %744 {offsets = [0, 256], sizes = [2, 128], strides = [1, 1]} : vector<2x512xf32> to vector<2x128xf32>
    %758 = math.tanh %757 : vector<2x128xf32>
    %759 = vector.extract_strided_slice %744 {offsets = [0, 384], sizes = [2, 128], strides = [1, 1]} : vector<2x512xf32> to vector<2x128xf32>
    %760 = arith.negf %759 : vector<2x128xf32>
    %761 = math.exp %760 : vector<2x128xf32>
    %cst_91 = arith.constant 1.000000e+00 : f32
    %762 = vector.broadcast %cst_91 : f32 to vector<2x128xf32>
    %763 = arith.addf %762, %761 : vector<2x128xf32>
    %764 = arith.divf %762, %763 : vector<2x128xf32>
    %765 = arith.mulf %756, %710 : vector<2x128xf32>
    %766 = arith.mulf %750, %758 : vector<2x128xf32>
    %767 = arith.addf %765, %766 : vector<2x128xf32>
    %768 = math.tanh %767 : vector<2x128xf32>
    %769 = arith.mulf %764, %768 : vector<2x128xf32>
    %770 = tpu.concatenate %769, %741 in 1 : vector<2x128xf32>, vector<2x128xf32> -> vector<2x256xf32>
    %cst_92 = arith.constant dense<0.000000e+00> : vector<2x512xf32>
    %771 = tpu.matmul %770, %333, %cst_92 {dimension_numbers = #tpu.dot_dimension_numbers<[1], [0], [0], [1], [0, 0, 1, 1], [], []>} : vector<2x256xf32>, vector<256x512xf32>, vector<2x512xf32> -> vector<2x512xf32>
    %772 = vector.broadcast %334 : vector<1x512xf32> to vector<2x512xf32>
    %773 = arith.addf %771, %772 : vector<2x512xf32>
    %774 = vector.extract_strided_slice %773 {offsets = [0, 0], sizes = [2, 128], strides = [1, 1]} : vector<2x512xf32> to vector<2x128xf32>
    %775 = arith.negf %774 : vector<2x128xf32>
    %776 = math.exp %775 : vector<2x128xf32>
    %cst_93 = arith.constant 1.000000e+00 : f32
    %777 = vector.broadcast %cst_93 : f32 to vector<2x128xf32>
    %778 = arith.addf %777, %776 : vector<2x128xf32>
    %779 = arith.divf %777, %778 : vector<2x128xf32>
    %780 = vector.extract_strided_slice %773 {offsets = [0, 128], sizes = [2, 128], strides = [1, 1]} : vector<2x512xf32> to vector<2x128xf32>
    %781 = arith.negf %780 : vector<2x128xf32>
    %782 = math.exp %781 : vector<2x128xf32>
    %cst_94 = arith.constant 1.000000e+00 : f32
    %783 = vector.broadcast %cst_94 : f32 to vector<2x128xf32>
    %784 = arith.addf %783, %782 : vector<2x128xf32>
    %785 = arith.divf %783, %784 : vector<2x128xf32>
    %786 = vector.extract_strided_slice %773 {offsets = [0, 256], sizes = [2, 128], strides = [1, 1]} : vector<2x512xf32> to vector<2x128xf32>
    %787 = math.tanh %786 : vector<2x128xf32>
    %788 = vector.extract_strided_slice %773 {offsets = [0, 384], sizes = [2, 128], strides = [1, 1]} : vector<2x512xf32> to vector<2x128xf32>
    %789 = arith.negf %788 : vector<2x128xf32>
    %790 = math.exp %789 : vector<2x128xf32>
    %cst_95 = arith.constant 1.000000e+00 : f32
    %791 = vector.broadcast %cst_95 : f32 to vector<2x128xf32>
    %792 = arith.addf %791, %790 : vector<2x128xf32>
    %793 = arith.divf %791, %792 : vector<2x128xf32>
    %794 = arith.mulf %785, %739 : vector<2x128xf32>
    %795 = arith.mulf %779, %787 : vector<2x128xf32>
    %796 = arith.addf %794, %795 : vector<2x128xf32>
    %797 = math.tanh %796 : vector<2x128xf32>
    %798 = arith.mulf %793, %797 : vector<2x128xf32>
    %c0_96 = arith.constant 0 : index
    %c0_97 = arith.constant 0 : index
    %799 = vector.load %arg10[%c0_96, %c0_97] : memref<128x8xf32, #tpu.memory_space<vmem>>, vector<128x8xf32>
    %cst_98 = arith.constant dense<0.000000e+00> : vector<2x8xf32>
    %800 = tpu.matmul %798, %799, %cst_98 {dimension_numbers = #tpu.dot_dimension_numbers<[1], [0], [0], [1], [0, 0, 1, 1], [], []>} : vector<2x128xf32>, vector<128x8xf32>, vector<2x8xf32> -> vector<2x8xf32>
    %c0_99 = arith.constant 0 : index
    %c0_100 = arith.constant 0 : index
    %801 = vector.load %arg11[%c0_99, %c0_100] : memref<1x8xf32, #tpu.memory_space<vmem>>, vector<1x8xf32>
    %802 = vector.broadcast %801 : vector<1x8xf32> to vector<2x8xf32>
    %803 = arith.addf %800, %802 : vector<2x8xf32>
    %cst_101 = arith.constant dense<0xFF800000> : vector<2xf32>
    %804 = vector.multi_reduction <maximumf>, %803, %cst_101 [1] : vector<2x8xf32> to vector<2xf32>
    %805 = vector.shape_cast %804 : vector<2xf32> to vector<2x1xf32>
    %806 = vector.broadcast %805 : vector<2x1xf32> to vector<2x8xf32>
    %807 = arith.subf %803, %806 : vector<2x8xf32>
    %808 = math.exp %807 : vector<2x8xf32>
    %cst_102 = arith.constant dense<0.000000e+00> : vector<2xf32>
    %809 = vector.multi_reduction <add>, %808, %cst_102 [1] : vector<2x8xf32> to vector<2xf32>
    %810 = vector.shape_cast %809 : vector<2xf32> to vector<2x1xf32>
    %811 = math.log %810 : vector<2x1xf32>
    %812 = vector.broadcast %811 : vector<2x1xf32> to vector<2x8xf32>
    %813 = arith.subf %807, %812 : vector<2x8xf32>
    %c0_103 = arith.constant 0 : index
    %c0_104 = arith.constant 0 : index
    %814 = vector.load %arg12[%c0_103, %c0_104] : memref<2x8xf32, #tpu.memory_space<vmem>>, vector<2x8xf32>
    tpu.vector_store %arg12[%c0_103, %c0_104], %813 {strides = array<i32>} : memref<2x8xf32, #tpu.memory_space<vmem>>, vector<2x8xf32>,
    return
  }
}

</mosaic_0001>

<llo_original>
// kernel: cnn_lstm_forward.1
$region0: #{cnn_lstm_forward.1}
  #allocation0 [shape = 'u32[]', space=smem, size = 0x4, offset = 0x4, fixed_abs, tag = 'smem constant byte address 0x4 - core index']
  #allocation1 [shape = 'u32[72,128]{1,0:T(1,128)}', space=vmem, size = 0x9000, scoped, tag = 'internal scratch']
  %s0 = inlined_call_operand.vmem [shape: f32[16,6,10], index: 0, kind: input, shape index: {}]
  %s1 = inlined_call_operand.vmem [shape: f32[45], index: 1, kind: input, shape index: {}]
  %s2 = inlined_call_operand.vmem [shape: f32[3], index: 2, kind: input, shape index: {}]
  %s3 = inlined_call_operand.vmem [shape: f32[18,512], index: 3, kind: input, shape index: {}]
  %s4 = inlined_call_operand.vmem [shape: f32[128,512], index: 4, kind: input, shape index: {}]
  %s5 = inlined_call_operand.vmem [shape: f32[1,512], index: 5, kind: input, shape index: {}]
  %s6 = inlined_call_operand.hbm [shape: f32[256,512], index: 6, kind: input, shape index: {}]
  %s7 = inlined_call_operand.vmem [shape: f32[1,512], index: 7, kind: input, shape index: {}]
  %s8 = inlined_call_operand.vmem [shape: f32[2,2,128], index: 8, kind: input, shape index: {}]
  %s9 = inlined_call_operand.vmem [shape: f32[2,2,128], index: 9, kind: input, shape index: {}]
  %s10 = inlined_call_operand.vmem [shape: f32[128,8], index: 10, kind: input, shape index: {}]
  %s11 = inlined_call_operand.vmem [shape: f32[1,8], index: 11, kind: input, shape index: {}]
  %s12 = inlined_call_operand.hbm [shape: f32[2,8], index: 12, kind: output, shape index: {}]
  %s13 = sld [smem:[#allocation0]]
  $region70: #{cnn_lstm_forward.1} parent=0
    _
  %s15 = ssub.s32 1, %s13
  %s16 = scalar_select 0, %s15, %s13
  $region1: #{cnn_lstm_forward.1} parent=0
    #allocation2 [shape = 'u8[512]{0}', space=smem, size = 0x200, scoped, tag = 'input window, operand 1, single buffered']
    #allocation3 [shape = 's32[1]{0}', space=sflag, size = 0x4, scoped, tag = 'scoped memory for cnn_lstm_forward.1']
    #allocation4 [shape = 's32[1]{0}', space=sflag, size = 0x4, scoped, tag = 'scoped memory for cnn_lstm_forward.1']
    #allocation5 [shape = 's32[1]{0}', space=sflag, size = 0x4, scoped, tag = 'scoped memory for cnn_lstm_forward.1']
    #allocation6 [shape = 'u8[512]{0}', space=smem, size = 0x200, scoped, tag = 'input window, operand 2, single buffered']
    #allocation7 [shape = 's32[1]{0}', space=sflag, size = 0x4, scoped, tag = 'scoped memory for cnn_lstm_forward.1']
    #allocation8 [shape = 'u8[524288]{0}', space=vmem, size = 0x80000, scoped, tag = 'input window, operand 6, single buffered']
    #allocation9 [shape = 'u8[1024]{0}', space=vmem, size = 0x400, scoped, tag = 'output window, operand 0, single buffered']
    %17 = vsyncpa [#allocation5], 0
    %18 = vsyncpa [#allocation7], 0
    %19 = vsyncpa [#allocation3], 0
    %20 = vsyncpa [#allocation4], 0
    // Predicated region
    $region2: #{cnn_lstm_forward.1} parent=1 // pred_check
      _
    $region3: #{cnn_lstm_forward.1} parent=1 // pred_check_branch
      %22 = sbr.rel (0) target = $region5
    $region4: #{cnn_lstm_forward.1} parent=1 // pred_region
      _
    $region5: #{cnn_lstm_forward.1} parent=1 // pred_fallthru
      _
    // Predicated region
    $region6: #{cnn_lstm_forward.1} parent=1 // pred_check
      _
    $region7: #{cnn_lstm_forward.1} parent=1 // pred_check_branch
      %24 = sbr.rel (0) target = $region9
    $region8: #{cnn_lstm_forward.1} parent=1 // pred_region
      %26 = vsyncadd [#allocation5], 0
      %s28 = sshll.u32 %s1, 4
      %s29 = int_to_ptr.vmem [resolvable:$true] %s28
      %31 = dma.vmem_to_smem %s29, 16, [#allocation2], [#allocation5]
    $region9: #{cnn_lstm_forward.1} parent=1 // pred_fallthru
      _
    // Predicated region
    $region10: #{cnn_lstm_forward.1} parent=1 // pred_check
      _
    $region11: #{cnn_lstm_forward.1} parent=1 // pred_check_branch
      %33 = sbr.rel (0) target = $region13
    $region12: #{cnn_lstm_forward.1} parent=1 // pred_region
      %35 = vsyncadd [#allocation7], 0
      %s37 = sshll.u32 %s2, 4
      %s38 = int_to_ptr.vmem [resolvable:$true] %s37
      %40 = dma.vmem_to_smem %s38, 16, [#allocation6], [#allocation7]
    $region13: #{cnn_lstm_forward.1} parent=1 // pred_fallthru
      _
    // Predicated region
    $region14: #{cnn_lstm_forward.1} parent=1 // pred_check
      _
    $region15: #{cnn_lstm_forward.1} parent=1 // pred_check_branch
      %42 = sbr.rel (0) target = $region17
    $region16: #{cnn_lstm_forward.1} parent=1 // pred_region
      _
    $region17: #{cnn_lstm_forward.1} parent=1 // pred_fallthru
      _
    // Predicated region
    $region18: #{cnn_lstm_forward.1} parent=1 // pred_check
      _
    $region19: #{cnn_lstm_forward.1} parent=1 // pred_check_branch
      %44 = sbr.rel (0) target = $region21
    $region20: #{cnn_lstm_forward.1} parent=1 // pred_region
      _
    $region21: #{cnn_lstm_forward.1} parent=1 // pred_fallthru
      _
    // Predicated region
    $region22: #{cnn_lstm_forward.1} parent=1 // pred_check
      _
    $region23: #{cnn_lstm_forward.1} parent=1 // pred_check_branch
      %46 = sbr.rel (0) target = $region25
    $region24: #{cnn_lstm_forward.1} parent=1 // pred_region
      _
    $region25: #{cnn_lstm_forward.1} parent=1 // pred_fallthru
      _
    // Predicated region
    $region26: #{cnn_lstm_forward.1} parent=1 // pred_check
      _
    $region27: #{cnn_lstm_forward.1} parent=1 // pred_check_branch
      %48 = sbr.rel (0) target = $region29
    $region28: #{cnn_lstm_forward.1} parent=1 // pred_region
      %50 = vsyncadd [#allocation3], 0
      %s51 = sshll.u32 %s6, 4
      %s52 = int_to_ptr.hbm [resolvable:$true] %s51
      %s53 = sshll.u32 [#allocation8], 4
      %s54 = int_to_ptr.vmem [resolvable:$true] %s53
      %59 = dma.hbm_to_vmem [thread:$0]  %s52, 16384, %s54, [#allocation3], 512, 512, 32
    $region29: #{cnn_lstm_forward.1} parent=1 // pred_fallthru
      _
    // Predicated region
    $region30: #{cnn_lstm_forward.1} parent=1 // pred_check
      _
    $region31: #{cnn_lstm_forward.1} parent=1 // pred_check_branch
      %61 = sbr.rel (0) target = $region33
    $region32: #{cnn_lstm_forward.1} parent=1 // pred_region
      _
    $region33: #{cnn_lstm_forward.1} parent=1 // pred_fallthru
      _
    // Predicated region
    $region34: #{cnn_lstm_forward.1} parent=1 // pred_check
      _
    $region35: #{cnn_lstm_forward.1} parent=1 // pred_check_branch
      %63 = sbr.rel (0) target = $region37
    $region36: #{cnn_lstm_forward.1} parent=1 // pred_region
      _
    $region37: #{cnn_lstm_forward.1} parent=1 // pred_fallthru
      _
    // Predicated region
    $region38: #{cnn_lstm_forward.1} parent=1 // pred_check
      _
    $region39: #{cnn_lstm_forward.1} parent=1 // pred_check_branch
      %65 = sbr.rel (0) target = $region41
    $region40: #{cnn_lstm_forward.1} parent=1 // pred_region
      _
    $region41: #{cnn_lstm_forward.1} parent=1 // pred_fallthru
      _
    // Predicated region
    $region42: #{cnn_lstm_forward.1} parent=1 // pred_check
      _
    $region43: #{cnn_lstm_forward.1} parent=1 // pred_check_branch
      %67 = sbr.rel (0) target = $region45
    $region44: #{cnn_lstm_forward.1} parent=1 // pred_region
      _
    $region45: #{cnn_lstm_forward.1} parent=1 // pred_fallthru
      _
    // Predicated region
    $region46: #{cnn_lstm_forward.1} parent=1 // pred_check
      _
    $region47: #{cnn_lstm_forward.1} parent=1 // pred_check_branch
      %69 = sbr.rel (0) target = $region49
    $region48: #{cnn_lstm_forward.1} parent=1 // pred_region
      _
    $region49: #{cnn_lstm_forward.1} parent=1 // pred_fallthru
      _
    // Predicated region
    $region50: #{cnn_lstm_forward.1} parent=1 // pred_check
      _
    $region51: #{cnn_lstm_forward.1} parent=1 // pred_check_branch
      %71 = sbr.rel (0) target = $region53
    $region52: #{cnn_lstm_forward.1} parent=1 // pred_region
      %73 = dma.done [#allocation5], 16
    $region53: #{cnn_lstm_forward.1} parent=1 // pred_fallthru
      _
    // Predicated region
    $region54: #{cnn_lstm_forward.1} parent=1 // pred_check
      _
    $region55: #{cnn_lstm_forward.1} parent=1 // pred_check_branch
      %75 = sbr.rel (0) target = $region57
    $region56: #{cnn_lstm_forward.1} parent=1 // pred_region
      %77 = dma.done [#allocation7], 16
    $region57: #{cnn_lstm_forward.1} parent=1 // pred_fallthru
      _
    // Predicated region
    $region58: #{cnn_lstm_forward.1} parent=1 // pred_check
      _
    $region59: #{cnn_lstm_forward.1} parent=1 // pred_check_branch
      %79 = sbr.rel (0) target = $region61
    $region60: #{cnn_lstm_forward.1} parent=1 // pred_region
      %81 = dma.done [#allocation3], 16384
    $region61: #{cnn_lstm_forward.1} parent=1 // pred_fallthru
      _
    %82 = sfence
    %v83 = vld [vmem:[%s0] sm:$0x3f]
    %v84 = vld [vmem:[%s0 + $0x8] sm:$0x3f]
    %v85 = vld [vmem:[%s0 + $0x10] sm:$0x3f]
    %v86 = vld [vmem:[%s0 + $0x18] sm:$0x3f]
    %v87 = vld [vmem:[%s0 + $0x20] sm:$0x3f]
    %v88 = vld [vmem:[%s0 + $0x28] sm:$0x3f]
    %v89 = vld [vmem:[%s0 + $0x30] sm:$0x3f]
    %v90 = vld [vmem:[%s0 + $0x38] sm:$0x3f]
    %v91 = vld [vmem:[%s0 + $0x40] sm:$0x3f]
    %v92 = vld [vmem:[%s0 + $0x48] sm:$0x3f]
    %v93 = vld [vmem:[%s0 + $0x50] sm:$0x3f]
    %v94 = vld [vmem:[%s0 + $0x58] sm:$0x3f]
    %v95 = vld [vmem:[%s0 + $0x60] sm:$0x3f]
    %v96 = vld [vmem:[%s0 + $0x68] sm:$0x3f]
    %v97 = vld [vmem:[%s0 + $0x70] sm:$0x3f]
    %v98 = vld [vmem:[%s0 + $0x78] sm:$0x3f]
    %s99 = sld [smem:[#allocation2]]
    %v100 = vstv %s99
    %v101 = vmul.f32 %v83, %v100
    %v102 = vmul.f32 %v84, %v100
    %v103 = vmul.f32 %v85, %v100
    %v104 = vmul.f32 %v86, %v100
    %v105 = vmul.f32 %v87, %v100
    %v106 = vmul.f32 %v88, %v100
    %v107 = vmul.f32 %v89, %v100
    %v108 = vmul.f32 %v90, %v100
    %v109 = vmul.f32 %v91, %v100
    %v110 = vmul.f32 %v92, %v100
    %v111 = vmul.f32 %v93, %v100
    %v112 = vmul.f32 %v94, %v100
    %v113 = vmul.f32 %v95, %v100
    %v114 = vmul.f32 %v96, %v100
    %v115 = vmul.f32 %v97, %v100
    %v116 = vmul.f32 %v98, %v100
    %v117 = vadd.f32 %v101, 0.0
    %v118 = vadd.f32 %v102, 0.0
    %v119 = vadd.f32 %v103, 0.0
    %v120 = vadd.f32 %v104, 0.0
    %v121 = vadd.f32 %v105, 0.0
    %v122 = vadd.f32 %v106, 0.0
    %v123 = vadd.f32 %v107, 0.0
    %v124 = vadd.f32 %v108, 0.0
    %v125 = vadd.f32 %v109, 0.0
    %v126 = vadd.f32 %v110, 0.0
    %v127 = vadd.f32 %v111, 0.0
    %v128 = vadd.f32 %v112, 0.0
    %v129 = vadd.f32 %v113, 0.0
    %v130 = vadd.f32 %v114, 0.0
    %v131 = vadd.f32 %v115, 0.0
    %v132 = vadd.f32 %v116, 0.0
    %s133 = sld [smem:[#allocation2 + $0x1]]
    %v134 = vstv %s133
    %v135 = vmul.f32 %v83, %v134
    %v136 = vmul.f32 %v84, %v134
    %v137 = vmul.f32 %v85, %v134
    %v138 = vmul.f32 %v86, %v134
    %v139 = vmul.f32 %v87, %v134
    %v140 = vmul.f32 %v88, %v134
    %v141 = vmul.f32 %v89, %v134
    %v142 = vmul.f32 %v90, %v134
    %v143 = vmul.f32 %v91, %v134
    %v144 = vmul.f32 %v92, %v134
    %v145 = vmul.f32 %v93, %v134
    %v146 = vmul.f32 %v94, %v134
    %v147 = vmul.f32 %v95, %v134
    %v148 = vmul.f32 %v96, %v134
    %v149 = vmul.f32 %v97, %v134
    %v150 = vmul.f32 %v98, %v134
    %167 = vrot.lane.b32.xlu0 %v135, 127
    %v168 = vpop.permute.xlu0 %167
    %169 = vrot.lane.b32.xlu0 %v136, 127
    %v170 = vpop.permute.xlu0 %169
    %171 = vrot.lane.b32.xlu0 %v137, 127
    %v172 = vpop.permute.xlu0 %171
    %173 = vrot.lane.b32.xlu0 %v138, 127
    %v174 = vpop.permute.xlu0 %173
    %175 = vrot.lane.b32.xlu0 %v139, 127
    %v176 = vpop.permute.xlu0 %175
    %177 = vrot.lane.b32.xlu0 %v140, 127
    %v178 = vpop.permute.xlu0 %177
    %179 = vrot.lane.b32.xlu0 %v141, 127
    %v180 = vpop.permute.xlu0 %179
    %181 = vrot.lane.b32.xlu0 %v142, 127
    %v182 = vpop.permute.xlu0 %181
    %183 = vrot.lane.b32.xlu0 %v143, 127
    %v184 = vpop.permute.xlu0 %183
    %185 = vrot.lane.b32.xlu0 %v144, 127
    %v186 = vpop.permute.xlu0 %185
    %187 = vrot.lane.b32.xlu0 %v145, 127
    %v188 = vpop.permute.xlu0 %187
    %189 = vrot.lane.b32.xlu0 %v146, 127
    %v190 = vpop.permute.xlu0 %189
    %191 = vrot.lane.b32.xlu0 %v147, 127
    %v192 = vpop.permute.xlu0 %191
    %193 = vrot.lane.b32.xlu0 %v148, 127
    %v194 = vpop.permute.xlu0 %193
    %195 = vrot.lane.b32.xlu0 %v149, 127
    %v196 = vpop.permute.xlu0 %195
    %197 = vrot.lane.b32.xlu0 %v150, 127
    %v198 = vpop.permute.xlu0 %197
    %v215 = vadd.f32 %v117, %v168
    %v216 = vadd.f32 %v118, %v170
    %v217 = vadd.f32 %v119, %v172
    %v218 = vadd.f32 %v120, %v174
    %v219 = vadd.f32 %v121, %v176
    %v220 = vadd.f32 %v122, %v178
    %v221 = vadd.f32 %v123, %v180
    %v222 = vadd.f32 %v124, %v182
    %v223 = vadd.f32 %v125, %v184
    %v224 = vadd.f32 %v126, %v186
    %v225 = vadd.f32 %v127, %v188
    %v226 = vadd.f32 %v128, %v190
    %v227 = vadd.f32 %v129, %v192
    %v228 = vadd.f32 %v130, %v194
    %v229 = vadd.f32 %v131, %v196
    %v230 = vadd.f32 %v132, %v198
    %s231 = sld [smem:[#allocation2 + $0x2]]
    %v232 = vstv %s231
    %v233 = vmul.f32 %v83, %v232
    %v234 = vmul.f32 %v84, %v232
    %v235 = vmul.f32 %v85, %v232
    %v236 = vmul.f32 %v86, %v232
    %v237 = vmul.f32 %v87, %v232
    %v238 = vmul.f32 %v88, %v232
    %v239 = vmul.f32 %v89, %v232
    %v240 = vmul.f32 %v90, %v232
    %v241 = vmul.f32 %v91, %v232
    %v242 = vmul.f32 %v92, %v232
    %v243 = vmul.f32 %v93, %v232
    %v244 = vmul.f32 %v94, %v232
    %v245 = vmul.f32 %v95, %v232
    %v246 = vmul.f32 %v96, %v232
    %v247 = vmul.f32 %v97, %v232
    %v248 = vmul.f32 %v98, %v232
    %265 = vrot.lane.b32.xlu0 %v233, 126
    %v266 = vpop.permute.xlu0 %265
    %267 = vrot.lane.b32.xlu0 %v234, 126
    %v268 = vpop.permute.xlu0 %267
    %269 = vrot.lane.b32.xlu0 %v235, 126
    %v270 = vpop.permute.xlu0 %269
    %271 = vrot.lane.b32.xlu0 %v236, 126
    %v272 = vpop.permute.xlu0 %271
    %273 = vrot.lane.b32.xlu0 %v237, 126
    %v274 = vpop.permute.xlu0 %273
    %275 = vrot.lane.b32.xlu0 %v238, 126
    %v276 = vpop.permute.xlu0 %275
    %277 = vrot.lane.b32.xlu0 %v239, 126
    %v278 = vpop.permute.xlu0 %277
    %279 = vrot.lane.b32.xlu0 %v240, 126
    %v280 = vpop.permute.xlu0 %279
    %281 = vrot.lane.b32.xlu0 %v241, 126
    %v282 = vpop.permute.xlu0 %281
    %283 = vrot.lane.b32.xlu0 %v242, 126
    %v284 = vpop.permute.xlu0 %283
    %285 = vrot.lane.b32.xlu0 %v243, 126
    %v286 = vpop.permute.xlu0 %285
    %287 = vrot.lane.b32.xlu0 %v244, 126
    %v288 = vpop.permute.xlu0 %287
    %289 = vrot.lane.b32.xlu0 %v245, 126
    %v290 = vpop.permute.xlu0 %289
    %291 = vrot.lane.b32.xlu0 %v246, 126
    %v292 = vpop.permute.xlu0 %291
    %293 = vrot.lane.b32.xlu0 %v247, 126
    %v294 = vpop.permute.xlu0 %293
    %295 = vrot.lane.b32.xlu0 %v248, 126
    %v296 = vpop.permute.xlu0 %295
    %v313 = vadd.f32 %v215, %v266
    %v314 = vadd.f32 %v216, %v268
    %v315 = vadd.f32 %v217, %v270
    %v316 = vadd.f32 %v218, %v272
    %v317 = vadd.f32 %v219, %v274
    %v318 = vadd.f32 %v220, %v276
    %v319 = vadd.f32 %v221, %v278
    %v320 = vadd.f32 %v222, %v280
    %v321 = vadd.f32 %v223, %v282
    %v322 = vadd.f32 %v224, %v284
    %v323 = vadd.f32 %v225, %v286
    %v324 = vadd.f32 %v226, %v288
    %v325 = vadd.f32 %v227, %v290
    %v326 = vadd.f32 %v228, %v292
    %v327 = vadd.f32 %v229, %v294
    %v328 = vadd.f32 %v230, %v296
    %s329 = sld [smem:[#allocation2 + $0x3]]
    %v330 = vstv %s329
    %v331 = vmul.f32 %v83, %v330
    %v332 = vmul.f32 %v84, %v330
    %v333 = vmul.f32 %v85, %v330
    %v334 = vmul.f32 %v86, %v330
    %v335 = vmul.f32 %v87, %v330
    %v336 = vmul.f32 %v88, %v330
    %v337 = vmul.f32 %v89, %v330
    %v338 = vmul.f32 %v90, %v330
    %v339 = vmul.f32 %v91, %v330
    %v340 = vmul.f32 %v92, %v330
    %v341 = vmul.f32 %v93, %v330
    %v342 = vmul.f32 %v94, %v330
    %v343 = vmul.f32 %v95, %v330
    %v344 = vmul.f32 %v96, %v330
    %v345 = vmul.f32 %v97, %v330
    %v346 = vmul.f32 %v98, %v330
    %363 = vrot.lane.b32.xlu0 %v331, 125
    %v364 = vpop.permute.xlu0 %363
    %365 = vrot.lane.b32.xlu0 %v332, 125
    %v366 = vpop.permute.xlu0 %365
    %367 = vrot.lane.b32.xlu0 %v333, 125
    %v368 = vpop.permute.xlu0 %367
    %369 = vrot.lane.b32.xlu0 %v334, 125
    %v370 = vpop.permute.xlu0 %369
    %371 = vrot.lane.b32.xlu0 %v335, 125
    %v372 = vpop.permute.xlu0 %371
    %373 = vrot.lane.b32.xlu0 %v336, 125
    %v374 = vpop.permute.xlu0 %373
    %375 = vrot.lane.b32.xlu0 %v337, 125
    %v376 = vpop.permute.xlu0 %375
    %377 = vrot.lane.b32.xlu0 %v338, 125
    %v378 = vpop.permute.xlu0 %377
    %379 = vrot.lane.b32.xlu0 %v339, 125
    %v380 = vpop.permute.xlu0 %379
    %381 = vrot.lane.b32.xlu0 %v340, 125
    %v382 = vpop.permute.xlu0 %381
    %383 = vrot.lane.b32.xlu0 %v341, 125
    %v384 = vpop.permute.xlu0 %383
    %385 = vrot.lane.b32.xlu0 %v342, 125
    %v386 = vpop.permute.xlu0 %385
    %387 = vrot.lane.b32.xlu0 %v343, 125
    %v388 = vpop.permute.xlu0 %387
    %389 = vrot.lane.b32.xlu0 %v344, 125
    %v390 = vpop.permute.xlu0 %389
    %391 = vrot.lane.b32.xlu0 %v345, 125
    %v392 = vpop.permute.xlu0 %391
    %393 = vrot.lane.b32.xlu0 %v346, 125
    %v394 = vpop.permute.xlu0 %393
    %v411 = vadd.f32 %v313, %v364
    %v412 = vadd.f32 %v314, %v366
    %v413 = vadd.f32 %v315, %v368
    %v414 = vadd.f32 %v316, %v370
    %v415 = vadd.f32 %v317, %v372
    %v416 = vadd.f32 %v318, %v374
    %v417 = vadd.f32 %v319, %v376
    %v418 = vadd.f32 %v320, %v378
    %v419 = vadd.f32 %v321, %v380
    %v420 = vadd.f32 %v322, %v382
    %v421 = vadd.f32 %v323, %v384
    %v422 = vadd.f32 %v324, %v386
    %v423 = vadd.f32 %v325, %v388
    %v424 = vadd.f32 %v326, %v390
    %v425 = vadd.f32 %v327, %v392
    %v426 = vadd.f32 %v328, %v394
    %s427 = sld [smem:[#allocation2 + $0x4]]
    %v428 = vstv %s427
    %v429 = vmul.f32 %v83, %v428
    %v430 = vmul.f32 %v84, %v428
    %v431 = vmul.f32 %v85, %v428
    %v432 = vmul.f32 %v86, %v428
    %v433 = vmul.f32 %v87, %v428
    %v434 = vmul.f32 %v88, %v428
    %v435 = vmul.f32 %v89, %v428
    %v436 = vmul.f32 %v90, %v428
    %v437 = vmul.f32 %v91, %v428
    %v438 = vmul.f32 %v92, %v428
    %v439 = vmul.f32 %v93, %v428
    %v440 = vmul.f32 %v94, %v428
    %v441 = vmul.f32 %v95, %v428
    %v442 = vmul.f32 %v96, %v428
    %v443 = vmul.f32 %v97, %v428
    %v444 = vmul.f32 %v98, %v428
    %461 = vrot.lane.b32.xlu0 %v429, 124
    %v462 = vpop.permute.xlu0 %461
    %463 = vrot.lane.b32.xlu0 %v430, 124
    %v464 = vpop.permute.xlu0 %463
    %465 = vrot.lane.b32.xlu0 %v431, 124
    %v466 = vpop.permute.xlu0 %465
    %467 = vrot.lane.b32.xlu0 %v432, 124
    %v468 = vpop.permute.xlu0 %467
    %469 = vrot.lane.b32.xlu0 %v433, 124
    %v470 = vpop.permute.xlu0 %469
    %471 = vrot.lane.b32.xlu0 %v434, 124
    %v472 = vpop.permute.xlu0 %471
    %473 = vrot.lane.b32.xlu0 %v435, 124
    %v474 = vpop.permute.xlu0 %473
    %475 = vrot.lane.b32.xlu0 %v436, 124
    %v476 = vpop.permute.xlu0 %475
    %477 = vrot.lane.b32.xlu0 %v437, 124
    %v478 = vpop.permute.xlu0 %477
    %479 = vrot.lane.b32.xlu0 %v438, 124
    %v480 = vpop.permute.xlu0 %479
    %481 = vrot.lane.b32.xlu0 %v439, 124
    %v482 = vpop.permute.xlu0 %481
    %483 = vrot.lane.b32.xlu0 %v440, 124
    %v484 = vpop.permute.xlu0 %483
    %485 = vrot.lane.b32.xlu0 %v441, 124
    %v486 = vpop.permute.xlu0 %485
    %487 = vrot.lane.b32.xlu0 %v442, 124
    %v488 = vpop.permute.xlu0 %487
    %489 = vrot.lane.b32.xlu0 %v443, 124
    %v490 = vpop.permute.xlu0 %489
    %491 = vrot.lane.b32.xlu0 %v444, 124
    %v492 = vpop.permute.xlu0 %491
    %v509 = vadd.f32 %v411, %v462
    %v510 = vadd.f32 %v412, %v464
    %v511 = vadd.f32 %v413, %v466
    %v512 = vadd.f32 %v414, %v468
    %v513 = vadd.f32 %v415, %v470
    %v514 = vadd.f32 %v416, %v472
    %v515 = vadd.f32 %v417, %v474
    %v516 = vadd.f32 %v418, %v476
    %v517 = vadd.f32 %v419, %v478
    %v518 = vadd.f32 %v420, %v480
    %v519 = vadd.f32 %v421, %v482
    %v520 = vadd.f32 %v422, %v484
    %v521 = vadd.f32 %v423, %v486
    %v522 = vadd.f32 %v424, %v488
    %v523 = vadd.f32 %v425, %v490
    %v524 = vadd.f32 %v426, %v492
    %s525 = sld [smem:[#allocation2 + $0x5]]
    %v526 = vstv %s525
    %v527 = vmul.f32 %v83, %v526
    %v528 = vmul.f32 %v84, %v526
    %v529 = vmul.f32 %v85, %v526
    %v530 = vmul.f32 %v86, %v526
    %v531 = vmul.f32 %v87, %v526
    %v532 = vmul.f32 %v88, %v526
    %v533 = vmul.f32 %v89, %v526
    %v534 = vmul.f32 %v90, %v526
    %v535 = vmul.f32 %v91, %v526
    %v536 = vmul.f32 %v92, %v526
    %v537 = vmul.f32 %v93, %v526
    %v538 = vmul.f32 %v94, %v526
    %v539 = vmul.f32 %v95, %v526
    %v540 = vmul.f32 %v96, %v526
    %v541 = vmul.f32 %v97, %v526
    %v542 = vmul.f32 %v98, %v526
    %v559 = vrot.slane %v527, 1
    %v560 = vrot.slane %v528, 1
    %v561 = vrot.slane %v529, 1
    %v562 = vrot.slane %v530, 1
    %v563 = vrot.slane %v531, 1
    %v564 = vrot.slane %v532, 1
    %v565 = vrot.slane %v533, 1
    %v566 = vrot.slane %v534, 1
    %v567 = vrot.slane %v535, 1
    %v568 = vrot.slane %v536, 1
    %v569 = vrot.slane %v537, 1
    %v570 = vrot.slane %v538, 1
    %v571 = vrot.slane %v539, 1
    %v572 = vrot.slane %v540, 1
    %v573 = vrot.slane %v541, 1
    %v574 = vrot.slane %v542, 1
    %v591 = vadd.f32 %v509, %v559
    %v592 = vadd.f32 %v510, %v560
    %v593 = vadd.f32 %v511, %v561
    %v594 = vadd.f32 %v512, %v562
    %v595 = vadd.f32 %v513, %v563
    %v596 = vadd.f32 %v514, %v564
    %v597 = vadd.f32 %v515, %v565
    %v598 = vadd.f32 %v516, %v566
    %v599 = vadd.f32 %v517, %v567
    %v600 = vadd.f32 %v518, %v568
    %v601 = vadd.f32 %v519, %v569
    %v602 = vadd.f32 %v520, %v570
    %v603 = vadd.f32 %v521, %v571
    %v604 = vadd.f32 %v522, %v572
    %v605 = vadd.f32 %v523, %v573
    %v606 = vadd.f32 %v524, %v574
    %s607 = sld [smem:[#allocation2 + $0x6]]
    %v608 = vstv %s607
    %v609 = vmul.f32 %v83, %v608
    %v610 = vmul.f32 %v84, %v608
    %v611 = vmul.f32 %v85, %v608
    %v612 = vmul.f32 %v86, %v608
    %v613 = vmul.f32 %v87, %v608
    %v614 = vmul.f32 %v88, %v608
    %v615 = vmul.f32 %v89, %v608
    %v616 = vmul.f32 %v90, %v608
    %v617 = vmul.f32 %v91, %v608
    %v618 = vmul.f32 %v92, %v608
    %v619 = vmul.f32 %v93, %v608
    %v620 = vmul.f32 %v94, %v608
    %v621 = vmul.f32 %v95, %v608
    %v622 = vmul.f32 %v96, %v608
    %v623 = vmul.f32 %v97, %v608
    %v624 = vmul.f32 %v98, %v608
    %v641 = vrot.slane %v609, 1
    %v642 = vrot.slane %v610, 1
    %v643 = vrot.slane %v611, 1
    %v644 = vrot.slane %v612, 1
    %v645 = vrot.slane %v613, 1
    %v646 = vrot.slane %v614, 1
    %v647 = vrot.slane %v615, 1
    %v648 = vrot.slane %v616, 1
    %v649 = vrot.slane %v617, 1
    %v650 = vrot.slane %v618, 1
    %v651 = vrot.slane %v619, 1
    %v652 = vrot.slane %v620, 1
    %v653 = vrot.slane %v621, 1
    %v654 = vrot.slane %v622, 1
    %v655 = vrot.slane %v623, 1
    %v656 = vrot.slane %v624, 1
    %657 = vrot.lane.b32.xlu0 %v641, 127
    %v658 = vpop.permute.xlu0 %657
    %659 = vrot.lane.b32.xlu0 %v642, 127
    %v660 = vpop.permute.xlu0 %659
    %661 = vrot.lane.b32.xlu0 %v643, 127
    %v662 = vpop.permute.xlu0 %661
    %663 = vrot.lane.b32.xlu0 %v644, 127
    %v664 = vpop.permute.xlu0 %663
    %665 = vrot.lane.b32.xlu0 %v645, 127
    %v666 = vpop.permute.xlu0 %665
    %667 = vrot.lane.b32.xlu0 %v646, 127
    %v668 = vpop.permute.xlu0 %667
    %669 = vrot.lane.b32.xlu0 %v647, 127
    %v670 = vpop.permute.xlu0 %669
    %671 = vrot.lane.b32.xlu0 %v648, 127
    %v672 = vpop.permute.xlu0 %671
    %673 = vrot.lane.b32.xlu0 %v649, 127
    %v674 = vpop.permute.xlu0 %673
    %675 = vrot.lane.b32.xlu0 %v650, 127
    %v676 = vpop.permute.xlu0 %675
    %677 = vrot.lane.b32.xlu0 %v651, 127
    %v678 = vpop.permute.xlu0 %677
    %679 = vrot.lane.b32.xlu0 %v652, 127
    %v680 = vpop.permute.xlu0 %679
    %681 = vrot.lane.b32.xlu0 %v653, 127
    %v682 = vpop.permute.xlu0 %681
    %683 = vrot.lane.b32.xlu0 %v654, 127
    %v684 = vpop.permute.xlu0 %683
    %685 = vrot.lane.b32.xlu0 %v655, 127
    %v686 = vpop.permute.xlu0 %685
    %687 = vrot.lane.b32.xlu0 %v656, 127
    %v688 = vpop.permute.xlu0 %687
    %v705 = vadd.f32 %v591, %v658
    %v706 = vadd.f32 %v592, %v660
    %v707 = vadd.f32 %v593, %v662
    %v708 = vadd.f32 %v594, %v664
    %v709 = vadd.f32 %v595, %v666
    %v710 = vadd.f32 %v596, %v668
    %v711 = vadd.f32 %v597, %v670
    %v712 = vadd.f32 %v598, %v672
    %v713 = vadd.f32 %v599, %v674
    %v714 = vadd.f32 %v600, %v676
    %v715 = vadd.f32 %v601, %v678
    %v716 = vadd.f32 %v602, %v680
    %v717 = vadd.f32 %v603, %v682
    %v718 = vadd.f32 %v604, %v684
    %v719 = vadd.f32 %v605, %v686
    %v720 = vadd.f32 %v606, %v688
    %s721 = sld [smem:[#allocation2 + $0x7]]
    %v722 = vstv %s721
    %v723 = vmul.f32 %v83, %v722
    %v724 = vmul.f32 %v84, %v722
    %v725 = vmul.f32 %v85, %v722
    %v726 = vmul.f32 %v86, %v722
    %v727 = vmul.f32 %v87, %v722
    %v728 = vmul.f32 %v88, %v722
    %v729 = vmul.f32 %v89, %v722
    %v730 = vmul.f32 %v90, %v722
    %v731 = vmul.f32 %v91, %v722
    %v732 = vmul.f32 %v92, %v722
    %v733 = vmul.f32 %v93, %v722
    %v734 = vmul.f32 %v94, %v722
    %v735 = vmul.f32 %v95, %v722
    %v736 = vmul.f32 %v96, %v722
    %v737 = vmul.f32 %v97, %v722
    %v738 = vmul.f32 %v98, %v722
    %v755 = vrot.slane %v723, 1
    %v756 = vrot.slane %v724, 1
    %v757 = vrot.slane %v725, 1
    %v758 = vrot.slane %v726, 1
    %v759 = vrot.slane %v727, 1
    %v760 = vrot.slane %v728, 1
    %v761 = vrot.slane %v729, 1
    %v762 = vrot.slane %v730, 1
    %v763 = vrot.slane %v731, 1
    %v764 = vrot.slane %v732, 1
    %v765 = vrot.slane %v733, 1
    %v766 = vrot.slane %v734, 1
    %v767 = vrot.slane %v735, 1
    %v768 = vrot.slane %v736, 1
    %v769 = vrot.slane %v737, 1
    %v770 = vrot.slane %v738, 1
    %771 = vrot.lane.b32.xlu0 %v755, 126
    %v772 = vpop.permute.xlu0 %771
    %773 = vrot.lane.b32.xlu0 %v756, 126
    %v774 = vpop.permute.xlu0 %773
    %775 = vrot.lane.b32.xlu0 %v757, 126
    %v776 = vpop.permute.xlu0 %775
    %777 = vrot.lane.b32.xlu0 %v758, 126
    %v778 = vpop.permute.xlu0 %777
    %779 = vrot.lane.b32.xlu0 %v759, 126
    %v780 = vpop.permute.xlu0 %779
    %781 = vrot.lane.b32.xlu0 %v760, 126
    %v782 = vpop.permute.xlu0 %781
    %783 = vrot.lane.b32.xlu0 %v761, 126
    %v784 = vpop.permute.xlu0 %783
    %785 = vrot.lane.b32.xlu0 %v762, 126
    %v786 = vpop.permute.xlu0 %785
    %787 = vrot.lane.b32.xlu0 %v763, 126
    %v788 = vpop.permute.xlu0 %787
    %789 = vrot.lane.b32.xlu0 %v764, 126
    %v790 = vpop.permute.xlu0 %789
    %791 = vrot.lane.b32.xlu0 %v765, 126
    %v792 = vpop.permute.xlu0 %791
    %793 = vrot.lane.b32.xlu0 %v766, 126
    %v794 = vpop.permute.xlu0 %793
    %795 = vrot.lane.b32.xlu0 %v767, 126
    %v796 = vpop.permute.xlu0 %795
    %797 = vrot.lane.b32.xlu0 %v768, 126
    %v798 = vpop.permute.xlu0 %797
    %799 = vrot.lane.b32.xlu0 %v769, 126
    %v800 = vpop.permute.xlu0 %799
    %801 = vrot.lane.b32.xlu0 %v770, 126
    %v802 = vpop.permute.xlu0 %801
    %v819 = vadd.f32 %v705, %v772
    %v820 = vadd.f32 %v706, %v774
    %v821 = vadd.f32 %v707, %v776
    %v822 = vadd.f32 %v708, %v778
    %v823 = vadd.f32 %v709, %v780
    %v824 = vadd.f32 %v710, %v782
    %v825 = vadd.f32 %v711, %v784
    %v826 = vadd.f32 %v712, %v786
    %v827 = vadd.f32 %v713, %v788
    %v828 = vadd.f32 %v714, %v790
    %v829 = vadd.f32 %v715, %v792
    %v830 = vadd.f32 %v716, %v794
    %v831 = vadd.f32 %v717, %v796
    %v832 = vadd.f32 %v718, %v798
    %v833 = vadd.f32 %v719, %v800
    %v834 = vadd.f32 %v720, %v802
    %s835 = sld [smem:[#allocation2 + $0x8]]
    %v836 = vstv %s835
    %v837 = vmul.f32 %v83, %v836
    %v838 = vmul.f32 %v84, %v836
    %v839 = vmul.f32 %v85, %v836
    %v840 = vmul.f32 %v86, %v836
    %v841 = vmul.f32 %v87, %v836
    %v842 = vmul.f32 %v88, %v836
    %v843 = vmul.f32 %v89, %v836
    %v844 = vmul.f32 %v90, %v836
    %v845 = vmul.f32 %v91, %v836
    %v846 = vmul.f32 %v92, %v836
    %v847 = vmul.f32 %v93, %v836
    %v848 = vmul.f32 %v94, %v836
    %v849 = vmul.f32 %v95, %v836
    %v850 = vmul.f32 %v96, %v836
    %v851 = vmul.f32 %v97, %v836
    %v852 = vmul.f32 %v98, %v836
    %v869 = vrot.slane %v837, 1
    %v870 = vrot.slane %v838, 1
    %v871 = vrot.slane %v839, 1
    %v872 = vrot.slane %v840, 1
    %v873 = vrot.slane %v841, 1
    %v874 = vrot.slane %v842, 1
    %v875 = vrot.slane %v843, 1
    %v876 = vrot.slane %v844, 1
    %v877 = vrot.slane %v845, 1
    %v878 = vrot.slane %v846, 1
    %v879 = vrot.slane %v847, 1
    %v880 = vrot.slane %v848, 1
    %v881 = vrot.slane %v849, 1
    %v882 = vrot.slane %v850, 1
    %v883 = vrot.slane %v851, 1
    %v884 = vrot.slane %v852, 1
    %885 = vrot.lane.b32.xlu0 %v869, 125
    %v886 = vpop.permute.xlu0 %885
    %887 = vrot.lane.b32.xlu0 %v870, 125
    %v888 = vpop.permute.xlu0 %887
    %889 = vrot.lane.b32.xlu0 %v871, 125
    %v890 = vpop.permute.xlu0 %889
    %891 = vrot.lane.b32.xlu0 %v872, 125
    %v892 = vpop.permute.xlu0 %891
    %893 = vrot.lane.b32.xlu0 %v873, 125
    %v894 = vpop.permute.xlu0 %893
    %895 = vrot.lane.b32.xlu0 %v874, 125
    %v896 = vpop.permute.xlu0 %895
    %897 = vrot.lane.b32.xlu0 %v875, 125
    %v898 = vpop.permute.xlu0 %897
    %899 = vrot.lane.b32.xlu0 %v876, 125
    %v900 = vpop.permute.xlu0 %899
    %901 = vrot.lane.b32.xlu0 %v877, 125
    %v902 = vpop.permute.xlu0 %901
    %903 = vrot.lane.b32.xlu0 %v878, 125
    %v904 = vpop.permute.xlu0 %903
    %905 = vrot.lane.b32.xlu0 %v879, 125
    %v906 = vpop.permute.xlu0 %905
    %907 = vrot.lane.b32.xlu0 %v880, 125
    %v908 = vpop.permute.xlu0 %907
    %909 = vrot.lane.b32.xlu0 %v881, 125
    %v910 = vpop.permute.xlu0 %909
    %911 = vrot.lane.b32.xlu0 %v882, 125
    %v912 = vpop.permute.xlu0 %911
    %913 = vrot.lane.b32.xlu0 %v883, 125
    %v914 = vpop.permute.xlu0 %913
    %915 = vrot.lane.b32.xlu0 %v884, 125
    %v916 = vpop.permute.xlu0 %915
    %v933 = vadd.f32 %v819, %v886
    %v934 = vadd.f32 %v820, %v888
    %v935 = vadd.f32 %v821, %v890
    %v936 = vadd.f32 %v822, %v892
    %v937 = vadd.f32 %v823, %v894
    %v938 = vadd.f32 %v824, %v896
    %v939 = vadd.f32 %v825, %v898
    %v940 = vadd.f32 %v826, %v900
    %v941 = vadd.f32 %v827, %v902
    %v942 = vadd.f32 %v828, %v904
    %v943 = vadd.f32 %v829, %v906
    %v944 = vadd.f32 %v830, %v908
    %v945 = vadd.f32 %v831, %v910
    %v946 = vadd.f32 %v832, %v912
    %v947 = vadd.f32 %v833, %v914
    %v948 = vadd.f32 %v834, %v916
    %s949 = sld [smem:[#allocation2 + $0x9]]
    %v950 = vstv %s949
    %v951 = vmul.f32 %v83, %v950
    %v952 = vmul.f32 %v84, %v950
    %v953 = vmul.f32 %v85, %v950
    %v954 = vmul.f32 %v86, %v950
    %v955 = vmul.f32 %v87, %v950
    %v956 = vmul.f32 %v88, %v950
    %v957 = vmul.f32 %v89, %v950
    %v958 = vmul.f32 %v90, %v950
    %v959 = vmul.f32 %v91, %v950
    %v960 = vmul.f32 %v92, %v950
    %v961 = vmul.f32 %v93, %v950
    %v962 = vmul.f32 %v94, %v950
    %v963 = vmul.f32 %v95, %v950
    %v964 = vmul.f32 %v96, %v950
    %v965 = vmul.f32 %v97, %v950
    %v966 = vmul.f32 %v98, %v950
    %v983 = vrot.slane %v951, 1
    %v984 = vrot.slane %v952, 1
    %v985 = vrot.slane %v953, 1
    %v986 = vrot.slane %v954, 1
    %v987 = vrot.slane %v955, 1
    %v988 = vrot.slane %v956, 1
    %v989 = vrot.slane %v957, 1
    %v990 = vrot.slane %v958, 1
    %v991 = vrot.slane %v959, 1
    %v992 = vrot.slane %v960, 1
    %v993 = vrot.slane %v961, 1
    %v994 = vrot.slane %v962, 1
    %v995 = vrot.slane %v963, 1
    %v996 = vrot.slane %v964, 1
    %v997 = vrot.slane %v965, 1
    %v998 = vrot.slane %v966, 1
    %999 = vrot.lane.b32.xlu0 %v983, 124
    %v1000 = vpop.permute.xlu0 %999
    %1001 = vrot.lane.b32.xlu0 %v984, 124
    %v1002 = vpop.permute.xlu0 %1001
    %1003 = vrot.lane.b32.xlu0 %v985, 124
    %v1004 = vpop.permute.xlu0 %1003
    %1005 = vrot.lane.b32.xlu0 %v986, 124
    %v1006 = vpop.permute.xlu0 %1005
    %1007 = vrot.lane.b32.xlu0 %v987, 124
    %v1008 = vpop.permute.xlu0 %1007
    %1009 = vrot.lane.b32.xlu0 %v988, 124
    %v1010 = vpop.permute.xlu0 %1009
    %1011 = vrot.lane.b32.xlu0 %v989, 124
    %v1012 = vpop.permute.xlu0 %1011
    %1013 = vrot.lane.b32.xlu0 %v990, 124
    %v1014 = vpop.permute.xlu0 %1013
    %1015 = vrot.lane.b32.xlu0 %v991, 124
    %v1016 = vpop.permute.xlu0 %1015
    %1017 = vrot.lane.b32.xlu0 %v992, 124
    %v1018 = vpop.permute.xlu0 %1017
    %1019 = vrot.lane.b32.xlu0 %v993, 124
    %v1020 = vpop.permute.xlu0 %1019
    %1021 = vrot.lane.b32.xlu0 %v994, 124
    %v1022 = vpop.permute.xlu0 %1021
    %1023 = vrot.lane.b32.xlu0 %v995, 124
    %v1024 = vpop.permute.xlu0 %1023
    %1025 = vrot.lane.b32.xlu0 %v996, 124
    %v1026 = vpop.permute.xlu0 %1025
    %1027 = vrot.lane.b32.xlu0 %v997, 124
    %v1028 = vpop.permute.xlu0 %1027
    %1029 = vrot.lane.b32.xlu0 %v998, 124
    %v1030 = vpop.permute.xlu0 %1029
    %v1047 = vadd.f32 %v933, %v1000
    %v1048 = vadd.f32 %v934, %v1002
    %v1049 = vadd.f32 %v935, %v1004
    %v1050 = vadd.f32 %v936, %v1006
    %v1051 = vadd.f32 %v937, %v1008
    %v1052 = vadd.f32 %v938, %v1010
    %v1053 = vadd.f32 %v939, %v1012
    %v1054 = vadd.f32 %v940, %v1014
    %v1055 = vadd.f32 %v941, %v1016
    %v1056 = vadd.f32 %v942, %v1018
    %v1057 = vadd.f32 %v943, %v1020
    %v1058 = vadd.f32 %v944, %v1022
    %v1059 = vadd.f32 %v945, %v1024
    %v1060 = vadd.f32 %v946, %v1026
    %v1061 = vadd.f32 %v947, %v1028
    %v1062 = vadd.f32 %v948, %v1030
    %s1063 = sld [smem:[#allocation2 + $0xa]]
    %v1064 = vstv %s1063
    %v1065 = vmul.f32 %v83, %v1064
    %v1066 = vmul.f32 %v84, %v1064
    %v1067 = vmul.f32 %v85, %v1064
    %v1068 = vmul.f32 %v86, %v1064
    %v1069 = vmul.f32 %v87, %v1064
    %v1070 = vmul.f32 %v88, %v1064
    %v1071 = vmul.f32 %v89, %v1064
    %v1072 = vmul.f32 %v90, %v1064
    %v1073 = vmul.f32 %v91, %v1064
    %v1074 = vmul.f32 %v92, %v1064
    %v1075 = vmul.f32 %v93, %v1064
    %v1076 = vmul.f32 %v94, %v1064
    %v1077 = vmul.f32 %v95, %v1064
    %v1078 = vmul.f32 %v96, %v1064
    %v1079 = vmul.f32 %v97, %v1064
    %v1080 = vmul.f32 %v98, %v1064
    %v1097 = vrot.slane %v1065, 2
    %v1098 = vrot.slane %v1066, 2
    %v1099 = vrot.slane %v1067, 2
    %v1100 = vrot.slane %v1068, 2
    %v1101 = vrot.slane %v1069, 2
    %v1102 = vrot.slane %v1070, 2
    %v1103 = vrot.slane %v1071, 2
    %v1104 = vrot.slane %v1072, 2
    %v1105 = vrot.slane %v1073, 2
    %v1106 = vrot.slane %v1074, 2
    %v1107 = vrot.slane %v1075, 2
    %v1108 = vrot.slane %v1076, 2
    %v1109 = vrot.slane %v1077, 2
    %v1110 = vrot.slane %v1078, 2
    %v1111 = vrot.slane %v1079, 2
    %v1112 = vrot.slane %v1080, 2
    %v1129 = vadd.f32 %v1047, %v1097
    %v1130 = vadd.f32 %v1048, %v1098
    %v1131 = vadd.f32 %v1049, %v1099
    %v1132 = vadd.f32 %v1050, %v1100
    %v1133 = vadd.f32 %v1051, %v1101
    %v1134 = vadd.f32 %v1052, %v1102
    %v1135 = vadd.f32 %v1053, %v1103
    %v1136 = vadd.f32 %v1054, %v1104
    %v1137 = vadd.f32 %v1055, %v1105
    %v1138 = vadd.f32 %v1056, %v1106
    %v1139 = vadd.f32 %v1057, %v1107
    %v1140 = vadd.f32 %v1058, %v1108
    %v1141 = vadd.f32 %v1059, %v1109
    %v1142 = vadd.f32 %v1060, %v1110
    %v1143 = vadd.f32 %v1061, %v1111
    %v1144 = vadd.f32 %v1062, %v1112
    %s1145 = sld [smem:[#allocation2 + $0xb]]
    %v1146 = vstv %s1145
    %v1147 = vmul.f32 %v83, %v1146
    %v1148 = vmul.f32 %v84, %v1146
    %v1149 = vmul.f32 %v85, %v1146
    %v1150 = vmul.f32 %v86, %v1146
    %v1151 = vmul.f32 %v87, %v1146
    %v1152 = vmul.f32 %v88, %v1146
    %v1153 = vmul.f32 %v89, %v1146
    %v1154 = vmul.f32 %v90, %v1146
    %v1155 = vmul.f32 %v91, %v1146
    %v1156 = vmul.f32 %v92, %v1146
    %v1157 = vmul.f32 %v93, %v1146
    %v1158 = vmul.f32 %v94, %v1146
    %v1159 = vmul.f32 %v95, %v1146
    %v1160 = vmul.f32 %v96, %v1146
    %v1161 = vmul.f32 %v97, %v1146
    %v1162 = vmul.f32 %v98, %v1146
    %v1179 = vrot.slane %v1147, 2
    %v1180 = vrot.slane %v1148, 2
    %v1181 = vrot.slane %v1149, 2
    %v1182 = vrot.slane %v1150, 2
    %v1183 = vrot.slane %v1151, 2
    %v1184 = vrot.slane %v1152, 2
    %v1185 = vrot.slane %v1153, 2
    %v1186 = vrot.slane %v1154, 2
    %v1187 = vrot.slane %v1155, 2
    %v1188 = vrot.slane %v1156, 2
    %v1189 = vrot.slane %v1157, 2
    %v1190 = vrot.slane %v1158, 2
    %v1191 = vrot.slane %v1159, 2
    %v1192 = vrot.slane %v1160, 2
    %v1193 = vrot.slane %v1161, 2
    %v1194 = vrot.slane %v1162, 2
    %1195 = vrot.lane.b32.xlu0 %v1179, 127
    %v1196 = vpop.permute.xlu0 %1195
    %1197 = vrot.lane.b32.xlu0 %v1180, 127
    %v1198 = vpop.permute.xlu0 %1197
    %1199 = vrot.lane.b32.xlu0 %v1181, 127
    %v1200 = vpop.permute.xlu0 %1199
    %1201 = vrot.lane.b32.xlu0 %v1182, 127
    %v1202 = vpop.permute.xlu0 %1201
    %1203 = vrot.lane.b32.xlu0 %v1183, 127
    %v1204 = vpop.permute.xlu0 %1203
    %1205 = vrot.lane.b32.xlu0 %v1184, 127
    %v1206 = vpop.permute.xlu0 %1205
    %1207 = vrot.lane.b32.xlu0 %v1185, 127
    %v1208 = vpop.permute.xlu0 %1207
    %1209 = vrot.lane.b32.xlu0 %v1186, 127
    %v1210 = vpop.permute.xlu0 %1209
    %1211 = vrot.lane.b32.xlu0 %v1187, 127
    %v1212 = vpop.permute.xlu0 %1211
    %1213 = vrot.lane.b32.xlu0 %v1188, 127
    %v1214 = vpop.permute.xlu0 %1213
    %1215 = vrot.lane.b32.xlu0 %v1189, 127
    %v1216 = vpop.permute.xlu0 %1215
    %1217 = vrot.lane.b32.xlu0 %v1190, 127
    %v1218 = vpop.permute.xlu0 %1217
    %1219 = vrot.lane.b32.xlu0 %v1191, 127
    %v1220 = vpop.permute.xlu0 %1219
    %1221 = vrot.lane.b32.xlu0 %v1192, 127
    %v1222 = vpop.permute.xlu0 %1221
    %1223 = vrot.lane.b32.xlu0 %v1193, 127
    %v1224 = vpop.permute.xlu0 %1223
    %1225 = vrot.lane.b32.xlu0 %v1194, 127
    %v1226 = vpop.permute.xlu0 %1225
    %v1243 = vadd.f32 %v1129, %v1196
    %v1244 = vadd.f32 %v1130, %v1198
    %v1245 = vadd.f32 %v1131, %v1200
    %v1246 = vadd.f32 %v1132, %v1202
    %v1247 = vadd.f32 %v1133, %v1204
    %v1248 = vadd.f32 %v1134, %v1206
    %v1249 = vadd.f32 %v1135, %v1208
    %v1250 = vadd.f32 %v1136, %v1210
    %v1251 = vadd.f32 %v1137, %v1212
    %v1252 = vadd.f32 %v1138, %v1214
    %v1253 = vadd.f32 %v1139, %v1216
    %v1254 = vadd.f32 %v1140, %v1218
    %v1255 = vadd.f32 %v1141, %v1220
    %v1256 = vadd.f32 %v1142, %v1222
    %v1257 = vadd.f32 %v1143, %v1224
    %v1258 = vadd.f32 %v1144, %v1226
    %s1259 = sld [smem:[#allocation2 + $0xc]]
    %v1260 = vstv %s1259
    %v1261 = vmul.f32 %v83, %v1260
    %v1262 = vmul.f32 %v84, %v1260
    %v1263 = vmul.f32 %v85, %v1260
    %v1264 = vmul.f32 %v86, %v1260
    %v1265 = vmul.f32 %v87, %v1260
    %v1266 = vmul.f32 %v88, %v1260
    %v1267 = vmul.f32 %v89, %v1260
    %v1268 = vmul.f32 %v90, %v1260
    %v1269 = vmul.f32 %v91, %v1260
    %v1270 = vmul.f32 %v92, %v1260
    %v1271 = vmul.f32 %v93, %v1260
    %v1272 = vmul.f32 %v94, %v1260
    %v1273 = vmul.f32 %v95, %v1260
    %v1274 = vmul.f32 %v96, %v1260
    %v1275 = vmul.f32 %v97, %v1260
    %v1276 = vmul.f32 %v98, %v1260
    %v1293 = vrot.slane %v1261, 2
    %v1294 = vrot.slane %v1262, 2
    %v1295 = vrot.slane %v1263, 2
    %v1296 = vrot.slane %v1264, 2
    %v1297 = vrot.slane %v1265, 2
    %v1298 = vrot.slane %v1266, 2
    %v1299 = vrot.slane %v1267, 2
    %v1300 = vrot.slane %v1268, 2
    %v1301 = vrot.slane %v1269, 2
    %v1302 = vrot.slane %v1270, 2
    %v1303 = vrot.slane %v1271, 2
    %v1304 = vrot.slane %v1272, 2
    %v1305 = vrot.slane %v1273, 2
    %v1306 = vrot.slane %v1274, 2
    %v1307 = vrot.slane %v1275, 2
    %v1308 = vrot.slane %v1276, 2
    %1309 = vrot.lane.b32.xlu0 %v1293, 126
    %v1310 = vpop.permute.xlu0 %1309
    %1311 = vrot.lane.b32.xlu0 %v1294, 126
    %v1312 = vpop.permute.xlu0 %1311
    %1313 = vrot.lane.b32.xlu0 %v1295, 126
    %v1314 = vpop.permute.xlu0 %1313
    %1315 = vrot.lane.b32.xlu0 %v1296, 126
    %v1316 = vpop.permute.xlu0 %1315
    %1317 = vrot.lane.b32.xlu0 %v1297, 126
    %v1318 = vpop.permute.xlu0 %1317
    %1319 = vrot.lane.b32.xlu0 %v1298, 126
    %v1320 = vpop.permute.xlu0 %1319
    %1321 = vrot.lane.b32.xlu0 %v1299, 126
    %v1322 = vpop.permute.xlu0 %1321
    %1323 = vrot.lane.b32.xlu0 %v1300, 126
    %v1324 = vpop.permute.xlu0 %1323
    %1325 = vrot.lane.b32.xlu0 %v1301, 126
    %v1326 = vpop.permute.xlu0 %1325
    %1327 = vrot.lane.b32.xlu0 %v1302, 126
    %v1328 = vpop.permute.xlu0 %1327
    %1329 = vrot.lane.b32.xlu0 %v1303, 126
    %v1330 = vpop.permute.xlu0 %1329
    %1331 = vrot.lane.b32.xlu0 %v1304, 126
    %v1332 = vpop.permute.xlu0 %1331
    %1333 = vrot.lane.b32.xlu0 %v1305, 126
    %v1334 = vpop.permute.xlu0 %1333
    %1335 = vrot.lane.b32.xlu0 %v1306, 126
    %v1336 = vpop.permute.xlu0 %1335
    %1337 = vrot.lane.b32.xlu0 %v1307, 126
    %v1338 = vpop.permute.xlu0 %1337
    %1339 = vrot.lane.b32.xlu0 %v1308, 126
    %v1340 = vpop.permute.xlu0 %1339
    %v1357 = vadd.f32 %v1243, %v1310
    %v1358 = vadd.f32 %v1244, %v1312
    %v1359 = vadd.f32 %v1245, %v1314
    %v1360 = vadd.f32 %v1246, %v1316
    %v1361 = vadd.f32 %v1247, %v1318
    %v1362 = vadd.f32 %v1248, %v1320
    %v1363 = vadd.f32 %v1249, %v1322
    %v1364 = vadd.f32 %v1250, %v1324
    %v1365 = vadd.f32 %v1251, %v1326
    %v1366 = vadd.f32 %v1252, %v1328
    %v1367 = vadd.f32 %v1253, %v1330
    %v1368 = vadd.f32 %v1254, %v1332
    %v1369 = vadd.f32 %v1255, %v1334
    %v1370 = vadd.f32 %v1256, %v1336
    %v1371 = vadd.f32 %v1257, %v1338
    %v1372 = vadd.f32 %v1258, %v1340
    %s1373 = sld [smem:[#allocation2 + $0xd]]
    %v1374 = vstv %s1373
    %v1375 = vmul.f32 %v83, %v1374
    %v1376 = vmul.f32 %v84, %v1374
    %v1377 = vmul.f32 %v85, %v1374
    %v1378 = vmul.f32 %v86, %v1374
    %v1379 = vmul.f32 %v87, %v1374
    %v1380 = vmul.f32 %v88, %v1374
    %v1381 = vmul.f32 %v89, %v1374
    %v1382 = vmul.f32 %v90, %v1374
    %v1383 = vmul.f32 %v91, %v1374
    %v1384 = vmul.f32 %v92, %v1374
    %v1385 = vmul.f32 %v93, %v1374
    %v1386 = vmul.f32 %v94, %v1374
    %v1387 = vmul.f32 %v95, %v1374
    %v1388 = vmul.f32 %v96, %v1374
    %v1389 = vmul.f32 %v97, %v1374
    %v1390 = vmul.f32 %v98, %v1374
    %v1407 = vrot.slane %v1375, 2
    %v1408 = vrot.slane %v1376, 2
    %v1409 = vrot.slane %v1377, 2
    %v1410 = vrot.slane %v1378, 2
    %v1411 = vrot.slane %v1379, 2
    %v1412 = vrot.slane %v1380, 2
    %v1413 = vrot.slane %v1381, 2
    %v1414 = vrot.slane %v1382, 2
    %v1415 = vrot.slane %v1383, 2
    %v1416 = vrot.slane %v1384, 2
    %v1417 = vrot.slane %v1385, 2
    %v1418 = vrot.slane %v1386, 2
    %v1419 = vrot.slane %v1387, 2
    %v1420 = vrot.slane %v1388, 2
    %v1421 = vrot.slane %v1389, 2
    %v1422 = vrot.slane %v1390, 2
    %1423 = vrot.lane.b32.xlu0 %v1407, 125
    %v1424 = vpop.permute.xlu0 %1423
    %1425 = vrot.lane.b32.xlu0 %v1408, 125
    %v1426 = vpop.permute.xlu0 %1425
    %1427 = vrot.lane.b32.xlu0 %v1409, 125
    %v1428 = vpop.permute.xlu0 %1427
    %1429 = vrot.lane.b32.xlu0 %v1410, 125
    %v1430 = vpop.permute.xlu0 %1429
    %1431 = vrot.lane.b32.xlu0 %v1411, 125
    %v1432 = vpop.permute.xlu0 %1431
    %1433 = vrot.lane.b32.xlu0 %v1412, 125
    %v1434 = vpop.permute.xlu0 %1433
    %1435 = vrot.lane.b32.xlu0 %v1413, 125
    %v1436 = vpop.permute.xlu0 %1435
    %1437 = vrot.lane.b32.xlu0 %v1414, 125
    %v1438 = vpop.permute.xlu0 %1437
    %1439 = vrot.lane.b32.xlu0 %v1415, 125
    %v1440 = vpop.permute.xlu0 %1439
    %1441 = vrot.lane.b32.xlu0 %v1416, 125
    %v1442 = vpop.permute.xlu0 %1441
    %1443 = vrot.lane.b32.xlu0 %v1417, 125
    %v1444 = vpop.permute.xlu0 %1443
    %1445 = vrot.lane.b32.xlu0 %v1418, 125
    %v1446 = vpop.permute.xlu0 %1445
    %1447 = vrot.lane.b32.xlu0 %v1419, 125
    %v1448 = vpop.permute.xlu0 %1447
    %1449 = vrot.lane.b32.xlu0 %v1420, 125
    %v1450 = vpop.permute.xlu0 %1449
    %1451 = vrot.lane.b32.xlu0 %v1421, 125
    %v1452 = vpop.permute.xlu0 %1451
    %1453 = vrot.lane.b32.xlu0 %v1422, 125
    %v1454 = vpop.permute.xlu0 %1453
    %v1471 = vadd.f32 %v1357, %v1424
    %v1472 = vadd.f32 %v1358, %v1426
    %v1473 = vadd.f32 %v1359, %v1428
    %v1474 = vadd.f32 %v1360, %v1430
    %v1475 = vadd.f32 %v1361, %v1432
    %v1476 = vadd.f32 %v1362, %v1434
    %v1477 = vadd.f32 %v1363, %v1436
    %v1478 = vadd.f32 %v1364, %v1438
    %v1479 = vadd.f32 %v1365, %v1440
    %v1480 = vadd.f32 %v1366, %v1442
    %v1481 = vadd.f32 %v1367, %v1444
    %v1482 = vadd.f32 %v1368, %v1446
    %v1483 = vadd.f32 %v1369, %v1448
    %v1484 = vadd.f32 %v1370, %v1450
    %v1485 = vadd.f32 %v1371, %v1452
    %v1486 = vadd.f32 %v1372, %v1454
    %s1487 = sld [smem:[#allocation2 + $0xe]]
    %v1488 = vstv %s1487
    %v1489 = vmul.f32 %v83, %v1488
    %v1490 = vmul.f32 %v84, %v1488
    %v1491 = vmul.f32 %v85, %v1488
    %v1492 = vmul.f32 %v86, %v1488
    %v1493 = vmul.f32 %v87, %v1488
    %v1494 = vmul.f32 %v88, %v1488
    %v1495 = vmul.f32 %v89, %v1488
    %v1496 = vmul.f32 %v90, %v1488
    %v1497 = vmul.f32 %v91, %v1488
    %v1498 = vmul.f32 %v92, %v1488
    %v1499 = vmul.f32 %v93, %v1488
    %v1500 = vmul.f32 %v94, %v1488
    %v1501 = vmul.f32 %v95, %v1488
    %v1502 = vmul.f32 %v96, %v1488
    %v1503 = vmul.f32 %v97, %v1488
    %v1504 = vmul.f32 %v98, %v1488
    %v1521 = vrot.slane %v1489, 2
    %v1522 = vrot.slane %v1490, 2
    %v1523 = vrot.slane %v1491, 2
    %v1524 = vrot.slane %v1492, 2
    %v1525 = vrot.slane %v1493, 2
    %v1526 = vrot.slane %v1494, 2
    %v1527 = vrot.slane %v1495, 2
    %v1528 = vrot.slane %v1496, 2
    %v1529 = vrot.slane %v1497, 2
    %v1530 = vrot.slane %v1498, 2
    %v1531 = vrot.slane %v1499, 2
    %v1532 = vrot.slane %v1500, 2
    %v1533 = vrot.slane %v1501, 2
    %v1534 = vrot.slane %v1502, 2
    %v1535 = vrot.slane %v1503, 2
    %v1536 = vrot.slane %v1504, 2
    %1537 = vrot.lane.b32.xlu0 %v1521, 124
    %v1538 = vpop.permute.xlu0 %1537
    %1539 = vrot.lane.b32.xlu0 %v1522, 124
    %v1540 = vpop.permute.xlu0 %1539
    %1541 = vrot.lane.b32.xlu0 %v1523, 124
    %v1542 = vpop.permute.xlu0 %1541
    %1543 = vrot.lane.b32.xlu0 %v1524, 124
    %v1544 = vpop.permute.xlu0 %1543
    %1545 = vrot.lane.b32.xlu0 %v1525, 124
    %v1546 = vpop.permute.xlu0 %1545
    %1547 = vrot.lane.b32.xlu0 %v1526, 124
    %v1548 = vpop.permute.xlu0 %1547
    %1549 = vrot.lane.b32.xlu0 %v1527, 124
    %v1550 = vpop.permute.xlu0 %1549
    %1551 = vrot.lane.b32.xlu0 %v1528, 124
    %v1552 = vpop.permute.xlu0 %1551
    %1553 = vrot.lane.b32.xlu0 %v1529, 124
    %v1554 = vpop.permute.xlu0 %1553
    %1555 = vrot.lane.b32.xlu0 %v1530, 124
    %v1556 = vpop.permute.xlu0 %1555
    %1557 = vrot.lane.b32.xlu0 %v1531, 124
    %v1558 = vpop.permute.xlu0 %1557
    %1559 = vrot.lane.b32.xlu0 %v1532, 124
    %v1560 = vpop.permute.xlu0 %1559
    %1561 = vrot.lane.b32.xlu0 %v1533, 124
    %v1562 = vpop.permute.xlu0 %1561
    %1563 = vrot.lane.b32.xlu0 %v1534, 124
    %v1564 = vpop.permute.xlu0 %1563
    %1565 = vrot.lane.b32.xlu0 %v1535, 124
    %v1566 = vpop.permute.xlu0 %1565
    %1567 = vrot.lane.b32.xlu0 %v1536, 124
    %v1568 = vpop.permute.xlu0 %1567
    %v1585 = vadd.f32 %v1471, %v1538
    %v1586 = vadd.f32 %v1472, %v1540
    %v1587 = vadd.f32 %v1473, %v1542
    %v1588 = vadd.f32 %v1474, %v1544
    %v1589 = vadd.f32 %v1475, %v1546
    %v1590 = vadd.f32 %v1476, %v1548
    %v1591 = vadd.f32 %v1477, %v1550
    %v1592 = vadd.f32 %v1478, %v1552
    %v1593 = vadd.f32 %v1479, %v1554
    %v1594 = vadd.f32 %v1480, %v1556
    %v1595 = vadd.f32 %v1481, %v1558
    %v1596 = vadd.f32 %v1482, %v1560
    %v1597 = vadd.f32 %v1483, %v1562
    %v1598 = vadd.f32 %v1484, %v1564
    %v1599 = vadd.f32 %v1485, %v1566
    %v1600 = vadd.f32 %v1486, %v1568
    %s1601 = sld [smem:[#allocation6]]
    %v1602 = vstv %s1601
    %v1603 = vadd.f32 %v1585, %v1602
    %v1604 = vadd.f32 %v1586, %v1602
    %v1605 = vadd.f32 %v1587, %v1602
    %v1606 = vadd.f32 %v1588, %v1602
    %v1607 = vadd.f32 %v1589, %v1602
    %v1608 = vadd.f32 %v1590, %v1602
    %v1609 = vadd.f32 %v1591, %v1602
    %v1610 = vadd.f32 %v1592, %v1602
    %v1611 = vadd.f32 %v1593, %v1602
    %v1612 = vadd.f32 %v1594, %v1602
    %v1613 = vadd.f32 %v1595, %v1602
    %v1614 = vadd.f32 %v1596, %v1602
    %v1615 = vadd.f32 %v1597, %v1602
    %v1616 = vadd.f32 %v1598, %v1602
    %v1617 = vadd.f32 %v1599, %v1602
    %v1618 = vadd.f32 %v1600, %v1602
    %v1635 = vrot.slane %v1603, 1
    %v1636 = vrot.slane %v1604, 1
    %v1637 = vrot.slane %v1605, 1
    %v1638 = vrot.slane %v1606, 1
    %v1639 = vrot.slane %v1607, 1
    %v1640 = vrot.slane %v1608, 1
    %v1641 = vrot.slane %v1609, 1
    %v1642 = vrot.slane %v1610, 1
    %v1643 = vrot.slane %v1611, 1
    %v1644 = vrot.slane %v1612, 1
    %v1645 = vrot.slane %v1613, 1
    %v1646 = vrot.slane %v1614, 1
    %v1647 = vrot.slane %v1615, 1
    %v1648 = vrot.slane %v1616, 1
    %v1649 = vrot.slane %v1617, 1
    %v1650 = vrot.slane %v1618, 1
    %v1667 = vmax.f32 %v1603, %v1635
    %v1668 = vmax.f32 %v1604, %v1636
    %v1669 = vmax.f32 %v1605, %v1637
    %v1670 = vmax.f32 %v1606, %v1638
    %v1671 = vmax.f32 %v1607, %v1639
    %v1672 = vmax.f32 %v1608, %v1640
    %v1673 = vmax.f32 %v1609, %v1641
    %v1674 = vmax.f32 %v1610, %v1642
    %v1675 = vmax.f32 %v1611, %v1643
    %v1676 = vmax.f32 %v1612, %v1644
    %v1677 = vmax.f32 %v1613, %v1645
    %v1678 = vmax.f32 %v1614, %v1646
    %v1679 = vmax.f32 %v1615, %v1647
    %v1680 = vmax.f32 %v1616, %v1648
    %v1681 = vmax.f32 %v1617, %v1649
    %v1682 = vmax.f32 %v1618, %v1650
    %1699 = vrot.lane.b32.xlu0 %v1667, 127
    %v1700 = vpop.permute.xlu0 %1699
    %1701 = vrot.lane.b32.xlu0 %v1668, 127
    %v1702 = vpop.permute.xlu0 %1701
    %1703 = vrot.lane.b32.xlu0 %v1669, 127
    %v1704 = vpop.permute.xlu0 %1703
    %1705 = vrot.lane.b32.xlu0 %v1670, 127
    %v1706 = vpop.permute.xlu0 %1705
    %1707 = vrot.lane.b32.xlu0 %v1671, 127
    %v1708 = vpop.permute.xlu0 %1707
    %1709 = vrot.lane.b32.xlu0 %v1672, 127
    %v1710 = vpop.permute.xlu0 %1709
    %1711 = vrot.lane.b32.xlu0 %v1673, 127
    %v1712 = vpop.permute.xlu0 %1711
    %1713 = vrot.lane.b32.xlu0 %v1674, 127
    %v1714 = vpop.permute.xlu0 %1713
    %1715 = vrot.lane.b32.xlu0 %v1675, 127
    %v1716 = vpop.permute.xlu0 %1715
    %1717 = vrot.lane.b32.xlu0 %v1676, 127
    %v1718 = vpop.permute.xlu0 %1717
    %1719 = vrot.lane.b32.xlu0 %v1677, 127
    %v1720 = vpop.permute.xlu0 %1719
    %1721 = vrot.lane.b32.xlu0 %v1678, 127
    %v1722 = vpop.permute.xlu0 %1721
    %1723 = vrot.lane.b32.xlu0 %v1679, 127
    %v1724 = vpop.permute.xlu0 %1723
    %1725 = vrot.lane.b32.xlu0 %v1680, 127
    %v1726 = vpop.permute.xlu0 %1725
    %1727 = vrot.lane.b32.xlu0 %v1681, 127
    %v1728 = vpop.permute.xlu0 %1727
    %1729 = vrot.lane.b32.xlu0 %v1682, 127
    %v1730 = vpop.permute.xlu0 %1729
    %v1747 = vmax.f32 %v1667, %v1700
    %v1748 = vmax.f32 %v1668, %v1702
    %v1749 = vmax.f32 %v1669, %v1704
    %v1750 = vmax.f32 %v1670, %v1706
    %v1751 = vmax.f32 %v1671, %v1708
    %v1752 = vmax.f32 %v1672, %v1710
    %v1753 = vmax.f32 %v1673, %v1712
    %v1754 = vmax.f32 %v1674, %v1714
    %v1755 = vmax.f32 %v1675, %v1716
    %v1756 = vmax.f32 %v1676, %v1718
    %v1757 = vmax.f32 %v1677, %v1720
    %v1758 = vmax.f32 %v1678, %v1722
    %v1759 = vmax.f32 %v1679, %v1724
    %v1760 = vmax.f32 %v1680, %v1726
    %v1761 = vmax.f32 %v1681, %v1728
    %v1762 = vmax.f32 %v1682, %v1730
    %s1763 = sld [smem:[#allocation2 + $0xf]]
    %v1764 = vstv %s1763
    %v1765 = vmul.f32 %v83, %v1764
    %v1766 = vmul.f32 %v84, %v1764
    %v1767 = vmul.f32 %v85, %v1764
    %v1768 = vmul.f32 %v86, %v1764
    %v1769 = vmul.f32 %v87, %v1764
    %v1770 = vmul.f32 %v88, %v1764
    %v1771 = vmul.f32 %v89, %v1764
    %v1772 = vmul.f32 %v90, %v1764
    %v1773 = vmul.f32 %v91, %v1764
    %v1774 = vmul.f32 %v92, %v1764
    %v1775 = vmul.f32 %v93, %v1764
    %v1776 = vmul.f32 %v94, %v1764
    %v1777 = vmul.f32 %v95, %v1764
    %v1778 = vmul.f32 %v96, %v1764
    %v1779 = vmul.f32 %v97, %v1764
    %v1780 = vmul.f32 %v98, %v1764
    %v1781 = vadd.f32 %v1765, 0.0
    %v1782 = vadd.f32 %v1766, 0.0
    %v1783 = vadd.f32 %v1767, 0.0
    %v1784 = vadd.f32 %v1768, 0.0
    %v1785 = vadd.f32 %v1769, 0.0
    %v1786 = vadd.f32 %v1770, 0.0
    %v1787 = vadd.f32 %v1771, 0.0
    %v1788 = vadd.f32 %v1772, 0.0
    %v1789 = vadd.f32 %v1773, 0.0
    %v1790 = vadd.f32 %v1774, 0.0
    %v1791 = vadd.f32 %v1775, 0.0
    %v1792 = vadd.f32 %v1776, 0.0
    %v1793 = vadd.f32 %v1777, 0.0
    %v1794 = vadd.f32 %v1778, 0.0
    %v1795 = vadd.f32 %v1779, 0.0
    %v1796 = vadd.f32 %v1780, 0.0
    %s1797 = sld [smem:[#allocation2 + $0x10]]
    %v1798 = vstv %s1797
    %v1799 = vmul.f32 %v83, %v1798
    %v1800 = vmul.f32 %v84, %v1798
    %v1801 = vmul.f32 %v85, %v1798
    %v1802 = vmul.f32 %v86, %v1798
    %v1803 = vmul.f32 %v87, %v1798
    %v1804 = vmul.f32 %v88, %v1798
    %v1805 = vmul.f32 %v89, %v1798
    %v1806 = vmul.f32 %v90, %v1798
    %v1807 = vmul.f32 %v91, %v1798
    %v1808 = vmul.f32 %v92, %v1798
    %v1809 = vmul.f32 %v93, %v1798
    %v1810 = vmul.f32 %v94, %v1798
    %v1811 = vmul.f32 %v95, %v1798
    %v1812 = vmul.f32 %v96, %v1798
    %v1813 = vmul.f32 %v97, %v1798
    %v1814 = vmul.f32 %v98, %v1798
    %1831 = vrot.lane.b32.xlu0 %v1799, 127
    %v1832 = vpop.permute.xlu0 %1831
    %1833 = vrot.lane.b32.xlu0 %v1800, 127
    %v1834 = vpop.permute.xlu0 %1833
    %1835 = vrot.lane.b32.xlu0 %v1801, 127
    %v1836 = vpop.permute.xlu0 %1835
    %1837 = vrot.lane.b32.xlu0 %v1802, 127
    %v1838 = vpop.permute.xlu0 %1837
    %1839 = vrot.lane.b32.xlu0 %v1803, 127
    %v1840 = vpop.permute.xlu0 %1839
    %1841 = vrot.lane.b32.xlu0 %v1804, 127
    %v1842 = vpop.permute.xlu0 %1841
    %1843 = vrot.lane.b32.xlu0 %v1805, 127
    %v1844 = vpop.permute.xlu0 %1843
    %1845 = vrot.lane.b32.xlu0 %v1806, 127
    %v1846 = vpop.permute.xlu0 %1845
    %1847 = vrot.lane.b32.xlu0 %v1807, 127
    %v1848 = vpop.permute.xlu0 %1847
    %1849 = vrot.lane.b32.xlu0 %v1808, 127
    %v1850 = vpop.permute.xlu0 %1849
    %1851 = vrot.lane.b32.xlu0 %v1809, 127
    %v1852 = vpop.permute.xlu0 %1851
    %1853 = vrot.lane.b32.xlu0 %v1810, 127
    %v1854 = vpop.permute.xlu0 %1853
    %1855 = vrot.lane.b32.xlu0 %v1811, 127
    %v1856 = vpop.permute.xlu0 %1855
    %1857 = vrot.lane.b32.xlu0 %v1812, 127
    %v1858 = vpop.permute.xlu0 %1857
    %1859 = vrot.lane.b32.xlu0 %v1813, 127
    %v1860 = vpop.permute.xlu0 %1859
    %1861 = vrot.lane.b32.xlu0 %v1814, 127
    %v1862 = vpop.permute.xlu0 %1861
    %v1879 = vadd.f32 %v1781, %v1832
    %v1880 = vadd.f32 %v1782, %v1834
    %v1881 = vadd.f32 %v1783, %v1836
    %v1882 = vadd.f32 %v1784, %v1838
    %v1883 = vadd.f32 %v1785, %v1840
    %v1884 = vadd.f32 %v1786, %v1842
    %v1885 = vadd.f32 %v1787, %v1844
    %v1886 = vadd.f32 %v1788, %v1846
    %v1887 = vadd.f32 %v1789, %v1848
    %v1888 = vadd.f32 %v1790, %v1850
    %v1889 = vadd.f32 %v1791, %v1852
    %v1890 = vadd.f32 %v1792, %v1854
    %v1891 = vadd.f32 %v1793, %v1856
    %v1892 = vadd.f32 %v1794, %v1858
    %v1893 = vadd.f32 %v1795, %v1860
    %v1894 = vadd.f32 %v1796, %v1862
    %s1895 = sld [smem:[#allocation2 + $0x11]]
    %v1896 = vstv %s1895
    %v1897 = vmul.f32 %v83, %v1896
    %v1898 = vmul.f32 %v84, %v1896
    %v1899 = vmul.f32 %v85, %v1896
    %v1900 = vmul.f32 %v86, %v1896
    %v1901 = vmul.f32 %v87, %v1896
    %v1902 = vmul.f32 %v88, %v1896
    %v1903 = vmul.f32 %v89, %v1896
    %v1904 = vmul.f32 %v90, %v1896
    %v1905 = vmul.f32 %v91, %v1896
    %v1906 = vmul.f32 %v92, %v1896
    %v1907 = vmul.f32 %v93, %v1896
    %v1908 = vmul.f32 %v94, %v1896
    %v1909 = vmul.f32 %v95, %v1896
    %v1910 = vmul.f32 %v96, %v1896
    %v1911 = vmul.f32 %v97, %v1896
    %v1912 = vmul.f32 %v98, %v1896
    %1929 = vrot.lane.b32.xlu0 %v1897, 126
    %v1930 = vpop.permute.xlu0 %1929
    %1931 = vrot.lane.b32.xlu0 %v1898, 126
    %v1932 = vpop.permute.xlu0 %1931
    %1933 = vrot.lane.b32.xlu0 %v1899, 126
    %v1934 = vpop.permute.xlu0 %1933
    %1935 = vrot.lane.b32.xlu0 %v1900, 126
    %v1936 = vpop.permute.xlu0 %1935
    %1937 = vrot.lane.b32.xlu0 %v1901, 126
    %v1938 = vpop.permute.xlu0 %1937
    %1939 = vrot.lane.b32.xlu0 %v1902, 126
    %v1940 = vpop.permute.xlu0 %1939
    %1941 = vrot.lane.b32.xlu0 %v1903, 126
    %v1942 = vpop.permute.xlu0 %1941
    %1943 = vrot.lane.b32.xlu0 %v1904, 126
    %v1944 = vpop.permute.xlu0 %1943
    %1945 = vrot.lane.b32.xlu0 %v1905, 126
    %v1946 = vpop.permute.xlu0 %1945
    %1947 = vrot.lane.b32.xlu0 %v1906, 126
    %v1948 = vpop.permute.xlu0 %1947
    %1949 = vrot.lane.b32.xlu0 %v1907, 126
    %v1950 = vpop.permute.xlu0 %1949
    %1951 = vrot.lane.b32.xlu0 %v1908, 126
    %v1952 = vpop.permute.xlu0 %1951
    %1953 = vrot.lane.b32.xlu0 %v1909, 126
    %v1954 = vpop.permute.xlu0 %1953
    %1955 = vrot.lane.b32.xlu0 %v1910, 126
    %v1956 = vpop.permute.xlu0 %1955
    %1957 = vrot.lane.b32.xlu0 %v1911, 126
    %v1958 = vpop.permute.xlu0 %1957
    %1959 = vrot.lane.b32.xlu0 %v1912, 126
    %v1960 = vpop.permute.xlu0 %1959
    %v1977 = vadd.f32 %v1879, %v1930
    %v1978 = vadd.f32 %v1880, %v1932
    %v1979 = vadd.f32 %v1881, %v1934
    %v1980 = vadd.f32 %v1882, %v1936
    %v1981 = vadd.f32 %v1883, %v1938
    %v1982 = vadd.f32 %v1884, %v1940
    %v1983 = vadd.f32 %v1885, %v1942
    %v1984 = vadd.f32 %v1886, %v1944
    %v1985 = vadd.f32 %v1887, %v1946
    %v1986 = vadd.f32 %v1888, %v1948
    %v1987 = vadd.f32 %v1889, %v1950
    %v1988 = vadd.f32 %v1890, %v1952
    %v1989 = vadd.f32 %v1891, %v1954
    %v1990 = vadd.f32 %v1892, %v1956
    %v1991 = vadd.f32 %v1893, %v1958
    %v1992 = vadd.f32 %v1894, %v1960
    %s1993 = sld [smem:[#allocation2 + $0x12]]
    %v1994 = vstv %s1993
    %v1995 = vmul.f32 %v83, %v1994
    %v1996 = vmul.f32 %v84, %v1994
    %v1997 = vmul.f32 %v85, %v1994
    %v1998 = vmul.f32 %v86, %v1994
    %v1999 = vmul.f32 %v87, %v1994
    %v2000 = vmul.f32 %v88, %v1994
    %v2001 = vmul.f32 %v89, %v1994
    %v2002 = vmul.f32 %v90, %v1994
    %v2003 = vmul.f32 %v91, %v1994
    %v2004 = vmul.f32 %v92, %v1994
    %v2005 = vmul.f32 %v93, %v1994
    %v2006 = vmul.f32 %v94, %v1994
    %v2007 = vmul.f32 %v95, %v1994
    %v2008 = vmul.f32 %v96, %v1994
    %v2009 = vmul.f32 %v97, %v1994
    %v2010 = vmul.f32 %v98, %v1994
    %2027 = vrot.lane.b32.xlu0 %v1995, 125
    %v2028 = vpop.permute.xlu0 %2027
    %2029 = vrot.lane.b32.xlu0 %v1996, 125
    %v2030 = vpop.permute.xlu0 %2029
    %2031 = vrot.lane.b32.xlu0 %v1997, 125
    %v2032 = vpop.permute.xlu0 %2031
    %2033 = vrot.lane.b32.xlu0 %v1998, 125
    %v2034 = vpop.permute.xlu0 %2033
    %2035 = vrot.lane.b32.xlu0 %v1999, 125
    %v2036 = vpop.permute.xlu0 %2035
    %2037 = vrot.lane.b32.xlu0 %v2000, 125
    %v2038 = vpop.permute.xlu0 %2037
    %2039 = vrot.lane.b32.xlu0 %v2001, 125
    %v2040 = vpop.permute.xlu0 %2039
    %2041 = vrot.lane.b32.xlu0 %v2002, 125
    %v2042 = vpop.permute.xlu0 %2041
    %2043 = vrot.lane.b32.xlu0 %v2003, 125
    %v2044 = vpop.permute.xlu0 %2043
    %2045 = vrot.lane.b32.xlu0 %v2004, 125
    %v2046 = vpop.permute.xlu0 %2045
    %2047 = vrot.lane.b32.xlu0 %v2005, 125
    %v2048 = vpop.permute.xlu0 %2047
    %2049 = vrot.lane.b32.xlu0 %v2006, 125
    %v2050 = vpop.permute.xlu0 %2049
    %2051 = vrot.lane.b32.xlu0 %v2007, 125
    %v2052 = vpop.permute.xlu0 %2051
    %2053 = vrot.lane.b32.xlu0 %v2008, 125
    %v2054 = vpop.permute.xlu0 %2053
    %2055 = vrot.lane.b32.xlu0 %v2009, 125
    %v2056 = vpop.permute.xlu0 %2055
    %2057 = vrot.lane.b32.xlu0 %v2010, 125
    %v2058 = vpop.permute.xlu0 %2057
    %v2075 = vadd.f32 %v1977, %v2028
    %v2076 = vadd.f32 %v1978, %v2030
    %v2077 = vadd.f32 %v1979, %v2032
    %v2078 = vadd.f32 %v1980, %v2034
    %v2079 = vadd.f32 %v1981, %v2036
    %v2080 = vadd.f32 %v1982, %v2038
    %v2081 = vadd.f32 %v1983, %v2040
    %v2082 = vadd.f32 %v1984, %v2042
    %v2083 = vadd.f32 %v1985, %v2044
    %v2084 = vadd.f32 %v1986, %v2046
    %v2085 = vadd.f32 %v1987, %v2048
    %v2086 = vadd.f32 %v1988, %v2050
    %v2087 = vadd.f32 %v1989, %v2052
    %v2088 = vadd.f32 %v1990, %v2054
    %v2089 = vadd.f32 %v1991, %v2056
    %v2090 = vadd.f32 %v1992, %v2058
    %s2091 = sld [smem:[#allocation2 + $0x13]]
    %v2092 = vstv %s2091
    %v2093 = vmul.f32 %v83, %v2092
    %v2094 = vmul.f32 %v84, %v2092
    %v2095 = vmul.f32 %v85, %v2092
    %v2096 = vmul.f32 %v86, %v2092
    %v2097 = vmul.f32 %v87, %v2092
    %v2098 = vmul.f32 %v88, %v2092
    %v2099 = vmul.f32 %v89, %v2092
    %v2100 = vmul.f32 %v90, %v2092
    %v2101 = vmul.f32 %v91, %v2092
    %v2102 = vmul.f32 %v92, %v2092
    %v2103 = vmul.f32 %v93, %v2092
    %v2104 = vmul.f32 %v94, %v2092
    %v2105 = vmul.f32 %v95, %v2092
    %v2106 = vmul.f32 %v96, %v2092
    %v2107 = vmul.f32 %v97, %v2092
    %v2108 = vmul.f32 %v98, %v2092
    %2125 = vrot.lane.b32.xlu0 %v2093, 124
    %v2126 = vpop.permute.xlu0 %2125
    %2127 = vrot.lane.b32.xlu0 %v2094, 124
    %v2128 = vpop.permute.xlu0 %2127
    %2129 = vrot.lane.b32.xlu0 %v2095, 124
    %v2130 = vpop.permute.xlu0 %2129
    %2131 = vrot.lane.b32.xlu0 %v2096, 124
    %v2132 = vpop.permute.xlu0 %2131
    %2133 = vrot.lane.b32.xlu0 %v2097, 124
    %v2134 = vpop.permute.xlu0 %2133
    %2135 = vrot.lane.b32.xlu0 %v2098, 124
    %v2136 = vpop.permute.xlu0 %2135
    %2137 = vrot.lane.b32.xlu0 %v2099, 124
    %v2138 = vpop.permute.xlu0 %2137
    %2139 = vrot.lane.b32.xlu0 %v2100, 124
    %v2140 = vpop.permute.xlu0 %2139
    %2141 = vrot.lane.b32.xlu0 %v2101, 124
    %v2142 = vpop.permute.xlu0 %2141
    %2143 = vrot.lane.b32.xlu0 %v2102, 124
    %v2144 = vpop.permute.xlu0 %2143
    %2145 = vrot.lane.b32.xlu0 %v2103, 124
    %v2146 = vpop.permute.xlu0 %2145
    %2147 = vrot.lane.b32.xlu0 %v2104, 124
    %v2148 = vpop.permute.xlu0 %2147
    %2149 = vrot.lane.b32.xlu0 %v2105, 124
    %v2150 = vpop.permute.xlu0 %2149
    %2151 = vrot.lane.b32.xlu0 %v2106, 124
    %v2152 = vpop.permute.xlu0 %2151
    %2153 = vrot.lane.b32.xlu0 %v2107, 124
    %v2154 = vpop.permute.xlu0 %2153
    %2155 = vrot.lane.b32.xlu0 %v2108, 124
    %v2156 = vpop.permute.xlu0 %2155
    %v2173 = vadd.f32 %v2075, %v2126
    %v2174 = vadd.f32 %v2076, %v2128
    %v2175 = vadd.f32 %v2077, %v2130
    %v2176 = vadd.f32 %v2078, %v2132
    %v2177 = vadd.f32 %v2079, %v2134
    %v2178 = vadd.f32 %v2080, %v2136
    %v2179 = vadd.f32 %v2081, %v2138
    %v2180 = vadd.f32 %v2082, %v2140
    %v2181 = vadd.f32 %v2083, %v2142
    %v2182 = vadd.f32 %v2084, %v2144
    %v2183 = vadd.f32 %v2085, %v2146
    %v2184 = vadd.f32 %v2086, %v2148
    %v2185 = vadd.f32 %v2087, %v2150
    %v2186 = vadd.f32 %v2088, %v2152
    %v2187 = vadd.f32 %v2089, %v2154
    %v2188 = vadd.f32 %v2090, %v2156
    %s2189 = sld [smem:[#allocation2 + $0x14]]
    %v2190 = vstv %s2189
    %v2191 = vmul.f32 %v83, %v2190
    %v2192 = vmul.f32 %v84, %v2190
    %v2193 = vmul.f32 %v85, %v2190
    %v2194 = vmul.f32 %v86, %v2190
    %v2195 = vmul.f32 %v87, %v2190
    %v2196 = vmul.f32 %v88, %v2190
    %v2197 = vmul.f32 %v89, %v2190
    %v2198 = vmul.f32 %v90, %v2190
    %v2199 = vmul.f32 %v91, %v2190
    %v2200 = vmul.f32 %v92, %v2190
    %v2201 = vmul.f32 %v93, %v2190
    %v2202 = vmul.f32 %v94, %v2190
    %v2203 = vmul.f32 %v95, %v2190
    %v2204 = vmul.f32 %v96, %v2190
    %v2205 = vmul.f32 %v97, %v2190
    %v2206 = vmul.f32 %v98, %v2190
    %v2223 = vrot.slane %v2191, 1
    %v2224 = vrot.slane %v2192, 1
    %v2225 = vrot.slane %v2193, 1
    %v2226 = vrot.slane %v2194, 1
    %v2227 = vrot.slane %v2195, 1
    %v2228 = vrot.slane %v2196, 1
    %v2229 = vrot.slane %v2197, 1
    %v2230 = vrot.slane %v2198, 1
    %v2231 = vrot.slane %v2199, 1
    %v2232 = vrot.slane %v2200, 1
    %v2233 = vrot.slane %v2201, 1
    %v2234 = vrot.slane %v2202, 1
    %v2235 = vrot.slane %v2203, 1
    %v2236 = vrot.slane %v2204, 1
    %v2237 = vrot.slane %v2205, 1
    %v2238 = vrot.slane %v2206, 1
    %v2255 = vadd.f32 %v2173, %v2223
    %v2256 = vadd.f32 %v2174, %v2224
    %v2257 = vadd.f32 %v2175, %v2225
    %v2258 = vadd.f32 %v2176, %v2226
    %v2259 = vadd.f32 %v2177, %v2227
    %v2260 = vadd.f32 %v2178, %v2228
    %v2261 = vadd.f32 %v2179, %v2229
    %v2262 = vadd.f32 %v2180, %v2230
    %v2263 = vadd.f32 %v2181, %v2231
    %v2264 = vadd.f32 %v2182, %v2232
    %v2265 = vadd.f32 %v2183, %v2233
    %v2266 = vadd.f32 %v2184, %v2234
    %v2267 = vadd.f32 %v2185, %v2235
    %v2268 = vadd.f32 %v2186, %v2236
    %v2269 = vadd.f32 %v2187, %v2237
    %v2270 = vadd.f32 %v2188, %v2238
    %s2271 = sld [smem:[#allocation2 + $0x15]]
    %v2272 = vstv %s2271
    %v2273 = vmul.f32 %v83, %v2272
    %v2274 = vmul.f32 %v84, %v2272
    %v2275 = vmul.f32 %v85, %v2272
    %v2276 = vmul.f32 %v86, %v2272
    %v2277 = vmul.f32 %v87, %v2272
    %v2278 = vmul.f32 %v88, %v2272
    %v2279 = vmul.f32 %v89, %v2272
    %v2280 = vmul.f32 %v90, %v2272
    %v2281 = vmul.f32 %v91, %v2272
    %v2282 = vmul.f32 %v92, %v2272
    %v2283 = vmul.f32 %v93, %v2272
    %v2284 = vmul.f32 %v94, %v2272
    %v2285 = vmul.f32 %v95, %v2272
    %v2286 = vmul.f32 %v96, %v2272
    %v2287 = vmul.f32 %v97, %v2272
    %v2288 = vmul.f32 %v98, %v2272
    %v2305 = vrot.slane %v2273, 1
    %v2306 = vrot.slane %v2274, 1
    %v2307 = vrot.slane %v2275, 1
    %v2308 = vrot.slane %v2276, 1
    %v2309 = vrot.slane %v2277, 1
    %v2310 = vrot.slane %v2278, 1
    %v2311 = vrot.slane %v2279, 1
    %v2312 = vrot.slane %v2280, 1
    %v2313 = vrot.slane %v2281, 1
    %v2314 = vrot.slane %v2282, 1
    %v2315 = vrot.slane %v2283, 1
    %v2316 = vrot.slane %v2284, 1
    %v2317 = vrot.slane %v2285, 1
    %v2318 = vrot.slane %v2286, 1
    %v2319 = vrot.slane %v2287, 1
    %v2320 = vrot.slane %v2288, 1
    %2321 = vrot.lane.b32.xlu0 %v2305, 127
    %v2322 = vpop.permute.xlu0 %2321
    %2323 = vrot.lane.b32.xlu0 %v2306, 127
    %v2324 = vpop.permute.xlu0 %2323
    %2325 = vrot.lane.b32.xlu0 %v2307, 127
    %v2326 = vpop.permute.xlu0 %2325
    %2327 = vrot.lane.b32.xlu0 %v2308, 127
    %v2328 = vpop.permute.xlu0 %2327
    %2329 = vrot.lane.b32.xlu0 %v2309, 127
    %v2330 = vpop.permute.xlu0 %2329
    %2331 = vrot.lane.b32.xlu0 %v2310, 127
    %v2332 = vpop.permute.xlu0 %2331
    %2333 = vrot.lane.b32.xlu0 %v2311, 127
    %v2334 = vpop.permute.xlu0 %2333
    %2335 = vrot.lane.b32.xlu0 %v2312, 127
    %v2336 = vpop.permute.xlu0 %2335
    %2337 = vrot.lane.b32.xlu0 %v2313, 127
    %v2338 = vpop.permute.xlu0 %2337
    %2339 = vrot.lane.b32.xlu0 %v2314, 127
    %v2340 = vpop.permute.xlu0 %2339
    %2341 = vrot.lane.b32.xlu0 %v2315, 127
    %v2342 = vpop.permute.xlu0 %2341
    %2343 = vrot.lane.b32.xlu0 %v2316, 127
    %v2344 = vpop.permute.xlu0 %2343
    %2345 = vrot.lane.b32.xlu0 %v2317, 127
    %v2346 = vpop.permute.xlu0 %2345
    %2347 = vrot.lane.b32.xlu0 %v2318, 127
    %v2348 = vpop.permute.xlu0 %2347
    %2349 = vrot.lane.b32.xlu0 %v2319, 127
    %v2350 = vpop.permute.xlu0 %2349
    %2351 = vrot.lane.b32.xlu0 %v2320, 127
    %v2352 = vpop.permute.xlu0 %2351
    %v2369 = vadd.f32 %v2255, %v2322
    %v2370 = vadd.f32 %v2256, %v2324
    %v2371 = vadd.f32 %v2257, %v2326
    %v2372 = vadd.f32 %v2258, %v2328
    %v2373 = vadd.f32 %v2259, %v2330
    %v2374 = vadd.f32 %v2260, %v2332
    %v2375 = vadd.f32 %v2261, %v2334
    %v2376 = vadd.f32 %v2262, %v2336
    %v2377 = vadd.f32 %v2263, %v2338
    %v2378 = vadd.f32 %v2264, %v2340
    %v2379 = vadd.f32 %v2265, %v2342
    %v2380 = vadd.f32 %v2266, %v2344
    %v2381 = vadd.f32 %v2267, %v2346
    %v2382 = vadd.f32 %v2268, %v2348
    %v2383 = vadd.f32 %v2269, %v2350
    %v2384 = vadd.f32 %v2270, %v2352
    %s2385 = sld [smem:[#allocation2 + $0x16]]
    %v2386 = vstv %s2385
    %v2387 = vmul.f32 %v83, %v2386
    %v2388 = vmul.f32 %v84, %v2386
    %v2389 = vmul.f32 %v85, %v2386
    %v2390 = vmul.f32 %v86, %v2386
    %v2391 = vmul.f32 %v87, %v2386
    %v2392 = vmul.f32 %v88, %v2386
    %v2393 = vmul.f32 %v89, %v2386
    %v2394 = vmul.f32 %v90, %v2386
    %v2395 = vmul.f32 %v91, %v2386
    %v2396 = vmul.f32 %v92, %v2386
    %v2397 = vmul.f32 %v93, %v2386
    %v2398 = vmul.f32 %v94, %v2386
    %v2399 = vmul.f32 %v95, %v2386
    %v2400 = vmul.f32 %v96, %v2386
    %v2401 = vmul.f32 %v97, %v2386
    %v2402 = vmul.f32 %v98, %v2386
    %v2419 = vrot.slane %v2387, 1
    %v2420 = vrot.slane %v2388, 1
    %v2421 = vrot.slane %v2389, 1
    %v2422 = vrot.slane %v2390, 1
    %v2423 = vrot.slane %v2391, 1
    %v2424 = vrot.slane %v2392, 1
    %v2425 = vrot.slane %v2393, 1
    %v2426 = vrot.slane %v2394, 1
    %v2427 = vrot.slane %v2395, 1
    %v2428 = vrot.slane %v2396, 1
    %v2429 = vrot.slane %v2397, 1
    %v2430 = vrot.slane %v2398, 1
    %v2431 = vrot.slane %v2399, 1
    %v2432 = vrot.slane %v2400, 1
    %v2433 = vrot.slane %v2401, 1
    %v2434 = vrot.slane %v2402, 1
    %2435 = vrot.lane.b32.xlu0 %v2419, 126
    %v2436 = vpop.permute.xlu0 %2435
    %2437 = vrot.lane.b32.xlu0 %v2420, 126
    %v2438 = vpop.permute.xlu0 %2437
    %2439 = vrot.lane.b32.xlu0 %v2421, 126
    %v2440 = vpop.permute.xlu0 %2439
    %2441 = vrot.lane.b32.xlu0 %v2422, 126
    %v2442 = vpop.permute.xlu0 %2441
    %2443 = vrot.lane.b32.xlu0 %v2423, 126
    %v2444 = vpop.permute.xlu0 %2443
    %2445 = vrot.lane.b32.xlu0 %v2424, 126
    %v2446 = vpop.permute.xlu0 %2445
    %2447 = vrot.lane.b32.xlu0 %v2425, 126
    %v2448 = vpop.permute.xlu0 %2447
    %2449 = vrot.lane.b32.xlu0 %v2426, 126
    %v2450 = vpop.permute.xlu0 %2449
    %2451 = vrot.lane.b32.xlu0 %v2427, 126
    %v2452 = vpop.permute.xlu0 %2451
    %2453 = vrot.lane.b32.xlu0 %v2428, 126
    %v2454 = vpop.permute.xlu0 %2453
    %2455 = vrot.lane.b32.xlu0 %v2429, 126
    %v2456 = vpop.permute.xlu0 %2455
    %2457 = vrot.lane.b32.xlu0 %v2430, 126
    %v2458 = vpop.permute.xlu0 %2457
    %2459 = vrot.lane.b32.xlu0 %v2431, 126
    %v2460 = vpop.permute.xlu0 %2459
    %2461 = vrot.lane.b32.xlu0 %v2432, 126
    %v2462 = vpop.permute.xlu0 %2461
    %2463 = vrot.lane.b32.xlu0 %v2433, 126
    %v2464 = vpop.permute.xlu0 %2463
    %2465 = vrot.lane.b32.xlu0 %v2434, 126
    %v2466 = vpop.permute.xlu0 %2465
    %v2483 = vadd.f32 %v2369, %v2436
    %v2484 = vadd.f32 %v2370, %v2438
    %v2485 = vadd.f32 %v2371, %v2440
    %v2486 = vadd.f32 %v2372, %v2442
    %v2487 = vadd.f32 %v2373, %v2444
    %v2488 = vadd.f32 %v2374, %v2446
    %v2489 = vadd.f32 %v2375, %v2448
    %v2490 = vadd.f32 %v2376, %v2450
    %v2491 = vadd.f32 %v2377, %v2452
    %v2492 = vadd.f32 %v2378, %v2454
    %v2493 = vadd.f32 %v2379, %v2456
    %v2494 = vadd.f32 %v2380, %v2458
    %v2495 = vadd.f32 %v2381, %v2460
    %v2496 = vadd.f32 %v2382, %v2462
    %v2497 = vadd.f32 %v2383, %v2464
    %v2498 = vadd.f32 %v2384, %v2466
    %s2499 = sld [smem:[#allocation2 + $0x17]]
    %v2500 = vstv %s2499
    %v2501 = vmul.f32 %v83, %v2500
    %v2502 = vmul.f32 %v84, %v2500
    %v2503 = vmul.f32 %v85, %v2500
    %v2504 = vmul.f32 %v86, %v2500
    %v2505 = vmul.f32 %v87, %v2500
    %v2506 = vmul.f32 %v88, %v2500
    %v2507 = vmul.f32 %v89, %v2500
    %v2508 = vmul.f32 %v90, %v2500
    %v2509 = vmul.f32 %v91, %v2500
    %v2510 = vmul.f32 %v92, %v2500
    %v2511 = vmul.f32 %v93, %v2500
    %v2512 = vmul.f32 %v94, %v2500
    %v2513 = vmul.f32 %v95, %v2500
    %v2514 = vmul.f32 %v96, %v2500
    %v2515 = vmul.f32 %v97, %v2500
    %v2516 = vmul.f32 %v98, %v2500
    %v2533 = vrot.slane %v2501, 1
    %v2534 = vrot.slane %v2502, 1
    %v2535 = vrot.slane %v2503, 1
    %v2536 = vrot.slane %v2504, 1
    %v2537 = vrot.slane %v2505, 1
    %v2538 = vrot.slane %v2506, 1
    %v2539 = vrot.slane %v2507, 1
    %v2540 = vrot.slane %v2508, 1
    %v2541 = vrot.slane %v2509, 1
    %v2542 = vrot.slane %v2510, 1
    %v2543 = vrot.slane %v2511, 1
    %v2544 = vrot.slane %v2512, 1
    %v2545 = vrot.slane %v2513, 1
    %v2546 = vrot.slane %v2514, 1
    %v2547 = vrot.slane %v2515, 1
    %v2548 = vrot.slane %v2516, 1
    %2549 = vrot.lane.b32.xlu0 %v2533, 125
    %v2550 = vpop.permute.xlu0 %2549
    %2551 = vrot.lane.b32.xlu0 %v2534, 125
    %v2552 = vpop.permute.xlu0 %2551
    %2553 = vrot.lane.b32.xlu0 %v2535, 125
    %v2554 = vpop.permute.xlu0 %2553
    %2555 = vrot.lane.b32.xlu0 %v2536, 125
    %v2556 = vpop.permute.xlu0 %2555
    %2557 = vrot.lane.b32.xlu0 %v2537, 125
    %v2558 = vpop.permute.xlu0 %2557
    %2559 = vrot.lane.b32.xlu0 %v2538, 125
    %v2560 = vpop.permute.xlu0 %2559
    %2561 = vrot.lane.b32.xlu0 %v2539, 125
    %v2562 = vpop.permute.xlu0 %2561
    %2563 = vrot.lane.b32.xlu0 %v2540, 125
    %v2564 = vpop.permute.xlu0 %2563
    %2565 = vrot.lane.b32.xlu0 %v2541, 125
    %v2566 = vpop.permute.xlu0 %2565
    %2567 = vrot.lane.b32.xlu0 %v2542, 125
    %v2568 = vpop.permute.xlu0 %2567
    %2569 = vrot.lane.b32.xlu0 %v2543, 125
    %v2570 = vpop.permute.xlu0 %2569
    %2571 = vrot.lane.b32.xlu0 %v2544, 125
    %v2572 = vpop.permute.xlu0 %2571
    %2573 = vrot.lane.b32.xlu0 %v2545, 125
    %v2574 = vpop.permute.xlu0 %2573
    %2575 = vrot.lane.b32.xlu0 %v2546, 125
    %v2576 = vpop.permute.xlu0 %2575
    %2577 = vrot.lane.b32.xlu0 %v2547, 125
    %v2578 = vpop.permute.xlu0 %2577
    %2579 = vrot.lane.b32.xlu0 %v2548, 125
    %v2580 = vpop.permute.xlu0 %2579
    %v2597 = vadd.f32 %v2483, %v2550
    %v2598 = vadd.f32 %v2484, %v2552
    %v2599 = vadd.f32 %v2485, %v2554
    %v2600 = vadd.f32 %v2486, %v2556
    %v2601 = vadd.f32 %v2487, %v2558
    %v2602 = vadd.f32 %v2488, %v2560
    %v2603 = vadd.f32 %v2489, %v2562
    %v2604 = vadd.f32 %v2490, %v2564
    %v2605 = vadd.f32 %v2491, %v2566
    %v2606 = vadd.f32 %v2492, %v2568
    %v2607 = vadd.f32 %v2493, %v2570
    %v2608 = vadd.f32 %v2494, %v2572
    %v2609 = vadd.f32 %v2495, %v2574
    %v2610 = vadd.f32 %v2496, %v2576
    %v2611 = vadd.f32 %v2497, %v2578
    %v2612 = vadd.f32 %v2498, %v2580
    %s2613 = sld [smem:[#allocation2 + $0x18]]
    %v2614 = vstv %s2613
    %v2615 = vmul.f32 %v83, %v2614
    %v2616 = vmul.f32 %v84, %v2614
    %v2617 = vmul.f32 %v85, %v2614
    %v2618 = vmul.f32 %v86, %v2614
    %v2619 = vmul.f32 %v87, %v2614
    %v2620 = vmul.f32 %v88, %v2614
    %v2621 = vmul.f32 %v89, %v2614
    %v2622 = vmul.f32 %v90, %v2614
    %v2623 = vmul.f32 %v91, %v2614
    %v2624 = vmul.f32 %v92, %v2614
    %v2625 = vmul.f32 %v93, %v2614
    %v2626 = vmul.f32 %v94, %v2614
    %v2627 = vmul.f32 %v95, %v2614
    %v2628 = vmul.f32 %v96, %v2614
    %v2629 = vmul.f32 %v97, %v2614
    %v2630 = vmul.f32 %v98, %v2614
    %v2647 = vrot.slane %v2615, 1
    %v2648 = vrot.slane %v2616, 1
    %v2649 = vrot.slane %v2617, 1
    %v2650 = vrot.slane %v2618, 1
    %v2651 = vrot.slane %v2619, 1
    %v2652 = vrot.slane %v2620, 1
    %v2653 = vrot.slane %v2621, 1
    %v2654 = vrot.slane %v2622, 1
    %v2655 = vrot.slane %v2623, 1
    %v2656 = vrot.slane %v2624, 1
    %v2657 = vrot.slane %v2625, 1
    %v2658 = vrot.slane %v2626, 1
    %v2659 = vrot.slane %v2627, 1
    %v2660 = vrot.slane %v2628, 1
    %v2661 = vrot.slane %v2629, 1
    %v2662 = vrot.slane %v2630, 1
    %2663 = vrot.lane.b32.xlu0 %v2647, 124
    %v2664 = vpop.permute.xlu0 %2663
    %2665 = vrot.lane.b32.xlu0 %v2648, 124
    %v2666 = vpop.permute.xlu0 %2665
    %2667 = vrot.lane.b32.xlu0 %v2649, 124
    %v2668 = vpop.permute.xlu0 %2667
    %2669 = vrot.lane.b32.xlu0 %v2650, 124
    %v2670 = vpop.permute.xlu0 %2669
    %2671 = vrot.lane.b32.xlu0 %v2651, 124
    %v2672 = vpop.permute.xlu0 %2671
    %2673 = vrot.lane.b32.xlu0 %v2652, 124
    %v2674 = vpop.permute.xlu0 %2673
    %2675 = vrot.lane.b32.xlu0 %v2653, 124
    %v2676 = vpop.permute.xlu0 %2675
    %2677 = vrot.lane.b32.xlu0 %v2654, 124
    %v2678 = vpop.permute.xlu0 %2677
    %2679 = vrot.lane.b32.xlu0 %v2655, 124
    %v2680 = vpop.permute.xlu0 %2679
    %2681 = vrot.lane.b32.xlu0 %v2656, 124
    %v2682 = vpop.permute.xlu0 %2681
    %2683 = vrot.lane.b32.xlu0 %v2657, 124
    %v2684 = vpop.permute.xlu0 %2683
    %2685 = vrot.lane.b32.xlu0 %v2658, 124
    %v2686 = vpop.permute.xlu0 %2685
    %2687 = vrot.lane.b32.xlu0 %v2659, 124
    %v2688 = vpop.permute.xlu0 %2687
    %2689 = vrot.lane.b32.xlu0 %v2660, 124
    %v2690 = vpop.permute.xlu0 %2689
    %2691 = vrot.lane.b32.xlu0 %v2661, 124
    %v2692 = vpop.permute.xlu0 %2691
    %2693 = vrot.lane.b32.xlu0 %v2662, 124
    %v2694 = vpop.permute.xlu0 %2693
    %v2711 = vadd.f32 %v2597, %v2664
    %v2712 = vadd.f32 %v2598, %v2666
    %v2713 = vadd.f32 %v2599, %v2668
    %v2714 = vadd.f32 %v2600, %v2670
    %v2715 = vadd.f32 %v2601, %v2672
    %v2716 = vadd.f32 %v2602, %v2674
    %v2717 = vadd.f32 %v2603, %v2676
    %v2718 = vadd.f32 %v2604, %v2678
    %v2719 = vadd.f32 %v2605, %v2680
    %v2720 = vadd.f32 %v2606, %v2682
    %v2721 = vadd.f32 %v2607, %v2684
    %v2722 = vadd.f32 %v2608, %v2686
    %v2723 = vadd.f32 %v2609, %v2688
    %v2724 = vadd.f32 %v2610, %v2690
    %v2725 = vadd.f32 %v2611, %v2692
    %v2726 = vadd.f32 %v2612, %v2694
    %s2727 = sld [smem:[#allocation2 + $0x19]]
    %v2728 = vstv %s2727
    %v2729 = vmul.f32 %v83, %v2728
    %v2730 = vmul.f32 %v84, %v2728
    %v2731 = vmul.f32 %v85, %v2728
    %v2732 = vmul.f32 %v86, %v2728
    %v2733 = vmul.f32 %v87, %v2728
    %v2734 = vmul.f32 %v88, %v2728
    %v2735 = vmul.f32 %v89, %v2728
    %v2736 = vmul.f32 %v90, %v2728
    %v2737 = vmul.f32 %v91, %v2728
    %v2738 = vmul.f32 %v92, %v2728
    %v2739 = vmul.f32 %v93, %v2728
    %v2740 = vmul.f32 %v94, %v2728
    %v2741 = vmul.f32 %v95, %v2728
    %v2742 = vmul.f32 %v96, %v2728
    %v2743 = vmul.f32 %v97, %v2728
    %v2744 = vmul.f32 %v98, %v2728
    %v2761 = vrot.slane %v2729, 2
    %v2762 = vrot.slane %v2730, 2
    %v2763 = vrot.slane %v2731, 2
    %v2764 = vrot.slane %v2732, 2
    %v2765 = vrot.slane %v2733, 2
    %v2766 = vrot.slane %v2734, 2
    %v2767 = vrot.slane %v2735, 2
    %v2768 = vrot.slane %v2736, 2
    %v2769 = vrot.slane %v2737, 2
    %v2770 = vrot.slane %v2738, 2
    %v2771 = vrot.slane %v2739, 2
    %v2772 = vrot.slane %v2740, 2
    %v2773 = vrot.slane %v2741, 2
    %v2774 = vrot.slane %v2742, 2
    %v2775 = vrot.slane %v2743, 2
    %v2776 = vrot.slane %v2744, 2
    %v2793 = vadd.f32 %v2711, %v2761
    %v2794 = vadd.f32 %v2712, %v2762
    %v2795 = vadd.f32 %v2713, %v2763
    %v2796 = vadd.f32 %v2714, %v2764
    %v2797 = vadd.f32 %v2715, %v2765
    %v2798 = vadd.f32 %v2716, %v2766
    %v2799 = vadd.f32 %v2717, %v2767
    %v2800 = vadd.f32 %v2718, %v2768
    %v2801 = vadd.f32 %v2719, %v2769
    %v2802 = vadd.f32 %v2720, %v2770
    %v2803 = vadd.f32 %v2721, %v2771
    %v2804 = vadd.f32 %v2722, %v2772
    %v2805 = vadd.f32 %v2723, %v2773
    %v2806 = vadd.f32 %v2724, %v2774
    %v2807 = vadd.f32 %v2725, %v2775
    %v2808 = vadd.f32 %v2726, %v2776
    %s2809 = sld [smem:[#allocation2 + $0x1a]]
    %v2810 = vstv %s2809
    %v2811 = vmul.f32 %v83, %v2810
    %v2812 = vmul.f32 %v84, %v2810
    %v2813 = vmul.f32 %v85, %v2810
    %v2814 = vmul.f32 %v86, %v2810
    %v2815 = vmul.f32 %v87, %v2810
    %v2816 = vmul.f32 %v88, %v2810
    %v2817 = vmul.f32 %v89, %v2810
    %v2818 = vmul.f32 %v90, %v2810
    %v2819 = vmul.f32 %v91, %v2810
    %v2820 = vmul.f32 %v92, %v2810
    %v2821 = vmul.f32 %v93, %v2810
    %v2822 = vmul.f32 %v94, %v2810
    %v2823 = vmul.f32 %v95, %v2810
    %v2824 = vmul.f32 %v96, %v2810
    %v2825 = vmul.f32 %v97, %v2810
    %v2826 = vmul.f32 %v98, %v2810
    %v2843 = vrot.slane %v2811, 2
    %v2844 = vrot.slane %v2812, 2
    %v2845 = vrot.slane %v2813, 2
    %v2846 = vrot.slane %v2814, 2
    %v2847 = vrot.slane %v2815, 2
    %v2848 = vrot.slane %v2816, 2
    %v2849 = vrot.slane %v2817, 2
    %v2850 = vrot.slane %v2818, 2
    %v2851 = vrot.slane %v2819, 2
    %v2852 = vrot.slane %v2820, 2
    %v2853 = vrot.slane %v2821, 2
    %v2854 = vrot.slane %v2822, 2
    %v2855 = vrot.slane %v2823, 2
    %v2856 = vrot.slane %v2824, 2
    %v2857 = vrot.slane %v2825, 2
    %v2858 = vrot.slane %v2826, 2
    %2859 = vrot.lane.b32.xlu0 %v2843, 127
    %v2860 = vpop.permute.xlu0 %2859
    %2861 = vrot.lane.b32.xlu0 %v2844, 127
    %v2862 = vpop.permute.xlu0 %2861
    %2863 = vrot.lane.b32.xlu0 %v2845, 127
    %v2864 = vpop.permute.xlu0 %2863
    %2865 = vrot.lane.b32.xlu0 %v2846, 127
    %v2866 = vpop.permute.xlu0 %2865
    %2867 = vrot.lane.b32.xlu0 %v2847, 127
    %v2868 = vpop.permute.xlu0 %2867
    %2869 = vrot.lane.b32.xlu0 %v2848, 127
    %v2870 = vpop.permute.xlu0 %2869
    %2871 = vrot.lane.b32.xlu0 %v2849, 127
    %v2872 = vpop.permute.xlu0 %2871
    %2873 = vrot.lane.b32.xlu0 %v2850, 127
    %v2874 = vpop.permute.xlu0 %2873
    %2875 = vrot.lane.b32.xlu0 %v2851, 127
    %v2876 = vpop.permute.xlu0 %2875
    %2877 = vrot.lane.b32.xlu0 %v2852, 127
    %v2878 = vpop.permute.xlu0 %2877
    %2879 = vrot.lane.b32.xlu0 %v2853, 127
    %v2880 = vpop.permute.xlu0 %2879
    %2881 = vrot.lane.b32.xlu0 %v2854, 127
    %v2882 = vpop.permute.xlu0 %2881
    %2883 = vrot.lane.b32.xlu0 %v2855, 127
    %v2884 = vpop.permute.xlu0 %2883
    %2885 = vrot.lane.b32.xlu0 %v2856, 127
    %v2886 = vpop.permute.xlu0 %2885
    %2887 = vrot.lane.b32.xlu0 %v2857, 127
    %v2888 = vpop.permute.xlu0 %2887
    %2889 = vrot.lane.b32.xlu0 %v2858, 127
    %v2890 = vpop.permute.xlu0 %2889
    %v2907 = vadd.f32 %v2793, %v2860
    %v2908 = vadd.f32 %v2794, %v2862
    %v2909 = vadd.f32 %v2795, %v2864
    %v2910 = vadd.f32 %v2796, %v2866
    %v2911 = vadd.f32 %v2797, %v2868
    %v2912 = vadd.f32 %v2798, %v2870
    %v2913 = vadd.f32 %v2799, %v2872
    %v2914 = vadd.f32 %v2800, %v2874
    %v2915 = vadd.f32 %v2801, %v2876
    %v2916 = vadd.f32 %v2802, %v2878
    %v2917 = vadd.f32 %v2803, %v2880
    %v2918 = vadd.f32 %v2804, %v2882
    %v2919 = vadd.f32 %v2805, %v2884
    %v2920 = vadd.f32 %v2806, %v2886
    %v2921 = vadd.f32 %v2807, %v2888
    %v2922 = vadd.f32 %v2808, %v2890
    %s2923 = sld [smem:[#allocation2 + $0x1b]]
    %v2924 = vstv %s2923
    %v2925 = vmul.f32 %v83, %v2924
    %v2926 = vmul.f32 %v84, %v2924
    %v2927 = vmul.f32 %v85, %v2924
    %v2928 = vmul.f32 %v86, %v2924
    %v2929 = vmul.f32 %v87, %v2924
    %v2930 = vmul.f32 %v88, %v2924
    %v2931 = vmul.f32 %v89, %v2924
    %v2932 = vmul.f32 %v90, %v2924
    %v2933 = vmul.f32 %v91, %v2924
    %v2934 = vmul.f32 %v92, %v2924
    %v2935 = vmul.f32 %v93, %v2924
    %v2936 = vmul.f32 %v94, %v2924
    %v2937 = vmul.f32 %v95, %v2924
    %v2938 = vmul.f32 %v96, %v2924
    %v2939 = vmul.f32 %v97, %v2924
    %v2940 = vmul.f32 %v98, %v2924
    %v2957 = vrot.slane %v2925, 2
    %v2958 = vrot.slane %v2926, 2
    %v2959 = vrot.slane %v2927, 2
    %v2960 = vrot.slane %v2928, 2
    %v2961 = vrot.slane %v2929, 2
    %v2962 = vrot.slane %v2930, 2
    %v2963 = vrot.slane %v2931, 2
    %v2964 = vrot.slane %v2932, 2
    %v2965 = vrot.slane %v2933, 2
    %v2966 = vrot.slane %v2934, 2
    %v2967 = vrot.slane %v2935, 2
    %v2968 = vrot.slane %v2936, 2
    %v2969 = vrot.slane %v2937, 2
    %v2970 = vrot.slane %v2938, 2
    %v2971 = vrot.slane %v2939, 2
    %v2972 = vrot.slane %v2940, 2
    %2973 = vrot.lane.b32.xlu0 %v2957, 126
    %v2974 = vpop.permute.xlu0 %2973
    %2975 = vrot.lane.b32.xlu0 %v2958, 126
    %v2976 = vpop.permute.xlu0 %2975
    %2977 = vrot.lane.b32.xlu0 %v2959, 126
    %v2978 = vpop.permute.xlu0 %2977
    %2979 = vrot.lane.b32.xlu0 %v2960, 126
    %v2980 = vpop.permute.xlu0 %2979
    %2981 = vrot.lane.b32.xlu0 %v2961, 126
    %v2982 = vpop.permute.xlu0 %2981
    %2983 = vrot.lane.b32.xlu0 %v2962, 126
    %v2984 = vpop.permute.xlu0 %2983
    %2985 = vrot.lane.b32.xlu0 %v2963, 126
    %v2986 = vpop.permute.xlu0 %2985
    %2987 = vrot.lane.b32.xlu0 %v2964, 126
    %v2988 = vpop.permute.xlu0 %2987
    %2989 = vrot.lane.b32.xlu0 %v2965, 126
    %v2990 = vpop.permute.xlu0 %2989
    %2991 = vrot.lane.b32.xlu0 %v2966, 126
    %v2992 = vpop.permute.xlu0 %2991
    %2993 = vrot.lane.b32.xlu0 %v2967, 126
    %v2994 = vpop.permute.xlu0 %2993
    %2995 = vrot.lane.b32.xlu0 %v2968, 126
    %v2996 = vpop.permute.xlu0 %2995
    %2997 = vrot.lane.b32.xlu0 %v2969, 126
    %v2998 = vpop.permute.xlu0 %2997
    %2999 = vrot.lane.b32.xlu0 %v2970, 126
    %v3000 = vpop.permute.xlu0 %2999
    %3001 = vrot.lane.b32.xlu0 %v2971, 126
    %v3002 = vpop.permute.xlu0 %3001
    %3003 = vrot.lane.b32.xlu0 %v2972, 126
    %v3004 = vpop.permute.xlu0 %3003
    %v3021 = vadd.f32 %v2907, %v2974
    %v3022 = vadd.f32 %v2908, %v2976
    %v3023 = vadd.f32 %v2909, %v2978
    %v3024 = vadd.f32 %v2910, %v2980
    %v3025 = vadd.f32 %v2911, %v2982
    %v3026 = vadd.f32 %v2912, %v2984
    %v3027 = vadd.f32 %v2913, %v2986
    %v3028 = vadd.f32 %v2914, %v2988
    %v3029 = vadd.f32 %v2915, %v2990
    %v3030 = vadd.f32 %v2916, %v2992
    %v3031 = vadd.f32 %v2917, %v2994
    %v3032 = vadd.f32 %v2918, %v2996
    %v3033 = vadd.f32 %v2919, %v2998
    %v3034 = vadd.f32 %v2920, %v3000
    %v3035 = vadd.f32 %v2921, %v3002
    %v3036 = vadd.f32 %v2922, %v3004
    %s3037 = sld [smem:[#allocation2 + $0x1c]]
    %v3038 = vstv %s3037
    %v3039 = vmul.f32 %v83, %v3038
    %v3040 = vmul.f32 %v84, %v3038
    %v3041 = vmul.f32 %v85, %v3038
    %v3042 = vmul.f32 %v86, %v3038
    %v3043 = vmul.f32 %v87, %v3038
    %v3044 = vmul.f32 %v88, %v3038
    %v3045 = vmul.f32 %v89, %v3038
    %v3046 = vmul.f32 %v90, %v3038
    %v3047 = vmul.f32 %v91, %v3038
    %v3048 = vmul.f32 %v92, %v3038
    %v3049 = vmul.f32 %v93, %v3038
    %v3050 = vmul.f32 %v94, %v3038
    %v3051 = vmul.f32 %v95, %v3038
    %v3052 = vmul.f32 %v96, %v3038
    %v3053 = vmul.f32 %v97, %v3038
    %v3054 = vmul.f32 %v98, %v3038
    %v3071 = vrot.slane %v3039, 2
    %v3072 = vrot.slane %v3040, 2
    %v3073 = vrot.slane %v3041, 2
    %v3074 = vrot.slane %v3042, 2
    %v3075 = vrot.slane %v3043, 2
    %v3076 = vrot.slane %v3044, 2
    %v3077 = vrot.slane %v3045, 2
    %v3078 = vrot.slane %v3046, 2
    %v3079 = vrot.slane %v3047, 2
    %v3080 = vrot.slane %v3048, 2
    %v3081 = vrot.slane %v3049, 2
    %v3082 = vrot.slane %v3050, 2
    %v3083 = vrot.slane %v3051, 2
    %v3084 = vrot.slane %v3052, 2
    %v3085 = vrot.slane %v3053, 2
    %v3086 = vrot.slane %v3054, 2
    %3087 = vrot.lane.b32.xlu0 %v3071, 125
    %v3088 = vpop.permute.xlu0 %3087
    %3089 = vrot.lane.b32.xlu0 %v3072, 125
    %v3090 = vpop.permute.xlu0 %3089
    %3091 = vrot.lane.b32.xlu0 %v3073, 125
    %v3092 = vpop.permute.xlu0 %3091
    %3093 = vrot.lane.b32.xlu0 %v3074, 125
    %v3094 = vpop.permute.xlu0 %3093
    %3095 = vrot.lane.b32.xlu0 %v3075, 125
    %v3096 = vpop.permute.xlu0 %3095
    %3097 = vrot.lane.b32.xlu0 %v3076, 125
    %v3098 = vpop.permute.xlu0 %3097
    %3099 = vrot.lane.b32.xlu0 %v3077, 125
    %v3100 = vpop.permute.xlu0 %3099
    %3101 = vrot.lane.b32.xlu0 %v3078, 125
    %v3102 = vpop.permute.xlu0 %3101
    %3103 = vrot.lane.b32.xlu0 %v3079, 125
    %v3104 = vpop.permute.xlu0 %3103
    %3105 = vrot.lane.b32.xlu0 %v3080, 125
    %v3106 = vpop.permute.xlu0 %3105
    %3107 = vrot.lane.b32.xlu0 %v3081, 125
    %v3108 = vpop.permute.xlu0 %3107
    %3109 = vrot.lane.b32.xlu0 %v3082, 125
    %v3110 = vpop.permute.xlu0 %3109
    %3111 = vrot.lane.b32.xlu0 %v3083, 125
    %v3112 = vpop.permute.xlu0 %3111
    %3113 = vrot.lane.b32.xlu0 %v3084, 125
    %v3114 = vpop.permute.xlu0 %3113
    %3115 = vrot.lane.b32.xlu0 %v3085, 125
    %v3116 = vpop.permute.xlu0 %3115
    %3117 = vrot.lane.b32.xlu0 %v3086, 125
    %v3118 = vpop.permute.xlu0 %3117
    %v3135 = vadd.f32 %v3021, %v3088
    %v3136 = vadd.f32 %v3022, %v3090
    %v3137 = vadd.f32 %v3023, %v3092
    %v3138 = vadd.f32 %v3024, %v3094
    %v3139 = vadd.f32 %v3025, %v3096
    %v3140 = vadd.f32 %v3026, %v3098
    %v3141 = vadd.f32 %v3027, %v3100
    %v3142 = vadd.f32 %v3028, %v3102
    %v3143 = vadd.f32 %v3029, %v3104
    %v3144 = vadd.f32 %v3030, %v3106
    %v3145 = vadd.f32 %v3031, %v3108
    %v3146 = vadd.f32 %v3032, %v3110
    %v3147 = vadd.f32 %v3033, %v3112
    %v3148 = vadd.f32 %v3034, %v3114
    %v3149 = vadd.f32 %v3035, %v3116
    %v3150 = vadd.f32 %v3036, %v3118
    %s3151 = sld [smem:[#allocation2 + $0x1d]]
    %v3152 = vstv %s3151
    %v3153 = vmul.f32 %v83, %v3152
    %v3154 = vmul.f32 %v84, %v3152
    %v3155 = vmul.f32 %v85, %v3152
    %v3156 = vmul.f32 %v86, %v3152
    %v3157 = vmul.f32 %v87, %v3152
    %v3158 = vmul.f32 %v88, %v3152
    %v3159 = vmul.f32 %v89, %v3152
    %v3160 = vmul.f32 %v90, %v3152
    %v3161 = vmul.f32 %v91, %v3152
    %v3162 = vmul.f32 %v92, %v3152
    %v3163 = vmul.f32 %v93, %v3152
    %v3164 = vmul.f32 %v94, %v3152
    %v3165 = vmul.f32 %v95, %v3152
    %v3166 = vmul.f32 %v96, %v3152
    %v3167 = vmul.f32 %v97, %v3152
    %v3168 = vmul.f32 %v98, %v3152
    %v3185 = vrot.slane %v3153, 2
    %v3186 = vrot.slane %v3154, 2
    %v3187 = vrot.slane %v3155, 2
    %v3188 = vrot.slane %v3156, 2
    %v3189 = vrot.slane %v3157, 2
    %v3190 = vrot.slane %v3158, 2
    %v3191 = vrot.slane %v3159, 2
    %v3192 = vrot.slane %v3160, 2
    %v3193 = vrot.slane %v3161, 2
    %v3194 = vrot.slane %v3162, 2
    %v3195 = vrot.slane %v3163, 2
    %v3196 = vrot.slane %v3164, 2
    %v3197 = vrot.slane %v3165, 2
    %v3198 = vrot.slane %v3166, 2
    %v3199 = vrot.slane %v3167, 2
    %v3200 = vrot.slane %v3168, 2
    %3201 = vrot.lane.b32.xlu0 %v3185, 124
    %v3202 = vpop.permute.xlu0 %3201
    %3203 = vrot.lane.b32.xlu0 %v3186, 124
    %v3204 = vpop.permute.xlu0 %3203
    %3205 = vrot.lane.b32.xlu0 %v3187, 124
    %v3206 = vpop.permute.xlu0 %3205
    %3207 = vrot.lane.b32.xlu0 %v3188, 124
    %v3208 = vpop.permute.xlu0 %3207
    %3209 = vrot.lane.b32.xlu0 %v3189, 124
    %v3210 = vpop.permute.xlu0 %3209
    %3211 = vrot.lane.b32.xlu0 %v3190, 124
    %v3212 = vpop.permute.xlu0 %3211
    %3213 = vrot.lane.b32.xlu0 %v3191, 124
    %v3214 = vpop.permute.xlu0 %3213
    %3215 = vrot.lane.b32.xlu0 %v3192, 124
    %v3216 = vpop.permute.xlu0 %3215
    %3217 = vrot.lane.b32.xlu0 %v3193, 124
    %v3218 = vpop.permute.xlu0 %3217
    %3219 = vrot.lane.b32.xlu0 %v3194, 124
    %v3220 = vpop.permute.xlu0 %3219
    %3221 = vrot.lane.b32.xlu0 %v3195, 124
    %v3222 = vpop.permute.xlu0 %3221
    %3223 = vrot.lane.b32.xlu0 %v3196, 124
    %v3224 = vpop.permute.xlu0 %3223
    %3225 = vrot.lane.b32.xlu0 %v3197, 124
    %v3226 = vpop.permute.xlu0 %3225
    %3227 = vrot.lane.b32.xlu0 %v3198, 124
    %v3228 = vpop.permute.xlu0 %3227
    %3229 = vrot.lane.b32.xlu0 %v3199, 124
    %v3230 = vpop.permute.xlu0 %3229
    %3231 = vrot.lane.b32.xlu0 %v3200, 124
    %v3232 = vpop.permute.xlu0 %3231
    %v3249 = vadd.f32 %v3135, %v3202
    %v3250 = vadd.f32 %v3136, %v3204
    %v3251 = vadd.f32 %v3137, %v3206
    %v3252 = vadd.f32 %v3138, %v3208
    %v3253 = vadd.f32 %v3139, %v3210
    %v3254 = vadd.f32 %v3140, %v3212
    %v3255 = vadd.f32 %v3141, %v3214
    %v3256 = vadd.f32 %v3142, %v3216
    %v3257 = vadd.f32 %v3143, %v3218
    %v3258 = vadd.f32 %v3144, %v3220
    %v3259 = vadd.f32 %v3145, %v3222
    %v3260 = vadd.f32 %v3146, %v3224
    %v3261 = vadd.f32 %v3147, %v3226
    %v3262 = vadd.f32 %v3148, %v3228
    %v3263 = vadd.f32 %v3149, %v3230
    %v3264 = vadd.f32 %v3150, %v3232
    %s3265 = sld [smem:[#allocation6 + $0x1]]
    %v3266 = vstv %s3265
    %v3267 = vadd.f32 %v3249, %v3266
    %v3268 = vadd.f32 %v3250, %v3266
    %v3269 = vadd.f32 %v3251, %v3266
    %v3270 = vadd.f32 %v3252, %v3266
    %v3271 = vadd.f32 %v3253, %v3266
    %v3272 = vadd.f32 %v3254, %v3266
    %v3273 = vadd.f32 %v3255, %v3266
    %v3274 = vadd.f32 %v3256, %v3266
    %v3275 = vadd.f32 %v3257, %v3266
    %v3276 = vadd.f32 %v3258, %v3266
    %v3277 = vadd.f32 %v3259, %v3266
    %v3278 = vadd.f32 %v3260, %v3266
    %v3279 = vadd.f32 %v3261, %v3266
    %v3280 = vadd.f32 %v3262, %v3266
    %v3281 = vadd.f32 %v3263, %v3266
    %v3282 = vadd.f32 %v3264, %v3266
    %v3299 = vrot.slane %v3267, 1
    %v3300 = vrot.slane %v3268, 1
    %v3301 = vrot.slane %v3269, 1
    %v3302 = vrot.slane %v3270, 1
    %v3303 = vrot.slane %v3271, 1
    %v3304 = vrot.slane %v3272, 1
    %v3305 = vrot.slane %v3273, 1
    %v3306 = vrot.slane %v3274, 1
    %v3307 = vrot.slane %v3275, 1
    %v3308 = vrot.slane %v3276, 1
    %v3309 = vrot.slane %v3277, 1
    %v3310 = vrot.slane %v3278, 1
    %v3311 = vrot.slane %v3279, 1
    %v3312 = vrot.slane %v3280, 1
    %v3313 = vrot.slane %v3281, 1
    %v3314 = vrot.slane %v3282, 1
    %v3331 = vmax.f32 %v3267, %v3299
    %v3332 = vmax.f32 %v3268, %v3300
    %v3333 = vmax.f32 %v3269, %v3301
    %v3334 = vmax.f32 %v3270, %v3302
    %v3335 = vmax.f32 %v3271, %v3303
    %v3336 = vmax.f32 %v3272, %v3304
    %v3337 = vmax.f32 %v3273, %v3305
    %v3338 = vmax.f32 %v3274, %v3306
    %v3339 = vmax.f32 %v3275, %v3307
    %v3340 = vmax.f32 %v3276, %v3308
    %v3341 = vmax.f32 %v3277, %v3309
    %v3342 = vmax.f32 %v3278, %v3310
    %v3343 = vmax.f32 %v3279, %v3311
    %v3344 = vmax.f32 %v3280, %v3312
    %v3345 = vmax.f32 %v3281, %v3313
    %v3346 = vmax.f32 %v3282, %v3314
    %3363 = vrot.lane.b32.xlu0 %v3331, 127
    %v3364 = vpop.permute.xlu0 %3363
    %3365 = vrot.lane.b32.xlu0 %v3332, 127
    %v3366 = vpop.permute.xlu0 %3365
    %3367 = vrot.lane.b32.xlu0 %v3333, 127
    %v3368 = vpop.permute.xlu0 %3367
    %3369 = vrot.lane.b32.xlu0 %v3334, 127
    %v3370 = vpop.permute.xlu0 %3369
    %3371 = vrot.lane.b32.xlu0 %v3335, 127
    %v3372 = vpop.permute.xlu0 %3371
    %3373 = vrot.lane.b32.xlu0 %v3336, 127
    %v3374 = vpop.permute.xlu0 %3373
    %3375 = vrot.lane.b32.xlu0 %v3337, 127
    %v3376 = vpop.permute.xlu0 %3375
    %3377 = vrot.lane.b32.xlu0 %v3338, 127
    %v3378 = vpop.permute.xlu0 %3377
    %3379 = vrot.lane.b32.xlu0 %v3339, 127
    %v3380 = vpop.permute.xlu0 %3379
    %3381 = vrot.lane.b32.xlu0 %v3340, 127
    %v3382 = vpop.permute.xlu0 %3381
    %3383 = vrot.lane.b32.xlu0 %v3341, 127
    %v3384 = vpop.permute.xlu0 %3383
    %3385 = vrot.lane.b32.xlu0 %v3342, 127
    %v3386 = vpop.permute.xlu0 %3385
    %3387 = vrot.lane.b32.xlu0 %v3343, 127
    %v3388 = vpop.permute.xlu0 %3387
    %3389 = vrot.lane.b32.xlu0 %v3344, 127
    %v3390 = vpop.permute.xlu0 %3389
    %3391 = vrot.lane.b32.xlu0 %v3345, 127
    %v3392 = vpop.permute.xlu0 %3391
    %3393 = vrot.lane.b32.xlu0 %v3346, 127
    %v3394 = vpop.permute.xlu0 %3393
    %v3411 = vmax.f32 %v3331, %v3364
    %v3412 = vmax.f32 %v3332, %v3366
    %v3413 = vmax.f32 %v3333, %v3368
    %v3414 = vmax.f32 %v3334, %v3370
    %v3415 = vmax.f32 %v3335, %v3372
    %v3416 = vmax.f32 %v3336, %v3374
    %v3417 = vmax.f32 %v3337, %v3376
    %v3418 = vmax.f32 %v3338, %v3378
    %v3419 = vmax.f32 %v3339, %v3380
    %v3420 = vmax.f32 %v3340, %v3382
    %v3421 = vmax.f32 %v3341, %v3384
    %v3422 = vmax.f32 %v3342, %v3386
    %v3423 = vmax.f32 %v3343, %v3388
    %v3424 = vmax.f32 %v3344, %v3390
    %v3425 = vmax.f32 %v3345, %v3392
    %v3426 = vmax.f32 %v3346, %v3394
    %s3427 = sld [smem:[#allocation2 + $0x1e]]
    %v3428 = vstv %s3427
    %v3429 = vmul.f32 %v83, %v3428
    %v3430 = vmul.f32 %v84, %v3428
    %v3431 = vmul.f32 %v85, %v3428
    %v3432 = vmul.f32 %v86, %v3428
    %v3433 = vmul.f32 %v87, %v3428
    %v3434 = vmul.f32 %v88, %v3428
    %v3435 = vmul.f32 %v89, %v3428
    %v3436 = vmul.f32 %v90, %v3428
    %v3437 = vmul.f32 %v91, %v3428
    %v3438 = vmul.f32 %v92, %v3428
    %v3439 = vmul.f32 %v93, %v3428
    %v3440 = vmul.f32 %v94, %v3428
    %v3441 = vmul.f32 %v95, %v3428
    %v3442 = vmul.f32 %v96, %v3428
    %v3443 = vmul.f32 %v97, %v3428
    %v3444 = vmul.f32 %v98, %v3428
    %v3445 = vadd.f32 %v3429, 0.0
    %v3446 = vadd.f32 %v3430, 0.0
    %v3447 = vadd.f32 %v3431, 0.0
    %v3448 = vadd.f32 %v3432, 0.0
    %v3449 = vadd.f32 %v3433, 0.0
    %v3450 = vadd.f32 %v3434, 0.0
    %v3451 = vadd.f32 %v3435, 0.0
    %v3452 = vadd.f32 %v3436, 0.0
    %v3453 = vadd.f32 %v3437, 0.0
    %v3454 = vadd.f32 %v3438, 0.0
    %v3455 = vadd.f32 %v3439, 0.0
    %v3456 = vadd.f32 %v3440, 0.0
    %v3457 = vadd.f32 %v3441, 0.0
    %v3458 = vadd.f32 %v3442, 0.0
    %v3459 = vadd.f32 %v3443, 0.0
    %v3460 = vadd.f32 %v3444, 0.0
    %s3461 = sld [smem:[#allocation2 + $0x1f]]
    %v3462 = vstv %s3461
    %v3463 = vmul.f32 %v83, %v3462
    %v3464 = vmul.f32 %v84, %v3462
    %v3465 = vmul.f32 %v85, %v3462
    %v3466 = vmul.f32 %v86, %v3462
    %v3467 = vmul.f32 %v87, %v3462
    %v3468 = vmul.f32 %v88, %v3462
    %v3469 = vmul.f32 %v89, %v3462
    %v3470 = vmul.f32 %v90, %v3462
    %v3471 = vmul.f32 %v91, %v3462
    %v3472 = vmul.f32 %v92, %v3462
    %v3473 = vmul.f32 %v93, %v3462
    %v3474 = vmul.f32 %v94, %v3462
    %v3475 = vmul.f32 %v95, %v3462
    %v3476 = vmul.f32 %v96, %v3462
    %v3477 = vmul.f32 %v97, %v3462
    %v3478 = vmul.f32 %v98, %v3462
    %3495 = vrot.lane.b32.xlu0 %v3463, 127
    %v3496 = vpop.permute.xlu0 %3495
    %3497 = vrot.lane.b32.xlu0 %v3464, 127
    %v3498 = vpop.permute.xlu0 %3497
    %3499 = vrot.lane.b32.xlu0 %v3465, 127
    %v3500 = vpop.permute.xlu0 %3499
    %3501 = vrot.lane.b32.xlu0 %v3466, 127
    %v3502 = vpop.permute.xlu0 %3501
    %3503 = vrot.lane.b32.xlu0 %v3467, 127
    %v3504 = vpop.permute.xlu0 %3503
    %3505 = vrot.lane.b32.xlu0 %v3468, 127
    %v3506 = vpop.permute.xlu0 %3505
    %3507 = vrot.lane.b32.xlu0 %v3469, 127
    %v3508 = vpop.permute.xlu0 %3507
    %3509 = vrot.lane.b32.xlu0 %v3470, 127
    %v3510 = vpop.permute.xlu0 %3509
    %3511 = vrot.lane.b32.xlu0 %v3471, 127
    %v3512 = vpop.permute.xlu0 %3511
    %3513 = vrot.lane.b32.xlu0 %v3472, 127
    %v3514 = vpop.permute.xlu0 %3513
    %3515 = vrot.lane.b32.xlu0 %v3473, 127
    %v3516 = vpop.permute.xlu0 %3515
    %3517 = vrot.lane.b32.xlu0 %v3474, 127
    %v3518 = vpop.permute.xlu0 %3517
    %3519 = vrot.lane.b32.xlu0 %v3475, 127
    %v3520 = vpop.permute.xlu0 %3519
    %3521 = vrot.lane.b32.xlu0 %v3476, 127
    %v3522 = vpop.permute.xlu0 %3521
    %3523 = vrot.lane.b32.xlu0 %v3477, 127
    %v3524 = vpop.permute.xlu0 %3523
    %3525 = vrot.lane.b32.xlu0 %v3478, 127
    %v3526 = vpop.permute.xlu0 %3525
    %v3543 = vadd.f32 %v3445, %v3496
    %v3544 = vadd.f32 %v3446, %v3498
    %v3545 = vadd.f32 %v3447, %v3500
    %v3546 = vadd.f32 %v3448, %v3502
    %v3547 = vadd.f32 %v3449, %v3504
    %v3548 = vadd.f32 %v3450, %v3506
    %v3549 = vadd.f32 %v3451, %v3508
    %v3550 = vadd.f32 %v3452, %v3510
    %v3551 = vadd.f32 %v3453, %v3512
    %v3552 = vadd.f32 %v3454, %v3514
    %v3553 = vadd.f32 %v3455, %v3516
    %v3554 = vadd.f32 %v3456, %v3518
    %v3555 = vadd.f32 %v3457, %v3520
    %v3556 = vadd.f32 %v3458, %v3522
    %v3557 = vadd.f32 %v3459, %v3524
    %v3558 = vadd.f32 %v3460, %v3526
    %s3559 = sld [smem:[#allocation2 + $0x20]]
    %v3560 = vstv %s3559
    %v3561 = vmul.f32 %v83, %v3560
    %v3562 = vmul.f32 %v84, %v3560
    %v3563 = vmul.f32 %v85, %v3560
    %v3564 = vmul.f32 %v86, %v3560
    %v3565 = vmul.f32 %v87, %v3560
    %v3566 = vmul.f32 %v88, %v3560
    %v3567 = vmul.f32 %v89, %v3560
    %v3568 = vmul.f32 %v90, %v3560
    %v3569 = vmul.f32 %v91, %v3560
    %v3570 = vmul.f32 %v92, %v3560
    %v3571 = vmul.f32 %v93, %v3560
    %v3572 = vmul.f32 %v94, %v3560
    %v3573 = vmul.f32 %v95, %v3560
    %v3574 = vmul.f32 %v96, %v3560
    %v3575 = vmul.f32 %v97, %v3560
    %v3576 = vmul.f32 %v98, %v3560
    %3593 = vrot.lane.b32.xlu0 %v3561, 126
    %v3594 = vpop.permute.xlu0 %3593
    %3595 = vrot.lane.b32.xlu0 %v3562, 126
    %v3596 = vpop.permute.xlu0 %3595
    %3597 = vrot.lane.b32.xlu0 %v3563, 126
    %v3598 = vpop.permute.xlu0 %3597
    %3599 = vrot.lane.b32.xlu0 %v3564, 126
    %v3600 = vpop.permute.xlu0 %3599
    %3601 = vrot.lane.b32.xlu0 %v3565, 126
    %v3602 = vpop.permute.xlu0 %3601
    %3603 = vrot.lane.b32.xlu0 %v3566, 126
    %v3604 = vpop.permute.xlu0 %3603
    %3605 = vrot.lane.b32.xlu0 %v3567, 126
    %v3606 = vpop.permute.xlu0 %3605
    %3607 = vrot.lane.b32.xlu0 %v3568, 126
    %v3608 = vpop.permute.xlu0 %3607
    %3609 = vrot.lane.b32.xlu0 %v3569, 126
    %v3610 = vpop.permute.xlu0 %3609
    %3611 = vrot.lane.b32.xlu0 %v3570, 126
    %v3612 = vpop.permute.xlu0 %3611
    %3613 = vrot.lane.b32.xlu0 %v3571, 126
    %v3614 = vpop.permute.xlu0 %3613
    %3615 = vrot.lane.b32.xlu0 %v3572, 126
    %v3616 = vpop.permute.xlu0 %3615
    %3617 = vrot.lane.b32.xlu0 %v3573, 126
    %v3618 = vpop.permute.xlu0 %3617
    %3619 = vrot.lane.b32.xlu0 %v3574, 126
    %v3620 = vpop.permute.xlu0 %3619
    %3621 = vrot.lane.b32.xlu0 %v3575, 126
    %v3622 = vpop.permute.xlu0 %3621
    %3623 = vrot.lane.b32.xlu0 %v3576, 126
    %v3624 = vpop.permute.xlu0 %3623
    %v3641 = vadd.f32 %v3543, %v3594
    %v3642 = vadd.f32 %v3544, %v3596
    %v3643 = vadd.f32 %v3545, %v3598
    %v3644 = vadd.f32 %v3546, %v3600
    %v3645 = vadd.f32 %v3547, %v3602
    %v3646 = vadd.f32 %v3548, %v3604
    %v3647 = vadd.f32 %v3549, %v3606
    %v3648 = vadd.f32 %v3550, %v3608
    %v3649 = vadd.f32 %v3551, %v3610
    %v3650 = vadd.f32 %v3552, %v3612
    %v3651 = vadd.f32 %v3553, %v3614
    %v3652 = vadd.f32 %v3554, %v3616
    %v3653 = vadd.f32 %v3555, %v3618
    %v3654 = vadd.f32 %v3556, %v3620
    %v3655 = vadd.f32 %v3557, %v3622
    %v3656 = vadd.f32 %v3558, %v3624
    %s3657 = sld [smem:[#allocation2 + $0x21]]
    %v3658 = vstv %s3657
    %v3659 = vmul.f32 %v83, %v3658
    %v3660 = vmul.f32 %v84, %v3658
    %v3661 = vmul.f32 %v85, %v3658
    %v3662 = vmul.f32 %v86, %v3658
    %v3663 = vmul.f32 %v87, %v3658
    %v3664 = vmul.f32 %v88, %v3658
    %v3665 = vmul.f32 %v89, %v3658
    %v3666 = vmul.f32 %v90, %v3658
    %v3667 = vmul.f32 %v91, %v3658
    %v3668 = vmul.f32 %v92, %v3658
    %v3669 = vmul.f32 %v93, %v3658
    %v3670 = vmul.f32 %v94, %v3658
    %v3671 = vmul.f32 %v95, %v3658
    %v3672 = vmul.f32 %v96, %v3658
    %v3673 = vmul.f32 %v97, %v3658
    %v3674 = vmul.f32 %v98, %v3658
    %3691 = vrot.lane.b32.xlu0 %v3659, 125
    %v3692 = vpop.permute.xlu0 %3691
    %3693 = vrot.lane.b32.xlu0 %v3660, 125
    %v3694 = vpop.permute.xlu0 %3693
    %3695 = vrot.lane.b32.xlu0 %v3661, 125
    %v3696 = vpop.permute.xlu0 %3695
    %3697 = vrot.lane.b32.xlu0 %v3662, 125
    %v3698 = vpop.permute.xlu0 %3697
    %3699 = vrot.lane.b32.xlu0 %v3663, 125
    %v3700 = vpop.permute.xlu0 %3699
    %3701 = vrot.lane.b32.xlu0 %v3664, 125
    %v3702 = vpop.permute.xlu0 %3701
    %3703 = vrot.lane.b32.xlu0 %v3665, 125
    %v3704 = vpop.permute.xlu0 %3703
    %3705 = vrot.lane.b32.xlu0 %v3666, 125
    %v3706 = vpop.permute.xlu0 %3705
    %3707 = vrot.lane.b32.xlu0 %v3667, 125
    %v3708 = vpop.permute.xlu0 %3707
    %3709 = vrot.lane.b32.xlu0 %v3668, 125
    %v3710 = vpop.permute.xlu0 %3709
    %3711 = vrot.lane.b32.xlu0 %v3669, 125
    %v3712 = vpop.permute.xlu0 %3711
    %3713 = vrot.lane.b32.xlu0 %v3670, 125
    %v3714 = vpop.permute.xlu0 %3713
    %3715 = vrot.lane.b32.xlu0 %v3671, 125
    %v3716 = vpop.permute.xlu0 %3715
    %3717 = vrot.lane.b32.xlu0 %v3672, 125
    %v3718 = vpop.permute.xlu0 %3717
    %3719 = vrot.lane.b32.xlu0 %v3673, 125
    %v3720 = vpop.permute.xlu0 %3719
    %3721 = vrot.lane.b32.xlu0 %v3674, 125
    %v3722 = vpop.permute.xlu0 %3721
    %v3739 = vadd.f32 %v3641, %v3692
    %v3740 = vadd.f32 %v3642, %v3694
    %v3741 = vadd.f32 %v3643, %v3696
    %v3742 = vadd.f32 %v3644, %v3698
    %v3743 = vadd.f32 %v3645, %v3700
    %v3744 = vadd.f32 %v3646, %v3702
    %v3745 = vadd.f32 %v3647, %v3704
    %v3746 = vadd.f32 %v3648, %v3706
    %v3747 = vadd.f32 %v3649, %v3708
    %v3748 = vadd.f32 %v3650, %v3710
    %v3749 = vadd.f32 %v3651, %v3712
    %v3750 = vadd.f32 %v3652, %v3714
    %v3751 = vadd.f32 %v3653, %v3716
    %v3752 = vadd.f32 %v3654, %v3718
    %v3753 = vadd.f32 %v3655, %v3720
    %v3754 = vadd.f32 %v3656, %v3722
    %s3755 = sld [smem:[#allocation2 + $0x22]]
    %v3756 = vstv %s3755
    %v3757 = vmul.f32 %v83, %v3756
    %v3758 = vmul.f32 %v84, %v3756
    %v3759 = vmul.f32 %v85, %v3756
    %v3760 = vmul.f32 %v86, %v3756
    %v3761 = vmul.f32 %v87, %v3756
    %v3762 = vmul.f32 %v88, %v3756
    %v3763 = vmul.f32 %v89, %v3756
    %v3764 = vmul.f32 %v90, %v3756
    %v3765 = vmul.f32 %v91, %v3756
    %v3766 = vmul.f32 %v92, %v3756
    %v3767 = vmul.f32 %v93, %v3756
    %v3768 = vmul.f32 %v94, %v3756
    %v3769 = vmul.f32 %v95, %v3756
    %v3770 = vmul.f32 %v96, %v3756
    %v3771 = vmul.f32 %v97, %v3756
    %v3772 = vmul.f32 %v98, %v3756
    %3789 = vrot.lane.b32.xlu0 %v3757, 124
    %v3790 = vpop.permute.xlu0 %3789
    %3791 = vrot.lane.b32.xlu0 %v3758, 124
    %v3792 = vpop.permute.xlu0 %3791
    %3793 = vrot.lane.b32.xlu0 %v3759, 124
    %v3794 = vpop.permute.xlu0 %3793
    %3795 = vrot.lane.b32.xlu0 %v3760, 124
    %v3796 = vpop.permute.xlu0 %3795
    %3797 = vrot.lane.b32.xlu0 %v3761, 124
    %v3798 = vpop.permute.xlu0 %3797
    %3799 = vrot.lane.b32.xlu0 %v3762, 124
    %v3800 = vpop.permute.xlu0 %3799
    %3801 = vrot.lane.b32.xlu0 %v3763, 124
    %v3802 = vpop.permute.xlu0 %3801
    %3803 = vrot.lane.b32.xlu0 %v3764, 124
    %v3804 = vpop.permute.xlu0 %3803
    %3805 = vrot.lane.b32.xlu0 %v3765, 124
    %v3806 = vpop.permute.xlu0 %3805
    %3807 = vrot.lane.b32.xlu0 %v3766, 124
    %v3808 = vpop.permute.xlu0 %3807
    %3809 = vrot.lane.b32.xlu0 %v3767, 124
    %v3810 = vpop.permute.xlu0 %3809
    %3811 = vrot.lane.b32.xlu0 %v3768, 124
    %v3812 = vpop.permute.xlu0 %3811
    %3813 = vrot.lane.b32.xlu0 %v3769, 124
    %v3814 = vpop.permute.xlu0 %3813
    %3815 = vrot.lane.b32.xlu0 %v3770, 124
    %v3816 = vpop.permute.xlu0 %3815
    %3817 = vrot.lane.b32.xlu0 %v3771, 124
    %v3818 = vpop.permute.xlu0 %3817
    %3819 = vrot.lane.b32.xlu0 %v3772, 124
    %v3820 = vpop.permute.xlu0 %3819
    %v3837 = vadd.f32 %v3739, %v3790
    %v3838 = vadd.f32 %v3740, %v3792
    %v3839 = vadd.f32 %v3741, %v3794
    %v3840 = vadd.f32 %v3742, %v3796
    %v3841 = vadd.f32 %v3743, %v3798
    %v3842 = vadd.f32 %v3744, %v3800
    %v3843 = vadd.f32 %v3745, %v3802
    %v3844 = vadd.f32 %v3746, %v3804
    %v3845 = vadd.f32 %v3747, %v3806
    %v3846 = vadd.f32 %v3748, %v3808
    %v3847 = vadd.f32 %v3749, %v3810
    %v3848 = vadd.f32 %v3750, %v3812
    %v3849 = vadd.f32 %v3751, %v3814
    %v3850 = vadd.f32 %v3752, %v3816
    %v3851 = vadd.f32 %v3753, %v3818
    %v3852 = vadd.f32 %v3754, %v3820
    %s3853 = sld [smem:[#allocation2 + $0x23]]
    %v3854 = vstv %s3853
    %v3855 = vmul.f32 %v83, %v3854
    %v3856 = vmul.f32 %v84, %v3854
    %v3857 = vmul.f32 %v85, %v3854
    %v3858 = vmul.f32 %v86, %v3854
    %v3859 = vmul.f32 %v87, %v3854
    %v3860 = vmul.f32 %v88, %v3854
    %v3861 = vmul.f32 %v89, %v3854
    %v3862 = vmul.f32 %v90, %v3854
    %v3863 = vmul.f32 %v91, %v3854
    %v3864 = vmul.f32 %v92, %v3854
    %v3865 = vmul.f32 %v93, %v3854
    %v3866 = vmul.f32 %v94, %v3854
    %v3867 = vmul.f32 %v95, %v3854
    %v3868 = vmul.f32 %v96, %v3854
    %v3869 = vmul.f32 %v97, %v3854
    %v3870 = vmul.f32 %v98, %v3854
    %v3887 = vrot.slane %v3855, 1
    %v3888 = vrot.slane %v3856, 1
    %v3889 = vrot.slane %v3857, 1
    %v3890 = vrot.slane %v3858, 1
    %v3891 = vrot.slane %v3859, 1
    %v3892 = vrot.slane %v3860, 1
    %v3893 = vrot.slane %v3861, 1
    %v3894 = vrot.slane %v3862, 1
    %v3895 = vrot.slane %v3863, 1
    %v3896 = vrot.slane %v3864, 1
    %v3897 = vrot.slane %v3865, 1
    %v3898 = vrot.slane %v3866, 1
    %v3899 = vrot.slane %v3867, 1
    %v3900 = vrot.slane %v3868, 1
    %v3901 = vrot.slane %v3869, 1
    %v3902 = vrot.slane %v3870, 1
    %v3919 = vadd.f32 %v3837, %v3887
    %v3920 = vadd.f32 %v3838, %v3888
    %v3921 = vadd.f32 %v3839, %v3889
    %v3922 = vadd.f32 %v3840, %v3890
    %v3923 = vadd.f32 %v3841, %v3891
    %v3924 = vadd.f32 %v3842, %v3892
    %v3925 = vadd.f32 %v3843, %v3893
    %v3926 = vadd.f32 %v3844, %v3894
    %v3927 = vadd.f32 %v3845, %v3895
    %v3928 = vadd.f32 %v3846, %v3896
    %v3929 = vadd.f32 %v3847, %v3897
    %v3930 = vadd.f32 %v3848, %v3898
    %v3931 = vadd.f32 %v3849, %v3899
    %v3932 = vadd.f32 %v3850, %v3900
    %v3933 = vadd.f32 %v3851, %v3901
    %v3934 = vadd.f32 %v3852, %v3902
    %s3935 = sld [smem:[#allocation2 + $0x24]]
    %v3936 = vstv %s3935
    %v3937 = vmul.f32 %v83, %v3936
    %v3938 = vmul.f32 %v84, %v3936
    %v3939 = vmul.f32 %v85, %v3936
    %v3940 = vmul.f32 %v86, %v3936
    %v3941 = vmul.f32 %v87, %v3936
    %v3942 = vmul.f32 %v88, %v3936
    %v3943 = vmul.f32 %v89, %v3936
    %v3944 = vmul.f32 %v90, %v3936
    %v3945 = vmul.f32 %v91, %v3936
    %v3946 = vmul.f32 %v92, %v3936
    %v3947 = vmul.f32 %v93, %v3936
    %v3948 = vmul.f32 %v94, %v3936
    %v3949 = vmul.f32 %v95, %v3936
    %v3950 = vmul.f32 %v96, %v3936
    %v3951 = vmul.f32 %v97, %v3936
    %v3952 = vmul.f32 %v98, %v3936
    %v3969 = vrot.slane %v3937, 1
    %v3970 = vrot.slane %v3938, 1
    %v3971 = vrot.slane %v3939, 1
    %v3972 = vrot.slane %v3940, 1
    %v3973 = vrot.slane %v3941, 1
    %v3974 = vrot.slane %v3942, 1
    %v3975 = vrot.slane %v3943, 1
    %v3976 = vrot.slane %v3944, 1
    %v3977 = vrot.slane %v3945, 1
    %v3978 = vrot.slane %v3946, 1
    %v3979 = vrot.slane %v3947, 1
    %v3980 = vrot.slane %v3948, 1
    %v3981 = vrot.slane %v3949, 1
    %v3982 = vrot.slane %v3950, 1
    %v3983 = vrot.slane %v3951, 1
    %v3984 = vrot.slane %v3952, 1
    %3985 = vrot.lane.b32.xlu0 %v3969, 127
    %v3986 = vpop.permute.xlu0 %3985
    %3987 = vrot.lane.b32.xlu0 %v3970, 127
    %v3988 = vpop.permute.xlu0 %3987
    %3989 = vrot.lane.b32.xlu0 %v3971, 127
    %v3990 = vpop.permute.xlu0 %3989
    %3991 = vrot.lane.b32.xlu0 %v3972, 127
    %v3992 = vpop.permute.xlu0 %3991
    %3993 = vrot.lane.b32.xlu0 %v3973, 127
    %v3994 = vpop.permute.xlu0 %3993
    %3995 = vrot.lane.b32.xlu0 %v3974, 127
    %v3996 = vpop.permute.xlu0 %3995
    %3997 = vrot.lane.b32.xlu0 %v3975, 127
    %v3998 = vpop.permute.xlu0 %3997
    %3999 = vrot.lane.b32.xlu0 %v3976, 127
    %v4000 = vpop.permute.xlu0 %3999
    %4001 = vrot.lane.b32.xlu0 %v3977, 127
    %v4002 = vpop.permute.xlu0 %4001
    %4003 = vrot.lane.b32.xlu0 %v3978, 127
    %v4004 = vpop.permute.xlu0 %4003
    %4005 = vrot.lane.b32.xlu0 %v3979, 127
    %v4006 = vpop.permute.xlu0 %4005
    %4007 = vrot.lane.b32.xlu0 %v3980, 127
    %v4008 = vpop.permute.xlu0 %4007
    %4009 = vrot.lane.b32.xlu0 %v3981, 127
    %v4010 = vpop.permute.xlu0 %4009
    %4011 = vrot.lane.b32.xlu0 %v3982, 127
    %v4012 = vpop.permute.xlu0 %4011
    %4013 = vrot.lane.b32.xlu0 %v3983, 127
    %v4014 = vpop.permute.xlu0 %4013
    %4015 = vrot.lane.b32.xlu0 %v3984, 127
    %v4016 = vpop.permute.xlu0 %4015
    %v4033 = vadd.f32 %v3919, %v3986
    %v4034 = vadd.f32 %v3920, %v3988
    %v4035 = vadd.f32 %v3921, %v3990
    %v4036 = vadd.f32 %v3922, %v3992
    %v4037 = vadd.f32 %v3923, %v3994
    %v4038 = vadd.f32 %v3924, %v3996
    %v4039 = vadd.f32 %v3925, %v3998
    %v4040 = vadd.f32 %v3926, %v4000
    %v4041 = vadd.f32 %v3927, %v4002
    %v4042 = vadd.f32 %v3928, %v4004
    %v4043 = vadd.f32 %v3929, %v4006
    %v4044 = vadd.f32 %v3930, %v4008
    %v4045 = vadd.f32 %v3931, %v4010
    %v4046 = vadd.f32 %v3932, %v4012
    %v4047 = vadd.f32 %v3933, %v4014
    %v4048 = vadd.f32 %v3934, %v4016
    %s4049 = sld [smem:[#allocation2 + $0x25]]
    %v4050 = vstv %s4049
    %v4051 = vmul.f32 %v83, %v4050
    %v4052 = vmul.f32 %v84, %v4050
    %v4053 = vmul.f32 %v85, %v4050
    %v4054 = vmul.f32 %v86, %v4050
    %v4055 = vmul.f32 %v87, %v4050
    %v4056 = vmul.f32 %v88, %v4050
    %v4057 = vmul.f32 %v89, %v4050
    %v4058 = vmul.f32 %v90, %v4050
    %v4059 = vmul.f32 %v91, %v4050
    %v4060 = vmul.f32 %v92, %v4050
    %v4061 = vmul.f32 %v93, %v4050
    %v4062 = vmul.f32 %v94, %v4050
    %v4063 = vmul.f32 %v95, %v4050
    %v4064 = vmul.f32 %v96, %v4050
    %v4065 = vmul.f32 %v97, %v4050
    %v4066 = vmul.f32 %v98, %v4050
    %v4083 = vrot.slane %v4051, 1
    %v4084 = vrot.slane %v4052, 1
    %v4085 = vrot.slane %v4053, 1
    %v4086 = vrot.slane %v4054, 1
    %v4087 = vrot.slane %v4055, 1
    %v4088 = vrot.slane %v4056, 1
    %v4089 = vrot.slane %v4057, 1
    %v4090 = vrot.slane %v4058, 1
    %v4091 = vrot.slane %v4059, 1
    %v4092 = vrot.slane %v4060, 1
    %v4093 = vrot.slane %v4061, 1
    %v4094 = vrot.slane %v4062, 1
    %v4095 = vrot.slane %v4063, 1
    %v4096 = vrot.slane %v4064, 1
    %v4097 = vrot.slane %v4065, 1
    %v4098 = vrot.slane %v4066, 1
    %4099 = vrot.lane.b32.xlu0 %v4083, 126
    %v4100 = vpop.permute.xlu0 %4099
    %4101 = vrot.lane.b32.xlu0 %v4084, 126
    %v4102 = vpop.permute.xlu0 %4101
    %4103 = vrot.lane.b32.xlu0 %v4085, 126
    %v4104 = vpop.permute.xlu0 %4103
    %4105 = vrot.lane.b32.xlu0 %v4086, 126
    %v4106 = vpop.permute.xlu0 %4105
    %4107 = vrot.lane.b32.xlu0 %v4087, 126
    %v4108 = vpop.permute.xlu0 %4107
    %4109 = vrot.lane.b32.xlu0 %v4088, 126
    %v4110 = vpop.permute.xlu0 %4109
    %4111 = vrot.lane.b32.xlu0 %v4089, 126
    %v4112 = vpop.permute.xlu0 %4111
    %4113 = vrot.lane.b32.xlu0 %v4090, 126
    %v4114 = vpop.permute.xlu0 %4113
    %4115 = vrot.lane.b32.xlu0 %v4091, 126
    %v4116 = vpop.permute.xlu0 %4115
    %4117 = vrot.lane.b32.xlu0 %v4092, 126
    %v4118 = vpop.permute.xlu0 %4117
    %4119 = vrot.lane.b32.xlu0 %v4093, 126
    %v4120 = vpop.permute.xlu0 %4119
    %4121 = vrot.lane.b32.xlu0 %v4094, 126
    %v4122 = vpop.permute.xlu0 %4121
    %4123 = vrot.lane.b32.xlu0 %v4095, 126
    %v4124 = vpop.permute.xlu0 %4123
    %4125 = vrot.lane.b32.xlu0 %v4096, 126
    %v4126 = vpop.permute.xlu0 %4125
    %4127 = vrot.lane.b32.xlu0 %v4097, 126
    %v4128 = vpop.permute.xlu0 %4127
    %4129 = vrot.lane.b32.xlu0 %v4098, 126
    %v4130 = vpop.permute.xlu0 %4129
    %v4147 = vadd.f32 %v4033, %v4100
    %v4148 = vadd.f32 %v4034, %v4102
    %v4149 = vadd.f32 %v4035, %v4104
    %v4150 = vadd.f32 %v4036, %v4106
    %v4151 = vadd.f32 %v4037, %v4108
    %v4152 = vadd.f32 %v4038, %v4110
    %v4153 = vadd.f32 %v4039, %v4112
    %v4154 = vadd.f32 %v4040, %v4114
    %v4155 = vadd.f32 %v4041, %v4116
    %v4156 = vadd.f32 %v4042, %v4118
    %v4157 = vadd.f32 %v4043, %v4120
    %v4158 = vadd.f32 %v4044, %v4122
    %v4159 = vadd.f32 %v4045, %v4124
    %v4160 = vadd.f32 %v4046, %v4126
    %v4161 = vadd.f32 %v4047, %v4128
    %v4162 = vadd.f32 %v4048, %v4130
    %s4163 = sld [smem:[#allocation2 + $0x26]]
    %v4164 = vstv %s4163
    %v4165 = vmul.f32 %v83, %v4164
    %v4166 = vmul.f32 %v84, %v4164
    %v4167 = vmul.f32 %v85, %v4164
    %v4168 = vmul.f32 %v86, %v4164
    %v4169 = vmul.f32 %v87, %v4164
    %v4170 = vmul.f32 %v88, %v4164
    %v4171 = vmul.f32 %v89, %v4164
    %v4172 = vmul.f32 %v90, %v4164
    %v4173 = vmul.f32 %v91, %v4164
    %v4174 = vmul.f32 %v92, %v4164
    %v4175 = vmul.f32 %v93, %v4164
    %v4176 = vmul.f32 %v94, %v4164
    %v4177 = vmul.f32 %v95, %v4164
    %v4178 = vmul.f32 %v96, %v4164
    %v4179 = vmul.f32 %v97, %v4164
    %v4180 = vmul.f32 %v98, %v4164
    %v4197 = vrot.slane %v4165, 1
    %v4198 = vrot.slane %v4166, 1
    %v4199 = vrot.slane %v4167, 1
    %v4200 = vrot.slane %v4168, 1
    %v4201 = vrot.slane %v4169, 1
    %v4202 = vrot.slane %v4170, 1
    %v4203 = vrot.slane %v4171, 1
    %v4204 = vrot.slane %v4172, 1
    %v4205 = vrot.slane %v4173, 1
    %v4206 = vrot.slane %v4174, 1
    %v4207 = vrot.slane %v4175, 1
    %v4208 = vrot.slane %v4176, 1
    %v4209 = vrot.slane %v4177, 1
    %v4210 = vrot.slane %v4178, 1
    %v4211 = vrot.slane %v4179, 1
    %v4212 = vrot.slane %v4180, 1
    %4213 = vrot.lane.b32.xlu0 %v4197, 125
    %v4214 = vpop.permute.xlu0 %4213
    %4215 = vrot.lane.b32.xlu0 %v4198, 125
    %v4216 = vpop.permute.xlu0 %4215
    %4217 = vrot.lane.b32.xlu0 %v4199, 125
    %v4218 = vpop.permute.xlu0 %4217
    %4219 = vrot.lane.b32.xlu0 %v4200, 125
    %v4220 = vpop.permute.xlu0 %4219
    %4221 = vrot.lane.b32.xlu0 %v4201, 125
    %v4222 = vpop.permute.xlu0 %4221
    %4223 = vrot.lane.b32.xlu0 %v4202, 125
    %v4224 = vpop.permute.xlu0 %4223
    %4225 = vrot.lane.b32.xlu0 %v4203, 125
    %v4226 = vpop.permute.xlu0 %4225
    %4227 = vrot.lane.b32.xlu0 %v4204, 125
    %v4228 = vpop.permute.xlu0 %4227
    %4229 = vrot.lane.b32.xlu0 %v4205, 125
    %v4230 = vpop.permute.xlu0 %4229
    %4231 = vrot.lane.b32.xlu0 %v4206, 125
    %v4232 = vpop.permute.xlu0 %4231
    %4233 = vrot.lane.b32.xlu0 %v4207, 125
    %v4234 = vpop.permute.xlu0 %4233
    %4235 = vrot.lane.b32.xlu0 %v4208, 125
    %v4236 = vpop.permute.xlu0 %4235
    %4237 = vrot.lane.b32.xlu0 %v4209, 125
    %v4238 = vpop.permute.xlu0 %4237
    %4239 = vrot.lane.b32.xlu0 %v4210, 125
    %v4240 = vpop.permute.xlu0 %4239
    %4241 = vrot.lane.b32.xlu0 %v4211, 125
    %v4242 = vpop.permute.xlu0 %4241
    %4243 = vrot.lane.b32.xlu0 %v4212, 125
    %v4244 = vpop.permute.xlu0 %4243
    %v4261 = vadd.f32 %v4147, %v4214
    %v4262 = vadd.f32 %v4148, %v4216
    %v4263 = vadd.f32 %v4149, %v4218
    %v4264 = vadd.f32 %v4150, %v4220
    %v4265 = vadd.f32 %v4151, %v4222
    %v4266 = vadd.f32 %v4152, %v4224
    %v4267 = vadd.f32 %v4153, %v4226
    %v4268 = vadd.f32 %v4154, %v4228
    %v4269 = vadd.f32 %v4155, %v4230
    %v4270 = vadd.f32 %v4156, %v4232
    %v4271 = vadd.f32 %v4157, %v4234
    %v4272 = vadd.f32 %v4158, %v4236
    %v4273 = vadd.f32 %v4159, %v4238
    %v4274 = vadd.f32 %v4160, %v4240
    %v4275 = vadd.f32 %v4161, %v4242
    %v4276 = vadd.f32 %v4162, %v4244
    %s4277 = sld [smem:[#allocation2 + $0x27]]
    %v4278 = vstv %s4277
    %v4279 = vmul.f32 %v83, %v4278
    %v4280 = vmul.f32 %v84, %v4278
    %v4281 = vmul.f32 %v85, %v4278
    %v4282 = vmul.f32 %v86, %v4278
    %v4283 = vmul.f32 %v87, %v4278
    %v4284 = vmul.f32 %v88, %v4278
    %v4285 = vmul.f32 %v89, %v4278
    %v4286 = vmul.f32 %v90, %v4278
    %v4287 = vmul.f32 %v91, %v4278
    %v4288 = vmul.f32 %v92, %v4278
    %v4289 = vmul.f32 %v93, %v4278
    %v4290 = vmul.f32 %v94, %v4278
    %v4291 = vmul.f32 %v95, %v4278
    %v4292 = vmul.f32 %v96, %v4278
    %v4293 = vmul.f32 %v97, %v4278
    %v4294 = vmul.f32 %v98, %v4278
    %v4311 = vrot.slane %v4279, 1
    %v4312 = vrot.slane %v4280, 1
    %v4313 = vrot.slane %v4281, 1
    %v4314 = vrot.slane %v4282, 1
    %v4315 = vrot.slane %v4283, 1
    %v4316 = vrot.slane %v4284, 1
    %v4317 = vrot.slane %v4285, 1
    %v4318 = vrot.slane %v4286, 1
    %v4319 = vrot.slane %v4287, 1
    %v4320 = vrot.slane %v4288, 1
    %v4321 = vrot.slane %v4289, 1
    %v4322 = vrot.slane %v4290, 1
    %v4323 = vrot.slane %v4291, 1
    %v4324 = vrot.slane %v4292, 1
    %v4325 = vrot.slane %v4293, 1
    %v4326 = vrot.slane %v4294, 1
    %4327 = vrot.lane.b32.xlu0 %v4311, 124
    %v4328 = vpop.permute.xlu0 %4327
    %4329 = vrot.lane.b32.xlu0 %v4312, 124
    %v4330 = vpop.permute.xlu0 %4329
    %4331 = vrot.lane.b32.xlu0 %v4313, 124
    %v4332 = vpop.permute.xlu0 %4331
    %4333 = vrot.lane.b32.xlu0 %v4314, 124
    %v4334 = vpop.permute.xlu0 %4333
    %4335 = vrot.lane.b32.xlu0 %v4315, 124
    %v4336 = vpop.permute.xlu0 %4335
    %4337 = vrot.lane.b32.xlu0 %v4316, 124
    %v4338 = vpop.permute.xlu0 %4337
    %4339 = vrot.lane.b32.xlu0 %v4317, 124
    %v4340 = vpop.permute.xlu0 %4339
    %4341 = vrot.lane.b32.xlu0 %v4318, 124
    %v4342 = vpop.permute.xlu0 %4341
    %4343 = vrot.lane.b32.xlu0 %v4319, 124
    %v4344 = vpop.permute.xlu0 %4343
    %4345 = vrot.lane.b32.xlu0 %v4320, 124
    %v4346 = vpop.permute.xlu0 %4345
    %4347 = vrot.lane.b32.xlu0 %v4321, 124
    %v4348 = vpop.permute.xlu0 %4347
    %4349 = vrot.lane.b32.xlu0 %v4322, 124
    %v4350 = vpop.permute.xlu0 %4349
    %4351 = vrot.lane.b32.xlu0 %v4323, 124
    %v4352 = vpop.permute.xlu0 %4351
    %4353 = vrot.lane.b32.xlu0 %v4324, 124
    %v4354 = vpop.permute.xlu0 %4353
    %4355 = vrot.lane.b32.xlu0 %v4325, 124
    %v4356 = vpop.permute.xlu0 %4355
    %4357 = vrot.lane.b32.xlu0 %v4326, 124
    %v4358 = vpop.permute.xlu0 %4357
    %v4375 = vadd.f32 %v4261, %v4328
    %v4376 = vadd.f32 %v4262, %v4330
    %v4377 = vadd.f32 %v4263, %v4332
    %v4378 = vadd.f32 %v4264, %v4334
    %v4379 = vadd.f32 %v4265, %v4336
    %v4380 = vadd.f32 %v4266, %v4338
    %v4381 = vadd.f32 %v4267, %v4340
    %v4382 = vadd.f32 %v4268, %v4342
    %v4383 = vadd.f32 %v4269, %v4344
    %v4384 = vadd.f32 %v4270, %v4346
    %v4385 = vadd.f32 %v4271, %v4348
    %v4386 = vadd.f32 %v4272, %v4350
    %v4387 = vadd.f32 %v4273, %v4352
    %v4388 = vadd.f32 %v4274, %v4354
    %v4389 = vadd.f32 %v4275, %v4356
    %v4390 = vadd.f32 %v4276, %v4358
    %s4391 = sld [smem:[#allocation2 + $0x28]]
    %v4392 = vstv %s4391
    %v4393 = vmul.f32 %v83, %v4392
    %v4394 = vmul.f32 %v84, %v4392
    %v4395 = vmul.f32 %v85, %v4392
    %v4396 = vmul.f32 %v86, %v4392
    %v4397 = vmul.f32 %v87, %v4392
    %v4398 = vmul.f32 %v88, %v4392
    %v4399 = vmul.f32 %v89, %v4392
    %v4400 = vmul.f32 %v90, %v4392
    %v4401 = vmul.f32 %v91, %v4392
    %v4402 = vmul.f32 %v92, %v4392
    %v4403 = vmul.f32 %v93, %v4392
    %v4404 = vmul.f32 %v94, %v4392
    %v4405 = vmul.f32 %v95, %v4392
    %v4406 = vmul.f32 %v96, %v4392
    %v4407 = vmul.f32 %v97, %v4392
    %v4408 = vmul.f32 %v98, %v4392
    %v4425 = vrot.slane %v4393, 2
    %v4426 = vrot.slane %v4394, 2
    %v4427 = vrot.slane %v4395, 2
    %v4428 = vrot.slane %v4396, 2
    %v4429 = vrot.slane %v4397, 2
    %v4430 = vrot.slane %v4398, 2
    %v4431 = vrot.slane %v4399, 2
    %v4432 = vrot.slane %v4400, 2
    %v4433 = vrot.slane %v4401, 2
    %v4434 = vrot.slane %v4402, 2
    %v4435 = vrot.slane %v4403, 2
    %v4436 = vrot.slane %v4404, 2
    %v4437 = vrot.slane %v4405, 2
    %v4438 = vrot.slane %v4406, 2
    %v4439 = vrot.slane %v4407, 2
    %v4440 = vrot.slane %v4408, 2
    %v4457 = vadd.f32 %v4375, %v4425
    %v4458 = vadd.f32 %v4376, %v4426
    %v4459 = vadd.f32 %v4377, %v4427
    %v4460 = vadd.f32 %v4378, %v4428
    %v4461 = vadd.f32 %v4379, %v4429
    %v4462 = vadd.f32 %v4380, %v4430
    %v4463 = vadd.f32 %v4381, %v4431
    %v4464 = vadd.f32 %v4382, %v4432
    %v4465 = vadd.f32 %v4383, %v4433
    %v4466 = vadd.f32 %v4384, %v4434
    %v4467 = vadd.f32 %v4385, %v4435
    %v4468 = vadd.f32 %v4386, %v4436
    %v4469 = vadd.f32 %v4387, %v4437
    %v4470 = vadd.f32 %v4388, %v4438
    %v4471 = vadd.f32 %v4389, %v4439
    %v4472 = vadd.f32 %v4390, %v4440
    %s4473 = sld [smem:[#allocation2 + $0x29]]
    %v4474 = vstv %s4473
    %v4475 = vmul.f32 %v83, %v4474
    %v4476 = vmul.f32 %v84, %v4474
    %v4477 = vmul.f32 %v85, %v4474
    %v4478 = vmul.f32 %v86, %v4474
    %v4479 = vmul.f32 %v87, %v4474
    %v4480 = vmul.f32 %v88, %v4474
    %v4481 = vmul.f32 %v89, %v4474
    %v4482 = vmul.f32 %v90, %v4474
    %v4483 = vmul.f32 %v91, %v4474
    %v4484 = vmul.f32 %v92, %v4474
    %v4485 = vmul.f32 %v93, %v4474
    %v4486 = vmul.f32 %v94, %v4474
    %v4487 = vmul.f32 %v95, %v4474
    %v4488 = vmul.f32 %v96, %v4474
    %v4489 = vmul.f32 %v97, %v4474
    %v4490 = vmul.f32 %v98, %v4474
    %v4507 = vrot.slane %v4475, 2
    %v4508 = vrot.slane %v4476, 2
    %v4509 = vrot.slane %v4477, 2
    %v4510 = vrot.slane %v4478, 2
    %v4511 = vrot.slane %v4479, 2
    %v4512 = vrot.slane %v4480, 2
    %v4513 = vrot.slane %v4481, 2
    %v4514 = vrot.slane %v4482, 2
    %v4515 = vrot.slane %v4483, 2
    %v4516 = vrot.slane %v4484, 2
    %v4517 = vrot.slane %v4485, 2
    %v4518 = vrot.slane %v4486, 2
    %v4519 = vrot.slane %v4487, 2
    %v4520 = vrot.slane %v4488, 2
    %v4521 = vrot.slane %v4489, 2
    %v4522 = vrot.slane %v4490, 2
    %4523 = vrot.lane.b32.xlu0 %v4507, 127
    %v4524 = vpop.permute.xlu0 %4523
    %4525 = vrot.lane.b32.xlu0 %v4508, 127
    %v4526 = vpop.permute.xlu0 %4525
    %4527 = vrot.lane.b32.xlu0 %v4509, 127
    %v4528 = vpop.permute.xlu0 %4527
    %4529 = vrot.lane.b32.xlu0 %v4510, 127
    %v4530 = vpop.permute.xlu0 %4529
    %4531 = vrot.lane.b32.xlu0 %v4511, 127
    %v4532 = vpop.permute.xlu0 %4531
    %4533 = vrot.lane.b32.xlu0 %v4512, 127
    %v4534 = vpop.permute.xlu0 %4533
    %4535 = vrot.lane.b32.xlu0 %v4513, 127
    %v4536 = vpop.permute.xlu0 %4535
    %4537 = vrot.lane.b32.xlu0 %v4514, 127
    %v4538 = vpop.permute.xlu0 %4537
    %4539 = vrot.lane.b32.xlu0 %v4515, 127
    %v4540 = vpop.permute.xlu0 %4539
    %4541 = vrot.lane.b32.xlu0 %v4516, 127
    %v4542 = vpop.permute.xlu0 %4541
    %4543 = vrot.lane.b32.xlu0 %v4517, 127
    %v4544 = vpop.permute.xlu0 %4543
    %4545 = vrot.lane.b32.xlu0 %v4518, 127
    %v4546 = vpop.permute.xlu0 %4545
    %4547 = vrot.lane.b32.xlu0 %v4519, 127
    %v4548 = vpop.permute.xlu0 %4547
    %4549 = vrot.lane.b32.xlu0 %v4520, 127
    %v4550 = vpop.permute.xlu0 %4549
    %4551 = vrot.lane.b32.xlu0 %v4521, 127
    %v4552 = vpop.permute.xlu0 %4551
    %4553 = vrot.lane.b32.xlu0 %v4522, 127
    %v4554 = vpop.permute.xlu0 %4553
    %v4571 = vadd.f32 %v4457, %v4524
    %v4572 = vadd.f32 %v4458, %v4526
    %v4573 = vadd.f32 %v4459, %v4528
    %v4574 = vadd.f32 %v4460, %v4530
    %v4575 = vadd.f32 %v4461, %v4532
    %v4576 = vadd.f32 %v4462, %v4534
    %v4577 = vadd.f32 %v4463, %v4536
    %v4578 = vadd.f32 %v4464, %v4538
    %v4579 = vadd.f32 %v4465, %v4540
    %v4580 = vadd.f32 %v4466, %v4542
    %v4581 = vadd.f32 %v4467, %v4544
    %v4582 = vadd.f32 %v4468, %v4546
    %v4583 = vadd.f32 %v4469, %v4548
    %v4584 = vadd.f32 %v4470, %v4550
    %v4585 = vadd.f32 %v4471, %v4552
    %v4586 = vadd.f32 %v4472, %v4554
    %s4587 = sld [smem:[#allocation2 + $0x2a]]
    %v4588 = vstv %s4587
    %v4589 = vmul.f32 %v83, %v4588
    %v4590 = vmul.f32 %v84, %v4588
    %v4591 = vmul.f32 %v85, %v4588
    %v4592 = vmul.f32 %v86, %v4588
    %v4593 = vmul.f32 %v87, %v4588
    %v4594 = vmul.f32 %v88, %v4588
    %v4595 = vmul.f32 %v89, %v4588
    %v4596 = vmul.f32 %v90, %v4588
    %v4597 = vmul.f32 %v91, %v4588
    %v4598 = vmul.f32 %v92, %v4588
    %v4599 = vmul.f32 %v93, %v4588
    %v4600 = vmul.f32 %v94, %v4588
    %v4601 = vmul.f32 %v95, %v4588
    %v4602 = vmul.f32 %v96, %v4588
    %v4603 = vmul.f32 %v97, %v4588
    %v4604 = vmul.f32 %v98, %v4588
    %v4621 = vrot.slane %v4589, 2
    %v4622 = vrot.slane %v4590, 2
    %v4623 = vrot.slane %v4591, 2
    %v4624 = vrot.slane %v4592, 2
    %v4625 = vrot.slane %v4593, 2
    %v4626 = vrot.slane %v4594, 2
    %v4627 = vrot.slane %v4595, 2
    %v4628 = vrot.slane %v4596, 2
    %v4629 = vrot.slane %v4597, 2
    %v4630 = vrot.slane %v4598, 2
    %v4631 = vrot.slane %v4599, 2
    %v4632 = vrot.slane %v4600, 2
    %v4633 = vrot.slane %v4601, 2
    %v4634 = vrot.slane %v4602, 2
    %v4635 = vrot.slane %v4603, 2
    %v4636 = vrot.slane %v4604, 2
    %4637 = vrot.lane.b32.xlu0 %v4621, 126
    %v4638 = vpop.permute.xlu0 %4637
    %4639 = vrot.lane.b32.xlu0 %v4622, 126
    %v4640 = vpop.permute.xlu0 %4639
    %4641 = vrot.lane.b32.xlu0 %v4623, 126
    %v4642 = vpop.permute.xlu0 %4641
    %4643 = vrot.lane.b32.xlu0 %v4624, 126
    %v4644 = vpop.permute.xlu0 %4643
    %4645 = vrot.lane.b32.xlu0 %v4625, 126
    %v4646 = vpop.permute.xlu0 %4645
    %4647 = vrot.lane.b32.xlu0 %v4626, 126
    %v4648 = vpop.permute.xlu0 %4647
    %4649 = vrot.lane.b32.xlu0 %v4627, 126
    %v4650 = vpop.permute.xlu0 %4649
    %4651 = vrot.lane.b32.xlu0 %v4628, 126
    %v4652 = vpop.permute.xlu0 %4651
    %4653 = vrot.lane.b32.xlu0 %v4629, 126
    %v4654 = vpop.permute.xlu0 %4653
    %4655 = vrot.lane.b32.xlu0 %v4630, 126
    %v4656 = vpop.permute.xlu0 %4655
    %4657 = vrot.lane.b32.xlu0 %v4631, 126
    %v4658 = vpop.permute.xlu0 %4657
    %4659 = vrot.lane.b32.xlu0 %v4632, 126
    %v4660 = vpop.permute.xlu0 %4659
    %4661 = vrot.lane.b32.xlu0 %v4633, 126
    %v4662 = vpop.permute.xlu0 %4661
    %4663 = vrot.lane.b32.xlu0 %v4634, 126
    %v4664 = vpop.permute.xlu0 %4663
    %4665 = vrot.lane.b32.xlu0 %v4635, 126
    %v4666 = vpop.permute.xlu0 %4665
    %4667 = vrot.lane.b32.xlu0 %v4636, 126
    %v4668 = vpop.permute.xlu0 %4667
    %v4685 = vadd.f32 %v4571, %v4638
    %v4686 = vadd.f32 %v4572, %v4640
    %v4687 = vadd.f32 %v4573, %v4642
    %v4688 = vadd.f32 %v4574, %v4644
    %v4689 = vadd.f32 %v4575, %v4646
    %v4690 = vadd.f32 %v4576, %v4648
    %v4691 = vadd.f32 %v4577, %v4650
    %v4692 = vadd.f32 %v4578, %v4652
    %v4693 = vadd.f32 %v4579, %v4654
    %v4694 = vadd.f32 %v4580, %v4656
    %v4695 = vadd.f32 %v4581, %v4658
    %v4696 = vadd.f32 %v4582, %v4660
    %v4697 = vadd.f32 %v4583, %v4662
    %v4698 = vadd.f32 %v4584, %v4664
    %v4699 = vadd.f32 %v4585, %v4666
    %v4700 = vadd.f32 %v4586, %v4668
    %s4701 = sld [smem:[#allocation2 + $0x2b]]
    %v4702 = vstv %s4701
    %v4703 = vmul.f32 %v83, %v4702
    %v4704 = vmul.f32 %v84, %v4702
    %v4705 = vmul.f32 %v85, %v4702
    %v4706 = vmul.f32 %v86, %v4702
    %v4707 = vmul.f32 %v87, %v4702
    %v4708 = vmul.f32 %v88, %v4702
    %v4709 = vmul.f32 %v89, %v4702
    %v4710 = vmul.f32 %v90, %v4702
    %v4711 = vmul.f32 %v91, %v4702
    %v4712 = vmul.f32 %v92, %v4702
    %v4713 = vmul.f32 %v93, %v4702
    %v4714 = vmul.f32 %v94, %v4702
    %v4715 = vmul.f32 %v95, %v4702
    %v4716 = vmul.f32 %v96, %v4702
    %v4717 = vmul.f32 %v97, %v4702
    %v4718 = vmul.f32 %v98, %v4702
    %v4735 = vrot.slane %v4703, 2
    %v4736 = vrot.slane %v4704, 2
    %v4737 = vrot.slane %v4705, 2
    %v4738 = vrot.slane %v4706, 2
    %v4739 = vrot.slane %v4707, 2
    %v4740 = vrot.slane %v4708, 2
    %v4741 = vrot.slane %v4709, 2
    %v4742 = vrot.slane %v4710, 2
    %v4743 = vrot.slane %v4711, 2
    %v4744 = vrot.slane %v4712, 2
    %v4745 = vrot.slane %v4713, 2
    %v4746 = vrot.slane %v4714, 2
    %v4747 = vrot.slane %v4715, 2
    %v4748 = vrot.slane %v4716, 2
    %v4749 = vrot.slane %v4717, 2
    %v4750 = vrot.slane %v4718, 2
    %4751 = vrot.lane.b32.xlu0 %v4735, 125
    %v4752 = vpop.permute.xlu0 %4751
    %4753 = vrot.lane.b32.xlu0 %v4736, 125
    %v4754 = vpop.permute.xlu0 %4753
    %4755 = vrot.lane.b32.xlu0 %v4737, 125
    %v4756 = vpop.permute.xlu0 %4755
    %4757 = vrot.lane.b32.xlu0 %v4738, 125
    %v4758 = vpop.permute.xlu0 %4757
    %4759 = vrot.lane.b32.xlu0 %v4739, 125
    %v4760 = vpop.permute.xlu0 %4759
    %4761 = vrot.lane.b32.xlu0 %v4740, 125
    %v4762 = vpop.permute.xlu0 %4761
    %4763 = vrot.lane.b32.xlu0 %v4741, 125
    %v4764 = vpop.permute.xlu0 %4763
    %4765 = vrot.lane.b32.xlu0 %v4742, 125
    %v4766 = vpop.permute.xlu0 %4765
    %4767 = vrot.lane.b32.xlu0 %v4743, 125
    %v4768 = vpop.permute.xlu0 %4767
    %4769 = vrot.lane.b32.xlu0 %v4744, 125
    %v4770 = vpop.permute.xlu0 %4769
    %4771 = vrot.lane.b32.xlu0 %v4745, 125
    %v4772 = vpop.permute.xlu0 %4771
    %4773 = vrot.lane.b32.xlu0 %v4746, 125
    %v4774 = vpop.permute.xlu0 %4773
    %4775 = vrot.lane.b32.xlu0 %v4747, 125
    %v4776 = vpop.permute.xlu0 %4775
    %4777 = vrot.lane.b32.xlu0 %v4748, 125
    %v4778 = vpop.permute.xlu0 %4777
    %4779 = vrot.lane.b32.xlu0 %v4749, 125
    %v4780 = vpop.permute.xlu0 %4779
    %4781 = vrot.lane.b32.xlu0 %v4750, 125
    %v4782 = vpop.permute.xlu0 %4781
    %v4799 = vadd.f32 %v4685, %v4752
    %v4800 = vadd.f32 %v4686, %v4754
    %v4801 = vadd.f32 %v4687, %v4756
    %v4802 = vadd.f32 %v4688, %v4758
    %v4803 = vadd.f32 %v4689, %v4760
    %v4804 = vadd.f32 %v4690, %v4762
    %v4805 = vadd.f32 %v4691, %v4764
    %v4806 = vadd.f32 %v4692, %v4766
    %v4807 = vadd.f32 %v4693, %v4768
    %v4808 = vadd.f32 %v4694, %v4770
    %v4809 = vadd.f32 %v4695, %v4772
    %v4810 = vadd.f32 %v4696, %v4774
    %v4811 = vadd.f32 %v4697, %v4776
    %v4812 = vadd.f32 %v4698, %v4778
    %v4813 = vadd.f32 %v4699, %v4780
    %v4814 = vadd.f32 %v4700, %v4782
    %s4815 = sld [smem:[#allocation2 + $0x2c]]
    %v4816 = vstv %s4815
    %v4817 = vmul.f32 %v83, %v4816
    %v4818 = vmul.f32 %v84, %v4816
    %v4819 = vmul.f32 %v85, %v4816
    %v4820 = vmul.f32 %v86, %v4816
    %v4821 = vmul.f32 %v87, %v4816
    %v4822 = vmul.f32 %v88, %v4816
    %v4823 = vmul.f32 %v89, %v4816
    %v4824 = vmul.f32 %v90, %v4816
    %v4825 = vmul.f32 %v91, %v4816
    %v4826 = vmul.f32 %v92, %v4816
    %v4827 = vmul.f32 %v93, %v4816
    %v4828 = vmul.f32 %v94, %v4816
    %v4829 = vmul.f32 %v95, %v4816
    %v4830 = vmul.f32 %v96, %v4816
    %v4831 = vmul.f32 %v97, %v4816
    %v4832 = vmul.f32 %v98, %v4816
    %v4849 = vrot.slane %v4817, 2
    %v4850 = vrot.slane %v4818, 2
    %v4851 = vrot.slane %v4819, 2
    %v4852 = vrot.slane %v4820, 2
    %v4853 = vrot.slane %v4821, 2
    %v4854 = vrot.slane %v4822, 2
    %v4855 = vrot.slane %v4823, 2
    %v4856 = vrot.slane %v4824, 2
    %v4857 = vrot.slane %v4825, 2
    %v4858 = vrot.slane %v4826, 2
    %v4859 = vrot.slane %v4827, 2
    %v4860 = vrot.slane %v4828, 2
    %v4861 = vrot.slane %v4829, 2
    %v4862 = vrot.slane %v4830, 2
    %v4863 = vrot.slane %v4831, 2
    %v4864 = vrot.slane %v4832, 2
    %4865 = vrot.lane.b32.xlu0 %v4849, 124
    %v4866 = vpop.permute.xlu0 %4865
    %4867 = vrot.lane.b32.xlu0 %v4850, 124
    %v4868 = vpop.permute.xlu0 %4867
    %4869 = vrot.lane.b32.xlu0 %v4851, 124
    %v4870 = vpop.permute.xlu0 %4869
    %4871 = vrot.lane.b32.xlu0 %v4852, 124
    %v4872 = vpop.permute.xlu0 %4871
    %4873 = vrot.lane.b32.xlu0 %v4853, 124
    %v4874 = vpop.permute.xlu0 %4873
    %4875 = vrot.lane.b32.xlu0 %v4854, 124
    %v4876 = vpop.permute.xlu0 %4875
    %4877 = vrot.lane.b32.xlu0 %v4855, 124
    %v4878 = vpop.permute.xlu0 %4877
    %4879 = vrot.lane.b32.xlu0 %v4856, 124
    %v4880 = vpop.permute.xlu0 %4879
    %4881 = vrot.lane.b32.xlu0 %v4857, 124
    %v4882 = vpop.permute.xlu0 %4881
    %4883 = vrot.lane.b32.xlu0 %v4858, 124
    %v4884 = vpop.permute.xlu0 %4883
    %4885 = vrot.lane.b32.xlu0 %v4859, 124
    %v4886 = vpop.permute.xlu0 %4885
    %4887 = vrot.lane.b32.xlu0 %v4860, 124
    %v4888 = vpop.permute.xlu0 %4887
    %4889 = vrot.lane.b32.xlu0 %v4861, 124
    %v4890 = vpop.permute.xlu0 %4889
    %4891 = vrot.lane.b32.xlu0 %v4862, 124
    %v4892 = vpop.permute.xlu0 %4891
    %4893 = vrot.lane.b32.xlu0 %v4863, 124
    %v4894 = vpop.permute.xlu0 %4893
    %4895 = vrot.lane.b32.xlu0 %v4864, 124
    %v4896 = vpop.permute.xlu0 %4895
    %v4913 = vadd.f32 %v4799, %v4866
    %v4914 = vadd.f32 %v4800, %v4868
    %v4915 = vadd.f32 %v4801, %v4870
    %v4916 = vadd.f32 %v4802, %v4872
    %v4917 = vadd.f32 %v4803, %v4874
    %v4918 = vadd.f32 %v4804, %v4876
    %v4919 = vadd.f32 %v4805, %v4878
    %v4920 = vadd.f32 %v4806, %v4880
    %v4921 = vadd.f32 %v4807, %v4882
    %v4922 = vadd.f32 %v4808, %v4884
    %v4923 = vadd.f32 %v4809, %v4886
    %v4924 = vadd.f32 %v4810, %v4888
    %v4925 = vadd.f32 %v4811, %v4890
    %v4926 = vadd.f32 %v4812, %v4892
    %v4927 = vadd.f32 %v4813, %v4894
    %v4928 = vadd.f32 %v4814, %v4896
    %s4929 = sld [smem:[#allocation6 + $0x2]]
    %v4930 = vstv %s4929
    %v4931 = vadd.f32 %v4913, %v4930
    %v4932 = vadd.f32 %v4914, %v4930
    %v4933 = vadd.f32 %v4915, %v4930
    %v4934 = vadd.f32 %v4916, %v4930
    %v4935 = vadd.f32 %v4917, %v4930
    %v4936 = vadd.f32 %v4918, %v4930
    %v4937 = vadd.f32 %v4919, %v4930
    %v4938 = vadd.f32 %v4920, %v4930
    %v4939 = vadd.f32 %v4921, %v4930
    %v4940 = vadd.f32 %v4922, %v4930
    %v4941 = vadd.f32 %v4923, %v4930
    %v4942 = vadd.f32 %v4924, %v4930
    %v4943 = vadd.f32 %v4925, %v4930
    %v4944 = vadd.f32 %v4926, %v4930
    %v4945 = vadd.f32 %v4927, %v4930
    %v4946 = vadd.f32 %v4928, %v4930
    %v4963 = vrot.slane %v4931, 1
    %v4964 = vrot.slane %v4932, 1
    %v4965 = vrot.slane %v4933, 1
    %v4966 = vrot.slane %v4934, 1
    %v4967 = vrot.slane %v4935, 1
    %v4968 = vrot.slane %v4936, 1
    %v4969 = vrot.slane %v4937, 1
    %v4970 = vrot.slane %v4938, 1
    %v4971 = vrot.slane %v4939, 1
    %v4972 = vrot.slane %v4940, 1
    %v4973 = vrot.slane %v4941, 1
    %v4974 = vrot.slane %v4942, 1
    %v4975 = vrot.slane %v4943, 1
    %v4976 = vrot.slane %v4944, 1
    %v4977 = vrot.slane %v4945, 1
    %v4978 = vrot.slane %v4946, 1
    %v4995 = vmax.f32 %v4931, %v4963
    %v4996 = vmax.f32 %v4932, %v4964
    %v4997 = vmax.f32 %v4933, %v4965
    %v4998 = vmax.f32 %v4934, %v4966
    %v4999 = vmax.f32 %v4935, %v4967
    %v5000 = vmax.f32 %v4936, %v4968
    %v5001 = vmax.f32 %v4937, %v4969
    %v5002 = vmax.f32 %v4938, %v4970
    %v5003 = vmax.f32 %v4939, %v4971
    %v5004 = vmax.f32 %v4940, %v4972
    %v5005 = vmax.f32 %v4941, %v4973
    %v5006 = vmax.f32 %v4942, %v4974
    %v5007 = vmax.f32 %v4943, %v4975
    %v5008 = vmax.f32 %v4944, %v4976
    %v5009 = vmax.f32 %v4945, %v4977
    %v5010 = vmax.f32 %v4946, %v4978
    %5027 = vrot.lane.b32.xlu0 %v4995, 127
    %v5028 = vpop.permute.xlu0 %5027
    %5029 = vrot.lane.b32.xlu0 %v4996, 127
    %v5030 = vpop.permute.xlu0 %5029
    %5031 = vrot.lane.b32.xlu0 %v4997, 127
    %v5032 = vpop.permute.xlu0 %5031
    %5033 = vrot.lane.b32.xlu0 %v4998, 127
    %v5034 = vpop.permute.xlu0 %5033
    %5035 = vrot.lane.b32.xlu0 %v4999, 127
    %v5036 = vpop.permute.xlu0 %5035
    %5037 = vrot.lane.b32.xlu0 %v5000, 127
    %v5038 = vpop.permute.xlu0 %5037
    %5039 = vrot.lane.b32.xlu0 %v5001, 127
    %v5040 = vpop.permute.xlu0 %5039
    %5041 = vrot.lane.b32.xlu0 %v5002, 127
    %v5042 = vpop.permute.xlu0 %5041
    %5043 = vrot.lane.b32.xlu0 %v5003, 127
    %v5044 = vpop.permute.xlu0 %5043
    %5045 = vrot.lane.b32.xlu0 %v5004, 127
    %v5046 = vpop.permute.xlu0 %5045
    %5047 = vrot.lane.b32.xlu0 %v5005, 127
    %v5048 = vpop.permute.xlu0 %5047
    %5049 = vrot.lane.b32.xlu0 %v5006, 127
    %v5050 = vpop.permute.xlu0 %5049
    %5051 = vrot.lane.b32.xlu0 %v5007, 127
    %v5052 = vpop.permute.xlu0 %5051
    %5053 = vrot.lane.b32.xlu0 %v5008, 127
    %v5054 = vpop.permute.xlu0 %5053
    %5055 = vrot.lane.b32.xlu0 %v5009, 127
    %v5056 = vpop.permute.xlu0 %5055
    %5057 = vrot.lane.b32.xlu0 %v5010, 127
    %v5058 = vpop.permute.xlu0 %5057
    %v5075 = vmax.f32 %v4995, %v5028
    %v5076 = vmax.f32 %v4996, %v5030
    %v5077 = vmax.f32 %v4997, %v5032
    %v5078 = vmax.f32 %v4998, %v5034
    %v5079 = vmax.f32 %v4999, %v5036
    %v5080 = vmax.f32 %v5000, %v5038
    %v5081 = vmax.f32 %v5001, %v5040
    %v5082 = vmax.f32 %v5002, %v5042
    %v5083 = vmax.f32 %v5003, %v5044
    %v5084 = vmax.f32 %v5004, %v5046
    %v5085 = vmax.f32 %v5005, %v5048
    %v5086 = vmax.f32 %v5006, %v5050
    %v5087 = vmax.f32 %v5007, %v5052
    %v5088 = vmax.f32 %v5008, %v5054
    %v5089 = vmax.f32 %v5009, %v5056
    %v5090 = vmax.f32 %v5010, %v5058
    %v5107 = vrot.slane %v1748, 7
    %vm5108 = vcmask 1041409
    %v5109 = vsel %vm5108, %v5107, %v1747
    %v5110 = vrot.slane %v1749, 6
    %vm5111 = vcmask 1042434
    %v5112 = vsel %vm5111, %v5110, %v5109
    %v5113 = vrot.slane %v1750, 5
    %vm5114 = vcmask 1043459
    %v5115 = vsel %vm5114, %v5113, %v5112
    %v5116 = vrot.slane %v1751, 4
    %vm5117 = vcmask 1044484
    %v5118 = vsel %vm5117, %v5116, %v5115
    %v5119 = vrot.slane %v1752, 3
    %vm5120 = vcmask 1045509
    %v5121 = vsel %vm5120, %v5119, %v5118
    %v5122 = vrot.slane %v1753, 2
    %vm5123 = vcmask 1046534
    %v5124 = vsel %vm5123, %v5122, %v5121
    %v5125 = vrot.slane %v1754, 1
    %vm5126 = vcmask 1047559
    %v5127 = vsel %vm5126, %v5125, %v5124
    %v5128 = vrot.slane %v1756, 7
    %v5129 = vsel %vm5108, %v5128, %v1755
    %v5130 = vrot.slane %v1757, 6
    %v5131 = vsel %vm5111, %v5130, %v5129
    %v5132 = vrot.slane %v1758, 5
    %v5133 = vsel %vm5114, %v5132, %v5131
    %v5134 = vrot.slane %v1759, 4
    %v5135 = vsel %vm5117, %v5134, %v5133
    %v5136 = vrot.slane %v1760, 3
    %v5137 = vsel %vm5120, %v5136, %v5135
    %v5138 = vrot.slane %v1761, 2
    %v5139 = vsel %vm5123, %v5138, %v5137
    %v5140 = vrot.slane %v1762, 1
    %v5141 = vsel %vm5126, %v5140, %v5139
    %5144 = vrot.lane.b32.xlu0 %v5127, 127
    %v5145 = vpop.permute.xlu0 %5144
    %5146 = vrot.lane.b32.xlu0 %v5141, 127
    %v5147 = vpop.permute.xlu0 %5146
    %5150 = vrot.lane.b32.xlu0 %v5127, 126
    %v5151 = vpop.permute.xlu0 %5150
    %5152 = vrot.lane.b32.xlu0 %v5141, 126
    %v5153 = vpop.permute.xlu0 %5152
    %v5156 = vrot.slane %v1747, 2
    %v5157 = vrot.slane %v1748, 1
    %v5158 = vsel %vm5108, %v5157, %v5156
    %v5159 = vsel %vm5111, %v1749, %v5158
    %v5160 = vrot.slane %v1750, 7
    %v5161 = vsel %vm5114, %v5160, %v5159
    %v5162 = vrot.slane %v1751, 6
    %v5163 = vsel %vm5117, %v5162, %v5161
    %v5164 = vrot.slane %v1752, 5
    %v5165 = vsel %vm5120, %v5164, %v5163
    %v5166 = vrot.slane %v1753, 4
    %v5167 = vsel %vm5123, %v5166, %v5165
    %v5168 = vrot.slane %v1754, 3
    %v5169 = vsel %vm5126, %v5168, %v5167
    %v5170 = vrot.slane %v1755, 2
    %v5171 = vrot.slane %v1756, 1
    %v5172 = vsel %vm5108, %v5171, %v5170
    %v5173 = vsel %vm5111, %v1757, %v5172
    %v5174 = vrot.slane %v1758, 7
    %v5175 = vsel %vm5114, %v5174, %v5173
    %v5176 = vrot.slane %v1759, 6
    %v5177 = vsel %vm5117, %v5176, %v5175
    %v5178 = vrot.slane %v1760, 5
    %v5179 = vsel %vm5120, %v5178, %v5177
    %v5180 = vrot.slane %v1761, 4
    %v5181 = vsel %vm5123, %v5180, %v5179
    %v5182 = vrot.slane %v1762, 3
    %v5183 = vsel %vm5126, %v5182, %v5181
    %5184 = vrot.lane.b32.xlu0 %v5169, 3
    %v5185 = vpop.permute.xlu0 %5184
    %5186 = vrot.lane.b32.xlu0 %v5183, 3
    %v5187 = vpop.permute.xlu0 %5186
    %5190 = vrot.lane.b32.xlu0 %v5169, 2
    %v5191 = vpop.permute.xlu0 %5190
    %5192 = vrot.lane.b32.xlu0 %v5183, 2
    %v5193 = vpop.permute.xlu0 %5192
    %5196 = vrot.lane.b32.xlu0 %v5169, 1
    %v5197 = vpop.permute.xlu0 %5196
    %5198 = vrot.lane.b32.xlu0 %v5183, 1
    %v5199 = vpop.permute.xlu0 %5198
    %v5218 = vrot.slane %v3412, 7
    %v5219 = vsel %vm5108, %v5218, %v3411
    %v5220 = vrot.slane %v3413, 6
    %v5221 = vsel %vm5111, %v5220, %v5219
    %v5222 = vrot.slane %v3414, 5
    %v5223 = vsel %vm5114, %v5222, %v5221
    %v5224 = vrot.slane %v3415, 4
    %v5225 = vsel %vm5117, %v5224, %v5223
    %v5226 = vrot.slane %v3416, 3
    %v5227 = vsel %vm5120, %v5226, %v5225
    %v5228 = vrot.slane %v3417, 2
    %v5229 = vsel %vm5123, %v5228, %v5227
    %v5230 = vrot.slane %v3418, 1
    %v5231 = vsel %vm5126, %v5230, %v5229
    %v5232 = vrot.slane %v3420, 7
    %v5233 = vsel %vm5108, %v5232, %v3419
    %v5234 = vrot.slane %v3421, 6
    %v5235 = vsel %vm5111, %v5234, %v5233
    %v5236 = vrot.slane %v3422, 5
    %v5237 = vsel %vm5114, %v5236, %v5235
    %v5238 = vrot.slane %v3423, 4
    %v5239 = vsel %vm5117, %v5238, %v5237
    %v5240 = vrot.slane %v3424, 3
    %v5241 = vsel %vm5120, %v5240, %v5239
    %v5242 = vrot.slane %v3425, 2
    %v5243 = vsel %vm5123, %v5242, %v5241
    %v5244 = vrot.slane %v3426, 1
    %v5245 = vsel %vm5126, %v5244, %v5243
    %5246 = vrot.lane.b32.xlu0 %v5231, 6
    %v5247 = vpop.permute.xlu0 %5246
    %5248 = vrot.lane.b32.xlu0 %v5245, 6
    %v5249 = vpop.permute.xlu0 %5248
    %5252 = vrot.lane.b32.xlu0 %v5231, 5
    %v5253 = vpop.permute.xlu0 %5252
    %5254 = vrot.lane.b32.xlu0 %v5245, 5
    %v5255 = vpop.permute.xlu0 %5254
    %5258 = vrot.lane.b32.xlu0 %v5231, 4
    %v5259 = vpop.permute.xlu0 %5258
    %5260 = vrot.lane.b32.xlu0 %v5245, 4
    %v5261 = vpop.permute.xlu0 %5260
    %v5264 = vrot.slane %v3411, 2
    %v5265 = vrot.slane %v3412, 1
    %v5266 = vsel %vm5108, %v5265, %v5264
    %v5267 = vsel %vm5111, %v3413, %v5266
    %v5268 = vrot.slane %v3414, 7
    %v5269 = vsel %vm5114, %v5268, %v5267
    %v5270 = vrot.slane %v3415, 6
    %v5271 = vsel %vm5117, %v5270, %v5269
    %v5272 = vrot.slane %v3416, 5
    %v5273 = vsel %vm5120, %v5272, %v5271
    %v5274 = vrot.slane %v3417, 4
    %v5275 = vsel %vm5123, %v5274, %v5273
    %v5276 = vrot.slane %v3418, 3
    %v5277 = vsel %vm5126, %v5276, %v5275
    %v5278 = vrot.slane %v3419, 2
    %v5279 = vrot.slane %v3420, 1
    %v5280 = vsel %vm5108, %v5279, %v5278
    %v5281 = vsel %vm5111, %v3421, %v5280
    %v5282 = vrot.slane %v3422, 7
    %v5283 = vsel %vm5114, %v5282, %v5281
    %v5284 = vrot.slane %v3423, 6
    %v5285 = vsel %vm5117, %v5284, %v5283
    %v5286 = vrot.slane %v3424, 5
    %v5287 = vsel %vm5120, %v5286, %v5285
    %v5288 = vrot.slane %v3425, 4
    %v5289 = vsel %vm5123, %v5288, %v5287
    %v5290 = vrot.slane %v3426, 3
    %v5291 = vsel %vm5126, %v5290, %v5289
    %5292 = vrot.lane.b32.xlu0 %v5277, 9
    %v5293 = vpop.permute.xlu0 %5292
    %5294 = vrot.lane.b32.xlu0 %v5291, 9
    %v5295 = vpop.permute.xlu0 %5294
    %5298 = vrot.lane.b32.xlu0 %v5277, 8
    %v5299 = vpop.permute.xlu0 %5298
    %5300 = vrot.lane.b32.xlu0 %v5291, 8
    %v5301 = vpop.permute.xlu0 %5300
    %5304 = vrot.lane.b32.xlu0 %v5277, 7
    %v5305 = vpop.permute.xlu0 %5304
    %5306 = vrot.lane.b32.xlu0 %v5291, 7
    %v5307 = vpop.permute.xlu0 %5306
    %v5326 = vrot.slane %v5076, 7
    %v5327 = vsel %vm5108, %v5326, %v5075
    %v5328 = vrot.slane %v5077, 6
    %v5329 = vsel %vm5111, %v5328, %v5327
    %v5330 = vrot.slane %v5078, 5
    %v5331 = vsel %vm5114, %v5330, %v5329
    %v5332 = vrot.slane %v5079, 4
    %v5333 = vsel %vm5117, %v5332, %v5331
    %v5334 = vrot.slane %v5080, 3
    %v5335 = vsel %vm5120, %v5334, %v5333
    %v5336 = vrot.slane %v5081, 2
    %v5337 = vsel %vm5123, %v5336, %v5335
    %v5338 = vrot.slane %v5082, 1
    %v5339 = vsel %vm5126, %v5338, %v5337
    %v5340 = vrot.slane %v5084, 7
    %v5341 = vsel %vm5108, %v5340, %v5083
    %v5342 = vrot.slane %v5085, 6
    %v5343 = vsel %vm5111, %v5342, %v5341
    %v5344 = vrot.slane %v5086, 5
    %v5345 = vsel %vm5114, %v5344, %v5343
    %v5346 = vrot.slane %v5087, 4
    %v5347 = vsel %vm5117, %v5346, %v5345
    %v5348 = vrot.slane %v5088, 3
    %v5349 = vsel %vm5120, %v5348, %v5347
    %v5350 = vrot.slane %v5089, 2
    %v5351 = vsel %vm5123, %v5350, %v5349
    %v5352 = vrot.slane %v5090, 1
    %v5353 = vsel %vm5126, %v5352, %v5351
    %5354 = vrot.lane.b32.xlu0 %v5339, 12
    %v5355 = vpop.permute.xlu0 %5354
    %5356 = vrot.lane.b32.xlu0 %v5353, 12
    %v5357 = vpop.permute.xlu0 %5356
    %5360 = vrot.lane.b32.xlu0 %v5339, 11
    %v5361 = vpop.permute.xlu0 %5360
    %5362 = vrot.lane.b32.xlu0 %v5353, 11
    %v5363 = vpop.permute.xlu0 %5362
    %5366 = vrot.lane.b32.xlu0 %v5339, 10
    %v5367 = vpop.permute.xlu0 %5366
    %5368 = vrot.lane.b32.xlu0 %v5353, 10
    %v5369 = vpop.permute.xlu0 %5368
    %v5372 = vrot.slane %v5075, 2
    %v5373 = vrot.slane %v5076, 1
    %v5374 = vsel %vm5108, %v5373, %v5372
    %v5375 = vsel %vm5111, %v5077, %v5374
    %v5376 = vrot.slane %v5078, 7
    %v5377 = vsel %vm5114, %v5376, %v5375
    %v5378 = vrot.slane %v5079, 6
    %v5379 = vsel %vm5117, %v5378, %v5377
    %v5380 = vrot.slane %v5080, 5
    %v5381 = vsel %vm5120, %v5380, %v5379
    %v5382 = vrot.slane %v5081, 4
    %v5383 = vsel %vm5123, %v5382, %v5381
    %v5384 = vrot.slane %v5082, 3
    %v5385 = vsel %vm5126, %v5384, %v5383
    %v5386 = vrot.slane %v5083, 2
    %v5387 = vrot.slane %v5084, 1
    %v5388 = vsel %vm5108, %v5387, %v5386
    %v5389 = vsel %vm5111, %v5085, %v5388
    %v5390 = vrot.slane %v5086, 7
    %v5391 = vsel %vm5114, %v5390, %v5389
    %v5392 = vrot.slane %v5087, 6
    %v5393 = vsel %vm5117, %v5392, %v5391
    %v5394 = vrot.slane %v5088, 5
    %v5395 = vsel %vm5120, %v5394, %v5393
    %v5396 = vrot.slane %v5089, 4
    %v5397 = vsel %vm5123, %v5396, %v5395
    %v5398 = vrot.slane %v5090, 3
    %v5399 = vsel %vm5126, %v5398, %v5397
    %5400 = vrot.lane.b32.xlu0 %v5385, 15
    %v5401 = vpop.permute.xlu0 %5400
    %5402 = vrot.lane.b32.xlu0 %v5399, 15
    %v5403 = vpop.permute.xlu0 %5402
    %vm5406 = vcmask 7168
    %v5407 = vsel %vm5406, %v5127, %v5145
    %v5408 = vsel %vm5406, %v5141, %v5147
    %vm5409 = vcmask 15360
    %v5410 = vsel %vm5409, %v5407, %v5151
    %v5411 = vsel %vm5409, %v5408, %v5153
    %vm5412 = vcmask 23552
    %v5413 = vsel %vm5412, %v5410, %v5185
    %v5414 = vsel %vm5412, %v5411, %v5187
    %vm5415 = vcmask 31744
    %v5416 = vsel %vm5415, %v5413, %v5191
    %v5417 = vsel %vm5415, %v5414, %v5193
    %vm5418 = vcmask 39936
    %v5419 = vsel %vm5418, %v5416, %v5197
    %v5420 = vsel %vm5418, %v5417, %v5199
    %vm5421 = vcmask 48128
    %v5422 = vsel %vm5421, %v5419, %v5247
    %v5423 = vsel %vm5421, %v5420, %v5249
    %vm5424 = vcmask 56320
    %v5425 = vsel %vm5424, %v5422, %v5253
    %v5426 = vsel %vm5424, %v5423, %v5255
    %vm5427 = vcmask 64512
    %v5428 = vsel %vm5427, %v5425, %v5259
    %v5429 = vsel %vm5427, %v5426, %v5261
    %vm5430 = vcmask 72704
    %v5431 = vsel %vm5430, %v5428, %v5293
    %v5432 = vsel %vm5430, %v5429, %v5295
    %vm5433 = vcmask 80896
    %v5434 = vsel %vm5433, %v5431, %v5299
    %v5435 = vsel %vm5433, %v5432, %v5301
    %vm5436 = vcmask 89088
    %v5437 = vsel %vm5436, %v5434, %v5305
    %v5438 = vsel %vm5436, %v5435, %v5307
    %vm5439 = vcmask 97280
    %v5440 = vsel %vm5439, %v5437, %v5355
    %v5441 = vsel %vm5439, %v5438, %v5357
    %vm5442 = vcmask 105472
    %v5443 = vsel %vm5442, %v5440, %v5361
    %v5444 = vsel %vm5442, %v5441, %v5363
    %vm5445 = vcmask 113664
    %v5446 = vsel %vm5445, %v5443, %v5367
    %v5447 = vsel %vm5445, %v5444, %v5369
    %vm5448 = vcmask 121856
    %v5449 = vsel %vm5448, %v5446, %v5401
    %v5450 = vsel %vm5448, %v5447, %v5403
    %v5451 = vsel %vm5114, %v5326, %v5075
    %v5452 = vsel %vm5117, %v5328, %v5451
    %v5453 = vsel %vm5120, %v5330, %v5452
    %v5454 = vsel %vm5123, %v5332, %v5453
    %v5455 = vsel %vm5126, %v5334, %v5454
    %v5456 = vsel %vm5108, %v5338, %v5336
    %v5457 = vsel %vm5111, %v5083, %v5456
    %v5458 = vsel %vm5114, %v5340, %v5457
    %v5459 = vsel %vm5117, %v5342, %v5458
    %v5460 = vsel %vm5120, %v5344, %v5459
    %v5461 = vsel %vm5123, %v5346, %v5460
    %v5462 = vsel %vm5126, %v5348, %v5461
    %v5463 = vsel %vm5108, %v5352, %v5350
    %5464 = vrot.lane.b32.xlu0 %v5455, 126
    %v5465 = vpop.permute.xlu0 %5464
    %5466 = vrot.lane.b32.xlu0 %v5462, 126
    %v5467 = vpop.permute.xlu0 %5466
    %5468 = vrot.lane.b32.xlu0 %v5463, 126
    %v5469 = vpop.permute.xlu0 %5468
    %5473 = vrot.lane.b32.xlu0 %v5455, 125
    %v5474 = vpop.permute.xlu0 %5473
    %5475 = vrot.lane.b32.xlu0 %v5462, 125
    %v5476 = vpop.permute.xlu0 %5475
    %5477 = vrot.lane.b32.xlu0 %v5463, 125
    %v5478 = vpop.permute.xlu0 %5477
    %v5482 = vsel %vm5406, %v5465, %v5474
    %v5483 = vsel %vm5406, %v5467, %v5476
    %v5484 = vsel %vm5406, %v5469, %v5478
    %vm5488 = vcmask 1045504
    %v5489 = vrot.slane %v5482, 2
    %v5490 = vrot.slane %v5483, 2
    %v5491 = vsel %vm5488, %v5489, %v5490
    %v5492 = vrot.slane %v5484, 2
    %v5493 = vsel %vm5488, %v5490, %v5492
    %5494 = vrot.lane.b32.xlu0 %v5491, 16
    %v5495 = vpop.permute.xlu0 %5494
    %5496 = vrot.lane.b32.xlu0 %v5493, 16
    %v5497 = vpop.permute.xlu0 %5496
    %vm5500 = vcmask 130048
    %v5501 = vsel %vm5500, %v5449, %v5495
    %v5502 = vsel %vm5500, %v5450, %v5497
    %v5503 = vmax.f32 %v5501, 0.0
    %v5504 = vmax.f32 %v5502, 0.0
    %v5505 = vld [vmem:[%s3] sm:$0xff]
    %v5506 = vld [vmem:[%s3 + $0x8] sm:$0xff]
    %v5507 = vld [vmem:[%s3 + $0x10] sm:$0xff]
    %v5508 = vld [vmem:[%s3 + $0x18] sm:$0xff]
    %v5509 = vld [vmem:[%s3 + $0x20] sm:$0xff]
    %v5510 = vld [vmem:[%s3 + $0x28] sm:$0xff]
    %v5511 = vld [vmem:[%s3 + $0x30] sm:$0xff]
    %v5512 = vld [vmem:[%s3 + $0x38] sm:$0xff]
    %v5513 = vld [vmem:[%s3 + $0x40] sm:$0x3]
    %v5514 = vld [vmem:[%s3 + $0x48] sm:$0x3]
    %v5515 = vld [vmem:[%s3 + $0x50] sm:$0x3]
    %v5516 = vld [vmem:[%s3 + $0x58] sm:$0x3]
    %v5517 = vld [vmem:[%s5] sm:$0xf]
    %v5519 = vperm.slane %v5517, 0
    %v5520 = vperm.slane %v5517, 1
    %v5521 = vperm.slane %v5517, 2
    %v5522 = vperm.slane %v5517, 3
    %vm5527 = vcmask 146432
    %v5529 = vsel %vm5527, %v5503, 0
    %v5532 = vsel %vm5527, %v5504, 0
    %vm5534 = vcmask 1041408
    %v5536 = vsel %vm5534, %v5513, 0
    %v5539 = vsel %vm5534, %v5514, 0
    %v5542 = vsel %vm5534, %v5515, 0
    %v5545 = vsel %vm5534, %v5516, 0
    %5547 = vmatpush.msra.mxu0 0.0
    %5548 = vmatpush.msra.mxu0 0.0
    %5549 = vmatpush.msra.mxu0 0.0
    %5550 = vmatpush.msra.mxu0 0.0
    %5551 = vmatpush.msra.mxu0 0.0
    %5552 = vmatpush.msra.mxu0 0.0
    %5553 = vmatpush.msra.mxu0 0.0
    %5554 = vmatpush.msra.mxu0 0.0
    %5555 = vmatpush.msra.mxu0 0.0
    %5556 = vmatpush.msra.mxu0 0.0
    %5557 = vmatpush.msra.mxu0 0.0
    %5558 = vmatpush.msra.mxu0 0.0
    %5559 = vmatpush.msra.mxu0 0.0
    %5560 = vmatpush.msra.mxu0 %v5536
    %5561 = vmatpush.msra.mxu0 %v5509
    %5562 = vmatpush.msra.mxu0 %v5505
    %5563 = vmatmul.f32.gmra.mxu0 %v5529
    %v5564 = vpop.f32.mrf.mxu0
    %v5565 = vadd.f32 %v5519, %v5564
    %5566 = vmatmul.f32.gmra.mxu0 %v5532
    %v5567 = vpop.f32.mrf.mxu0
    %v5568 = vadd.f32 %v5519, %v5567
    %5569 = vdwg.mxu0
    %5570 = vmatpush.msra.mxu0 0.0
    %5571 = vmatpush.msra.mxu0 0.0
    %5572 = vmatpush.msra.mxu0 0.0
    %5573 = vmatpush.msra.mxu0 0.0
    %5574 = vmatpush.msra.mxu0 0.0
    %5575 = vmatpush.msra.mxu0 0.0
    %5576 = vmatpush.msra.mxu0 0.0
    %5577 = vmatpush.msra.mxu0 0.0
    %5578 = vmatpush.msra.mxu0 0.0
    %5579 = vmatpush.msra.mxu0 0.0
    %5580 = vmatpush.msra.mxu0 0.0
    %5581 = vmatpush.msra.mxu0 0.0
    %5582 = vmatpush.msra.mxu0 0.0
    %5583 = vmatpush.msra.mxu0 %v5539
    %5584 = vmatpush.msra.mxu0 %v5510
    %5585 = vmatpush.msra.mxu0 %v5506
    %5586 = vmatmul.f32.gmra.mxu0 %v5529
    %v5587 = vpop.f32.mrf.mxu0
    %v5588 = vadd.f32 %v5520, %v5587
    %5589 = vmatmul.f32.gmra.mxu0 %v5532
    %v5590 = vpop.f32.mrf.mxu0
    %v5591 = vadd.f32 %v5520, %v5590
    %5592 = vdwg.mxu0
    %5593 = vmatpush.msra.mxu0 0.0
    %5594 = vmatpush.msra.mxu0 0.0
    %5595 = vmatpush.msra.mxu0 0.0
    %5596 = vmatpush.msra.mxu0 0.0
    %5597 = vmatpush.msra.mxu0 0.0
    %5598 = vmatpush.msra.mxu0 0.0
    %5599 = vmatpush.msra.mxu0 0.0
    %5600 = vmatpush.msra.mxu0 0.0
    %5601 = vmatpush.msra.mxu0 0.0
    %5602 = vmatpush.msra.mxu0 0.0
    %5603 = vmatpush.msra.mxu0 0.0
    %5604 = vmatpush.msra.mxu0 0.0
    %5605 = vmatpush.msra.mxu0 0.0
    %5606 = vmatpush.msra.mxu0 %v5542
    %5607 = vmatpush.msra.mxu0 %v5511
    %5608 = vmatpush.msra.mxu0 %v5507
    %5609 = vmatmul.f32.gmra.mxu0 %v5529
    %v5610 = vpop.f32.mrf.mxu0
    %v5611 = vadd.f32 %v5521, %v5610
    %5612 = vmatmul.f32.gmra.mxu0 %v5532
    %v5613 = vpop.f32.mrf.mxu0
    %v5614 = vadd.f32 %v5521, %v5613
    %5615 = vdwg.mxu0
    %5616 = vmatpush.msra.mxu0 0.0
    %5617 = vmatpush.msra.mxu0 0.0
    %5618 = vmatpush.msra.mxu0 0.0
    %5619 = vmatpush.msra.mxu0 0.0
    %5620 = vmatpush.msra.mxu0 0.0
    %5621 = vmatpush.msra.mxu0 0.0
    %5622 = vmatpush.msra.mxu0 0.0
    %5623 = vmatpush.msra.mxu0 0.0
    %5624 = vmatpush.msra.mxu0 0.0
    %5625 = vmatpush.msra.mxu0 0.0
    %5626 = vmatpush.msra.mxu0 0.0
    %5627 = vmatpush.msra.mxu0 0.0
    %5628 = vmatpush.msra.mxu0 0.0
    %5629 = vmatpush.msra.mxu0 %v5545
    %5630 = vmatpush.msra.mxu0 %v5512
    %5631 = vmatpush.msra.mxu0 %v5508
    %5632 = vmatmul.f32.gmra.mxu0 %v5529
    %v5633 = vpop.f32.mrf.mxu0
    %v5634 = vadd.f32 %v5522, %v5633
    %5635 = vmatmul.f32.gmra.mxu0 %v5532
    %v5636 = vpop.f32.mrf.mxu0
    %v5637 = vadd.f32 %v5522, %v5636
    %5638 = vdwg.mxu0
    %v5639 = vld [vmem:[%s4] sm:$0xff]
    %v5640 = vld [vmem:[%s4 + $0x8] sm:$0xff]
    %v5641 = vld [vmem:[%s4 + $0x10] sm:$0xff]
    %v5642 = vld [vmem:[%s4 + $0x18] sm:$0xff]
    %v5643 = vld [vmem:[%s4 + $0x20] sm:$0xff]
    %v5644 = vld [vmem:[%s4 + $0x28] sm:$0xff]
    %v5645 = vld [vmem:[%s4 + $0x30] sm:$0xff]
    %v5646 = vld [vmem:[%s4 + $0x38] sm:$0xff]
    %v5647 = vld [vmem:[%s4 + $0x40] sm:$0xff]
    %v5648 = vld [vmem:[%s4 + $0x48] sm:$0xff]
    %v5649 = vld [vmem:[%s4 + $0x50] sm:$0xff]
    %v5650 = vld [vmem:[%s4 + $0x58] sm:$0xff]
    %v5651 = vld [vmem:[%s4 + $0x60] sm:$0xff]
    %v5652 = vld [vmem:[%s4 + $0x68] sm:$0xff]
    %v5653 = vld [vmem:[%s4 + $0x70] sm:$0xff]
    %v5654 = vld [vmem:[%s4 + $0x78] sm:$0xff]
    %v5655 = vld [vmem:[%s4 + $0x80] sm:$0xff]
    %v5656 = vld [vmem:[%s4 + $0x88] sm:$0xff]
    %v5657 = vld [vmem:[%s4 + $0x90] sm:$0xff]
    %v5658 = vld [vmem:[%s4 + $0x98] sm:$0xff]
    %v5659 = vld [vmem:[%s4 + $0xa0] sm:$0xff]
    %v5660 = vld [vmem:[%s4 + $0xa8] sm:$0xff]
    %v5661 = vld [vmem:[%s4 + $0xb0] sm:$0xff]
    %v5662 = vld [vmem:[%s4 + $0xb8] sm:$0xff]
    %v5663 = vld [vmem:[%s4 + $0xc0] sm:$0xff]
    %v5664 = vld [vmem:[%s4 + $0xc8] sm:$0xff]
    %v5665 = vld [vmem:[%s4 + $0xd0] sm:$0xff]
    %v5666 = vld [vmem:[%s4 + $0xd8] sm:$0xff]
    %v5667 = vld [vmem:[%s4 + $0xe0] sm:$0xff]
    %v5668 = vld [vmem:[%s4 + $0xe8] sm:$0xff]
    %v5669 = vld [vmem:[%s4 + $0xf0] sm:$0xff]
    %v5670 = vld [vmem:[%s4 + $0xf8] sm:$0xff]
    %v5671 = vld [vmem:[%s4 + $0x100] sm:$0xff]
    %v5672 = vld [vmem:[%s4 + $0x108] sm:$0xff]
    %v5673 = vld [vmem:[%s4 + $0x110] sm:$0xff]
    %v5674 = vld [vmem:[%s4 + $0x118] sm:$0xff]
    %v5675 = vld [vmem:[%s4 + $0x120] sm:$0xff]
    %v5676 = vld [vmem:[%s4 + $0x128] sm:$0xff]
    %v5677 = vld [vmem:[%s4 + $0x130] sm:$0xff]
    %v5678 = vld [vmem:[%s4 + $0x138] sm:$0xff]
    %v5679 = vld [vmem:[%s4 + $0x140] sm:$0xff]
    %v5680 = vld [vmem:[%s4 + $0x148] sm:$0xff]
    %v5681 = vld [vmem:[%s4 + $0x150] sm:$0xff]
    %v5682 = vld [vmem:[%s4 + $0x158] sm:$0xff]
    %v5683 = vld [vmem:[%s4 + $0x160] sm:$0xff]
    %v5684 = vld [vmem:[%s4 + $0x168] sm:$0xff]
    %v5685 = vld [vmem:[%s4 + $0x170] sm:$0xff]
    %v5686 = vld [vmem:[%s4 + $0x178] sm:$0xff]
    %v5687 = vld [vmem:[%s4 + $0x180] sm:$0xff]
    %v5688 = vld [vmem:[%s4 + $0x188] sm:$0xff]
    %v5689 = vld [vmem:[%s4 + $0x190] sm:$0xff]
    %v5690 = vld [vmem:[%s4 + $0x198] sm:$0xff]
    %v5691 = vld [vmem:[%s4 + $0x1a0] sm:$0xff]
    %v5692 = vld [vmem:[%s4 + $0x1a8] sm:$0xff]
    %v5693 = vld [vmem:[%s4 + $0x1b0] sm:$0xff]
    %v5694 = vld [vmem:[%s4 + $0x1b8] sm:$0xff]
    %v5695 = vld [vmem:[%s4 + $0x1c0] sm:$0xff]
    %v5696 = vld [vmem:[%s4 + $0x1c8] sm:$0xff]
    %v5697 = vld [vmem:[%s4 + $0x1d0] sm:$0xff]
    %v5698 = vld [vmem:[%s4 + $0x1d8] sm:$0xff]
    %v5699 = vld [vmem:[%s4 + $0x1e0] sm:$0xff]
    %v5700 = vld [vmem:[%s4 + $0x1e8] sm:$0xff]
    %v5701 = vld [vmem:[%s4 + $0x1f0] sm:$0xff]
    %v5702 = vld [vmem:[%s4 + $0x1f8] sm:$0xff]
    %v5703 = vld [vmem:[#allocation8] sm:$0xff]
    %v5704 = vld [vmem:[#allocation8 + $0x8] sm:$0xff]
    %v5705 = vld [vmem:[#allocation8 + $0x10] sm:$0xff]
    %v5706 = vld [vmem:[#allocation8 + $0x18] sm:$0xff]
    %v5707 = vld [vmem:[#allocation8 + $0x20] sm:$0xff]
    %v5708 = vld [vmem:[#allocation8 + $0x28] sm:$0xff]
    %v5709 = vld [vmem:[#allocation8 + $0x30] sm:$0xff]
    %v5710 = vld [vmem:[#allocation8 + $0x38] sm:$0xff]
    %v5711 = vld [vmem:[#allocation8 + $0x40] sm:$0xff]
    %v5712 = vld [vmem:[#allocation8 + $0x48] sm:$0xff]
    %v5713 = vld [vmem:[#allocation8 + $0x50] sm:$0xff]
    %v5714 = vld [vmem:[#allocation8 + $0x58] sm:$0xff]
    %v5715 = vld [vmem:[#allocation8 + $0x60] sm:$0xff]
    %v5716 = vld [vmem:[#allocation8 + $0x68] sm:$0xff]
    %v5717 = vld [vmem:[#allocation8 + $0x70] sm:$0xff]
    %v5718 = vld [vmem:[#allocation8 + $0x78] sm:$0xff]
    %v5719 = vld [vmem:[#allocation8 + $0x80] sm:$0xff]
    %v5720 = vld [vmem:[#allocation8 + $0x88] sm:$0xff]
    %v5721 = vld [vmem:[#allocation8 + $0x90] sm:$0xff]
    %v5722 = vld [vmem:[#allocation8 + $0x98] sm:$0xff]
    %v5723 = vld [vmem:[#allocation8 + $0xa0] sm:$0xff]
    %v5724 = vld [vmem:[#allocation8 + $0xa8] sm:$0xff]
    %v5725 = vld [vmem:[#allocation8 + $0xb0] sm:$0xff]
    %v5726 = vld [vmem:[#allocation8 + $0xb8] sm:$0xff]
    %v5727 = vld [vmem:[#allocation8 + $0xc0] sm:$0xff]
    %v5728 = vld [vmem:[#allocation8 + $0xc8] sm:$0xff]
    %v5729 = vld [vmem:[#allocation8 + $0xd0] sm:$0xff]
    %v5730 = vld [vmem:[#allocation8 + $0xd8] sm:$0xff]
    %v5731 = vld [vmem:[#allocation8 + $0xe0] sm:$0xff]
    %v5732 = vld [vmem:[#allocation8 + $0xe8] sm:$0xff]
    %v5733 = vld [vmem:[#allocation8 + $0xf0] sm:$0xff]
    %v5734 = vld [vmem:[#allocation8 + $0xf8] sm:$0xff]
    %v5735 = vld [vmem:[#allocation8 + $0x100] sm:$0xff]
    %v5736 = vld [vmem:[#allocation8 + $0x108] sm:$0xff]
    %v5737 = vld [vmem:[#allocation8 + $0x110] sm:$0xff]
    %v5738 = vld [vmem:[#allocation8 + $0x118] sm:$0xff]
    %v5739 = vld [vmem:[#allocation8 + $0x120] sm:$0xff]
    %v5740 = vld [vmem:[#allocation8 + $0x128] sm:$0xff]
    %v5741 = vld [vmem:[#allocation8 + $0x130] sm:$0xff]
    %v5742 = vld [vmem:[#allocation8 + $0x138] sm:$0xff]
    %v5743 = vld [vmem:[#allocation8 + $0x140] sm:$0xff]
    %v5744 = vld [vmem:[#allocation8 + $0x148] sm:$0xff]
    %v5745 = vld [vmem:[#allocation8 + $0x150] sm:$0xff]
    %v5746 = vld [vmem:[#allocation8 + $0x158] sm:$0xff]
    %v5747 = vld [vmem:[#allocation8 + $0x160] sm:$0xff]
    %v5748 = vld [vmem:[#allocation8 + $0x168] sm:$0xff]
    %v5749 = vld [vmem:[#allocation8 + $0x170] sm:$0xff]
    %v5750 = vld [vmem:[#allocation8 + $0x178] sm:$0xff]
    %v5751 = vld [vmem:[#allocation8 + $0x180] sm:$0xff]
    %v5752 = vld [vmem:[#allocation8 + $0x188] sm:$0xff]
    %v5753 = vld [vmem:[#allocation8 + $0x190] sm:$0xff]
    %v5754 = vld [vmem:[#allocation8 + $0x198] sm:$0xff]
    %v5755 = vld [vmem:[#allocation8 + $0x1a0] sm:$0xff]
    %v5756 = vld [vmem:[#allocation8 + $0x1a8] sm:$0xff]
    %v5757 = vld [vmem:[#allocation8 + $0x1b0] sm:$0xff]
    %v5758 = vld [vmem:[#allocation8 + $0x1b8] sm:$0xff]
    %v5759 = vld [vmem:[#allocation8 + $0x1c0] sm:$0xff]
    %v5760 = vld [vmem:[#allocation8 + $0x1c8] sm:$0xff]
    %v5761 = vld [vmem:[#allocation8 + $0x1d0] sm:$0xff]
    %v5762 = vld [vmem:[#allocation8 + $0x1d8] sm:$0xff]
    %v5763 = vld [vmem:[#allocation8 + $0x1e0] sm:$0xff]
    %v5764 = vld [vmem:[#allocation8 + $0x1e8] sm:$0xff]
    %v5765 = vld [vmem:[#allocation8 + $0x1f0] sm:$0xff]
    %v5766 = vld [vmem:[#allocation8 + $0x1f8] sm:$0xff]
    %v5767 = vld [vmem:[#allocation8 + $0x200] sm:$0xff]
    %v5768 = vld [vmem:[#allocation8 + $0x208] sm:$0xff]
    %v5769 = vld [vmem:[#allocation8 + $0x210] sm:$0xff]
    %v5770 = vld [vmem:[#allocation8 + $0x218] sm:$0xff]
    %v5771 = vld [vmem:[#allocation8 + $0x220] sm:$0xff]
    %v5772 = vld [vmem:[#allocation8 + $0x228] sm:$0xff]
    %v5773 = vld [vmem:[#allocation8 + $0x230] sm:$0xff]
    %v5774 = vld [vmem:[#allocation8 + $0x238] sm:$0xff]
    %v5775 = vld [vmem:[#allocation8 + $0x240] sm:$0xff]
    %v5776 = vld [vmem:[#allocation8 + $0x248] sm:$0xff]
    %v5777 = vld [vmem:[#allocation8 + $0x250] sm:$0xff]
    %v5778 = vld [vmem:[#allocation8 + $0x258] sm:$0xff]
    %v5779 = vld [vmem:[#allocation8 + $0x260] sm:$0xff]
    %v5780 = vld [vmem:[#allocation8 + $0x268] sm:$0xff]
    %v5781 = vld [vmem:[#allocation8 + $0x270] sm:$0xff]
    %v5782 = vld [vmem:[#allocation8 + $0x278] sm:$0xff]
    %v5783 = vld [vmem:[#allocation8 + $0x280] sm:$0xff]
    %v5784 = vld [vmem:[#allocation8 + $0x288] sm:$0xff]
    %v5785 = vld [vmem:[#allocation8 + $0x290] sm:$0xff]
    %v5786 = vld [vmem:[#allocation8 + $0x298] sm:$0xff]
    %v5787 = vld [vmem:[#allocation8 + $0x2a0] sm:$0xff]
    %v5788 = vld [vmem:[#allocation8 + $0x2a8] sm:$0xff]
    %v5789 = vld [vmem:[#allocation8 + $0x2b0] sm:$0xff]
    %v5790 = vld [vmem:[#allocation8 + $0x2b8] sm:$0xff]
    %v5791 = vld [vmem:[#allocation8 + $0x2c0] sm:$0xff]
    %v5792 = vld [vmem:[#allocation8 + $0x2c8] sm:$0xff]
    %v5793 = vld [vmem:[#allocation8 + $0x2d0] sm:$0xff]
    %v5794 = vld [vmem:[#allocation8 + $0x2d8] sm:$0xff]
    %v5795 = vld [vmem:[#allocation8 + $0x2e0] sm:$0xff]
    %v5796 = vld [vmem:[#allocation8 + $0x2e8] sm:$0xff]
    %v5797 = vld [vmem:[#allocation8 + $0x2f0] sm:$0xff]
    %v5798 = vld [vmem:[#allocation8 + $0x2f8] sm:$0xff]
    %v5799 = vld [vmem:[#allocation8 + $0x300] sm:$0xff]
    %v5800 = vld [vmem:[#allocation8 + $0x308] sm:$0xff]
    %v5801 = vld [vmem:[#allocation8 + $0x310] sm:$0xff]
    %v5802 = vld [vmem:[#allocation8 + $0x318] sm:$0xff]
    %v5803 = vld [vmem:[#allocation8 + $0x320] sm:$0xff]
    %v5804 = vld [vmem:[#allocation8 + $0x328] sm:$0xff]
    %v5805 = vld [vmem:[#allocation8 + $0x330] sm:$0xff]
    %v5806 = vld [vmem:[#allocation8 + $0x338] sm:$0xff]
    %v5807 = vld [vmem:[#allocation8 + $0x340] sm:$0xff]
    %v5808 = vld [vmem:[#allocation8 + $0x348] sm:$0xff]
    %v5809 = vld [vmem:[#allocation8 + $0x350] sm:$0xff]
    %v5810 = vld [vmem:[#allocation8 + $0x358] sm:$0xff]
    %v5811 = vld [vmem:[#allocation8 + $0x360] sm:$0xff]
    %v5812 = vld [vmem:[#allocation8 + $0x368] sm:$0xff]
    %v5813 = vld [vmem:[#allocation8 + $0x370] sm:$0xff]
    %v5814 = vld [vmem:[#allocation8 + $0x378] sm:$0xff]
    %v5815 = vld [vmem:[#allocation8 + $0x380] sm:$0xff]
    %v5816 = vld [vmem:[#allocation8 + $0x388] sm:$0xff]
    %v5817 = vld [vmem:[#allocation8 + $0x390] sm:$0xff]
    %v5818 = vld [vmem:[#allocation8 + $0x398] sm:$0xff]
    %v5819 = vld [vmem:[#allocation8 + $0x3a0] sm:$0xff]
    %v5820 = vld [vmem:[#allocation8 + $0x3a8] sm:$0xff]
    %v5821 = vld [vmem:[#allocation8 + $0x3b0] sm:$0xff]
    %v5822 = vld [vmem:[#allocation8 + $0x3b8] sm:$0xff]
    %v5823 = vld [vmem:[#allocation8 + $0x3c0] sm:$0xff]
    %v5824 = vld [vmem:[#allocation8 + $0x3c8] sm:$0xff]
    %v5825 = vld [vmem:[#allocation8 + $0x3d0] sm:$0xff]
    %v5826 = vld [vmem:[#allocation8 + $0x3d8] sm:$0xff]
    %v5827 = vld [vmem:[#allocation8 + $0x3e0] sm:$0xff]
    %v5828 = vld [vmem:[#allocation8 + $0x3e8] sm:$0xff]
    %v5829 = vld [vmem:[#allocation8 + $0x3f0] sm:$0xff]
    %v5830 = vld [vmem:[#allocation8 + $0x3f8] sm:$0xff]
    %v5831 = vld [vmem:[%s7] sm:$0xf]
    %v5832 = vld [vmem:[%s8] sm:$0x3]
    %v5833 = vld [vmem:[%s9] sm:$0x3]
    %s5834 = scalar_lea.vmem %s8, 2
    %v5835 = vld [vmem:[%s5834] sm:$0x3]
    %s5836 = scalar_lea.vmem %s9, 2
    %v5837 = vld [vmem:[%s5836] sm:$0x3]
    %5838 = vmatpush.msra.mxu0 %v5699
    %5839 = vmatpush.msra.mxu0 %v5695
    %5840 = vmatpush.msra.mxu0 %v5691
    %5841 = vmatpush.msra.mxu0 %v5687
    %5842 = vmatpush.msra.mxu0 %v5683
    %5843 = vmatpush.msra.mxu0 %v5679
    %5844 = vmatpush.msra.mxu0 %v5675
    %5845 = vmatpush.msra.mxu0 %v5671
    %5846 = vmatpush.msra.mxu0 %v5667
    %5847 = vmatpush.msra.mxu0 %v5663
    %5848 = vmatpush.msra.mxu0 %v5659
    %5849 = vmatpush.msra.mxu0 %v5655
    %5850 = vmatpush.msra.mxu0 %v5651
    %5851 = vmatpush.msra.mxu0 %v5647
    %5852 = vmatpush.msra.mxu0 %v5643
    %5853 = vmatpush.msra.mxu0 %v5639
    %5854 = vmatmul.f32.gmra.mxu0 %v5832
    %v5855 = vpop.f32.mrf.mxu0
    %v5856 = vadd.f32 0.0, %v5855
    %5857 = vdwg.mxu0
    %5858 = vmatpush.msra.mxu0 %v5700
    %5859 = vmatpush.msra.mxu0 %v5696
    %5860 = vmatpush.msra.mxu0 %v5692
    %5861 = vmatpush.msra.mxu0 %v5688
    %5862 = vmatpush.msra.mxu0 %v5684
    %5863 = vmatpush.msra.mxu0 %v5680
    %5864 = vmatpush.msra.mxu0 %v5676
    %5865 = vmatpush.msra.mxu0 %v5672
    %5866 = vmatpush.msra.mxu0 %v5668
    %5867 = vmatpush.msra.mxu0 %v5664
    %5868 = vmatpush.msra.mxu0 %v5660
    %5869 = vmatpush.msra.mxu0 %v5656
    %5870 = vmatpush.msra.mxu0 %v5652
    %5871 = vmatpush.msra.mxu0 %v5648
    %5872 = vmatpush.msra.mxu0 %v5644
    %5873 = vmatpush.msra.mxu0 %v5640
    %5874 = vmatmul.f32.gmra.mxu0 %v5832
    %v5875 = vpop.f32.mrf.mxu0
    %v5876 = vadd.f32 0.0, %v5875
    %5877 = vdwg.mxu0
    %5878 = vmatpush.msra.mxu0 %v5701
    %5879 = vmatpush.msra.mxu0 %v5697
    %5880 = vmatpush.msra.mxu0 %v5693
    %5881 = vmatpush.msra.mxu0 %v5689
    %5882 = vmatpush.msra.mxu0 %v5685
    %5883 = vmatpush.msra.mxu0 %v5681
    %5884 = vmatpush.msra.mxu0 %v5677
    %5885 = vmatpush.msra.mxu0 %v5673
    %5886 = vmatpush.msra.mxu0 %v5669
    %5887 = vmatpush.msra.mxu0 %v5665
    %5888 = vmatpush.msra.mxu0 %v5661
    %5889 = vmatpush.msra.mxu0 %v5657
    %5890 = vmatpush.msra.mxu0 %v5653
    %5891 = vmatpush.msra.mxu0 %v5649
    %5892 = vmatpush.msra.mxu0 %v5645
    %5893 = vmatpush.msra.mxu0 %v5641
    %5894 = vmatmul.f32.gmra.mxu0 %v5832
    %v5895 = vpop.f32.mrf.mxu0
    %v5896 = vadd.f32 0.0, %v5895
    %5897 = vdwg.mxu0
    %5898 = vmatpush.msra.mxu0 %v5702
    %5899 = vmatpush.msra.mxu0 %v5698
    %5900 = vmatpush.msra.mxu0 %v5694
    %5901 = vmatpush.msra.mxu0 %v5690
    %5902 = vmatpush.msra.mxu0 %v5686
    %5903 = vmatpush.msra.mxu0 %v5682
    %5904 = vmatpush.msra.mxu0 %v5678
    %5905 = vmatpush.msra.mxu0 %v5674
    %5906 = vmatpush.msra.mxu0 %v5670
    %5907 = vmatpush.msra.mxu0 %v5666
    %5908 = vmatpush.msra.mxu0 %v5662
    %5909 = vmatpush.msra.mxu0 %v5658
    %5910 = vmatpush.msra.mxu0 %v5654
    %5911 = vmatpush.msra.mxu0 %v5650
    %5912 = vmatpush.msra.mxu0 %v5646
    %5913 = vmatpush.msra.mxu0 %v5642
    %5914 = vmatmul.f32.gmra.mxu0 %v5832
    %v5915 = vpop.f32.mrf.mxu0
    %v5916 = vadd.f32 0.0, %v5915
    %5917 = vdwg.mxu0
    %v5918 = vadd.f32 %v5565, %v5856
    %v5919 = vadd.f32 %v5588, %v5876
    %v5920 = vadd.f32 %v5611, %v5896
    %v5921 = vadd.f32 %v5634, %v5916
    %v5922 = vxor.u32 %v5918, 2147483648
    %v5923 = vmul.f32 %v5922, 1.442695
    %v5924 = vpow.pop %v5923
    %v5925 = vadd.f32 %v5924, 1.0
    %v5926 = vrcp.pop %v5925
    %v5927 = vmul.f32 %v5925, %v5926
    %v5928 = vsub.f32 1.0, %v5927
    %v5929 = vmul.f32 %v5926, %v5928
    %v5930 = vadd.f32 %v5926, %v5929
    %vm5931 = vweird.f32 %v5925
    %vm5932 = vweird.f32 %v5926
    %vm5933 = vmor %vm5931, %vm5932
    %v5934 = vsel %vm5933, %v5926, %v5930
    %v5935 = vand.u32 2147483647, %v5925
    %vm5936 = vcmp.eq.f32.partialorder %v5935, 8.507059e+37
    %v5937 = vand.u32 %v5925, 2147483648
    %v5938 = vor.u32 1.1754944e-38, %v5937
    %v5939 = vsel %vm5936, %v5938, %v5934
    %v5940 = vmul.f32 1.0, %v5939
    %v5941 = vxor.u32 %v5919, 2147483648
    %v5942 = vmul.f32 %v5941, 1.442695
    %v5943 = vpow.pop %v5942
    %v5944 = vadd.f32 %v5943, 1.0
    %v5945 = vrcp.pop %v5944
    %v5946 = vmul.f32 %v5944, %v5945
    %v5947 = vsub.f32 1.0, %v5946
    %v5948 = vmul.f32 %v5945, %v5947
    %v5949 = vadd.f32 %v5945, %v5948
    %vm5950 = vweird.f32 %v5944
    %vm5951 = vweird.f32 %v5945
    %vm5952 = vmor %vm5950, %vm5951
    %v5953 = vsel %vm5952, %v5945, %v5949
    %v5954 = vand.u32 2147483647, %v5944
    %vm5955 = vcmp.eq.f32.partialorder %v5954, 8.507059e+37
    %v5956 = vand.u32 %v5944, 2147483648
    %v5957 = vor.u32 1.1754944e-38, %v5956
    %v5958 = vsel %vm5955, %v5957, %v5953
    %v5959 = vmul.f32 1.0, %v5958
    %v5960 = vtanh.pop %v5920
    %v5961 = vxor.u32 %v5921, 2147483648
    %v5962 = vmul.f32 %v5961, 1.442695
    %v5963 = vpow.pop %v5962
    %v5964 = vadd.f32 %v5963, 1.0
    %v5965 = vrcp.pop %v5964
    %v5966 = vmul.f32 %v5964, %v5965
    %v5967 = vsub.f32 1.0, %v5966
    %v5968 = vmul.f32 %v5965, %v5967
    %v5969 = vadd.f32 %v5965, %v5968
    %vm5970 = vweird.f32 %v5964
    %vm5971 = vweird.f32 %v5965
    %vm5972 = vmor %vm5970, %vm5971
    %v5973 = vsel %vm5972, %v5965, %v5969
    %v5974 = vand.u32 2147483647, %v5964
    %vm5975 = vcmp.eq.f32.partialorder %v5974, 8.507059e+37
    %v5976 = vand.u32 %v5964, 2147483648
    %v5977 = vor.u32 1.1754944e-38, %v5976
    %v5978 = vsel %vm5975, %v5977, %v5973
    %v5979 = vmul.f32 1.0, %v5978
    %v5980 = vmul.f32 %v5959, %v5833
    %v5981 = vmul.f32 %v5940, %v5960
    %v5982 = vadd.f32 %v5980, %v5981
    %v5983 = vtanh.pop %v5982
    %v5984 = vmul.f32 %v5979, %v5983
    %v5986 = vperm.slane %v5831, 0
    %v5987 = vperm.slane %v5831, 1
    %v5988 = vperm.slane %v5831, 2
    %v5989 = vperm.slane %v5831, 3
    %5994 = vmatpush.msra.mxu0 %v5763
    %5995 = vmatpush.msra.mxu0 %v5759
    %5996 = vmatpush.msra.mxu0 %v5755
    %5997 = vmatpush.msra.mxu0 %v5751
    %5998 = vmatpush.msra.mxu0 %v5747
    %5999 = vmatpush.msra.mxu0 %v5743
    %6000 = vmatpush.msra.mxu0 %v5739
    %6001 = vmatpush.msra.mxu0 %v5735
    %6002 = vmatpush.msra.mxu0 %v5731
    %6003 = vmatpush.msra.mxu0 %v5727
    %6004 = vmatpush.msra.mxu0 %v5723
    %6005 = vmatpush.msra.mxu0 %v5719
    %6006 = vmatpush.msra.mxu0 %v5715
    %6007 = vmatpush.msra.mxu0 %v5711
    %6008 = vmatpush.msra.mxu0 %v5707
    %6009 = vmatpush.msra.mxu0 %v5703
    %6010 = vmatmul.f32.gmra.mxu0 %v5984
    %v6011 = vpop.f32.mrf.mxu0
    %v6012 = vadd.f32 %v5986, %v6011
    %6013 = vdwg.mxu0
    %6014 = vmatpush.msra.mxu0 %v5827
    %6015 = vmatpush.msra.mxu0 %v5823
    %6016 = vmatpush.msra.mxu0 %v5819
    %6017 = vmatpush.msra.mxu0 %v5815
    %6018 = vmatpush.msra.mxu0 %v5811
    %6019 = vmatpush.msra.mxu0 %v5807
    %6020 = vmatpush.msra.mxu0 %v5803
    %6021 = vmatpush.msra.mxu0 %v5799
    %6022 = vmatpush.msra.mxu0 %v5795
    %6023 = vmatpush.msra.mxu0 %v5791
    %6024 = vmatpush.msra.mxu0 %v5787
    %6025 = vmatpush.msra.mxu0 %v5783
    %6026 = vmatpush.msra.mxu0 %v5779
    %6027 = vmatpush.msra.mxu0 %v5775
    %6028 = vmatpush.msra.mxu0 %v5771
    %6029 = vmatpush.msra.mxu0 %v5767
    %6030 = vmatmul.f32.gmra.mxu0 %v5835
    %v6031 = vpop.f32.mrf.mxu0
    %v6032 = vadd.f32 %v6012, %v6031
    %6033 = vdwg.mxu0
    %6034 = vmatpush.msra.mxu0 %v5764
    %6035 = vmatpush.msra.mxu0 %v5760
    %6036 = vmatpush.msra.mxu0 %v5756
    %6037 = vmatpush.msra.mxu0 %v5752
    %6038 = vmatpush.msra.mxu0 %v5748
    %6039 = vmatpush.msra.mxu0 %v5744
    %6040 = vmatpush.msra.mxu0 %v5740
    %6041 = vmatpush.msra.mxu0 %v5736
    %6042 = vmatpush.msra.mxu0 %v5732
    %6043 = vmatpush.msra.mxu0 %v5728
    %6044 = vmatpush.msra.mxu0 %v5724
    %6045 = vmatpush.msra.mxu0 %v5720
    %6046 = vmatpush.msra.mxu0 %v5716
    %6047 = vmatpush.msra.mxu0 %v5712
    %6048 = vmatpush.msra.mxu0 %v5708
    %6049 = vmatpush.msra.mxu0 %v5704
    %6050 = vmatmul.f32.gmra.mxu0 %v5984
    %v6051 = vpop.f32.mrf.mxu0
    %v6052 = vadd.f32 %v5987, %v6051
    %6053 = vdwg.mxu0
    %6054 = vmatpush.msra.mxu0 %v5828
    %6055 = vmatpush.msra.mxu0 %v5824
    %6056 = vmatpush.msra.mxu0 %v5820
    %6057 = vmatpush.msra.mxu0 %v5816
    %6058 = vmatpush.msra.mxu0 %v5812
    %6059 = vmatpush.msra.mxu0 %v5808
    %6060 = vmatpush.msra.mxu0 %v5804
    %6061 = vmatpush.msra.mxu0 %v5800
    %6062 = vmatpush.msra.mxu0 %v5796
    %6063 = vmatpush.msra.mxu0 %v5792
    %6064 = vmatpush.msra.mxu0 %v5788
    %6065 = vmatpush.msra.mxu0 %v5784
    %6066 = vmatpush.msra.mxu0 %v5780
    %6067 = vmatpush.msra.mxu0 %v5776
    %6068 = vmatpush.msra.mxu0 %v5772
    %6069 = vmatpush.msra.mxu0 %v5768
    %6070 = vmatmul.f32.gmra.mxu0 %v5835
    %v6071 = vpop.f32.mrf.mxu0
    %v6072 = vadd.f32 %v6052, %v6071
    %6073 = vdwg.mxu0
    %6074 = vmatpush.msra.mxu0 %v5765
    %6075 = vmatpush.msra.mxu0 %v5761
    %6076 = vmatpush.msra.mxu0 %v5757
    %6077 = vmatpush.msra.mxu0 %v5753
    %6078 = vmatpush.msra.mxu0 %v5749
    %6079 = vmatpush.msra.mxu0 %v5745
    %6080 = vmatpush.msra.mxu0 %v5741
    %6081 = vmatpush.msra.mxu0 %v5737
    %6082 = vmatpush.msra.mxu0 %v5733
    %6083 = vmatpush.msra.mxu0 %v5729
    %6084 = vmatpush.msra.mxu0 %v5725
    %6085 = vmatpush.msra.mxu0 %v5721
    %6086 = vmatpush.msra.mxu0 %v5717
    %6087 = vmatpush.msra.mxu0 %v5713
    %6088 = vmatpush.msra.mxu0 %v5709
    %6089 = vmatpush.msra.mxu0 %v5705
    %6090 = vmatmul.f32.gmra.mxu0 %v5984
    %v6091 = vpop.f32.mrf.mxu0
    %v6092 = vadd.f32 %v5988, %v6091
    %6093 = vdwg.mxu0
    %6094 = vmatpush.msra.mxu0 %v5829
    %6095 = vmatpush.msra.mxu0 %v5825
    %6096 = vmatpush.msra.mxu0 %v5821
    %6097 = vmatpush.msra.mxu0 %v5817
    %6098 = vmatpush.msra.mxu0 %v5813
    %6099 = vmatpush.msra.mxu0 %v5809
    %6100 = vmatpush.msra.mxu0 %v5805
    %6101 = vmatpush.msra.mxu0 %v5801
    %6102 = vmatpush.msra.mxu0 %v5797
    %6103 = vmatpush.msra.mxu0 %v5793
    %6104 = vmatpush.msra.mxu0 %v5789
    %6105 = vmatpush.msra.mxu0 %v5785
    %6106 = vmatpush.msra.mxu0 %v5781
    %6107 = vmatpush.msra.mxu0 %v5777
    %6108 = vmatpush.msra.mxu0 %v5773
    %6109 = vmatpush.msra.mxu0 %v5769
    %6110 = vmatmul.f32.gmra.mxu0 %v5835
    %v6111 = vpop.f32.mrf.mxu0
    %v6112 = vadd.f32 %v6092, %v6111
    %6113 = vdwg.mxu0
    %6114 = vmatpush.msra.mxu0 %v5766
    %6115 = vmatpush.msra.mxu0 %v5762
    %6116 = vmatpush.msra.mxu0 %v5758
    %6117 = vmatpush.msra.mxu0 %v5754
    %6118 = vmatpush.msra.mxu0 %v5750
    %6119 = vmatpush.msra.mxu0 %v5746
    %6120 = vmatpush.msra.mxu0 %v5742
    %6121 = vmatpush.msra.mxu0 %v5738
    %6122 = vmatpush.msra.mxu0 %v5734
    %6123 = vmatpush.msra.mxu0 %v5730
    %6124 = vmatpush.msra.mxu0 %v5726
    %6125 = vmatpush.msra.mxu0 %v5722
    %6126 = vmatpush.msra.mxu0 %v5718
    %6127 = vmatpush.msra.mxu0 %v5714
    %6128 = vmatpush.msra.mxu0 %v5710
    %6129 = vmatpush.msra.mxu0 %v5706
    %6130 = vmatmul.f32.gmra.mxu0 %v5984
    %v6131 = vpop.f32.mrf.mxu0
    %v6132 = vadd.f32 %v5989, %v6131
    %6133 = vdwg.mxu0
    %6134 = vmatpush.msra.mxu0 %v5830
    %6135 = vmatpush.msra.mxu0 %v5826
    %6136 = vmatpush.msra.mxu0 %v5822
    %6137 = vmatpush.msra.mxu0 %v5818
    %6138 = vmatpush.msra.mxu0 %v5814
    %6139 = vmatpush.msra.mxu0 %v5810
    %6140 = vmatpush.msra.mxu0 %v5806
    %6141 = vmatpush.msra.mxu0 %v5802
    %6142 = vmatpush.msra.mxu0 %v5798
    %6143 = vmatpush.msra.mxu0 %v5794
    %6144 = vmatpush.msra.mxu0 %v5790
    %6145 = vmatpush.msra.mxu0 %v5786
    %6146 = vmatpush.msra.mxu0 %v5782
    %6147 = vmatpush.msra.mxu0 %v5778
    %6148 = vmatpush.msra.mxu0 %v5774
    %6149 = vmatpush.msra.mxu0 %v5770
    %6150 = vmatmul.f32.gmra.mxu0 %v5835
    %v6151 = vpop.f32.mrf.mxu0
    %v6152 = vadd.f32 %v6132, %v6151
    %6153 = vdwg.mxu0
    %v6154 = vxor.u32 %v6032, 2147483648
    %v6155 = vmul.f32 %v6154, 1.442695
    %v6156 = vpow.pop %v6155
    %v6157 = vadd.f32 %v6156, 1.0
    %v6158 = vrcp.pop %v6157
    %v6159 = vmul.f32 %v6157, %v6158
    %v6160 = vsub.f32 1.0, %v6159
    %v6161 = vmul.f32 %v6158, %v6160
    %v6162 = vadd.f32 %v6158, %v6161
    %vm6163 = vweird.f32 %v6157
    %vm6164 = vweird.f32 %v6158
    %vm6165 = vmor %vm6163, %vm6164
    %v6166 = vsel %vm6165, %v6158, %v6162
    %v6167 = vand.u32 2147483647, %v6157
    %vm6168 = vcmp.eq.f32.partialorder %v6167, 8.507059e+37
    %v6169 = vand.u32 %v6157, 2147483648
    %v6170 = vor.u32 1.1754944e-38, %v6169
    %v6171 = vsel %vm6168, %v6170, %v6166
    %v6172 = vmul.f32 1.0, %v6171
    %v6173 = vxor.u32 %v6072, 2147483648
    %v6174 = vmul.f32 %v6173, 1.442695
    %v6175 = vpow.pop %v6174
    %v6176 = vadd.f32 %v6175, 1.0
    %v6177 = vrcp.pop %v6176
    %v6178 = vmul.f32 %v6176, %v6177
    %v6179 = vsub.f32 1.0, %v6178
    %v6180 = vmul.f32 %v6177, %v6179
    %v6181 = vadd.f32 %v6177, %v6180
    %vm6182 = vweird.f32 %v6176
    %vm6183 = vweird.f32 %v6177
    %vm6184 = vmor %vm6182, %vm6183
    %v6185 = vsel %vm6184, %v6177, %v6181
    %v6186 = vand.u32 2147483647, %v6176
    %vm6187 = vcmp.eq.f32.partialorder %v6186, 8.507059e+37
    %v6188 = vand.u32 %v6176, 2147483648
    %v6189 = vor.u32 1.1754944e-38, %v6188
    %v6190 = vsel %vm6187, %v6189, %v6185
    %v6191 = vmul.f32 1.0, %v6190
    %v6192 = vtanh.pop %v6112
    %v6193 = vxor.u32 %v6152, 2147483648
    %v6194 = vmul.f32 %v6193, 1.442695
    %v6195 = vpow.pop %v6194
    %v6196 = vadd.f32 %v6195, 1.0
    %v6197 = vrcp.pop %v6196
    %v6198 = vmul.f32 %v6196, %v6197
    %v6199 = vsub.f32 1.0, %v6198
    %v6200 = vmul.f32 %v6197, %v6199
    %v6201 = vadd.f32 %v6197, %v6200
    %vm6202 = vweird.f32 %v6196
    %vm6203 = vweird.f32 %v6197
    %vm6204 = vmor %vm6202, %vm6203
    %v6205 = vsel %vm6204, %v6197, %v6201
    %v6206 = vand.u32 2147483647, %v6196
    %vm6207 = vcmp.eq.f32.partialorder %v6206, 8.507059e+37
    %v6208 = vand.u32 %v6196, 2147483648
    %v6209 = vor.u32 1.1754944e-38, %v6208
    %v6210 = vsel %vm6207, %v6209, %v6205
    %v6211 = vmul.f32 1.0, %v6210
    %v6212 = vmul.f32 %v6191, %v5837
    %v6213 = vmul.f32 %v6172, %v6192
    %v6214 = vadd.f32 %v6212, %v6213
    %v6215 = vtanh.pop %v6214
    %v6216 = vmul.f32 %v6211, %v6215
    %6217 = vmatpush.msra.mxu0 %v5699
    %6218 = vmatpush.msra.mxu0 %v5695
    %6219 = vmatpush.msra.mxu0 %v5691
    %6220 = vmatpush.msra.mxu0 %v5687
    %6221 = vmatpush.msra.mxu0 %v5683
    %6222 = vmatpush.msra.mxu0 %v5679
    %6223 = vmatpush.msra.mxu0 %v5675
    %6224 = vmatpush.msra.mxu0 %v5671
    %6225 = vmatpush.msra.mxu0 %v5667
    %6226 = vmatpush.msra.mxu0 %v5663
    %6227 = vmatpush.msra.mxu0 %v5659
    %6228 = vmatpush.msra.mxu0 %v5655
    %6229 = vmatpush.msra.mxu0 %v5651
    %6230 = vmatpush.msra.mxu0 %v5647
    %6231 = vmatpush.msra.mxu0 %v5643
    %6232 = vmatpush.msra.mxu0 %v5639
    %6233 = vmatmul.f32.gmra.mxu0 %v5984
    %v6234 = vpop.f32.mrf.mxu0
    %v6235 = vadd.f32 0.0, %v6234
    %6236 = vdwg.mxu0
    %6237 = vmatpush.msra.mxu0 %v5700
    %6238 = vmatpush.msra.mxu0 %v5696
    %6239 = vmatpush.msra.mxu0 %v5692
    %6240 = vmatpush.msra.mxu0 %v5688
    %6241 = vmatpush.msra.mxu0 %v5684
    %6242 = vmatpush.msra.mxu0 %v5680
    %6243 = vmatpush.msra.mxu0 %v5676
    %6244 = vmatpush.msra.mxu0 %v5672
    %6245 = vmatpush.msra.mxu0 %v5668
    %6246 = vmatpush.msra.mxu0 %v5664
    %6247 = vmatpush.msra.mxu0 %v5660
    %6248 = vmatpush.msra.mxu0 %v5656
    %6249 = vmatpush.msra.mxu0 %v5652
    %6250 = vmatpush.msra.mxu0 %v5648
    %6251 = vmatpush.msra.mxu0 %v5644
    %6252 = vmatpush.msra.mxu0 %v5640
    %6253 = vmatmul.f32.gmra.mxu0 %v5984
    %v6254 = vpop.f32.mrf.mxu0
    %v6255 = vadd.f32 0.0, %v6254
    %6256 = vdwg.mxu0
    %6257 = vmatpush.msra.mxu0 %v5701
    %6258 = vmatpush.msra.mxu0 %v5697
    %6259 = vmatpush.msra.mxu0 %v5693
    %6260 = vmatpush.msra.mxu0 %v5689
    %6261 = vmatpush.msra.mxu0 %v5685
    %6262 = vmatpush.msra.mxu0 %v5681
    %6263 = vmatpush.msra.mxu0 %v5677
    %6264 = vmatpush.msra.mxu0 %v5673
    %6265 = vmatpush.msra.mxu0 %v5669
    %6266 = vmatpush.msra.mxu0 %v5665
    %6267 = vmatpush.msra.mxu0 %v5661
    %6268 = vmatpush.msra.mxu0 %v5657
    %6269 = vmatpush.msra.mxu0 %v5653
    %6270 = vmatpush.msra.mxu0 %v5649
    %6271 = vmatpush.msra.mxu0 %v5645
    %6272 = vmatpush.msra.mxu0 %v5641
    %6273 = vmatmul.f32.gmra.mxu0 %v5984
    %v6274 = vpop.f32.mrf.mxu0
    %v6275 = vadd.f32 0.0, %v6274
    %6276 = vdwg.mxu0
    %6277 = vmatpush.msra.mxu0 %v5702
    %6278 = vmatpush.msra.mxu0 %v5698
    %6279 = vmatpush.msra.mxu0 %v5694
    %6280 = vmatpush.msra.mxu0 %v5690
    %6281 = vmatpush.msra.mxu0 %v5686
    %6282 = vmatpush.msra.mxu0 %v5682
    %6283 = vmatpush.msra.mxu0 %v5678
    %6284 = vmatpush.msra.mxu0 %v5674
    %6285 = vmatpush.msra.mxu0 %v5670
    %6286 = vmatpush.msra.mxu0 %v5666
    %6287 = vmatpush.msra.mxu0 %v5662
    %6288 = vmatpush.msra.mxu0 %v5658
    %6289 = vmatpush.msra.mxu0 %v5654
    %6290 = vmatpush.msra.mxu0 %v5650
    %6291 = vmatpush.msra.mxu0 %v5646
    %6292 = vmatpush.msra.mxu0 %v5642
    %6293 = vmatmul.f32.gmra.mxu0 %v5984
    %v6294 = vpop.f32.mrf.mxu0
    %v6295 = vadd.f32 0.0, %v6294
    %6296 = vdwg.mxu0
    %v6301 = vrot.slane %v6235, 6
    %v6302 = vrot.slane %v6255, 6
    %v6303 = vrot.slane %v6275, 6
    %v6304 = vrot.slane %v6295, 6
    %v6309 = vadd.f32 %v5565, %v6301
    %v6310 = vadd.f32 %v5588, %v6302
    %v6311 = vadd.f32 %v5611, %v6303
    %v6312 = vadd.f32 %v5634, %v6304
    %v6313 = vxor.u32 %v6309, 2147483648
    %v6314 = vmul.f32 %v6313, 1.442695
    %v6315 = vpow.pop %v6314
    %v6316 = vadd.f32 %v6315, 1.0
    %v6317 = vrcp.pop %v6316
    %v6318 = vmul.f32 %v6316, %v6317
    %v6319 = vsub.f32 1.0, %v6318
    %v6320 = vmul.f32 %v6317, %v6319
    %v6321 = vadd.f32 %v6317, %v6320
    %vm6322 = vweird.f32 %v6316
    %vm6323 = vweird.f32 %v6317
    %vm6324 = vmor %vm6322, %vm6323
    %v6325 = vsel %vm6324, %v6317, %v6321
    %v6326 = vand.u32 2147483647, %v6316
    %vm6327 = vcmp.eq.f32.partialorder %v6326, 8.507059e+37
    %v6328 = vand.u32 %v6316, 2147483648
    %v6329 = vor.u32 1.1754944e-38, %v6328
    %v6330 = vsel %vm6327, %v6329, %v6325
    %v6331 = vmul.f32 1.0, %v6330
    %v6332 = vxor.u32 %v6310, 2147483648
    %v6333 = vmul.f32 %v6332, 1.442695
    %v6334 = vpow.pop %v6333
    %v6335 = vadd.f32 %v6334, 1.0
    %v6336 = vrcp.pop %v6335
    %v6337 = vmul.f32 %v6335, %v6336
    %v6338 = vsub.f32 1.0, %v6337
    %v6339 = vmul.f32 %v6336, %v6338
    %v6340 = vadd.f32 %v6336, %v6339
    %vm6341 = vweird.f32 %v6335
    %vm6342 = vweird.f32 %v6336
    %vm6343 = vmor %vm6341, %vm6342
    %v6344 = vsel %vm6343, %v6336, %v6340
    %v6345 = vand.u32 2147483647, %v6335
    %vm6346 = vcmp.eq.f32.partialorder %v6345, 8.507059e+37
    %v6347 = vand.u32 %v6335, 2147483648
    %v6348 = vor.u32 1.1754944e-38, %v6347
    %v6349 = vsel %vm6346, %v6348, %v6344
    %v6350 = vmul.f32 1.0, %v6349
    %v6351 = vtanh.pop %v6311
    %v6352 = vxor.u32 %v6312, 2147483648
    %v6353 = vmul.f32 %v6352, 1.442695
    %v6354 = vpow.pop %v6353
    %v6355 = vadd.f32 %v6354, 1.0
    %v6356 = vrcp.pop %v6355
    %v6357 = vmul.f32 %v6355, %v6356
    %v6358 = vsub.f32 1.0, %v6357
    %v6359 = vmul.f32 %v6356, %v6358
    %v6360 = vadd.f32 %v6356, %v6359
    %vm6361 = vweird.f32 %v6355
    %vm6362 = vweird.f32 %v6356
    %vm6363 = vmor %vm6361, %vm6362
    %v6364 = vsel %vm6363, %v6356, %v6360
    %v6365 = vand.u32 2147483647, %v6355
    %vm6366 = vcmp.eq.f32.partialorder %v6365, 8.507059e+37
    %v6367 = vand.u32 %v6355, 2147483648
    %v6368 = vor.u32 1.1754944e-38, %v6367
    %v6369 = vsel %vm6366, %v6368, %v6364
    %v6370 = vmul.f32 1.0, %v6369
    %v6372 = vrot.slane %v5982, 6
    %v6374 = vmul.f32 %v6350, %v6372
    %v6375 = vmul.f32 %v6331, %v6351
    %v6376 = vadd.f32 %v6374, %v6375
    %v6377 = vtanh.pop %v6376
    %v6378 = vmul.f32 %v6370, %v6377
    %v6380 = vrot.slane %v6216, 6
    %v6382 = vrot.slane %v6378, 2
    %v6383 = vrot.slane %v6380, 2
    %6386 = vmatpush.msra.mxu0 %v5763
    %6387 = vmatpush.msra.mxu0 %v5759
    %6388 = vmatpush.msra.mxu0 %v5755
    %6389 = vmatpush.msra.mxu0 %v5751
    %6390 = vmatpush.msra.mxu0 %v5747
    %6391 = vmatpush.msra.mxu0 %v5743
    %6392 = vmatpush.msra.mxu0 %v5739
    %6393 = vmatpush.msra.mxu0 %v5735
    %6394 = vmatpush.msra.mxu0 %v5731
    %6395 = vmatpush.msra.mxu0 %v5727
    %6396 = vmatpush.msra.mxu0 %v5723
    %6397 = vmatpush.msra.mxu0 %v5719
    %6398 = vmatpush.msra.mxu0 %v5715
    %6399 = vmatpush.msra.mxu0 %v5711
    %6400 = vmatpush.msra.mxu0 %v5707
    %6401 = vmatpush.msra.mxu0 %v5703
    %6402 = vmatmul.f32.gmra.mxu0 %v6382
    %v6403 = vpop.f32.mrf.mxu0
    %v6404 = vadd.f32 %v5986, %v6403
    %6405 = vdwg.mxu0
    %6406 = vmatpush.msra.mxu0 %v5827
    %6407 = vmatpush.msra.mxu0 %v5823
    %6408 = vmatpush.msra.mxu0 %v5819
    %6409 = vmatpush.msra.mxu0 %v5815
    %6410 = vmatpush.msra.mxu0 %v5811
    %6411 = vmatpush.msra.mxu0 %v5807
    %6412 = vmatpush.msra.mxu0 %v5803
    %6413 = vmatpush.msra.mxu0 %v5799
    %6414 = vmatpush.msra.mxu0 %v5795
    %6415 = vmatpush.msra.mxu0 %v5791
    %6416 = vmatpush.msra.mxu0 %v5787
    %6417 = vmatpush.msra.mxu0 %v5783
    %6418 = vmatpush.msra.mxu0 %v5779
    %6419 = vmatpush.msra.mxu0 %v5775
    %6420 = vmatpush.msra.mxu0 %v5771
    %6421 = vmatpush.msra.mxu0 %v5767
    %6422 = vmatmul.f32.gmra.mxu0 %v6383
    %v6423 = vpop.f32.mrf.mxu0
    %v6424 = vadd.f32 %v6404, %v6423
    %6425 = vdwg.mxu0
    %6426 = vmatpush.msra.mxu0 %v5764
    %6427 = vmatpush.msra.mxu0 %v5760
    %6428 = vmatpush.msra.mxu0 %v5756
    %6429 = vmatpush.msra.mxu0 %v5752
    %6430 = vmatpush.msra.mxu0 %v5748
    %6431 = vmatpush.msra.mxu0 %v5744
    %6432 = vmatpush.msra.mxu0 %v5740
    %6433 = vmatpush.msra.mxu0 %v5736
    %6434 = vmatpush.msra.mxu0 %v5732
    %6435 = vmatpush.msra.mxu0 %v5728
    %6436 = vmatpush.msra.mxu0 %v5724
    %6437 = vmatpush.msra.mxu0 %v5720
    %6438 = vmatpush.msra.mxu0 %v5716
    %6439 = vmatpush.msra.mxu0 %v5712
    %6440 = vmatpush.msra.mxu0 %v5708
    %6441 = vmatpush.msra.mxu0 %v5704
    %6442 = vmatmul.f32.gmra.mxu0 %v6382
    %v6443 = vpop.f32.mrf.mxu0
    %v6444 = vadd.f32 %v5987, %v6443
    %6445 = vdwg.mxu0
    %6446 = vmatpush.msra.mxu0 %v5828
    %6447 = vmatpush.msra.mxu0 %v5824
    %6448 = vmatpush.msra.mxu0 %v5820
    %6449 = vmatpush.msra.mxu0 %v5816
    %6450 = vmatpush.msra.mxu0 %v5812
    %6451 = vmatpush.msra.mxu0 %v5808
    %6452 = vmatpush.msra.mxu0 %v5804
    %6453 = vmatpush.msra.mxu0 %v5800
    %6454 = vmatpush.msra.mxu0 %v5796
    %6455 = vmatpush.msra.mxu0 %v5792
    %6456 = vmatpush.msra.mxu0 %v5788
    %6457 = vmatpush.msra.mxu0 %v5784
    %6458 = vmatpush.msra.mxu0 %v5780
    %6459 = vmatpush.msra.mxu0 %v5776
    %6460 = vmatpush.msra.mxu0 %v5772
    %6461 = vmatpush.msra.mxu0 %v5768
    %6462 = vmatmul.f32.gmra.mxu0 %v6383
    %v6463 = vpop.f32.mrf.mxu0
    %v6464 = vadd.f32 %v6444, %v6463
    %6465 = vdwg.mxu0
    %6466 = vmatpush.msra.mxu0 %v5765
    %6467 = vmatpush.msra.mxu0 %v5761
    %6468 = vmatpush.msra.mxu0 %v5757
    %6469 = vmatpush.msra.mxu0 %v5753
    %6470 = vmatpush.msra.mxu0 %v5749
    %6471 = vmatpush.msra.mxu0 %v5745
    %6472 = vmatpush.msra.mxu0 %v5741
    %6473 = vmatpush.msra.mxu0 %v5737
    %6474 = vmatpush.msra.mxu0 %v5733
    %6475 = vmatpush.msra.mxu0 %v5729
    %6476 = vmatpush.msra.mxu0 %v5725
    %6477 = vmatpush.msra.mxu0 %v5721
    %6478 = vmatpush.msra.mxu0 %v5717
    %6479 = vmatpush.msra.mxu0 %v5713
    %6480 = vmatpush.msra.mxu0 %v5709
    %6481 = vmatpush.msra.mxu0 %v5705
    %6482 = vmatmul.f32.gmra.mxu0 %v6382
    %v6483 = vpop.f32.mrf.mxu0
    %v6484 = vadd.f32 %v5988, %v6483
    %6485 = vdwg.mxu0
    %6486 = vmatpush.msra.mxu0 %v5829
    %6487 = vmatpush.msra.mxu0 %v5825
    %6488 = vmatpush.msra.mxu0 %v5821
    %6489 = vmatpush.msra.mxu0 %v5817
    %6490 = vmatpush.msra.mxu0 %v5813
    %6491 = vmatpush.msra.mxu0 %v5809
    %6492 = vmatpush.msra.mxu0 %v5805
    %6493 = vmatpush.msra.mxu0 %v5801
    %6494 = vmatpush.msra.mxu0 %v5797
    %6495 = vmatpush.msra.mxu0 %v5793
    %6496 = vmatpush.msra.mxu0 %v5789
    %6497 = vmatpush.msra.mxu0 %v5785
    %6498 = vmatpush.msra.mxu0 %v5781
    %6499 = vmatpush.msra.mxu0 %v5777
    %6500 = vmatpush.msra.mxu0 %v5773
    %6501 = vmatpush.msra.mxu0 %v5769
    %6502 = vmatmul.f32.gmra.mxu0 %v6383
    %v6503 = vpop.f32.mrf.mxu0
    %v6504 = vadd.f32 %v6484, %v6503
    %6505 = vdwg.mxu0
    %6506 = vmatpush.msra.mxu0 %v5766
    %6507 = vmatpush.msra.mxu0 %v5762
    %6508 = vmatpush.msra.mxu0 %v5758
    %6509 = vmatpush.msra.mxu0 %v5754
    %6510 = vmatpush.msra.mxu0 %v5750
    %6511 = vmatpush.msra.mxu0 %v5746
    %6512 = vmatpush.msra.mxu0 %v5742
    %6513 = vmatpush.msra.mxu0 %v5738
    %6514 = vmatpush.msra.mxu0 %v5734
    %6515 = vmatpush.msra.mxu0 %v5730
    %6516 = vmatpush.msra.mxu0 %v5726
    %6517 = vmatpush.msra.mxu0 %v5722
    %6518 = vmatpush.msra.mxu0 %v5718
    %6519 = vmatpush.msra.mxu0 %v5714
    %6520 = vmatpush.msra.mxu0 %v5710
    %6521 = vmatpush.msra.mxu0 %v5706
    %6522 = vmatmul.f32.gmra.mxu0 %v6382
    %v6523 = vpop.f32.mrf.mxu0
    %v6524 = vadd.f32 %v5989, %v6523
    %6525 = vdwg.mxu0
    %6526 = vmatpush.msra.mxu0 %v5830
    %6527 = vmatpush.msra.mxu0 %v5826
    %6528 = vmatpush.msra.mxu0 %v5822
    %6529 = vmatpush.msra.mxu0 %v5818
    %6530 = vmatpush.msra.mxu0 %v5814
    %6531 = vmatpush.msra.mxu0 %v5810
    %6532 = vmatpush.msra.mxu0 %v5806
    %6533 = vmatpush.msra.mxu0 %v5802
    %6534 = vmatpush.msra.mxu0 %v5798
    %6535 = vmatpush.msra.mxu0 %v5794
    %6536 = vmatpush.msra.mxu0 %v5790
    %6537 = vmatpush.msra.mxu0 %v5786
    %6538 = vmatpush.msra.mxu0 %v5782
    %6539 = vmatpush.msra.mxu0 %v5778
    %6540 = vmatpush.msra.mxu0 %v5774
    %6541 = vmatpush.msra.mxu0 %v5770
    %6542 = vmatmul.f32.gmra.mxu0 %v6383
    %v6543 = vpop.f32.mrf.mxu0
    %v6544 = vadd.f32 %v6524, %v6543
    %6545 = vdwg.mxu0
    %v6546 = vxor.u32 %v6424, 2147483648
    %v6547 = vmul.f32 %v6546, 1.442695
    %v6548 = vpow.pop %v6547
    %v6549 = vadd.f32 %v6548, 1.0
    %v6550 = vrcp.pop %v6549
    %v6551 = vmul.f32 %v6549, %v6550
    %v6552 = vsub.f32 1.0, %v6551
    %v6553 = vmul.f32 %v6550, %v6552
    %v6554 = vadd.f32 %v6550, %v6553
    %vm6555 = vweird.f32 %v6549
    %vm6556 = vweird.f32 %v6550
    %vm6557 = vmor %vm6555, %vm6556
    %v6558 = vsel %vm6557, %v6550, %v6554
    %v6559 = vand.u32 2147483647, %v6549
    %vm6560 = vcmp.eq.f32.partialorder %v6559, 8.507059e+37
    %v6561 = vand.u32 %v6549, 2147483648
    %v6562 = vor.u32 1.1754944e-38, %v6561
    %v6563 = vsel %vm6560, %v6562, %v6558
    %v6564 = vmul.f32 1.0, %v6563
    %v6565 = vxor.u32 %v6464, 2147483648
    %v6566 = vmul.f32 %v6565, 1.442695
    %v6567 = vpow.pop %v6566
    %v6568 = vadd.f32 %v6567, 1.0
    %v6569 = vrcp.pop %v6568
    %v6570 = vmul.f32 %v6568, %v6569
    %v6571 = vsub.f32 1.0, %v6570
    %v6572 = vmul.f32 %v6569, %v6571
    %v6573 = vadd.f32 %v6569, %v6572
    %vm6574 = vweird.f32 %v6568
    %vm6575 = vweird.f32 %v6569
    %vm6576 = vmor %vm6574, %vm6575
    %v6577 = vsel %vm6576, %v6569, %v6573
    %v6578 = vand.u32 2147483647, %v6568
    %vm6579 = vcmp.eq.f32.partialorder %v6578, 8.507059e+37
    %v6580 = vand.u32 %v6568, 2147483648
    %v6581 = vor.u32 1.1754944e-38, %v6580
    %v6582 = vsel %vm6579, %v6581, %v6577
    %v6583 = vmul.f32 1.0, %v6582
    %v6584 = vtanh.pop %v6504
    %v6585 = vxor.u32 %v6544, 2147483648
    %v6586 = vmul.f32 %v6585, 1.442695
    %v6587 = vpow.pop %v6586
    %v6588 = vadd.f32 %v6587, 1.0
    %v6589 = vrcp.pop %v6588
    %v6590 = vmul.f32 %v6588, %v6589
    %v6591 = vsub.f32 1.0, %v6590
    %v6592 = vmul.f32 %v6589, %v6591
    %v6593 = vadd.f32 %v6589, %v6592
    %vm6594 = vweird.f32 %v6588
    %vm6595 = vweird.f32 %v6589
    %vm6596 = vmor %vm6594, %vm6595
    %v6597 = vsel %vm6596, %v6589, %v6593
    %v6598 = vand.u32 2147483647, %v6588
    %vm6599 = vcmp.eq.f32.partialorder %v6598, 8.507059e+37
    %v6600 = vand.u32 %v6588, 2147483648
    %v6601 = vor.u32 1.1754944e-38, %v6600
    %v6602 = vsel %vm6599, %v6601, %v6597
    %v6603 = vmul.f32 1.0, %v6602
    %v6604 = vmul.f32 %v6583, %v6214
    %v6605 = vmul.f32 %v6564, %v6584
    %v6606 = vadd.f32 %v6604, %v6605
    %v6607 = vtanh.pop %v6606
    %v6608 = vmul.f32 %v6603, %v6607
    %6609 = vmatpush.msra.mxu0 %v5699
    %6610 = vmatpush.msra.mxu0 %v5695
    %6611 = vmatpush.msra.mxu0 %v5691
    %6612 = vmatpush.msra.mxu0 %v5687
    %6613 = vmatpush.msra.mxu0 %v5683
    %6614 = vmatpush.msra.mxu0 %v5679
    %6615 = vmatpush.msra.mxu0 %v5675
    %6616 = vmatpush.msra.mxu0 %v5671
    %6617 = vmatpush.msra.mxu0 %v5667
    %6618 = vmatpush.msra.mxu0 %v5663
    %6619 = vmatpush.msra.mxu0 %v5659
    %6620 = vmatpush.msra.mxu0 %v5655
    %6621 = vmatpush.msra.mxu0 %v5651
    %6622 = vmatpush.msra.mxu0 %v5647
    %6623 = vmatpush.msra.mxu0 %v5643
    %6624 = vmatpush.msra.mxu0 %v5639
    %6625 = vmatmul.f32.gmra.mxu0 %v6382
    %v6626 = vpop.f32.mrf.mxu0
    %v6627 = vadd.f32 0.0, %v6626
    %6628 = vdwg.mxu0
    %6629 = vmatpush.msra.mxu0 %v5700
    %6630 = vmatpush.msra.mxu0 %v5696
    %6631 = vmatpush.msra.mxu0 %v5692
    %6632 = vmatpush.msra.mxu0 %v5688
    %6633 = vmatpush.msra.mxu0 %v5684
    %6634 = vmatpush.msra.mxu0 %v5680
    %6635 = vmatpush.msra.mxu0 %v5676
    %6636 = vmatpush.msra.mxu0 %v5672
    %6637 = vmatpush.msra.mxu0 %v5668
    %6638 = vmatpush.msra.mxu0 %v5664
    %6639 = vmatpush.msra.mxu0 %v5660
    %6640 = vmatpush.msra.mxu0 %v5656
    %6641 = vmatpush.msra.mxu0 %v5652
    %6642 = vmatpush.msra.mxu0 %v5648
    %6643 = vmatpush.msra.mxu0 %v5644
    %6644 = vmatpush.msra.mxu0 %v5640
    %6645 = vmatmul.f32.gmra.mxu0 %v6382
    %v6646 = vpop.f32.mrf.mxu0
    %v6647 = vadd.f32 0.0, %v6646
    %6648 = vdwg.mxu0
    %6649 = vmatpush.msra.mxu0 %v5701
    %6650 = vmatpush.msra.mxu0 %v5697
    %6651 = vmatpush.msra.mxu0 %v5693
    %6652 = vmatpush.msra.mxu0 %v5689
    %6653 = vmatpush.msra.mxu0 %v5685
    %6654 = vmatpush.msra.mxu0 %v5681
    %6655 = vmatpush.msra.mxu0 %v5677
    %6656 = vmatpush.msra.mxu0 %v5673
    %6657 = vmatpush.msra.mxu0 %v5669
    %6658 = vmatpush.msra.mxu0 %v5665
    %6659 = vmatpush.msra.mxu0 %v5661
    %6660 = vmatpush.msra.mxu0 %v5657
    %6661 = vmatpush.msra.mxu0 %v5653
    %6662 = vmatpush.msra.mxu0 %v5649
    %6663 = vmatpush.msra.mxu0 %v5645
    %6664 = vmatpush.msra.mxu0 %v5641
    %6665 = vmatmul.f32.gmra.mxu0 %v6382
    %v6666 = vpop.f32.mrf.mxu0
    %v6667 = vadd.f32 0.0, %v6666
    %6668 = vdwg.mxu0
    %6669 = vmatpush.msra.mxu0 %v5702
    %6670 = vmatpush.msra.mxu0 %v5698
    %6671 = vmatpush.msra.mxu0 %v5694
    %6672 = vmatpush.msra.mxu0 %v5690
    %6673 = vmatpush.msra.mxu0 %v5686
    %6674 = vmatpush.msra.mxu0 %v5682
    %6675 = vmatpush.msra.mxu0 %v5678
    %6676 = vmatpush.msra.mxu0 %v5674
    %6677 = vmatpush.msra.mxu0 %v5670
    %6678 = vmatpush.msra.mxu0 %v5666
    %6679 = vmatpush.msra.mxu0 %v5662
    %6680 = vmatpush.msra.mxu0 %v5658
    %6681 = vmatpush.msra.mxu0 %v5654
    %6682 = vmatpush.msra.mxu0 %v5650
    %6683 = vmatpush.msra.mxu0 %v5646
    %6684 = vmatpush.msra.mxu0 %v5642
    %6685 = vmatmul.f32.gmra.mxu0 %v6382
    %v6686 = vpop.f32.mrf.mxu0
    %v6687 = vadd.f32 0.0, %v6686
    %6688 = vdwg.mxu0
    %v6693 = vrot.slane %v6627, 4
    %v6694 = vrot.slane %v6647, 4
    %v6695 = vrot.slane %v6667, 4
    %v6696 = vrot.slane %v6687, 4
    %v6701 = vadd.f32 %v5565, %v6693
    %v6702 = vadd.f32 %v5588, %v6694
    %v6703 = vadd.f32 %v5611, %v6695
    %v6704 = vadd.f32 %v5634, %v6696
    %v6705 = vxor.u32 %v6701, 2147483648
    %v6706 = vmul.f32 %v6705, 1.442695
    %v6707 = vpow.pop %v6706
    %v6708 = vadd.f32 %v6707, 1.0
    %v6709 = vrcp.pop %v6708
    %v6710 = vmul.f32 %v6708, %v6709
    %v6711 = vsub.f32 1.0, %v6710
    %v6712 = vmul.f32 %v6709, %v6711
    %v6713 = vadd.f32 %v6709, %v6712
    %vm6714 = vweird.f32 %v6708
    %vm6715 = vweird.f32 %v6709
    %vm6716 = vmor %vm6714, %vm6715
    %v6717 = vsel %vm6716, %v6709, %v6713
    %v6718 = vand.u32 2147483647, %v6708
    %vm6719 = vcmp.eq.f32.partialorder %v6718, 8.507059e+37
    %v6720 = vand.u32 %v6708, 2147483648
    %v6721 = vor.u32 1.1754944e-38, %v6720
    %v6722 = vsel %vm6719, %v6721, %v6717
    %v6723 = vmul.f32 1.0, %v6722
    %v6724 = vxor.u32 %v6702, 2147483648
    %v6725 = vmul.f32 %v6724, 1.442695
    %v6726 = vpow.pop %v6725
    %v6727 = vadd.f32 %v6726, 1.0
    %v6728 = vrcp.pop %v6727
    %v6729 = vmul.f32 %v6727, %v6728
    %v6730 = vsub.f32 1.0, %v6729
    %v6731 = vmul.f32 %v6728, %v6730
    %v6732 = vadd.f32 %v6728, %v6731
    %vm6733 = vweird.f32 %v6727
    %vm6734 = vweird.f32 %v6728
    %vm6735 = vmor %vm6733, %vm6734
    %v6736 = vsel %vm6735, %v6728, %v6732
    %v6737 = vand.u32 2147483647, %v6727
    %vm6738 = vcmp.eq.f32.partialorder %v6737, 8.507059e+37
    %v6739 = vand.u32 %v6727, 2147483648
    %v6740 = vor.u32 1.1754944e-38, %v6739
    %v6741 = vsel %vm6738, %v6740, %v6736
    %v6742 = vmul.f32 1.0, %v6741
    %v6743 = vtanh.pop %v6703
    %v6744 = vxor.u32 %v6704, 2147483648
    %v6745 = vmul.f32 %v6744, 1.442695
    %v6746 = vpow.pop %v6745
    %v6747 = vadd.f32 %v6746, 1.0
    %v6748 = vrcp.pop %v6747
    %v6749 = vmul.f32 %v6747, %v6748
    %v6750 = vsub.f32 1.0, %v6749
    %v6751 = vmul.f32 %v6748, %v6750
    %v6752 = vadd.f32 %v6748, %v6751
    %vm6753 = vweird.f32 %v6747
    %vm6754 = vweird.f32 %v6748
    %vm6755 = vmor %vm6753, %vm6754
    %v6756 = vsel %vm6755, %v6748, %v6752
    %v6757 = vand.u32 2147483647, %v6747
    %vm6758 = vcmp.eq.f32.partialorder %v6757, 8.507059e+37
    %v6759 = vand.u32 %v6747, 2147483648
    %v6760 = vor.u32 1.1754944e-38, %v6759
    %v6761 = vsel %vm6758, %v6760, %v6756
    %v6762 = vmul.f32 1.0, %v6761
    %v6764 = vrot.slane %v6376, 6
    %v6766 = vmul.f32 %v6742, %v6764
    %v6767 = vmul.f32 %v6723, %v6743
    %v6768 = vadd.f32 %v6766, %v6767
    %v6769 = vtanh.pop %v6768
    %v6770 = vmul.f32 %v6762, %v6769
    %v6772 = vrot.slane %v6608, 4
    %v6774 = vrot.slane %v6770, 4
    %v6775 = vrot.slane %v6772, 4
    %6778 = vmatpush.msra.mxu0 %v5763
    %6779 = vmatpush.msra.mxu0 %v5759
    %6780 = vmatpush.msra.mxu0 %v5755
    %6781 = vmatpush.msra.mxu0 %v5751
    %6782 = vmatpush.msra.mxu0 %v5747
    %6783 = vmatpush.msra.mxu0 %v5743
    %6784 = vmatpush.msra.mxu0 %v5739
    %6785 = vmatpush.msra.mxu0 %v5735
    %6786 = vmatpush.msra.mxu0 %v5731
    %6787 = vmatpush.msra.mxu0 %v5727
    %6788 = vmatpush.msra.mxu0 %v5723
    %6789 = vmatpush.msra.mxu0 %v5719
    %6790 = vmatpush.msra.mxu0 %v5715
    %6791 = vmatpush.msra.mxu0 %v5711
    %6792 = vmatpush.msra.mxu0 %v5707
    %6793 = vmatpush.msra.mxu0 %v5703
    %6794 = vmatmul.f32.gmra.mxu0 %v6774
    %v6795 = vpop.f32.mrf.mxu0
    %v6796 = vadd.f32 %v5986, %v6795
    %6797 = vdwg.mxu0
    %6798 = vmatpush.msra.mxu0 %v5827
    %6799 = vmatpush.msra.mxu0 %v5823
    %6800 = vmatpush.msra.mxu0 %v5819
    %6801 = vmatpush.msra.mxu0 %v5815
    %6802 = vmatpush.msra.mxu0 %v5811
    %6803 = vmatpush.msra.mxu0 %v5807
    %6804 = vmatpush.msra.mxu0 %v5803
    %6805 = vmatpush.msra.mxu0 %v5799
    %6806 = vmatpush.msra.mxu0 %v5795
    %6807 = vmatpush.msra.mxu0 %v5791
    %6808 = vmatpush.msra.mxu0 %v5787
    %6809 = vmatpush.msra.mxu0 %v5783
    %6810 = vmatpush.msra.mxu0 %v5779
    %6811 = vmatpush.msra.mxu0 %v5775
    %6812 = vmatpush.msra.mxu0 %v5771
    %6813 = vmatpush.msra.mxu0 %v5767
    %6814 = vmatmul.f32.gmra.mxu0 %v6775
    %v6815 = vpop.f32.mrf.mxu0
    %v6816 = vadd.f32 %v6796, %v6815
    %6817 = vdwg.mxu0
    %6818 = vmatpush.msra.mxu0 %v5764
    %6819 = vmatpush.msra.mxu0 %v5760
    %6820 = vmatpush.msra.mxu0 %v5756
    %6821 = vmatpush.msra.mxu0 %v5752
    %6822 = vmatpush.msra.mxu0 %v5748
    %6823 = vmatpush.msra.mxu0 %v5744
    %6824 = vmatpush.msra.mxu0 %v5740
    %6825 = vmatpush.msra.mxu0 %v5736
    %6826 = vmatpush.msra.mxu0 %v5732
    %6827 = vmatpush.msra.mxu0 %v5728
    %6828 = vmatpush.msra.mxu0 %v5724
    %6829 = vmatpush.msra.mxu0 %v5720
    %6830 = vmatpush.msra.mxu0 %v5716
    %6831 = vmatpush.msra.mxu0 %v5712
    %6832 = vmatpush.msra.mxu0 %v5708
    %6833 = vmatpush.msra.mxu0 %v5704
    %6834 = vmatmul.f32.gmra.mxu0 %v6774
    %v6835 = vpop.f32.mrf.mxu0
    %v6836 = vadd.f32 %v5987, %v6835
    %6837 = vdwg.mxu0
    %6838 = vmatpush.msra.mxu0 %v5828
    %6839 = vmatpush.msra.mxu0 %v5824
    %6840 = vmatpush.msra.mxu0 %v5820
    %6841 = vmatpush.msra.mxu0 %v5816
    %6842 = vmatpush.msra.mxu0 %v5812
    %6843 = vmatpush.msra.mxu0 %v5808
    %6844 = vmatpush.msra.mxu0 %v5804
    %6845 = vmatpush.msra.mxu0 %v5800
    %6846 = vmatpush.msra.mxu0 %v5796
    %6847 = vmatpush.msra.mxu0 %v5792
    %6848 = vmatpush.msra.mxu0 %v5788
    %6849 = vmatpush.msra.mxu0 %v5784
    %6850 = vmatpush.msra.mxu0 %v5780
    %6851 = vmatpush.msra.mxu0 %v5776
    %6852 = vmatpush.msra.mxu0 %v5772
    %6853 = vmatpush.msra.mxu0 %v5768
    %6854 = vmatmul.f32.gmra.mxu0 %v6775
    %v6855 = vpop.f32.mrf.mxu0
    %v6856 = vadd.f32 %v6836, %v6855
    %6857 = vdwg.mxu0
    %6858 = vmatpush.msra.mxu0 %v5765
    %6859 = vmatpush.msra.mxu0 %v5761
    %6860 = vmatpush.msra.mxu0 %v5757
    %6861 = vmatpush.msra.mxu0 %v5753
    %6862 = vmatpush.msra.mxu0 %v5749
    %6863 = vmatpush.msra.mxu0 %v5745
    %6864 = vmatpush.msra.mxu0 %v5741
    %6865 = vmatpush.msra.mxu0 %v5737
    %6866 = vmatpush.msra.mxu0 %v5733
    %6867 = vmatpush.msra.mxu0 %v5729
    %6868 = vmatpush.msra.mxu0 %v5725
    %6869 = vmatpush.msra.mxu0 %v5721
    %6870 = vmatpush.msra.mxu0 %v5717
    %6871 = vmatpush.msra.mxu0 %v5713
    %6872 = vmatpush.msra.mxu0 %v5709
    %6873 = vmatpush.msra.mxu0 %v5705
    %6874 = vmatmul.f32.gmra.mxu0 %v6774
    %v6875 = vpop.f32.mrf.mxu0
    %v6876 = vadd.f32 %v5988, %v6875
    %6877 = vdwg.mxu0
    %6878 = vmatpush.msra.mxu0 %v5829
    %6879 = vmatpush.msra.mxu0 %v5825
    %6880 = vmatpush.msra.mxu0 %v5821
    %6881 = vmatpush.msra.mxu0 %v5817
    %6882 = vmatpush.msra.mxu0 %v5813
    %6883 = vmatpush.msra.mxu0 %v5809
    %6884 = vmatpush.msra.mxu0 %v5805
    %6885 = vmatpush.msra.mxu0 %v5801
    %6886 = vmatpush.msra.mxu0 %v5797
    %6887 = vmatpush.msra.mxu0 %v5793
    %6888 = vmatpush.msra.mxu0 %v5789
    %6889 = vmatpush.msra.mxu0 %v5785
    %6890 = vmatpush.msra.mxu0 %v5781
    %6891 = vmatpush.msra.mxu0 %v5777
    %6892 = vmatpush.msra.mxu0 %v5773
    %6893 = vmatpush.msra.mxu0 %v5769
    %6894 = vmatmul.f32.gmra.mxu0 %v6775
    %v6895 = vpop.f32.mrf.mxu0
    %v6896 = vadd.f32 %v6876, %v6895
    %6897 = vdwg.mxu0
    %6898 = vmatpush.msra.mxu0 %v5766
    %6899 = vmatpush.msra.mxu0 %v5762
    %6900 = vmatpush.msra.mxu0 %v5758
    %6901 = vmatpush.msra.mxu0 %v5754
    %6902 = vmatpush.msra.mxu0 %v5750
    %6903 = vmatpush.msra.mxu0 %v5746
    %6904 = vmatpush.msra.mxu0 %v5742
    %6905 = vmatpush.msra.mxu0 %v5738
    %6906 = vmatpush.msra.mxu0 %v5734
    %6907 = vmatpush.msra.mxu0 %v5730
    %6908 = vmatpush.msra.mxu0 %v5726
    %6909 = vmatpush.msra.mxu0 %v5722
    %6910 = vmatpush.msra.mxu0 %v5718
    %6911 = vmatpush.msra.mxu0 %v5714
    %6912 = vmatpush.msra.mxu0 %v5710
    %6913 = vmatpush.msra.mxu0 %v5706
    %6914 = vmatmul.f32.gmra.mxu0 %v6774
    %v6915 = vpop.f32.mrf.mxu0
    %v6916 = vadd.f32 %v5989, %v6915
    %6917 = vdwg.mxu0
    %6918 = vmatpush.msra.mxu0 %v5830
    %6919 = vmatpush.msra.mxu0 %v5826
    %6920 = vmatpush.msra.mxu0 %v5822
    %6921 = vmatpush.msra.mxu0 %v5818
    %6922 = vmatpush.msra.mxu0 %v5814
    %6923 = vmatpush.msra.mxu0 %v5810
    %6924 = vmatpush.msra.mxu0 %v5806
    %6925 = vmatpush.msra.mxu0 %v5802
    %6926 = vmatpush.msra.mxu0 %v5798
    %6927 = vmatpush.msra.mxu0 %v5794
    %6928 = vmatpush.msra.mxu0 %v5790
    %6929 = vmatpush.msra.mxu0 %v5786
    %6930 = vmatpush.msra.mxu0 %v5782
    %6931 = vmatpush.msra.mxu0 %v5778
    %6932 = vmatpush.msra.mxu0 %v5774
    %6933 = vmatpush.msra.mxu0 %v5770
    %6934 = vmatmul.f32.gmra.mxu0 %v6775
    %v6935 = vpop.f32.mrf.mxu0
    %v6936 = vadd.f32 %v6916, %v6935
    %6937 = vdwg.mxu0
    %v6938 = vxor.u32 %v6816, 2147483648
    %v6939 = vmul.f32 %v6938, 1.442695
    %v6940 = vpow.pop %v6939
    %v6941 = vadd.f32 %v6940, 1.0
    %v6942 = vrcp.pop %v6941
    %v6943 = vmul.f32 %v6941, %v6942
    %v6944 = vsub.f32 1.0, %v6943
    %v6945 = vmul.f32 %v6942, %v6944
    %v6946 = vadd.f32 %v6942, %v6945
    %vm6947 = vweird.f32 %v6941
    %vm6948 = vweird.f32 %v6942
    %vm6949 = vmor %vm6947, %vm6948
    %v6950 = vsel %vm6949, %v6942, %v6946
    %v6951 = vand.u32 2147483647, %v6941
    %vm6952 = vcmp.eq.f32.partialorder %v6951, 8.507059e+37
    %v6953 = vand.u32 %v6941, 2147483648
    %v6954 = vor.u32 1.1754944e-38, %v6953
    %v6955 = vsel %vm6952, %v6954, %v6950
    %v6956 = vmul.f32 1.0, %v6955
    %v6957 = vxor.u32 %v6856, 2147483648
    %v6958 = vmul.f32 %v6957, 1.442695
    %v6959 = vpow.pop %v6958
    %v6960 = vadd.f32 %v6959, 1.0
    %v6961 = vrcp.pop %v6960
    %v6962 = vmul.f32 %v6960, %v6961
    %v6963 = vsub.f32 1.0, %v6962
    %v6964 = vmul.f32 %v6961, %v6963
    %v6965 = vadd.f32 %v6961, %v6964
    %vm6966 = vweird.f32 %v6960
    %vm6967 = vweird.f32 %v6961
    %vm6968 = vmor %vm6966, %vm6967
    %v6969 = vsel %vm6968, %v6961, %v6965
    %v6970 = vand.u32 2147483647, %v6960
    %vm6971 = vcmp.eq.f32.partialorder %v6970, 8.507059e+37
    %v6972 = vand.u32 %v6960, 2147483648
    %v6973 = vor.u32 1.1754944e-38, %v6972
    %v6974 = vsel %vm6971, %v6973, %v6969
    %v6975 = vmul.f32 1.0, %v6974
    %v6976 = vtanh.pop %v6896
    %v6977 = vxor.u32 %v6936, 2147483648
    %v6978 = vmul.f32 %v6977, 1.442695
    %v6979 = vpow.pop %v6978
    %v6980 = vadd.f32 %v6979, 1.0
    %v6981 = vrcp.pop %v6980
    %v6982 = vmul.f32 %v6980, %v6981
    %v6983 = vsub.f32 1.0, %v6982
    %v6984 = vmul.f32 %v6981, %v6983
    %v6985 = vadd.f32 %v6981, %v6984
    %vm6986 = vweird.f32 %v6980
    %vm6987 = vweird.f32 %v6981
    %vm6988 = vmor %vm6986, %vm6987
    %v6989 = vsel %vm6988, %v6981, %v6985
    %v6990 = vand.u32 2147483647, %v6980
    %vm6991 = vcmp.eq.f32.partialorder %v6990, 8.507059e+37
    %v6992 = vand.u32 %v6980, 2147483648
    %v6993 = vor.u32 1.1754944e-38, %v6992
    %v6994 = vsel %vm6991, %v6993, %v6989
    %v6995 = vmul.f32 1.0, %v6994
    %v6996 = vmul.f32 %v6975, %v6606
    %v6997 = vmul.f32 %v6956, %v6976
    %v6998 = vadd.f32 %v6996, %v6997
    %v6999 = vtanh.pop %v6998
    %v7000 = vmul.f32 %v6995, %v6999
    %7001 = vmatpush.msra.mxu0 %v5699
    %7002 = vmatpush.msra.mxu0 %v5695
    %7003 = vmatpush.msra.mxu0 %v5691
    %7004 = vmatpush.msra.mxu0 %v5687
    %7005 = vmatpush.msra.mxu0 %v5683
    %7006 = vmatpush.msra.mxu0 %v5679
    %7007 = vmatpush.msra.mxu0 %v5675
    %7008 = vmatpush.msra.mxu0 %v5671
    %7009 = vmatpush.msra.mxu0 %v5667
    %7010 = vmatpush.msra.mxu0 %v5663
    %7011 = vmatpush.msra.mxu0 %v5659
    %7012 = vmatpush.msra.mxu0 %v5655
    %7013 = vmatpush.msra.mxu0 %v5651
    %7014 = vmatpush.msra.mxu0 %v5647
    %7015 = vmatpush.msra.mxu0 %v5643
    %7016 = vmatpush.msra.mxu0 %v5639
    %7017 = vmatmul.f32.gmra.mxu0 %v6774
    %v7018 = vpop.f32.mrf.mxu0
    %v7019 = vadd.f32 0.0, %v7018
    %7020 = vdwg.mxu0
    %7021 = vmatpush.msra.mxu0 %v5700
    %7022 = vmatpush.msra.mxu0 %v5696
    %7023 = vmatpush.msra.mxu0 %v5692
    %7024 = vmatpush.msra.mxu0 %v5688
    %7025 = vmatpush.msra.mxu0 %v5684
    %7026 = vmatpush.msra.mxu0 %v5680
    %7027 = vmatpush.msra.mxu0 %v5676
    %7028 = vmatpush.msra.mxu0 %v5672
    %7029 = vmatpush.msra.mxu0 %v5668
    %7030 = vmatpush.msra.mxu0 %v5664
    %7031 = vmatpush.msra.mxu0 %v5660
    %7032 = vmatpush.msra.mxu0 %v5656
    %7033 = vmatpush.msra.mxu0 %v5652
    %7034 = vmatpush.msra.mxu0 %v5648
    %7035 = vmatpush.msra.mxu0 %v5644
    %7036 = vmatpush.msra.mxu0 %v5640
    %7037 = vmatmul.f32.gmra.mxu0 %v6774
    %v7038 = vpop.f32.mrf.mxu0
    %v7039 = vadd.f32 0.0, %v7038
    %7040 = vdwg.mxu0
    %7041 = vmatpush.msra.mxu0 %v5701
    %7042 = vmatpush.msra.mxu0 %v5697
    %7043 = vmatpush.msra.mxu0 %v5693
    %7044 = vmatpush.msra.mxu0 %v5689
    %7045 = vmatpush.msra.mxu0 %v5685
    %7046 = vmatpush.msra.mxu0 %v5681
    %7047 = vmatpush.msra.mxu0 %v5677
    %7048 = vmatpush.msra.mxu0 %v5673
    %7049 = vmatpush.msra.mxu0 %v5669
    %7050 = vmatpush.msra.mxu0 %v5665
    %7051 = vmatpush.msra.mxu0 %v5661
    %7052 = vmatpush.msra.mxu0 %v5657
    %7053 = vmatpush.msra.mxu0 %v5653
    %7054 = vmatpush.msra.mxu0 %v5649
    %7055 = vmatpush.msra.mxu0 %v5645
    %7056 = vmatpush.msra.mxu0 %v5641
    %7057 = vmatmul.f32.gmra.mxu0 %v6774
    %v7058 = vpop.f32.mrf.mxu0
    %v7059 = vadd.f32 0.0, %v7058
    %7060 = vdwg.mxu0
    %7061 = vmatpush.msra.mxu0 %v5702
    %7062 = vmatpush.msra.mxu0 %v5698
    %7063 = vmatpush.msra.mxu0 %v5694
    %7064 = vmatpush.msra.mxu0 %v5690
    %7065 = vmatpush.msra.mxu0 %v5686
    %7066 = vmatpush.msra.mxu0 %v5682
    %7067 = vmatpush.msra.mxu0 %v5678
    %7068 = vmatpush.msra.mxu0 %v5674
    %7069 = vmatpush.msra.mxu0 %v5670
    %7070 = vmatpush.msra.mxu0 %v5666
    %7071 = vmatpush.msra.mxu0 %v5662
    %7072 = vmatpush.msra.mxu0 %v5658
    %7073 = vmatpush.msra.mxu0 %v5654
    %7074 = vmatpush.msra.mxu0 %v5650
    %7075 = vmatpush.msra.mxu0 %v5646
    %7076 = vmatpush.msra.mxu0 %v5642
    %7077 = vmatmul.f32.gmra.mxu0 %v6774
    %v7078 = vpop.f32.mrf.mxu0
    %v7079 = vadd.f32 0.0, %v7078
    %7080 = vdwg.mxu0
    %v7085 = vrot.slane %v7019, 2
    %v7086 = vrot.slane %v7039, 2
    %v7087 = vrot.slane %v7059, 2
    %v7088 = vrot.slane %v7079, 2
    %v7093 = vadd.f32 %v5565, %v7085
    %v7094 = vadd.f32 %v5588, %v7086
    %v7095 = vadd.f32 %v5611, %v7087
    %v7096 = vadd.f32 %v5634, %v7088
    %v7097 = vxor.u32 %v7093, 2147483648
    %v7098 = vmul.f32 %v7097, 1.442695
    %v7099 = vpow.pop %v7098
    %v7100 = vadd.f32 %v7099, 1.0
    %v7101 = vrcp.pop %v7100
    %v7102 = vmul.f32 %v7100, %v7101
    %v7103 = vsub.f32 1.0, %v7102
    %v7104 = vmul.f32 %v7101, %v7103
    %v7105 = vadd.f32 %v7101, %v7104
    %vm7106 = vweird.f32 %v7100
    %vm7107 = vweird.f32 %v7101
    %vm7108 = vmor %vm7106, %vm7107
    %v7109 = vsel %vm7108, %v7101, %v7105
    %v7110 = vand.u32 2147483647, %v7100
    %vm7111 = vcmp.eq.f32.partialorder %v7110, 8.507059e+37
    %v7112 = vand.u32 %v7100, 2147483648
    %v7113 = vor.u32 1.1754944e-38, %v7112
    %v7114 = vsel %vm7111, %v7113, %v7109
    %v7115 = vmul.f32 1.0, %v7114
    %v7116 = vxor.u32 %v7094, 2147483648
    %v7117 = vmul.f32 %v7116, 1.442695
    %v7118 = vpow.pop %v7117
    %v7119 = vadd.f32 %v7118, 1.0
    %v7120 = vrcp.pop %v7119
    %v7121 = vmul.f32 %v7119, %v7120
    %v7122 = vsub.f32 1.0, %v7121
    %v7123 = vmul.f32 %v7120, %v7122
    %v7124 = vadd.f32 %v7120, %v7123
    %vm7125 = vweird.f32 %v7119
    %vm7126 = vweird.f32 %v7120
    %vm7127 = vmor %vm7125, %vm7126
    %v7128 = vsel %vm7127, %v7120, %v7124
    %v7129 = vand.u32 2147483647, %v7119
    %vm7130 = vcmp.eq.f32.partialorder %v7129, 8.507059e+37
    %v7131 = vand.u32 %v7119, 2147483648
    %v7132 = vor.u32 1.1754944e-38, %v7131
    %v7133 = vsel %vm7130, %v7132, %v7128
    %v7134 = vmul.f32 1.0, %v7133
    %v7135 = vtanh.pop %v7095
    %v7136 = vxor.u32 %v7096, 2147483648
    %v7137 = vmul.f32 %v7136, 1.442695
    %v7138 = vpow.pop %v7137
    %v7139 = vadd.f32 %v7138, 1.0
    %v7140 = vrcp.pop %v7139
    %v7141 = vmul.f32 %v7139, %v7140
    %v7142 = vsub.f32 1.0, %v7141
    %v7143 = vmul.f32 %v7140, %v7142
    %v7144 = vadd.f32 %v7140, %v7143
    %vm7145 = vweird.f32 %v7139
    %vm7146 = vweird.f32 %v7140
    %vm7147 = vmor %vm7145, %vm7146
    %v7148 = vsel %vm7147, %v7140, %v7144
    %v7149 = vand.u32 2147483647, %v7139
    %vm7150 = vcmp.eq.f32.partialorder %v7149, 8.507059e+37
    %v7151 = vand.u32 %v7139, 2147483648
    %v7152 = vor.u32 1.1754944e-38, %v7151
    %v7153 = vsel %vm7150, %v7152, %v7148
    %v7154 = vmul.f32 1.0, %v7153
    %v7156 = vrot.slane %v6768, 6
    %v7158 = vmul.f32 %v7134, %v7156
    %v7159 = vmul.f32 %v7115, %v7135
    %v7160 = vadd.f32 %v7158, %v7159
    %v7161 = vtanh.pop %v7160
    %v7162 = vmul.f32 %v7154, %v7161
    %v7164 = vrot.slane %v7000, 2
    %v7166 = vrot.slane %v7162, 6
    %v7167 = vrot.slane %v7164, 6
    %7170 = vmatpush.msra.mxu0 %v5763
    %7171 = vmatpush.msra.mxu0 %v5759
    %7172 = vmatpush.msra.mxu0 %v5755
    %7173 = vmatpush.msra.mxu0 %v5751
    %7174 = vmatpush.msra.mxu0 %v5747
    %7175 = vmatpush.msra.mxu0 %v5743
    %7176 = vmatpush.msra.mxu0 %v5739
    %7177 = vmatpush.msra.mxu0 %v5735
    %7178 = vmatpush.msra.mxu0 %v5731
    %7179 = vmatpush.msra.mxu0 %v5727
    %7180 = vmatpush.msra.mxu0 %v5723
    %7181 = vmatpush.msra.mxu0 %v5719
    %7182 = vmatpush.msra.mxu0 %v5715
    %7183 = vmatpush.msra.mxu0 %v5711
    %7184 = vmatpush.msra.mxu0 %v5707
    %7185 = vmatpush.msra.mxu0 %v5703
    %7186 = vmatmul.f32.gmra.mxu0 %v7166
    %v7187 = vpop.f32.mrf.mxu0
    %v7188 = vadd.f32 %v5986, %v7187
    %7189 = vdwg.mxu0
    %7190 = vmatpush.msra.mxu0 %v5827
    %7191 = vmatpush.msra.mxu0 %v5823
    %7192 = vmatpush.msra.mxu0 %v5819
    %7193 = vmatpush.msra.mxu0 %v5815
    %7194 = vmatpush.msra.mxu0 %v5811
    %7195 = vmatpush.msra.mxu0 %v5807
    %7196 = vmatpush.msra.mxu0 %v5803
    %7197 = vmatpush.msra.mxu0 %v5799
    %7198 = vmatpush.msra.mxu0 %v5795
    %7199 = vmatpush.msra.mxu0 %v5791
    %7200 = vmatpush.msra.mxu0 %v5787
    %7201 = vmatpush.msra.mxu0 %v5783
    %7202 = vmatpush.msra.mxu0 %v5779
    %7203 = vmatpush.msra.mxu0 %v5775
    %7204 = vmatpush.msra.mxu0 %v5771
    %7205 = vmatpush.msra.mxu0 %v5767
    %7206 = vmatmul.f32.gmra.mxu0 %v7167
    %v7207 = vpop.f32.mrf.mxu0
    %v7208 = vadd.f32 %v7188, %v7207
    %7209 = vdwg.mxu0
    %7210 = vmatpush.msra.mxu0 %v5764
    %7211 = vmatpush.msra.mxu0 %v5760
    %7212 = vmatpush.msra.mxu0 %v5756
    %7213 = vmatpush.msra.mxu0 %v5752
    %7214 = vmatpush.msra.mxu0 %v5748
    %7215 = vmatpush.msra.mxu0 %v5744
    %7216 = vmatpush.msra.mxu0 %v5740
    %7217 = vmatpush.msra.mxu0 %v5736
    %7218 = vmatpush.msra.mxu0 %v5732
    %7219 = vmatpush.msra.mxu0 %v5728
    %7220 = vmatpush.msra.mxu0 %v5724
    %7221 = vmatpush.msra.mxu0 %v5720
    %7222 = vmatpush.msra.mxu0 %v5716
    %7223 = vmatpush.msra.mxu0 %v5712
    %7224 = vmatpush.msra.mxu0 %v5708
    %7225 = vmatpush.msra.mxu0 %v5704
    %7226 = vmatmul.f32.gmra.mxu0 %v7166
    %v7227 = vpop.f32.mrf.mxu0
    %v7228 = vadd.f32 %v5987, %v7227
    %7229 = vdwg.mxu0
    %7230 = vmatpush.msra.mxu0 %v5828
    %7231 = vmatpush.msra.mxu0 %v5824
    %7232 = vmatpush.msra.mxu0 %v5820
    %7233 = vmatpush.msra.mxu0 %v5816
    %7234 = vmatpush.msra.mxu0 %v5812
    %7235 = vmatpush.msra.mxu0 %v5808
    %7236 = vmatpush.msra.mxu0 %v5804
    %7237 = vmatpush.msra.mxu0 %v5800
    %7238 = vmatpush.msra.mxu0 %v5796
    %7239 = vmatpush.msra.mxu0 %v5792
    %7240 = vmatpush.msra.mxu0 %v5788
    %7241 = vmatpush.msra.mxu0 %v5784
    %7242 = vmatpush.msra.mxu0 %v5780
    %7243 = vmatpush.msra.mxu0 %v5776
    %7244 = vmatpush.msra.mxu0 %v5772
    %7245 = vmatpush.msra.mxu0 %v5768
    %7246 = vmatmul.f32.gmra.mxu0 %v7167
    %v7247 = vpop.f32.mrf.mxu0
    %v7248 = vadd.f32 %v7228, %v7247
    %7249 = vdwg.mxu0
    %7250 = vmatpush.msra.mxu0 %v5765
    %7251 = vmatpush.msra.mxu0 %v5761
    %7252 = vmatpush.msra.mxu0 %v5757
    %7253 = vmatpush.msra.mxu0 %v5753
    %7254 = vmatpush.msra.mxu0 %v5749
    %7255 = vmatpush.msra.mxu0 %v5745
    %7256 = vmatpush.msra.mxu0 %v5741
    %7257 = vmatpush.msra.mxu0 %v5737
    %7258 = vmatpush.msra.mxu0 %v5733
    %7259 = vmatpush.msra.mxu0 %v5729
    %7260 = vmatpush.msra.mxu0 %v5725
    %7261 = vmatpush.msra.mxu0 %v5721
    %7262 = vmatpush.msra.mxu0 %v5717
    %7263 = vmatpush.msra.mxu0 %v5713
    %7264 = vmatpush.msra.mxu0 %v5709
    %7265 = vmatpush.msra.mxu0 %v5705
    %7266 = vmatmul.f32.gmra.mxu0 %v7166
    %v7267 = vpop.f32.mrf.mxu0
    %v7268 = vadd.f32 %v5988, %v7267
    %7269 = vdwg.mxu0
    %7270 = vmatpush.msra.mxu0 %v5829
    %7271 = vmatpush.msra.mxu0 %v5825
    %7272 = vmatpush.msra.mxu0 %v5821
    %7273 = vmatpush.msra.mxu0 %v5817
    %7274 = vmatpush.msra.mxu0 %v5813
    %7275 = vmatpush.msra.mxu0 %v5809
    %7276 = vmatpush.msra.mxu0 %v5805
    %7277 = vmatpush.msra.mxu0 %v5801
    %7278 = vmatpush.msra.mxu0 %v5797
    %7279 = vmatpush.msra.mxu0 %v5793
    %7280 = vmatpush.msra.mxu0 %v5789
    %7281 = vmatpush.msra.mxu0 %v5785
    %7282 = vmatpush.msra.mxu0 %v5781
    %7283 = vmatpush.msra.mxu0 %v5777
    %7284 = vmatpush.msra.mxu0 %v5773
    %7285 = vmatpush.msra.mxu0 %v5769
    %7286 = vmatmul.f32.gmra.mxu0 %v7167
    %v7287 = vpop.f32.mrf.mxu0
    %v7288 = vadd.f32 %v7268, %v7287
    %7289 = vdwg.mxu0
    %7290 = vmatpush.msra.mxu0 %v5766
    %7291 = vmatpush.msra.mxu0 %v5762
    %7292 = vmatpush.msra.mxu0 %v5758
    %7293 = vmatpush.msra.mxu0 %v5754
    %7294 = vmatpush.msra.mxu0 %v5750
    %7295 = vmatpush.msra.mxu0 %v5746
    %7296 = vmatpush.msra.mxu0 %v5742
    %7297 = vmatpush.msra.mxu0 %v5738
    %7298 = vmatpush.msra.mxu0 %v5734
    %7299 = vmatpush.msra.mxu0 %v5730
    %7300 = vmatpush.msra.mxu0 %v5726
    %7301 = vmatpush.msra.mxu0 %v5722
    %7302 = vmatpush.msra.mxu0 %v5718
    %7303 = vmatpush.msra.mxu0 %v5714
    %7304 = vmatpush.msra.mxu0 %v5710
    %7305 = vmatpush.msra.mxu0 %v5706
    %7306 = vmatmul.f32.gmra.mxu0 %v7166
    %v7307 = vpop.f32.mrf.mxu0
    %v7308 = vadd.f32 %v5989, %v7307
    %7309 = vdwg.mxu0
    %7310 = vmatpush.msra.mxu0 %v5830
    %7311 = vmatpush.msra.mxu0 %v5826
    %7312 = vmatpush.msra.mxu0 %v5822
    %7313 = vmatpush.msra.mxu0 %v5818
    %7314 = vmatpush.msra.mxu0 %v5814
    %7315 = vmatpush.msra.mxu0 %v5810
    %7316 = vmatpush.msra.mxu0 %v5806
    %7317 = vmatpush.msra.mxu0 %v5802
    %7318 = vmatpush.msra.mxu0 %v5798
    %7319 = vmatpush.msra.mxu0 %v5794
    %7320 = vmatpush.msra.mxu0 %v5790
    %7321 = vmatpush.msra.mxu0 %v5786
    %7322 = vmatpush.msra.mxu0 %v5782
    %7323 = vmatpush.msra.mxu0 %v5778
    %7324 = vmatpush.msra.mxu0 %v5774
    %7325 = vmatpush.msra.mxu0 %v5770
    %7326 = vmatmul.f32.gmra.mxu0 %v7167
    %v7327 = vpop.f32.mrf.mxu0
    %v7328 = vadd.f32 %v7308, %v7327
    %7329 = vdwg.mxu0
    %v7330 = vxor.u32 %v7208, 2147483648
    %v7331 = vmul.f32 %v7330, 1.442695
    %v7332 = vpow.pop %v7331
    %v7333 = vadd.f32 %v7332, 1.0
    %v7334 = vrcp.pop %v7333
    %v7335 = vmul.f32 %v7333, %v7334
    %v7336 = vsub.f32 1.0, %v7335
    %v7337 = vmul.f32 %v7334, %v7336
    %v7338 = vadd.f32 %v7334, %v7337
    %vm7339 = vweird.f32 %v7333
    %vm7340 = vweird.f32 %v7334
    %vm7341 = vmor %vm7339, %vm7340
    %v7342 = vsel %vm7341, %v7334, %v7338
    %v7343 = vand.u32 2147483647, %v7333
    %vm7344 = vcmp.eq.f32.partialorder %v7343, 8.507059e+37
    %v7345 = vand.u32 %v7333, 2147483648
    %v7346 = vor.u32 1.1754944e-38, %v7345
    %v7347 = vsel %vm7344, %v7346, %v7342
    %v7348 = vmul.f32 1.0, %v7347
    %v7349 = vxor.u32 %v7248, 2147483648
    %v7350 = vmul.f32 %v7349, 1.442695
    %v7351 = vpow.pop %v7350
    %v7352 = vadd.f32 %v7351, 1.0
    %v7353 = vrcp.pop %v7352
    %v7354 = vmul.f32 %v7352, %v7353
    %v7355 = vsub.f32 1.0, %v7354
    %v7356 = vmul.f32 %v7353, %v7355
    %v7357 = vadd.f32 %v7353, %v7356
    %vm7358 = vweird.f32 %v7352
    %vm7359 = vweird.f32 %v7353
    %vm7360 = vmor %vm7358, %vm7359
    %v7361 = vsel %vm7360, %v7353, %v7357
    %v7362 = vand.u32 2147483647, %v7352
    %vm7363 = vcmp.eq.f32.partialorder %v7362, 8.507059e+37
    %v7364 = vand.u32 %v7352, 2147483648
    %v7365 = vor.u32 1.1754944e-38, %v7364
    %v7366 = vsel %vm7363, %v7365, %v7361
    %v7367 = vmul.f32 1.0, %v7366
    %v7368 = vtanh.pop %v7288
    %v7369 = vxor.u32 %v7328, 2147483648
    %v7370 = vmul.f32 %v7369, 1.442695
    %v7371 = vpow.pop %v7370
    %v7372 = vadd.f32 %v7371, 1.0
    %v7373 = vrcp.pop %v7372
    %v7374 = vmul.f32 %v7372, %v7373
    %v7375 = vsub.f32 1.0, %v7374
    %v7376 = vmul.f32 %v7373, %v7375
    %v7377 = vadd.f32 %v7373, %v7376
    %vm7378 = vweird.f32 %v7372
    %vm7379 = vweird.f32 %v7373
    %vm7380 = vmor %vm7378, %vm7379
    %v7381 = vsel %vm7380, %v7373, %v7377
    %v7382 = vand.u32 2147483647, %v7372
    %vm7383 = vcmp.eq.f32.partialorder %v7382, 8.507059e+37
    %v7384 = vand.u32 %v7372, 2147483648
    %v7385 = vor.u32 1.1754944e-38, %v7384
    %v7386 = vsel %vm7383, %v7385, %v7381
    %v7387 = vmul.f32 1.0, %v7386
    %v7388 = vmul.f32 %v7367, %v6998
    %v7389 = vmul.f32 %v7348, %v7368
    %v7390 = vadd.f32 %v7388, %v7389
    %v7391 = vtanh.pop %v7390
    %v7392 = vmul.f32 %v7387, %v7391
    %7393 = vmatpush.msra.mxu0 %v5699
    %7394 = vmatpush.msra.mxu0 %v5695
    %7395 = vmatpush.msra.mxu0 %v5691
    %7396 = vmatpush.msra.mxu0 %v5687
    %7397 = vmatpush.msra.mxu0 %v5683
    %7398 = vmatpush.msra.mxu0 %v5679
    %7399 = vmatpush.msra.mxu0 %v5675
    %7400 = vmatpush.msra.mxu0 %v5671
    %7401 = vmatpush.msra.mxu0 %v5667
    %7402 = vmatpush.msra.mxu0 %v5663
    %7403 = vmatpush.msra.mxu0 %v5659
    %7404 = vmatpush.msra.mxu0 %v5655
    %7405 = vmatpush.msra.mxu0 %v5651
    %7406 = vmatpush.msra.mxu0 %v5647
    %7407 = vmatpush.msra.mxu0 %v5643
    %7408 = vmatpush.msra.mxu0 %v5639
    %7409 = vmatmul.f32.gmra.mxu0 %v7166
    %v7410 = vpop.f32.mrf.mxu0
    %v7411 = vadd.f32 0.0, %v7410
    %7412 = vdwg.mxu0
    %7413 = vmatpush.msra.mxu0 %v5700
    %7414 = vmatpush.msra.mxu0 %v5696
    %7415 = vmatpush.msra.mxu0 %v5692
    %7416 = vmatpush.msra.mxu0 %v5688
    %7417 = vmatpush.msra.mxu0 %v5684
    %7418 = vmatpush.msra.mxu0 %v5680
    %7419 = vmatpush.msra.mxu0 %v5676
    %7420 = vmatpush.msra.mxu0 %v5672
    %7421 = vmatpush.msra.mxu0 %v5668
    %7422 = vmatpush.msra.mxu0 %v5664
    %7423 = vmatpush.msra.mxu0 %v5660
    %7424 = vmatpush.msra.mxu0 %v5656
    %7425 = vmatpush.msra.mxu0 %v5652
    %7426 = vmatpush.msra.mxu0 %v5648
    %7427 = vmatpush.msra.mxu0 %v5644
    %7428 = vmatpush.msra.mxu0 %v5640
    %7429 = vmatmul.f32.gmra.mxu0 %v7166
    %v7430 = vpop.f32.mrf.mxu0
    %v7431 = vadd.f32 0.0, %v7430
    %7432 = vdwg.mxu0
    %7433 = vmatpush.msra.mxu0 %v5701
    %7434 = vmatpush.msra.mxu0 %v5697
    %7435 = vmatpush.msra.mxu0 %v5693
    %7436 = vmatpush.msra.mxu0 %v5689
    %7437 = vmatpush.msra.mxu0 %v5685
    %7438 = vmatpush.msra.mxu0 %v5681
    %7439 = vmatpush.msra.mxu0 %v5677
    %7440 = vmatpush.msra.mxu0 %v5673
    %7441 = vmatpush.msra.mxu0 %v5669
    %7442 = vmatpush.msra.mxu0 %v5665
    %7443 = vmatpush.msra.mxu0 %v5661
    %7444 = vmatpush.msra.mxu0 %v5657
    %7445 = vmatpush.msra.mxu0 %v5653
    %7446 = vmatpush.msra.mxu0 %v5649
    %7447 = vmatpush.msra.mxu0 %v5645
    %7448 = vmatpush.msra.mxu0 %v5641
    %7449 = vmatmul.f32.gmra.mxu0 %v7166
    %v7450 = vpop.f32.mrf.mxu0
    %v7451 = vadd.f32 0.0, %v7450
    %7452 = vdwg.mxu0
    %7453 = vmatpush.msra.mxu0 %v5702
    %7454 = vmatpush.msra.mxu0 %v5698
    %7455 = vmatpush.msra.mxu0 %v5694
    %7456 = vmatpush.msra.mxu0 %v5690
    %7457 = vmatpush.msra.mxu0 %v5686
    %7458 = vmatpush.msra.mxu0 %v5682
    %7459 = vmatpush.msra.mxu0 %v5678
    %7460 = vmatpush.msra.mxu0 %v5674
    %7461 = vmatpush.msra.mxu0 %v5670
    %7462 = vmatpush.msra.mxu0 %v5666
    %7463 = vmatpush.msra.mxu0 %v5662
    %7464 = vmatpush.msra.mxu0 %v5658
    %7465 = vmatpush.msra.mxu0 %v5654
    %7466 = vmatpush.msra.mxu0 %v5650
    %7467 = vmatpush.msra.mxu0 %v5646
    %7468 = vmatpush.msra.mxu0 %v5642
    %7469 = vmatmul.f32.gmra.mxu0 %v7166
    %v7470 = vpop.f32.mrf.mxu0
    %v7471 = vadd.f32 0.0, %v7470
    %7472 = vdwg.mxu0
    %v7473 = vadd.f32 %v5568, %v7411
    %v7474 = vadd.f32 %v5591, %v7431
    %v7475 = vadd.f32 %v5614, %v7451
    %v7476 = vadd.f32 %v5637, %v7471
    %v7477 = vxor.u32 %v7473, 2147483648
    %v7478 = vmul.f32 %v7477, 1.442695
    %v7479 = vpow.pop %v7478
    %v7480 = vadd.f32 %v7479, 1.0
    %v7481 = vrcp.pop %v7480
    %v7482 = vmul.f32 %v7480, %v7481
    %v7483 = vsub.f32 1.0, %v7482
    %v7484 = vmul.f32 %v7481, %v7483
    %v7485 = vadd.f32 %v7481, %v7484
    %vm7486 = vweird.f32 %v7480
    %vm7487 = vweird.f32 %v7481
    %vm7488 = vmor %vm7486, %vm7487
    %v7489 = vsel %vm7488, %v7481, %v7485
    %v7490 = vand.u32 2147483647, %v7480
    %vm7491 = vcmp.eq.f32.partialorder %v7490, 8.507059e+37
    %v7492 = vand.u32 %v7480, 2147483648
    %v7493 = vor.u32 1.1754944e-38, %v7492
    %v7494 = vsel %vm7491, %v7493, %v7489
    %v7495 = vmul.f32 1.0, %v7494
    %v7496 = vxor.u32 %v7474, 2147483648
    %v7497 = vmul.f32 %v7496, 1.442695
    %v7498 = vpow.pop %v7497
    %v7499 = vadd.f32 %v7498, 1.0
    %v7500 = vrcp.pop %v7499
    %v7501 = vmul.f32 %v7499, %v7500
    %v7502 = vsub.f32 1.0, %v7501
    %v7503 = vmul.f32 %v7500, %v7502
    %v7504 = vadd.f32 %v7500, %v7503
    %vm7505 = vweird.f32 %v7499
    %vm7506 = vweird.f32 %v7500
    %vm7507 = vmor %vm7505, %vm7506
    %v7508 = vsel %vm7507, %v7500, %v7504
    %v7509 = vand.u32 2147483647, %v7499
    %vm7510 = vcmp.eq.f32.partialorder %v7509, 8.507059e+37
    %v7511 = vand.u32 %v7499, 2147483648
    %v7512 = vor.u32 1.1754944e-38, %v7511
    %v7513 = vsel %vm7510, %v7512, %v7508
    %v7514 = vmul.f32 1.0, %v7513
    %v7515 = vtanh.pop %v7475
    %v7516 = vxor.u32 %v7476, 2147483648
    %v7517 = vmul.f32 %v7516, 1.442695
    %v7518 = vpow.pop %v7517
    %v7519 = vadd.f32 %v7518, 1.0
    %v7520 = vrcp.pop %v7519
    %v7521 = vmul.f32 %v7519, %v7520
    %v7522 = vsub.f32 1.0, %v7521
    %v7523 = vmul.f32 %v7520, %v7522
    %v7524 = vadd.f32 %v7520, %v7523
    %vm7525 = vweird.f32 %v7519
    %vm7526 = vweird.f32 %v7520
    %vm7527 = vmor %vm7525, %vm7526
    %v7528 = vsel %vm7527, %v7520, %v7524
    %v7529 = vand.u32 2147483647, %v7519
    %vm7530 = vcmp.eq.f32.partialorder %v7529, 8.507059e+37
    %v7531 = vand.u32 %v7519, 2147483648
    %v7532 = vor.u32 1.1754944e-38, %v7531
    %v7533 = vsel %vm7530, %v7532, %v7528
    %v7534 = vmul.f32 1.0, %v7533
    %v7536 = vrot.slane %v7160, 6
    %v7538 = vmul.f32 %v7514, %v7536
    %v7539 = vmul.f32 %v7495, %v7515
    %v7540 = vadd.f32 %v7538, %v7539
    %v7541 = vtanh.pop %v7540
    %v7542 = vmul.f32 %v7534, %v7541
    %7543 = vmatpush.msra.mxu0 %v5763
    %7544 = vmatpush.msra.mxu0 %v5759
    %7545 = vmatpush.msra.mxu0 %v5755
    %7546 = vmatpush.msra.mxu0 %v5751
    %7547 = vmatpush.msra.mxu0 %v5747
    %7548 = vmatpush.msra.mxu0 %v5743
    %7549 = vmatpush.msra.mxu0 %v5739
    %7550 = vmatpush.msra.mxu0 %v5735
    %7551 = vmatpush.msra.mxu0 %v5731
    %7552 = vmatpush.msra.mxu0 %v5727
    %7553 = vmatpush.msra.mxu0 %v5723
    %7554 = vmatpush.msra.mxu0 %v5719
    %7555 = vmatpush.msra.mxu0 %v5715
    %7556 = vmatpush.msra.mxu0 %v5711
    %7557 = vmatpush.msra.mxu0 %v5707
    %7558 = vmatpush.msra.mxu0 %v5703
    %7559 = vmatmul.f32.gmra.mxu0 %v7542
    %v7560 = vpop.f32.mrf.mxu0
    %v7561 = vadd.f32 %v5986, %v7560
    %7562 = vdwg.mxu0
    %7563 = vmatpush.msra.mxu0 %v5827
    %7564 = vmatpush.msra.mxu0 %v5823
    %7565 = vmatpush.msra.mxu0 %v5819
    %7566 = vmatpush.msra.mxu0 %v5815
    %7567 = vmatpush.msra.mxu0 %v5811
    %7568 = vmatpush.msra.mxu0 %v5807
    %7569 = vmatpush.msra.mxu0 %v5803
    %7570 = vmatpush.msra.mxu0 %v5799
    %7571 = vmatpush.msra.mxu0 %v5795
    %7572 = vmatpush.msra.mxu0 %v5791
    %7573 = vmatpush.msra.mxu0 %v5787
    %7574 = vmatpush.msra.mxu0 %v5783
    %7575 = vmatpush.msra.mxu0 %v5779
    %7576 = vmatpush.msra.mxu0 %v5775
    %7577 = vmatpush.msra.mxu0 %v5771
    %7578 = vmatpush.msra.mxu0 %v5767
    %7579 = vmatmul.f32.gmra.mxu0 %v7392
    %v7580 = vpop.f32.mrf.mxu0
    %v7581 = vadd.f32 %v7561, %v7580
    %7582 = vdwg.mxu0
    %7583 = vmatpush.msra.mxu0 %v5764
    %7584 = vmatpush.msra.mxu0 %v5760
    %7585 = vmatpush.msra.mxu0 %v5756
    %7586 = vmatpush.msra.mxu0 %v5752
    %7587 = vmatpush.msra.mxu0 %v5748
    %7588 = vmatpush.msra.mxu0 %v5744
    %7589 = vmatpush.msra.mxu0 %v5740
    %7590 = vmatpush.msra.mxu0 %v5736
    %7591 = vmatpush.msra.mxu0 %v5732
    %7592 = vmatpush.msra.mxu0 %v5728
    %7593 = vmatpush.msra.mxu0 %v5724
    %7594 = vmatpush.msra.mxu0 %v5720
    %7595 = vmatpush.msra.mxu0 %v5716
    %7596 = vmatpush.msra.mxu0 %v5712
    %7597 = vmatpush.msra.mxu0 %v5708
    %7598 = vmatpush.msra.mxu0 %v5704
    %7599 = vmatmul.f32.gmra.mxu0 %v7542
    %v7600 = vpop.f32.mrf.mxu0
    %v7601 = vadd.f32 %v5987, %v7600
    %7602 = vdwg.mxu0
    %7603 = vmatpush.msra.mxu0 %v5828
    %7604 = vmatpush.msra.mxu0 %v5824
    %7605 = vmatpush.msra.mxu0 %v5820
    %7606 = vmatpush.msra.mxu0 %v5816
    %7607 = vmatpush.msra.mxu0 %v5812
    %7608 = vmatpush.msra.mxu0 %v5808
    %7609 = vmatpush.msra.mxu0 %v5804
    %7610 = vmatpush.msra.mxu0 %v5800
    %7611 = vmatpush.msra.mxu0 %v5796
    %7612 = vmatpush.msra.mxu0 %v5792
    %7613 = vmatpush.msra.mxu0 %v5788
    %7614 = vmatpush.msra.mxu0 %v5784
    %7615 = vmatpush.msra.mxu0 %v5780
    %7616 = vmatpush.msra.mxu0 %v5776
    %7617 = vmatpush.msra.mxu0 %v5772
    %7618 = vmatpush.msra.mxu0 %v5768
    %7619 = vmatmul.f32.gmra.mxu0 %v7392
    %v7620 = vpop.f32.mrf.mxu0
    %v7621 = vadd.f32 %v7601, %v7620
    %7622 = vdwg.mxu0
    %7623 = vmatpush.msra.mxu0 %v5765
    %7624 = vmatpush.msra.mxu0 %v5761
    %7625 = vmatpush.msra.mxu0 %v5757
    %7626 = vmatpush.msra.mxu0 %v5753
    %7627 = vmatpush.msra.mxu0 %v5749
    %7628 = vmatpush.msra.mxu0 %v5745
    %7629 = vmatpush.msra.mxu0 %v5741
    %7630 = vmatpush.msra.mxu0 %v5737
    %7631 = vmatpush.msra.mxu0 %v5733
    %7632 = vmatpush.msra.mxu0 %v5729
    %7633 = vmatpush.msra.mxu0 %v5725
    %7634 = vmatpush.msra.mxu0 %v5721
    %7635 = vmatpush.msra.mxu0 %v5717
    %7636 = vmatpush.msra.mxu0 %v5713
    %7637 = vmatpush.msra.mxu0 %v5709
    %7638 = vmatpush.msra.mxu0 %v5705
    %7639 = vmatmul.f32.gmra.mxu0 %v7542
    %v7640 = vpop.f32.mrf.mxu0
    %v7641 = vadd.f32 %v5988, %v7640
    %7642 = vdwg.mxu0
    %7643 = vmatpush.msra.mxu0 %v5829
    %7644 = vmatpush.msra.mxu0 %v5825
    %7645 = vmatpush.msra.mxu0 %v5821
    %7646 = vmatpush.msra.mxu0 %v5817
    %7647 = vmatpush.msra.mxu0 %v5813
    %7648 = vmatpush.msra.mxu0 %v5809
    %7649 = vmatpush.msra.mxu0 %v5805
    %7650 = vmatpush.msra.mxu0 %v5801
    %7651 = vmatpush.msra.mxu0 %v5797
    %7652 = vmatpush.msra.mxu0 %v5793
    %7653 = vmatpush.msra.mxu0 %v5789
    %7654 = vmatpush.msra.mxu0 %v5785
    %7655 = vmatpush.msra.mxu0 %v5781
    %7656 = vmatpush.msra.mxu0 %v5777
    %7657 = vmatpush.msra.mxu0 %v5773
    %7658 = vmatpush.msra.mxu0 %v5769
    %7659 = vmatmul.f32.gmra.mxu0 %v7392
    %v7660 = vpop.f32.mrf.mxu0
    %v7661 = vadd.f32 %v7641, %v7660
    %7662 = vdwg.mxu0
    %7663 = vmatpush.msra.mxu0 %v5766
    %7664 = vmatpush.msra.mxu0 %v5762
    %7665 = vmatpush.msra.mxu0 %v5758
    %7666 = vmatpush.msra.mxu0 %v5754
    %7667 = vmatpush.msra.mxu0 %v5750
    %7668 = vmatpush.msra.mxu0 %v5746
    %7669 = vmatpush.msra.mxu0 %v5742
    %7670 = vmatpush.msra.mxu0 %v5738
    %7671 = vmatpush.msra.mxu0 %v5734
    %7672 = vmatpush.msra.mxu0 %v5730
    %7673 = vmatpush.msra.mxu0 %v5726
    %7674 = vmatpush.msra.mxu0 %v5722
    %7675 = vmatpush.msra.mxu0 %v5718
    %7676 = vmatpush.msra.mxu0 %v5714
    %7677 = vmatpush.msra.mxu0 %v5710
    %7678 = vmatpush.msra.mxu0 %v5706
    %7679 = vmatmul.f32.gmra.mxu0 %v7542
    %v7680 = vpop.f32.mrf.mxu0
    %v7681 = vadd.f32 %v5989, %v7680
    %7682 = vdwg.mxu0
    %7683 = vmatpush.msra.mxu0 %v5830
    %7684 = vmatpush.msra.mxu0 %v5826
    %7685 = vmatpush.msra.mxu0 %v5822
    %7686 = vmatpush.msra.mxu0 %v5818
    %7687 = vmatpush.msra.mxu0 %v5814
    %7688 = vmatpush.msra.mxu0 %v5810
    %7689 = vmatpush.msra.mxu0 %v5806
    %7690 = vmatpush.msra.mxu0 %v5802
    %7691 = vmatpush.msra.mxu0 %v5798
    %7692 = vmatpush.msra.mxu0 %v5794
    %7693 = vmatpush.msra.mxu0 %v5790
    %7694 = vmatpush.msra.mxu0 %v5786
    %7695 = vmatpush.msra.mxu0 %v5782
    %7696 = vmatpush.msra.mxu0 %v5778
    %7697 = vmatpush.msra.mxu0 %v5774
    %7698 = vmatpush.msra.mxu0 %v5770
    %7699 = vmatmul.f32.gmra.mxu0 %v7392
    %v7700 = vpop.f32.mrf.mxu0
    %v7701 = vadd.f32 %v7681, %v7700
    %7702 = vdwg.mxu0
    %v7703 = vxor.u32 %v7581, 2147483648
    %v7704 = vmul.f32 %v7703, 1.442695
    %v7705 = vpow.pop %v7704
    %v7706 = vadd.f32 %v7705, 1.0
    %v7707 = vrcp.pop %v7706
    %v7708 = vmul.f32 %v7706, %v7707
    %v7709 = vsub.f32 1.0, %v7708
    %v7710 = vmul.f32 %v7707, %v7709
    %v7711 = vadd.f32 %v7707, %v7710
    %vm7712 = vweird.f32 %v7706
    %vm7713 = vweird.f32 %v7707
    %vm7714 = vmor %vm7712, %vm7713
    %v7715 = vsel %vm7714, %v7707, %v7711
    %v7716 = vand.u32 2147483647, %v7706
    %vm7717 = vcmp.eq.f32.partialorder %v7716, 8.507059e+37
    %v7718 = vand.u32 %v7706, 2147483648
    %v7719 = vor.u32 1.1754944e-38, %v7718
    %v7720 = vsel %vm7717, %v7719, %v7715
    %v7721 = vmul.f32 1.0, %v7720
    %v7722 = vxor.u32 %v7621, 2147483648
    %v7723 = vmul.f32 %v7722, 1.442695
    %v7724 = vpow.pop %v7723
    %v7725 = vadd.f32 %v7724, 1.0
    %v7726 = vrcp.pop %v7725
    %v7727 = vmul.f32 %v7725, %v7726
    %v7728 = vsub.f32 1.0, %v7727
    %v7729 = vmul.f32 %v7726, %v7728
    %v7730 = vadd.f32 %v7726, %v7729
    %vm7731 = vweird.f32 %v7725
    %vm7732 = vweird.f32 %v7726
    %vm7733 = vmor %vm7731, %vm7732
    %v7734 = vsel %vm7733, %v7726, %v7730
    %v7735 = vand.u32 2147483647, %v7725
    %vm7736 = vcmp.eq.f32.partialorder %v7735, 8.507059e+37
    %v7737 = vand.u32 %v7725, 2147483648
    %v7738 = vor.u32 1.1754944e-38, %v7737
    %v7739 = vsel %vm7736, %v7738, %v7734
    %v7740 = vmul.f32 1.0, %v7739
    %v7741 = vtanh.pop %v7661
    %v7742 = vxor.u32 %v7701, 2147483648
    %v7743 = vmul.f32 %v7742, 1.442695
    %v7744 = vpow.pop %v7743
    %v7745 = vadd.f32 %v7744, 1.0
    %v7746 = vrcp.pop %v7745
    %v7747 = vmul.f32 %v7745, %v7746
    %v7748 = vsub.f32 1.0, %v7747
    %v7749 = vmul.f32 %v7746, %v7748
    %v7750 = vadd.f32 %v7746, %v7749
    %vm7751 = vweird.f32 %v7745
    %vm7752 = vweird.f32 %v7746
    %vm7753 = vmor %vm7751, %vm7752
    %v7754 = vsel %vm7753, %v7746, %v7750
    %v7755 = vand.u32 2147483647, %v7745
    %vm7756 = vcmp.eq.f32.partialorder %v7755, 8.507059e+37
    %v7757 = vand.u32 %v7745, 2147483648
    %v7758 = vor.u32 1.1754944e-38, %v7757
    %v7759 = vsel %vm7756, %v7758, %v7754
    %v7760 = vmul.f32 1.0, %v7759
    %v7761 = vmul.f32 %v7740, %v7390
    %v7762 = vmul.f32 %v7721, %v7741
    %v7763 = vadd.f32 %v7761, %v7762
    %v7764 = vtanh.pop %v7763
    %v7765 = vmul.f32 %v7760, %v7764
    %7766 = vmatpush.msra.mxu0 %v5699
    %7767 = vmatpush.msra.mxu0 %v5695
    %7768 = vmatpush.msra.mxu0 %v5691
    %7769 = vmatpush.msra.mxu0 %v5687
    %7770 = vmatpush.msra.mxu0 %v5683
    %7771 = vmatpush.msra.mxu0 %v5679
    %7772 = vmatpush.msra.mxu0 %v5675
    %7773 = vmatpush.msra.mxu0 %v5671
    %7774 = vmatpush.msra.mxu0 %v5667
    %7775 = vmatpush.msra.mxu0 %v5663
    %7776 = vmatpush.msra.mxu0 %v5659
    %7777 = vmatpush.msra.mxu0 %v5655
    %7778 = vmatpush.msra.mxu0 %v5651
    %7779 = vmatpush.msra.mxu0 %v5647
    %7780 = vmatpush.msra.mxu0 %v5643
    %7781 = vmatpush.msra.mxu0 %v5639
    %7782 = vmatmul.f32.gmra.mxu0 %v7542
    %v7783 = vpop.f32.mrf.mxu0
    %v7784 = vadd.f32 0.0, %v7783
    %7785 = vdwg.mxu0
    %7786 = vmatpush.msra.mxu0 %v5700
    %7787 = vmatpush.msra.mxu0 %v5696
    %7788 = vmatpush.msra.mxu0 %v5692
    %7789 = vmatpush.msra.mxu0 %v5688
    %7790 = vmatpush.msra.mxu0 %v5684
    %7791 = vmatpush.msra.mxu0 %v5680
    %7792 = vmatpush.msra.mxu0 %v5676
    %7793 = vmatpush.msra.mxu0 %v5672
    %7794 = vmatpush.msra.mxu0 %v5668
    %7795 = vmatpush.msra.mxu0 %v5664
    %7796 = vmatpush.msra.mxu0 %v5660
    %7797 = vmatpush.msra.mxu0 %v5656
    %7798 = vmatpush.msra.mxu0 %v5652
    %7799 = vmatpush.msra.mxu0 %v5648
    %7800 = vmatpush.msra.mxu0 %v5644
    %7801 = vmatpush.msra.mxu0 %v5640
    %7802 = vmatmul.f32.gmra.mxu0 %v7542
    %v7803 = vpop.f32.mrf.mxu0
    %v7804 = vadd.f32 0.0, %v7803
    %7805 = vdwg.mxu0
    %7806 = vmatpush.msra.mxu0 %v5701
    %7807 = vmatpush.msra.mxu0 %v5697
    %7808 = vmatpush.msra.mxu0 %v5693
    %7809 = vmatpush.msra.mxu0 %v5689
    %7810 = vmatpush.msra.mxu0 %v5685
    %7811 = vmatpush.msra.mxu0 %v5681
    %7812 = vmatpush.msra.mxu0 %v5677
    %7813 = vmatpush.msra.mxu0 %v5673
    %7814 = vmatpush.msra.mxu0 %v5669
    %7815 = vmatpush.msra.mxu0 %v5665
    %7816 = vmatpush.msra.mxu0 %v5661
    %7817 = vmatpush.msra.mxu0 %v5657
    %7818 = vmatpush.msra.mxu0 %v5653
    %7819 = vmatpush.msra.mxu0 %v5649
    %7820 = vmatpush.msra.mxu0 %v5645
    %7821 = vmatpush.msra.mxu0 %v5641
    %7822 = vmatmul.f32.gmra.mxu0 %v7542
    %v7823 = vpop.f32.mrf.mxu0
    %v7824 = vadd.f32 0.0, %v7823
    %7825 = vdwg.mxu0
    %7826 = vmatpush.msra.mxu0 %v5702
    %7827 = vmatpush.msra.mxu0 %v5698
    %7828 = vmatpush.msra.mxu0 %v5694
    %7829 = vmatpush.msra.mxu0 %v5690
    %7830 = vmatpush.msra.mxu0 %v5686
    %7831 = vmatpush.msra.mxu0 %v5682
    %7832 = vmatpush.msra.mxu0 %v5678
    %7833 = vmatpush.msra.mxu0 %v5674
    %7834 = vmatpush.msra.mxu0 %v5670
    %7835 = vmatpush.msra.mxu0 %v5666
    %7836 = vmatpush.msra.mxu0 %v5662
    %7837 = vmatpush.msra.mxu0 %v5658
    %7838 = vmatpush.msra.mxu0 %v5654
    %7839 = vmatpush.msra.mxu0 %v5650
    %7840 = vmatpush.msra.mxu0 %v5646
    %7841 = vmatpush.msra.mxu0 %v5642
    %7842 = vmatmul.f32.gmra.mxu0 %v7542
    %v7843 = vpop.f32.mrf.mxu0
    %v7844 = vadd.f32 0.0, %v7843
    %7845 = vdwg.mxu0
    %v7850 = vrot.slane %v7784, 6
    %v7851 = vrot.slane %v7804, 6
    %v7852 = vrot.slane %v7824, 6
    %v7853 = vrot.slane %v7844, 6
    %v7858 = vadd.f32 %v5568, %v7850
    %v7859 = vadd.f32 %v5591, %v7851
    %v7860 = vadd.f32 %v5614, %v7852
    %v7861 = vadd.f32 %v5637, %v7853
    %v7862 = vxor.u32 %v7858, 2147483648
    %v7863 = vmul.f32 %v7862, 1.442695
    %v7864 = vpow.pop %v7863
    %v7865 = vadd.f32 %v7864, 1.0
    %v7866 = vrcp.pop %v7865
    %v7867 = vmul.f32 %v7865, %v7866
    %v7868 = vsub.f32 1.0, %v7867
    %v7869 = vmul.f32 %v7866, %v7868
    %v7870 = vadd.f32 %v7866, %v7869
    %vm7871 = vweird.f32 %v7865
    %vm7872 = vweird.f32 %v7866
    %vm7873 = vmor %vm7871, %vm7872
    %v7874 = vsel %vm7873, %v7866, %v7870
    %v7875 = vand.u32 2147483647, %v7865
    %vm7876 = vcmp.eq.f32.partialorder %v7875, 8.507059e+37
    %v7877 = vand.u32 %v7865, 2147483648
    %v7878 = vor.u32 1.1754944e-38, %v7877
    %v7879 = vsel %vm7876, %v7878, %v7874
    %v7880 = vmul.f32 1.0, %v7879
    %v7881 = vxor.u32 %v7859, 2147483648
    %v7882 = vmul.f32 %v7881, 1.442695
    %v7883 = vpow.pop %v7882
    %v7884 = vadd.f32 %v7883, 1.0
    %v7885 = vrcp.pop %v7884
    %v7886 = vmul.f32 %v7884, %v7885
    %v7887 = vsub.f32 1.0, %v7886
    %v7888 = vmul.f32 %v7885, %v7887
    %v7889 = vadd.f32 %v7885, %v7888
    %vm7890 = vweird.f32 %v7884
    %vm7891 = vweird.f32 %v7885
    %vm7892 = vmor %vm7890, %vm7891
    %v7893 = vsel %vm7892, %v7885, %v7889
    %v7894 = vand.u32 2147483647, %v7884
    %vm7895 = vcmp.eq.f32.partialorder %v7894, 8.507059e+37
    %v7896 = vand.u32 %v7884, 2147483648
    %v7897 = vor.u32 1.1754944e-38, %v7896
    %v7898 = vsel %vm7895, %v7897, %v7893
    %v7899 = vmul.f32 1.0, %v7898
    %v7900 = vtanh.pop %v7860
    %v7901 = vxor.u32 %v7861, 2147483648
    %v7902 = vmul.f32 %v7901, 1.442695
    %v7903 = vpow.pop %v7902
    %v7904 = vadd.f32 %v7903, 1.0
    %v7905 = vrcp.pop %v7904
    %v7906 = vmul.f32 %v7904, %v7905
    %v7907 = vsub.f32 1.0, %v7906
    %v7908 = vmul.f32 %v7905, %v7907
    %v7909 = vadd.f32 %v7905, %v7908
    %vm7910 = vweird.f32 %v7904
    %vm7911 = vweird.f32 %v7905
    %vm7912 = vmor %vm7910, %vm7911
    %v7913 = vsel %vm7912, %v7905, %v7909
    %v7914 = vand.u32 2147483647, %v7904
    %vm7915 = vcmp.eq.f32.partialorder %v7914, 8.507059e+37
    %v7916 = vand.u32 %v7904, 2147483648
    %v7917 = vor.u32 1.1754944e-38, %v7916
    %v7918 = vsel %vm7915, %v7917, %v7913
    %v7919 = vmul.f32 1.0, %v7918
    %v7921 = vrot.slane %v7540, 6
    %v7923 = vmul.f32 %v7899, %v7921
    %v7924 = vmul.f32 %v7880, %v7900
    %v7925 = vadd.f32 %v7923, %v7924
    %v7926 = vtanh.pop %v7925
    %v7927 = vmul.f32 %v7919, %v7926
    %v7929 = vrot.slane %v7765, 6
    %v7931 = vrot.slane %v7927, 2
    %v7932 = vrot.slane %v7929, 2
    %7935 = vmatpush.msra.mxu0 %v5763
    %7936 = vmatpush.msra.mxu0 %v5759
    %7937 = vmatpush.msra.mxu0 %v5755
    %7938 = vmatpush.msra.mxu0 %v5751
    %7939 = vmatpush.msra.mxu0 %v5747
    %7940 = vmatpush.msra.mxu0 %v5743
    %7941 = vmatpush.msra.mxu0 %v5739
    %7942 = vmatpush.msra.mxu0 %v5735
    %7943 = vmatpush.msra.mxu0 %v5731
    %7944 = vmatpush.msra.mxu0 %v5727
    %7945 = vmatpush.msra.mxu0 %v5723
    %7946 = vmatpush.msra.mxu0 %v5719
    %7947 = vmatpush.msra.mxu0 %v5715
    %7948 = vmatpush.msra.mxu0 %v5711
    %7949 = vmatpush.msra.mxu0 %v5707
    %7950 = vmatpush.msra.mxu0 %v5703
    %7951 = vmatmul.f32.gmra.mxu0 %v7931
    %v7952 = vpop.f32.mrf.mxu0
    %v7953 = vadd.f32 %v5986, %v7952
    %7954 = vdwg.mxu0
    %7955 = vmatpush.msra.mxu0 %v5827
    %7956 = vmatpush.msra.mxu0 %v5823
    %7957 = vmatpush.msra.mxu0 %v5819
    %7958 = vmatpush.msra.mxu0 %v5815
    %7959 = vmatpush.msra.mxu0 %v5811
    %7960 = vmatpush.msra.mxu0 %v5807
    %7961 = vmatpush.msra.mxu0 %v5803
    %7962 = vmatpush.msra.mxu0 %v5799
    %7963 = vmatpush.msra.mxu0 %v5795
    %7964 = vmatpush.msra.mxu0 %v5791
    %7965 = vmatpush.msra.mxu0 %v5787
    %7966 = vmatpush.msra.mxu0 %v5783
    %7967 = vmatpush.msra.mxu0 %v5779
    %7968 = vmatpush.msra.mxu0 %v5775
    %7969 = vmatpush.msra.mxu0 %v5771
    %7970 = vmatpush.msra.mxu0 %v5767
    %7971 = vmatmul.f32.gmra.mxu0 %v7932
    %v7972 = vpop.f32.mrf.mxu0
    %v7973 = vadd.f32 %v7953, %v7972
    %7974 = vdwg.mxu0
    %7975 = vmatpush.msra.mxu0 %v5764
    %7976 = vmatpush.msra.mxu0 %v5760
    %7977 = vmatpush.msra.mxu0 %v5756
    %7978 = vmatpush.msra.mxu0 %v5752
    %7979 = vmatpush.msra.mxu0 %v5748
    %7980 = vmatpush.msra.mxu0 %v5744
    %7981 = vmatpush.msra.mxu0 %v5740
    %7982 = vmatpush.msra.mxu0 %v5736
    %7983 = vmatpush.msra.mxu0 %v5732
    %7984 = vmatpush.msra.mxu0 %v5728
    %7985 = vmatpush.msra.mxu0 %v5724
    %7986 = vmatpush.msra.mxu0 %v5720
    %7987 = vmatpush.msra.mxu0 %v5716
    %7988 = vmatpush.msra.mxu0 %v5712
    %7989 = vmatpush.msra.mxu0 %v5708
    %7990 = vmatpush.msra.mxu0 %v5704
    %7991 = vmatmul.f32.gmra.mxu0 %v7931
    %v7992 = vpop.f32.mrf.mxu0
    %v7993 = vadd.f32 %v5987, %v7992
    %7994 = vdwg.mxu0
    %7995 = vmatpush.msra.mxu0 %v5828
    %7996 = vmatpush.msra.mxu0 %v5824
    %7997 = vmatpush.msra.mxu0 %v5820
    %7998 = vmatpush.msra.mxu0 %v5816
    %7999 = vmatpush.msra.mxu0 %v5812
    %8000 = vmatpush.msra.mxu0 %v5808
    %8001 = vmatpush.msra.mxu0 %v5804
    %8002 = vmatpush.msra.mxu0 %v5800
    %8003 = vmatpush.msra.mxu0 %v5796
    %8004 = vmatpush.msra.mxu0 %v5792
    %8005 = vmatpush.msra.mxu0 %v5788
    %8006 = vmatpush.msra.mxu0 %v5784
    %8007 = vmatpush.msra.mxu0 %v5780
    %8008 = vmatpush.msra.mxu0 %v5776
    %8009 = vmatpush.msra.mxu0 %v5772
    %8010 = vmatpush.msra.mxu0 %v5768
    %8011 = vmatmul.f32.gmra.mxu0 %v7932
    %v8012 = vpop.f32.mrf.mxu0
    %v8013 = vadd.f32 %v7993, %v8012
    %8014 = vdwg.mxu0
    %8015 = vmatpush.msra.mxu0 %v5765
    %8016 = vmatpush.msra.mxu0 %v5761
    %8017 = vmatpush.msra.mxu0 %v5757
    %8018 = vmatpush.msra.mxu0 %v5753
    %8019 = vmatpush.msra.mxu0 %v5749
    %8020 = vmatpush.msra.mxu0 %v5745
    %8021 = vmatpush.msra.mxu0 %v5741
    %8022 = vmatpush.msra.mxu0 %v5737
    %8023 = vmatpush.msra.mxu0 %v5733
    %8024 = vmatpush.msra.mxu0 %v5729
    %8025 = vmatpush.msra.mxu0 %v5725
    %8026 = vmatpush.msra.mxu0 %v5721
    %8027 = vmatpush.msra.mxu0 %v5717
    %8028 = vmatpush.msra.mxu0 %v5713
    %8029 = vmatpush.msra.mxu0 %v5709
    %8030 = vmatpush.msra.mxu0 %v5705
    %8031 = vmatmul.f32.gmra.mxu0 %v7931
    %v8032 = vpop.f32.mrf.mxu0
    %v8033 = vadd.f32 %v5988, %v8032
    %8034 = vdwg.mxu0
    %8035 = vmatpush.msra.mxu0 %v5829
    %8036 = vmatpush.msra.mxu0 %v5825
    %8037 = vmatpush.msra.mxu0 %v5821
    %8038 = vmatpush.msra.mxu0 %v5817
    %8039 = vmatpush.msra.mxu0 %v5813
    %8040 = vmatpush.msra.mxu0 %v5809
    %8041 = vmatpush.msra.mxu0 %v5805
    %8042 = vmatpush.msra.mxu0 %v5801
    %8043 = vmatpush.msra.mxu0 %v5797
    %8044 = vmatpush.msra.mxu0 %v5793
    %8045 = vmatpush.msra.mxu0 %v5789
    %8046 = vmatpush.msra.mxu0 %v5785
    %8047 = vmatpush.msra.mxu0 %v5781
    %8048 = vmatpush.msra.mxu0 %v5777
    %8049 = vmatpush.msra.mxu0 %v5773
    %8050 = vmatpush.msra.mxu0 %v5769
    %8051 = vmatmul.f32.gmra.mxu0 %v7932
    %v8052 = vpop.f32.mrf.mxu0
    %v8053 = vadd.f32 %v8033, %v8052
    %8054 = vdwg.mxu0
    %8055 = vmatpush.msra.mxu0 %v5766
    %8056 = vmatpush.msra.mxu0 %v5762
    %8057 = vmatpush.msra.mxu0 %v5758
    %8058 = vmatpush.msra.mxu0 %v5754
    %8059 = vmatpush.msra.mxu0 %v5750
    %8060 = vmatpush.msra.mxu0 %v5746
    %8061 = vmatpush.msra.mxu0 %v5742
    %8062 = vmatpush.msra.mxu0 %v5738
    %8063 = vmatpush.msra.mxu0 %v5734
    %8064 = vmatpush.msra.mxu0 %v5730
    %8065 = vmatpush.msra.mxu0 %v5726
    %8066 = vmatpush.msra.mxu0 %v5722
    %8067 = vmatpush.msra.mxu0 %v5718
    %8068 = vmatpush.msra.mxu0 %v5714
    %8069 = vmatpush.msra.mxu0 %v5710
    %8070 = vmatpush.msra.mxu0 %v5706
    %8071 = vmatmul.f32.gmra.mxu0 %v7931
    %v8072 = vpop.f32.mrf.mxu0
    %v8073 = vadd.f32 %v5989, %v8072
    %8074 = vdwg.mxu0
    %8075 = vmatpush.msra.mxu0 %v5830
    %8076 = vmatpush.msra.mxu0 %v5826
    %8077 = vmatpush.msra.mxu0 %v5822
    %8078 = vmatpush.msra.mxu0 %v5818
    %8079 = vmatpush.msra.mxu0 %v5814
    %8080 = vmatpush.msra.mxu0 %v5810
    %8081 = vmatpush.msra.mxu0 %v5806
    %8082 = vmatpush.msra.mxu0 %v5802
    %8083 = vmatpush.msra.mxu0 %v5798
    %8084 = vmatpush.msra.mxu0 %v5794
    %8085 = vmatpush.msra.mxu0 %v5790
    %8086 = vmatpush.msra.mxu0 %v5786
    %8087 = vmatpush.msra.mxu0 %v5782
    %8088 = vmatpush.msra.mxu0 %v5778
    %8089 = vmatpush.msra.mxu0 %v5774
    %8090 = vmatpush.msra.mxu0 %v5770
    %8091 = vmatmul.f32.gmra.mxu0 %v7932
    %v8092 = vpop.f32.mrf.mxu0
    %v8093 = vadd.f32 %v8073, %v8092
    %8094 = vdwg.mxu0
    %v8095 = vxor.u32 %v7973, 2147483648
    %v8096 = vmul.f32 %v8095, 1.442695
    %v8097 = vpow.pop %v8096
    %v8098 = vadd.f32 %v8097, 1.0
    %v8099 = vrcp.pop %v8098
    %v8100 = vmul.f32 %v8098, %v8099
    %v8101 = vsub.f32 1.0, %v8100
    %v8102 = vmul.f32 %v8099, %v8101
    %v8103 = vadd.f32 %v8099, %v8102
    %vm8104 = vweird.f32 %v8098
    %vm8105 = vweird.f32 %v8099
    %vm8106 = vmor %vm8104, %vm8105
    %v8107 = vsel %vm8106, %v8099, %v8103
    %v8108 = vand.u32 2147483647, %v8098
    %vm8109 = vcmp.eq.f32.partialorder %v8108, 8.507059e+37
    %v8110 = vand.u32 %v8098, 2147483648
    %v8111 = vor.u32 1.1754944e-38, %v8110
    %v8112 = vsel %vm8109, %v8111, %v8107
    %v8113 = vmul.f32 1.0, %v8112
    %v8114 = vxor.u32 %v8013, 2147483648
    %v8115 = vmul.f32 %v8114, 1.442695
    %v8116 = vpow.pop %v8115
    %v8117 = vadd.f32 %v8116, 1.0
    %v8118 = vrcp.pop %v8117
    %v8119 = vmul.f32 %v8117, %v8118
    %v8120 = vsub.f32 1.0, %v8119
    %v8121 = vmul.f32 %v8118, %v8120
    %v8122 = vadd.f32 %v8118, %v8121
    %vm8123 = vweird.f32 %v8117
    %vm8124 = vweird.f32 %v8118
    %vm8125 = vmor %vm8123, %vm8124
    %v8126 = vsel %vm8125, %v8118, %v8122
    %v8127 = vand.u32 2147483647, %v8117
    %vm8128 = vcmp.eq.f32.partialorder %v8127, 8.507059e+37
    %v8129 = vand.u32 %v8117, 2147483648
    %v8130 = vor.u32 1.1754944e-38, %v8129
    %v8131 = vsel %vm8128, %v8130, %v8126
    %v8132 = vmul.f32 1.0, %v8131
    %v8133 = vtanh.pop %v8053
    %v8134 = vxor.u32 %v8093, 2147483648
    %v8135 = vmul.f32 %v8134, 1.442695
    %v8136 = vpow.pop %v8135
    %v8137 = vadd.f32 %v8136, 1.0
    %v8138 = vrcp.pop %v8137
    %v8139 = vmul.f32 %v8137, %v8138
    %v8140 = vsub.f32 1.0, %v8139
    %v8141 = vmul.f32 %v8138, %v8140
    %v8142 = vadd.f32 %v8138, %v8141
    %vm8143 = vweird.f32 %v8137
    %vm8144 = vweird.f32 %v8138
    %vm8145 = vmor %vm8143, %vm8144
    %v8146 = vsel %vm8145, %v8138, %v8142
    %v8147 = vand.u32 2147483647, %v8137
    %vm8148 = vcmp.eq.f32.partialorder %v8147, 8.507059e+37
    %v8149 = vand.u32 %v8137, 2147483648
    %v8150 = vor.u32 1.1754944e-38, %v8149
    %v8151 = vsel %vm8148, %v8150, %v8146
    %v8152 = vmul.f32 1.0, %v8151
    %v8153 = vmul.f32 %v8132, %v7763
    %v8154 = vmul.f32 %v8113, %v8133
    %v8155 = vadd.f32 %v8153, %v8154
    %v8156 = vtanh.pop %v8155
    %v8157 = vmul.f32 %v8152, %v8156
    %8158 = vmatpush.msra.mxu0 %v5699
    %8159 = vmatpush.msra.mxu0 %v5695
    %8160 = vmatpush.msra.mxu0 %v5691
    %8161 = vmatpush.msra.mxu0 %v5687
    %8162 = vmatpush.msra.mxu0 %v5683
    %8163 = vmatpush.msra.mxu0 %v5679
    %8164 = vmatpush.msra.mxu0 %v5675
    %8165 = vmatpush.msra.mxu0 %v5671
    %8166 = vmatpush.msra.mxu0 %v5667
    %8167 = vmatpush.msra.mxu0 %v5663
    %8168 = vmatpush.msra.mxu0 %v5659
    %8169 = vmatpush.msra.mxu0 %v5655
    %8170 = vmatpush.msra.mxu0 %v5651
    %8171 = vmatpush.msra.mxu0 %v5647
    %8172 = vmatpush.msra.mxu0 %v5643
    %8173 = vmatpush.msra.mxu0 %v5639
    %8174 = vmatmul.f32.gmra.mxu0 %v7931
    %v8175 = vpop.f32.mrf.mxu0
    %v8176 = vadd.f32 0.0, %v8175
    %8177 = vdwg.mxu0
    %8178 = vmatpush.msra.mxu0 %v5700
    %8179 = vmatpush.msra.mxu0 %v5696
    %8180 = vmatpush.msra.mxu0 %v5692
    %8181 = vmatpush.msra.mxu0 %v5688
    %8182 = vmatpush.msra.mxu0 %v5684
    %8183 = vmatpush.msra.mxu0 %v5680
    %8184 = vmatpush.msra.mxu0 %v5676
    %8185 = vmatpush.msra.mxu0 %v5672
    %8186 = vmatpush.msra.mxu0 %v5668
    %8187 = vmatpush.msra.mxu0 %v5664
    %8188 = vmatpush.msra.mxu0 %v5660
    %8189 = vmatpush.msra.mxu0 %v5656
    %8190 = vmatpush.msra.mxu0 %v5652
    %8191 = vmatpush.msra.mxu0 %v5648
    %8192 = vmatpush.msra.mxu0 %v5644
    %8193 = vmatpush.msra.mxu0 %v5640
    %8194 = vmatmul.f32.gmra.mxu0 %v7931
    %v8195 = vpop.f32.mrf.mxu0
    %v8196 = vadd.f32 0.0, %v8195
    %8197 = vdwg.mxu0
    %8198 = vmatpush.msra.mxu0 %v5701
    %8199 = vmatpush.msra.mxu0 %v5697
    %8200 = vmatpush.msra.mxu0 %v5693
    %8201 = vmatpush.msra.mxu0 %v5689
    %8202 = vmatpush.msra.mxu0 %v5685
    %8203 = vmatpush.msra.mxu0 %v5681
    %8204 = vmatpush.msra.mxu0 %v5677
    %8205 = vmatpush.msra.mxu0 %v5673
    %8206 = vmatpush.msra.mxu0 %v5669
    %8207 = vmatpush.msra.mxu0 %v5665
    %8208 = vmatpush.msra.mxu0 %v5661
    %8209 = vmatpush.msra.mxu0 %v5657
    %8210 = vmatpush.msra.mxu0 %v5653
    %8211 = vmatpush.msra.mxu0 %v5649
    %8212 = vmatpush.msra.mxu0 %v5645
    %8213 = vmatpush.msra.mxu0 %v5641
    %8214 = vmatmul.f32.gmra.mxu0 %v7931
    %v8215 = vpop.f32.mrf.mxu0
    %v8216 = vadd.f32 0.0, %v8215
    %8217 = vdwg.mxu0
    %8218 = vmatpush.msra.mxu0 %v5702
    %8219 = vmatpush.msra.mxu0 %v5698
    %8220 = vmatpush.msra.mxu0 %v5694
    %8221 = vmatpush.msra.mxu0 %v5690
    %8222 = vmatpush.msra.mxu0 %v5686
    %8223 = vmatpush.msra.mxu0 %v5682
    %8224 = vmatpush.msra.mxu0 %v5678
    %8225 = vmatpush.msra.mxu0 %v5674
    %8226 = vmatpush.msra.mxu0 %v5670
    %8227 = vmatpush.msra.mxu0 %v5666
    %8228 = vmatpush.msra.mxu0 %v5662
    %8229 = vmatpush.msra.mxu0 %v5658
    %8230 = vmatpush.msra.mxu0 %v5654
    %8231 = vmatpush.msra.mxu0 %v5650
    %8232 = vmatpush.msra.mxu0 %v5646
    %8233 = vmatpush.msra.mxu0 %v5642
    %8234 = vmatmul.f32.gmra.mxu0 %v7931
    %v8235 = vpop.f32.mrf.mxu0
    %v8236 = vadd.f32 0.0, %v8235
    %8237 = vdwg.mxu0
    %v8242 = vrot.slane %v8176, 4
    %v8243 = vrot.slane %v8196, 4
    %v8244 = vrot.slane %v8216, 4
    %v8245 = vrot.slane %v8236, 4
    %v8250 = vadd.f32 %v5568, %v8242
    %v8251 = vadd.f32 %v5591, %v8243
    %v8252 = vadd.f32 %v5614, %v8244
    %v8253 = vadd.f32 %v5637, %v8245
    %v8254 = vxor.u32 %v8250, 2147483648
    %v8255 = vmul.f32 %v8254, 1.442695
    %v8256 = vpow.pop %v8255
    %v8257 = vadd.f32 %v8256, 1.0
    %v8258 = vrcp.pop %v8257
    %v8259 = vmul.f32 %v8257, %v8258
    %v8260 = vsub.f32 1.0, %v8259
    %v8261 = vmul.f32 %v8258, %v8260
    %v8262 = vadd.f32 %v8258, %v8261
    %vm8263 = vweird.f32 %v8257
    %vm8264 = vweird.f32 %v8258
    %vm8265 = vmor %vm8263, %vm8264
    %v8266 = vsel %vm8265, %v8258, %v8262
    %v8267 = vand.u32 2147483647, %v8257
    %vm8268 = vcmp.eq.f32.partialorder %v8267, 8.507059e+37
    %v8269 = vand.u32 %v8257, 2147483648
    %v8270 = vor.u32 1.1754944e-38, %v8269
    %v8271 = vsel %vm8268, %v8270, %v8266
    %v8272 = vmul.f32 1.0, %v8271
    %v8273 = vxor.u32 %v8251, 2147483648
    %v8274 = vmul.f32 %v8273, 1.442695
    %v8275 = vpow.pop %v8274
    %v8276 = vadd.f32 %v8275, 1.0
    %v8277 = vrcp.pop %v8276
    %v8278 = vmul.f32 %v8276, %v8277
    %v8279 = vsub.f32 1.0, %v8278
    %v8280 = vmul.f32 %v8277, %v8279
    %v8281 = vadd.f32 %v8277, %v8280
    %vm8282 = vweird.f32 %v8276
    %vm8283 = vweird.f32 %v8277
    %vm8284 = vmor %vm8282, %vm8283
    %v8285 = vsel %vm8284, %v8277, %v8281
    %v8286 = vand.u32 2147483647, %v8276
    %vm8287 = vcmp.eq.f32.partialorder %v8286, 8.507059e+37
    %v8288 = vand.u32 %v8276, 2147483648
    %v8289 = vor.u32 1.1754944e-38, %v8288
    %v8290 = vsel %vm8287, %v8289, %v8285
    %v8291 = vmul.f32 1.0, %v8290
    %v8292 = vtanh.pop %v8252
    %v8293 = vxor.u32 %v8253, 2147483648
    %v8294 = vmul.f32 %v8293, 1.442695
    %v8295 = vpow.pop %v8294
    %v8296 = vadd.f32 %v8295, 1.0
    %v8297 = vrcp.pop %v8296
    %v8298 = vmul.f32 %v8296, %v8297
    %v8299 = vsub.f32 1.0, %v8298
    %v8300 = vmul.f32 %v8297, %v8299
    %v8301 = vadd.f32 %v8297, %v8300
    %vm8302 = vweird.f32 %v8296
    %vm8303 = vweird.f32 %v8297
    %vm8304 = vmor %vm8302, %vm8303
    %v8305 = vsel %vm8304, %v8297, %v8301
    %v8306 = vand.u32 2147483647, %v8296
    %vm8307 = vcmp.eq.f32.partialorder %v8306, 8.507059e+37
    %v8308 = vand.u32 %v8296, 2147483648
    %v8309 = vor.u32 1.1754944e-38, %v8308
    %v8310 = vsel %vm8307, %v8309, %v8305
    %v8311 = vmul.f32 1.0, %v8310
    %v8313 = vrot.slane %v7925, 6
    %v8315 = vmul.f32 %v8291, %v8313
    %v8316 = vmul.f32 %v8272, %v8292
    %v8317 = vadd.f32 %v8315, %v8316
    %v8318 = vtanh.pop %v8317
    %v8319 = vmul.f32 %v8311, %v8318
    %v8321 = vrot.slane %v8157, 4
    %v8323 = vrot.slane %v8319, 4
    %v8324 = vrot.slane %v8321, 4
    %8327 = vmatpush.msra.mxu0 %v5763
    %8328 = vmatpush.msra.mxu0 %v5759
    %8329 = vmatpush.msra.mxu0 %v5755
    %8330 = vmatpush.msra.mxu0 %v5751
    %8331 = vmatpush.msra.mxu0 %v5747
    %8332 = vmatpush.msra.mxu0 %v5743
    %8333 = vmatpush.msra.mxu0 %v5739
    %8334 = vmatpush.msra.mxu0 %v5735
    %8335 = vmatpush.msra.mxu0 %v5731
    %8336 = vmatpush.msra.mxu0 %v5727
    %8337 = vmatpush.msra.mxu0 %v5723
    %8338 = vmatpush.msra.mxu0 %v5719
    %8339 = vmatpush.msra.mxu0 %v5715
    %8340 = vmatpush.msra.mxu0 %v5711
    %8341 = vmatpush.msra.mxu0 %v5707
    %8342 = vmatpush.msra.mxu0 %v5703
    %8343 = vmatmul.f32.gmra.mxu0 %v8323
    %v8344 = vpop.f32.mrf.mxu0
    %v8345 = vadd.f32 %v5986, %v8344
    %8346 = vdwg.mxu0
    %8347 = vmatpush.msra.mxu0 %v5827
    %8348 = vmatpush.msra.mxu0 %v5823
    %8349 = vmatpush.msra.mxu0 %v5819
    %8350 = vmatpush.msra.mxu0 %v5815
    %8351 = vmatpush.msra.mxu0 %v5811
    %8352 = vmatpush.msra.mxu0 %v5807
    %8353 = vmatpush.msra.mxu0 %v5803
    %8354 = vmatpush.msra.mxu0 %v5799
    %8355 = vmatpush.msra.mxu0 %v5795
    %8356 = vmatpush.msra.mxu0 %v5791
    %8357 = vmatpush.msra.mxu0 %v5787
    %8358 = vmatpush.msra.mxu0 %v5783
    %8359 = vmatpush.msra.mxu0 %v5779
    %8360 = vmatpush.msra.mxu0 %v5775
    %8361 = vmatpush.msra.mxu0 %v5771
    %8362 = vmatpush.msra.mxu0 %v5767
    %8363 = vmatmul.f32.gmra.mxu0 %v8324
    %v8364 = vpop.f32.mrf.mxu0
    %v8365 = vadd.f32 %v8345, %v8364
    %8366 = vdwg.mxu0
    %8367 = vmatpush.msra.mxu0 %v5764
    %8368 = vmatpush.msra.mxu0 %v5760
    %8369 = vmatpush.msra.mxu0 %v5756
    %8370 = vmatpush.msra.mxu0 %v5752
    %8371 = vmatpush.msra.mxu0 %v5748
    %8372 = vmatpush.msra.mxu0 %v5744
    %8373 = vmatpush.msra.mxu0 %v5740
    %8374 = vmatpush.msra.mxu0 %v5736
    %8375 = vmatpush.msra.mxu0 %v5732
    %8376 = vmatpush.msra.mxu0 %v5728
    %8377 = vmatpush.msra.mxu0 %v5724
    %8378 = vmatpush.msra.mxu0 %v5720
    %8379 = vmatpush.msra.mxu0 %v5716
    %8380 = vmatpush.msra.mxu0 %v5712
    %8381 = vmatpush.msra.mxu0 %v5708
    %8382 = vmatpush.msra.mxu0 %v5704
    %8383 = vmatmul.f32.gmra.mxu0 %v8323
    %v8384 = vpop.f32.mrf.mxu0
    %v8385 = vadd.f32 %v5987, %v8384
    %8386 = vdwg.mxu0
    %8387 = vmatpush.msra.mxu0 %v5828
    %8388 = vmatpush.msra.mxu0 %v5824
    %8389 = vmatpush.msra.mxu0 %v5820
    %8390 = vmatpush.msra.mxu0 %v5816
    %8391 = vmatpush.msra.mxu0 %v5812
    %8392 = vmatpush.msra.mxu0 %v5808
    %8393 = vmatpush.msra.mxu0 %v5804
    %8394 = vmatpush.msra.mxu0 %v5800
    %8395 = vmatpush.msra.mxu0 %v5796
    %8396 = vmatpush.msra.mxu0 %v5792
    %8397 = vmatpush.msra.mxu0 %v5788
    %8398 = vmatpush.msra.mxu0 %v5784
    %8399 = vmatpush.msra.mxu0 %v5780
    %8400 = vmatpush.msra.mxu0 %v5776
    %8401 = vmatpush.msra.mxu0 %v5772
    %8402 = vmatpush.msra.mxu0 %v5768
    %8403 = vmatmul.f32.gmra.mxu0 %v8324
    %v8404 = vpop.f32.mrf.mxu0
    %v8405 = vadd.f32 %v8385, %v8404
    %8406 = vdwg.mxu0
    %8407 = vmatpush.msra.mxu0 %v5765
    %8408 = vmatpush.msra.mxu0 %v5761
    %8409 = vmatpush.msra.mxu0 %v5757
    %8410 = vmatpush.msra.mxu0 %v5753
    %8411 = vmatpush.msra.mxu0 %v5749
    %8412 = vmatpush.msra.mxu0 %v5745
    %8413 = vmatpush.msra.mxu0 %v5741
    %8414 = vmatpush.msra.mxu0 %v5737
    %8415 = vmatpush.msra.mxu0 %v5733
    %8416 = vmatpush.msra.mxu0 %v5729
    %8417 = vmatpush.msra.mxu0 %v5725
    %8418 = vmatpush.msra.mxu0 %v5721
    %8419 = vmatpush.msra.mxu0 %v5717
    %8420 = vmatpush.msra.mxu0 %v5713
    %8421 = vmatpush.msra.mxu0 %v5709
    %8422 = vmatpush.msra.mxu0 %v5705
    %8423 = vmatmul.f32.gmra.mxu0 %v8323
    %v8424 = vpop.f32.mrf.mxu0
    %v8425 = vadd.f32 %v5988, %v8424
    %8426 = vdwg.mxu0
    %8427 = vmatpush.msra.mxu0 %v5829
    %8428 = vmatpush.msra.mxu0 %v5825
    %8429 = vmatpush.msra.mxu0 %v5821
    %8430 = vmatpush.msra.mxu0 %v5817
    %8431 = vmatpush.msra.mxu0 %v5813
    %8432 = vmatpush.msra.mxu0 %v5809
    %8433 = vmatpush.msra.mxu0 %v5805
    %8434 = vmatpush.msra.mxu0 %v5801
    %8435 = vmatpush.msra.mxu0 %v5797
    %8436 = vmatpush.msra.mxu0 %v5793
    %8437 = vmatpush.msra.mxu0 %v5789
    %8438 = vmatpush.msra.mxu0 %v5785
    %8439 = vmatpush.msra.mxu0 %v5781
    %8440 = vmatpush.msra.mxu0 %v5777
    %8441 = vmatpush.msra.mxu0 %v5773
    %8442 = vmatpush.msra.mxu0 %v5769
    %8443 = vmatmul.f32.gmra.mxu0 %v8324
    %v8444 = vpop.f32.mrf.mxu0
    %v8445 = vadd.f32 %v8425, %v8444
    %8446 = vdwg.mxu0
    %8447 = vmatpush.msra.mxu0 %v5766
    %8448 = vmatpush.msra.mxu0 %v5762
    %8449 = vmatpush.msra.mxu0 %v5758
    %8450 = vmatpush.msra.mxu0 %v5754
    %8451 = vmatpush.msra.mxu0 %v5750
    %8452 = vmatpush.msra.mxu0 %v5746
    %8453 = vmatpush.msra.mxu0 %v5742
    %8454 = vmatpush.msra.mxu0 %v5738
    %8455 = vmatpush.msra.mxu0 %v5734
    %8456 = vmatpush.msra.mxu0 %v5730
    %8457 = vmatpush.msra.mxu0 %v5726
    %8458 = vmatpush.msra.mxu0 %v5722
    %8459 = vmatpush.msra.mxu0 %v5718
    %8460 = vmatpush.msra.mxu0 %v5714
    %8461 = vmatpush.msra.mxu0 %v5710
    %8462 = vmatpush.msra.mxu0 %v5706
    %8463 = vmatmul.f32.gmra.mxu0 %v8323
    %v8464 = vpop.f32.mrf.mxu0
    %v8465 = vadd.f32 %v5989, %v8464
    %8466 = vdwg.mxu0
    %8467 = vmatpush.msra.mxu0 %v5830
    %8468 = vmatpush.msra.mxu0 %v5826
    %8469 = vmatpush.msra.mxu0 %v5822
    %8470 = vmatpush.msra.mxu0 %v5818
    %8471 = vmatpush.msra.mxu0 %v5814
    %8472 = vmatpush.msra.mxu0 %v5810
    %8473 = vmatpush.msra.mxu0 %v5806
    %8474 = vmatpush.msra.mxu0 %v5802
    %8475 = vmatpush.msra.mxu0 %v5798
    %8476 = vmatpush.msra.mxu0 %v5794
    %8477 = vmatpush.msra.mxu0 %v5790
    %8478 = vmatpush.msra.mxu0 %v5786
    %8479 = vmatpush.msra.mxu0 %v5782
    %8480 = vmatpush.msra.mxu0 %v5778
    %8481 = vmatpush.msra.mxu0 %v5774
    %8482 = vmatpush.msra.mxu0 %v5770
    %8483 = vmatmul.f32.gmra.mxu0 %v8324
    %v8484 = vpop.f32.mrf.mxu0
    %v8485 = vadd.f32 %v8465, %v8484
    %8486 = vdwg.mxu0
    %v8487 = vxor.u32 %v8365, 2147483648
    %v8488 = vmul.f32 %v8487, 1.442695
    %v8489 = vpow.pop %v8488
    %v8490 = vadd.f32 %v8489, 1.0
    %v8491 = vrcp.pop %v8490
    %v8492 = vmul.f32 %v8490, %v8491
    %v8493 = vsub.f32 1.0, %v8492
    %v8494 = vmul.f32 %v8491, %v8493
    %v8495 = vadd.f32 %v8491, %v8494
    %vm8496 = vweird.f32 %v8490
    %vm8497 = vweird.f32 %v8491
    %vm8498 = vmor %vm8496, %vm8497
    %v8499 = vsel %vm8498, %v8491, %v8495
    %v8500 = vand.u32 2147483647, %v8490
    %vm8501 = vcmp.eq.f32.partialorder %v8500, 8.507059e+37
    %v8502 = vand.u32 %v8490, 2147483648
    %v8503 = vor.u32 1.1754944e-38, %v8502
    %v8504 = vsel %vm8501, %v8503, %v8499
    %v8505 = vmul.f32 1.0, %v8504
    %v8506 = vxor.u32 %v8405, 2147483648
    %v8507 = vmul.f32 %v8506, 1.442695
    %v8508 = vpow.pop %v8507
    %v8509 = vadd.f32 %v8508, 1.0
    %v8510 = vrcp.pop %v8509
    %v8511 = vmul.f32 %v8509, %v8510
    %v8512 = vsub.f32 1.0, %v8511
    %v8513 = vmul.f32 %v8510, %v8512
    %v8514 = vadd.f32 %v8510, %v8513
    %vm8515 = vweird.f32 %v8509
    %vm8516 = vweird.f32 %v8510
    %vm8517 = vmor %vm8515, %vm8516
    %v8518 = vsel %vm8517, %v8510, %v8514
    %v8519 = vand.u32 2147483647, %v8509
    %vm8520 = vcmp.eq.f32.partialorder %v8519, 8.507059e+37
    %v8521 = vand.u32 %v8509, 2147483648
    %v8522 = vor.u32 1.1754944e-38, %v8521
    %v8523 = vsel %vm8520, %v8522, %v8518
    %v8524 = vmul.f32 1.0, %v8523
    %v8525 = vtanh.pop %v8445
    %v8526 = vxor.u32 %v8485, 2147483648
    %v8527 = vmul.f32 %v8526, 1.442695
    %v8528 = vpow.pop %v8527
    %v8529 = vadd.f32 %v8528, 1.0
    %v8530 = vrcp.pop %v8529
    %v8531 = vmul.f32 %v8529, %v8530
    %v8532 = vsub.f32 1.0, %v8531
    %v8533 = vmul.f32 %v8530, %v8532
    %v8534 = vadd.f32 %v8530, %v8533
    %vm8535 = vweird.f32 %v8529
    %vm8536 = vweird.f32 %v8530
    %vm8537 = vmor %vm8535, %vm8536
    %v8538 = vsel %vm8537, %v8530, %v8534
    %v8539 = vand.u32 2147483647, %v8529
    %vm8540 = vcmp.eq.f32.partialorder %v8539, 8.507059e+37
    %v8541 = vand.u32 %v8529, 2147483648
    %v8542 = vor.u32 1.1754944e-38, %v8541
    %v8543 = vsel %vm8540, %v8542, %v8538
    %v8544 = vmul.f32 1.0, %v8543
    %v8545 = vmul.f32 %v8524, %v8155
    %v8546 = vmul.f32 %v8505, %v8525
    %v8547 = vadd.f32 %v8545, %v8546
    %v8548 = vtanh.pop %v8547
    %v8549 = vmul.f32 %v8544, %v8548
    %8550 = vmatpush.msra.mxu0 %v5699
    %8551 = vmatpush.msra.mxu0 %v5695
    %8552 = vmatpush.msra.mxu0 %v5691
    %8553 = vmatpush.msra.mxu0 %v5687
    %8554 = vmatpush.msra.mxu0 %v5683
    %8555 = vmatpush.msra.mxu0 %v5679
    %8556 = vmatpush.msra.mxu0 %v5675
    %8557 = vmatpush.msra.mxu0 %v5671
    %8558 = vmatpush.msra.mxu0 %v5667
    %8559 = vmatpush.msra.mxu0 %v5663
    %8560 = vmatpush.msra.mxu0 %v5659
    %8561 = vmatpush.msra.mxu0 %v5655
    %8562 = vmatpush.msra.mxu0 %v5651
    %8563 = vmatpush.msra.mxu0 %v5647
    %8564 = vmatpush.msra.mxu0 %v5643
    %8565 = vmatpush.msra.mxu0 %v5639
    %8566 = vmatmul.f32.gmra.mxu0 %v8323
    %v8567 = vpop.f32.mrf.mxu0
    %v8568 = vadd.f32 0.0, %v8567
    %8569 = vdwg.mxu0
    %8570 = vmatpush.msra.mxu0 %v5700
    %8571 = vmatpush.msra.mxu0 %v5696
    %8572 = vmatpush.msra.mxu0 %v5692
    %8573 = vmatpush.msra.mxu0 %v5688
    %8574 = vmatpush.msra.mxu0 %v5684
    %8575 = vmatpush.msra.mxu0 %v5680
    %8576 = vmatpush.msra.mxu0 %v5676
    %8577 = vmatpush.msra.mxu0 %v5672
    %8578 = vmatpush.msra.mxu0 %v5668
    %8579 = vmatpush.msra.mxu0 %v5664
    %8580 = vmatpush.msra.mxu0 %v5660
    %8581 = vmatpush.msra.mxu0 %v5656
    %8582 = vmatpush.msra.mxu0 %v5652
    %8583 = vmatpush.msra.mxu0 %v5648
    %8584 = vmatpush.msra.mxu0 %v5644
    %8585 = vmatpush.msra.mxu0 %v5640
    %8586 = vmatmul.f32.gmra.mxu0 %v8323
    %v8587 = vpop.f32.mrf.mxu0
    %v8588 = vadd.f32 0.0, %v8587
    %8589 = vdwg.mxu0
    %8590 = vmatpush.msra.mxu0 %v5701
    %8591 = vmatpush.msra.mxu0 %v5697
    %8592 = vmatpush.msra.mxu0 %v5693
    %8593 = vmatpush.msra.mxu0 %v5689
    %8594 = vmatpush.msra.mxu0 %v5685
    %8595 = vmatpush.msra.mxu0 %v5681
    %8596 = vmatpush.msra.mxu0 %v5677
    %8597 = vmatpush.msra.mxu0 %v5673
    %8598 = vmatpush.msra.mxu0 %v5669
    %8599 = vmatpush.msra.mxu0 %v5665
    %8600 = vmatpush.msra.mxu0 %v5661
    %8601 = vmatpush.msra.mxu0 %v5657
    %8602 = vmatpush.msra.mxu0 %v5653
    %8603 = vmatpush.msra.mxu0 %v5649
    %8604 = vmatpush.msra.mxu0 %v5645
    %8605 = vmatpush.msra.mxu0 %v5641
    %8606 = vmatmul.f32.gmra.mxu0 %v8323
    %v8607 = vpop.f32.mrf.mxu0
    %v8608 = vadd.f32 0.0, %v8607
    %8609 = vdwg.mxu0
    %8610 = vmatpush.msra.mxu0 %v5702
    %8611 = vmatpush.msra.mxu0 %v5698
    %8612 = vmatpush.msra.mxu0 %v5694
    %8613 = vmatpush.msra.mxu0 %v5690
    %8614 = vmatpush.msra.mxu0 %v5686
    %8615 = vmatpush.msra.mxu0 %v5682
    %8616 = vmatpush.msra.mxu0 %v5678
    %8617 = vmatpush.msra.mxu0 %v5674
    %8618 = vmatpush.msra.mxu0 %v5670
    %8619 = vmatpush.msra.mxu0 %v5666
    %8620 = vmatpush.msra.mxu0 %v5662
    %8621 = vmatpush.msra.mxu0 %v5658
    %8622 = vmatpush.msra.mxu0 %v5654
    %8623 = vmatpush.msra.mxu0 %v5650
    %8624 = vmatpush.msra.mxu0 %v5646
    %8625 = vmatpush.msra.mxu0 %v5642
    %8626 = vmatmul.f32.gmra.mxu0 %v8323
    %v8627 = vpop.f32.mrf.mxu0
    %v8628 = vadd.f32 0.0, %v8627
    %8629 = vdwg.mxu0
    %v8634 = vrot.slane %v8568, 2
    %v8635 = vrot.slane %v8588, 2
    %v8636 = vrot.slane %v8608, 2
    %v8637 = vrot.slane %v8628, 2
    %v8642 = vadd.f32 %v5568, %v8634
    %v8643 = vadd.f32 %v5591, %v8635
    %v8644 = vadd.f32 %v5614, %v8636
    %v8645 = vadd.f32 %v5637, %v8637
    %v8646 = vxor.u32 %v8642, 2147483648
    %v8647 = vmul.f32 %v8646, 1.442695
    %v8648 = vpow.pop %v8647
    %v8649 = vadd.f32 %v8648, 1.0
    %v8650 = vrcp.pop %v8649
    %v8651 = vmul.f32 %v8649, %v8650
    %v8652 = vsub.f32 1.0, %v8651
    %v8653 = vmul.f32 %v8650, %v8652
    %v8654 = vadd.f32 %v8650, %v8653
    %vm8655 = vweird.f32 %v8649
    %vm8656 = vweird.f32 %v8650
    %vm8657 = vmor %vm8655, %vm8656
    %v8658 = vsel %vm8657, %v8650, %v8654
    %v8659 = vand.u32 2147483647, %v8649
    %vm8660 = vcmp.eq.f32.partialorder %v8659, 8.507059e+37
    %v8661 = vand.u32 %v8649, 2147483648
    %v8662 = vor.u32 1.1754944e-38, %v8661
    %v8663 = vsel %vm8660, %v8662, %v8658
    %v8664 = vmul.f32 1.0, %v8663
    %v8665 = vxor.u32 %v8643, 2147483648
    %v8666 = vmul.f32 %v8665, 1.442695
    %v8667 = vpow.pop %v8666
    %v8668 = vadd.f32 %v8667, 1.0
    %v8669 = vrcp.pop %v8668
    %v8670 = vmul.f32 %v8668, %v8669
    %v8671 = vsub.f32 1.0, %v8670
    %v8672 = vmul.f32 %v8669, %v8671
    %v8673 = vadd.f32 %v8669, %v8672
    %vm8674 = vweird.f32 %v8668
    %vm8675 = vweird.f32 %v8669
    %vm8676 = vmor %vm8674, %vm8675
    %v8677 = vsel %vm8676, %v8669, %v8673
    %v8678 = vand.u32 2147483647, %v8668
    %vm8679 = vcmp.eq.f32.partialorder %v8678, 8.507059e+37
    %v8680 = vand.u32 %v8668, 2147483648
    %v8681 = vor.u32 1.1754944e-38, %v8680
    %v8682 = vsel %vm8679, %v8681, %v8677
    %v8683 = vmul.f32 1.0, %v8682
    %v8684 = vtanh.pop %v8644
    %v8685 = vxor.u32 %v8645, 2147483648
    %v8686 = vmul.f32 %v8685, 1.442695
    %v8687 = vpow.pop %v8686
    %v8688 = vadd.f32 %v8687, 1.0
    %v8689 = vrcp.pop %v8688
    %v8690 = vmul.f32 %v8688, %v8689
    %v8691 = vsub.f32 1.0, %v8690
    %v8692 = vmul.f32 %v8689, %v8691
    %v8693 = vadd.f32 %v8689, %v8692
    %vm8694 = vweird.f32 %v8688
    %vm8695 = vweird.f32 %v8689
    %vm8696 = vmor %vm8694, %vm8695
    %v8697 = vsel %vm8696, %v8689, %v8693
    %v8698 = vand.u32 2147483647, %v8688
    %vm8699 = vcmp.eq.f32.partialorder %v8698, 8.507059e+37
    %v8700 = vand.u32 %v8688, 2147483648
    %v8701 = vor.u32 1.1754944e-38, %v8700
    %v8702 = vsel %vm8699, %v8701, %v8697
    %v8703 = vmul.f32 1.0, %v8702
    %v8705 = vrot.slane %v8317, 6
    %v8707 = vmul.f32 %v8683, %v8705
    %v8708 = vmul.f32 %v8664, %v8684
    %v8709 = vadd.f32 %v8707, %v8708
    %v8710 = vtanh.pop %v8709
    %v8711 = vmul.f32 %v8703, %v8710
    %v8713 = vrot.slane %v8549, 2
    %v8715 = vrot.slane %v8711, 6
    %v8716 = vrot.slane %v8713, 6
    %8719 = vmatpush.msra.mxu0 %v5763
    %8720 = vmatpush.msra.mxu0 %v5759
    %8721 = vmatpush.msra.mxu0 %v5755
    %8722 = vmatpush.msra.mxu0 %v5751
    %8723 = vmatpush.msra.mxu0 %v5747
    %8724 = vmatpush.msra.mxu0 %v5743
    %8725 = vmatpush.msra.mxu0 %v5739
    %8726 = vmatpush.msra.mxu0 %v5735
    %8727 = vmatpush.msra.mxu0 %v5731
    %8728 = vmatpush.msra.mxu0 %v5727
    %8729 = vmatpush.msra.mxu0 %v5723
    %8730 = vmatpush.msra.mxu0 %v5719
    %8731 = vmatpush.msra.mxu0 %v5715
    %8732 = vmatpush.msra.mxu0 %v5711
    %8733 = vmatpush.msra.mxu0 %v5707
    %8734 = vmatpush.msra.mxu0 %v5703
    %8735 = vmatmul.f32.gmra.mxu0 %v8715
    %v8736 = vpop.f32.mrf.mxu0
    %v8737 = vadd.f32 %v5986, %v8736
    %8738 = vdwg.mxu0
    %8739 = vmatpush.msra.mxu0 %v5827
    %8740 = vmatpush.msra.mxu0 %v5823
    %8741 = vmatpush.msra.mxu0 %v5819
    %8742 = vmatpush.msra.mxu0 %v5815
    %8743 = vmatpush.msra.mxu0 %v5811
    %8744 = vmatpush.msra.mxu0 %v5807
    %8745 = vmatpush.msra.mxu0 %v5803
    %8746 = vmatpush.msra.mxu0 %v5799
    %8747 = vmatpush.msra.mxu0 %v5795
    %8748 = vmatpush.msra.mxu0 %v5791
    %8749 = vmatpush.msra.mxu0 %v5787
    %8750 = vmatpush.msra.mxu0 %v5783
    %8751 = vmatpush.msra.mxu0 %v5779
    %8752 = vmatpush.msra.mxu0 %v5775
    %8753 = vmatpush.msra.mxu0 %v5771
    %8754 = vmatpush.msra.mxu0 %v5767
    %8755 = vmatmul.f32.gmra.mxu0 %v8716
    %v8756 = vpop.f32.mrf.mxu0
    %v8757 = vadd.f32 %v8737, %v8756
    %8758 = vdwg.mxu0
    %8759 = vmatpush.msra.mxu0 %v5764
    %8760 = vmatpush.msra.mxu0 %v5760
    %8761 = vmatpush.msra.mxu0 %v5756
    %8762 = vmatpush.msra.mxu0 %v5752
    %8763 = vmatpush.msra.mxu0 %v5748
    %8764 = vmatpush.msra.mxu0 %v5744
    %8765 = vmatpush.msra.mxu0 %v5740
    %8766 = vmatpush.msra.mxu0 %v5736
    %8767 = vmatpush.msra.mxu0 %v5732
    %8768 = vmatpush.msra.mxu0 %v5728
    %8769 = vmatpush.msra.mxu0 %v5724
    %8770 = vmatpush.msra.mxu0 %v5720
    %8771 = vmatpush.msra.mxu0 %v5716
    %8772 = vmatpush.msra.mxu0 %v5712
    %8773 = vmatpush.msra.mxu0 %v5708
    %8774 = vmatpush.msra.mxu0 %v5704
    %8775 = vmatmul.f32.gmra.mxu0 %v8715
    %v8776 = vpop.f32.mrf.mxu0
    %v8777 = vadd.f32 %v5987, %v8776
    %8778 = vdwg.mxu0
    %8779 = vmatpush.msra.mxu0 %v5828
    %8780 = vmatpush.msra.mxu0 %v5824
    %8781 = vmatpush.msra.mxu0 %v5820
    %8782 = vmatpush.msra.mxu0 %v5816
    %8783 = vmatpush.msra.mxu0 %v5812
    %8784 = vmatpush.msra.mxu0 %v5808
    %8785 = vmatpush.msra.mxu0 %v5804
    %8786 = vmatpush.msra.mxu0 %v5800
    %8787 = vmatpush.msra.mxu0 %v5796
    %8788 = vmatpush.msra.mxu0 %v5792
    %8789 = vmatpush.msra.mxu0 %v5788
    %8790 = vmatpush.msra.mxu0 %v5784
    %8791 = vmatpush.msra.mxu0 %v5780
    %8792 = vmatpush.msra.mxu0 %v5776
    %8793 = vmatpush.msra.mxu0 %v5772
    %8794 = vmatpush.msra.mxu0 %v5768
    %8795 = vmatmul.f32.gmra.mxu0 %v8716
    %v8796 = vpop.f32.mrf.mxu0
    %v8797 = vadd.f32 %v8777, %v8796
    %8798 = vdwg.mxu0
    %8799 = vmatpush.msra.mxu0 %v5765
    %8800 = vmatpush.msra.mxu0 %v5761
    %8801 = vmatpush.msra.mxu0 %v5757
    %8802 = vmatpush.msra.mxu0 %v5753
    %8803 = vmatpush.msra.mxu0 %v5749
    %8804 = vmatpush.msra.mxu0 %v5745
    %8805 = vmatpush.msra.mxu0 %v5741
    %8806 = vmatpush.msra.mxu0 %v5737
    %8807 = vmatpush.msra.mxu0 %v5733
    %8808 = vmatpush.msra.mxu0 %v5729
    %8809 = vmatpush.msra.mxu0 %v5725
    %8810 = vmatpush.msra.mxu0 %v5721
    %8811 = vmatpush.msra.mxu0 %v5717
    %8812 = vmatpush.msra.mxu0 %v5713
    %8813 = vmatpush.msra.mxu0 %v5709
    %8814 = vmatpush.msra.mxu0 %v5705
    %8815 = vmatmul.f32.gmra.mxu0 %v8715
    %v8816 = vpop.f32.mrf.mxu0
    %v8817 = vadd.f32 %v5988, %v8816
    %8818 = vdwg.mxu0
    %8819 = vmatpush.msra.mxu0 %v5829
    %8820 = vmatpush.msra.mxu0 %v5825
    %8821 = vmatpush.msra.mxu0 %v5821
    %8822 = vmatpush.msra.mxu0 %v5817
    %8823 = vmatpush.msra.mxu0 %v5813
    %8824 = vmatpush.msra.mxu0 %v5809
    %8825 = vmatpush.msra.mxu0 %v5805
    %8826 = vmatpush.msra.mxu0 %v5801
    %8827 = vmatpush.msra.mxu0 %v5797
    %8828 = vmatpush.msra.mxu0 %v5793
    %8829 = vmatpush.msra.mxu0 %v5789
    %8830 = vmatpush.msra.mxu0 %v5785
    %8831 = vmatpush.msra.mxu0 %v5781
    %8832 = vmatpush.msra.mxu0 %v5777
    %8833 = vmatpush.msra.mxu0 %v5773
    %8834 = vmatpush.msra.mxu0 %v5769
    %8835 = vmatmul.f32.gmra.mxu0 %v8716
    %v8836 = vpop.f32.mrf.mxu0
    %v8837 = vadd.f32 %v8817, %v8836
    %8838 = vdwg.mxu0
    %8839 = vmatpush.msra.mxu0 %v5766
    %8840 = vmatpush.msra.mxu0 %v5762
    %8841 = vmatpush.msra.mxu0 %v5758
    %8842 = vmatpush.msra.mxu0 %v5754
    %8843 = vmatpush.msra.mxu0 %v5750
    %8844 = vmatpush.msra.mxu0 %v5746
    %8845 = vmatpush.msra.mxu0 %v5742
    %8846 = vmatpush.msra.mxu0 %v5738
    %8847 = vmatpush.msra.mxu0 %v5734
    %8848 = vmatpush.msra.mxu0 %v5730
    %8849 = vmatpush.msra.mxu0 %v5726
    %8850 = vmatpush.msra.mxu0 %v5722
    %8851 = vmatpush.msra.mxu0 %v5718
    %8852 = vmatpush.msra.mxu0 %v5714
    %8853 = vmatpush.msra.mxu0 %v5710
    %8854 = vmatpush.msra.mxu0 %v5706
    %8855 = vmatmul.f32.gmra.mxu0 %v8715
    %v8856 = vpop.f32.mrf.mxu0
    %v8857 = vadd.f32 %v5989, %v8856
    %8858 = vdwg.mxu0
    %8859 = vmatpush.msra.mxu0 %v5830
    %8860 = vmatpush.msra.mxu0 %v5826
    %8861 = vmatpush.msra.mxu0 %v5822
    %8862 = vmatpush.msra.mxu0 %v5818
    %8863 = vmatpush.msra.mxu0 %v5814
    %8864 = vmatpush.msra.mxu0 %v5810
    %8865 = vmatpush.msra.mxu0 %v5806
    %8866 = vmatpush.msra.mxu0 %v5802
    %8867 = vmatpush.msra.mxu0 %v5798
    %8868 = vmatpush.msra.mxu0 %v5794
    %8869 = vmatpush.msra.mxu0 %v5790
    %8870 = vmatpush.msra.mxu0 %v5786
    %8871 = vmatpush.msra.mxu0 %v5782
    %8872 = vmatpush.msra.mxu0 %v5778
    %8873 = vmatpush.msra.mxu0 %v5774
    %8874 = vmatpush.msra.mxu0 %v5770
    %8875 = vmatmul.f32.gmra.mxu0 %v8716
    %v8876 = vpop.f32.mrf.mxu0
    %v8877 = vadd.f32 %v8857, %v8876
    %8878 = vdwg.mxu0
    %v8879 = vxor.u32 %v8757, 2147483648
    %v8880 = vmul.f32 %v8879, 1.442695
    %v8881 = vpow.pop %v8880
    %v8882 = vadd.f32 %v8881, 1.0
    %v8883 = vrcp.pop %v8882
    %v8884 = vmul.f32 %v8882, %v8883
    %v8885 = vsub.f32 1.0, %v8884
    %v8886 = vmul.f32 %v8883, %v8885
    %v8887 = vadd.f32 %v8883, %v8886
    %vm8888 = vweird.f32 %v8882
    %vm8889 = vweird.f32 %v8883
    %vm8890 = vmor %vm8888, %vm8889
    %v8891 = vsel %vm8890, %v8883, %v8887
    %v8892 = vand.u32 2147483647, %v8882
    %vm8893 = vcmp.eq.f32.partialorder %v8892, 8.507059e+37
    %v8894 = vand.u32 %v8882, 2147483648
    %v8895 = vor.u32 1.1754944e-38, %v8894
    %v8896 = vsel %vm8893, %v8895, %v8891
    %v8897 = vmul.f32 1.0, %v8896
    %v8898 = vxor.u32 %v8797, 2147483648
    %v8899 = vmul.f32 %v8898, 1.442695
    %v8900 = vpow.pop %v8899
    %v8901 = vadd.f32 %v8900, 1.0
    %v8902 = vrcp.pop %v8901
    %v8903 = vmul.f32 %v8901, %v8902
    %v8904 = vsub.f32 1.0, %v8903
    %v8905 = vmul.f32 %v8902, %v8904
    %v8906 = vadd.f32 %v8902, %v8905
    %vm8907 = vweird.f32 %v8901
    %vm8908 = vweird.f32 %v8902
    %vm8909 = vmor %vm8907, %vm8908
    %v8910 = vsel %vm8909, %v8902, %v8906
    %v8911 = vand.u32 2147483647, %v8901
    %vm8912 = vcmp.eq.f32.partialorder %v8911, 8.507059e+37
    %v8913 = vand.u32 %v8901, 2147483648
    %v8914 = vor.u32 1.1754944e-38, %v8913
    %v8915 = vsel %vm8912, %v8914, %v8910
    %v8916 = vmul.f32 1.0, %v8915
    %v8917 = vtanh.pop %v8837
    %v8918 = vxor.u32 %v8877, 2147483648
    %v8919 = vmul.f32 %v8918, 1.442695
    %v8920 = vpow.pop %v8919
    %v8921 = vadd.f32 %v8920, 1.0
    %v8922 = vrcp.pop %v8921
    %v8923 = vmul.f32 %v8921, %v8922
    %v8924 = vsub.f32 1.0, %v8923
    %v8925 = vmul.f32 %v8922, %v8924
    %v8926 = vadd.f32 %v8922, %v8925
    %vm8927 = vweird.f32 %v8921
    %vm8928 = vweird.f32 %v8922
    %vm8929 = vmor %vm8927, %vm8928
    %v8930 = vsel %vm8929, %v8922, %v8926
    %v8931 = vand.u32 2147483647, %v8921
    %vm8932 = vcmp.eq.f32.partialorder %v8931, 8.507059e+37
    %v8933 = vand.u32 %v8921, 2147483648
    %v8934 = vor.u32 1.1754944e-38, %v8933
    %v8935 = vsel %vm8932, %v8934, %v8930
    %v8936 = vmul.f32 1.0, %v8935
    %v8937 = vmul.f32 %v8916, %v8547
    %v8938 = vmul.f32 %v8897, %v8917
    %v8939 = vadd.f32 %v8937, %v8938
    %v8940 = vtanh.pop %v8939
    %v8941 = vmul.f32 %v8936, %v8940
    %v8942 = vld [vmem:[%s10] sm:$0xff]
    %v8943 = vld [vmem:[%s10 + $0x8] sm:$0xff]
    %v8944 = vld [vmem:[%s10 + $0x10] sm:$0xff]
    %v8945 = vld [vmem:[%s10 + $0x18] sm:$0xff]
    %v8946 = vld [vmem:[%s10 + $0x20] sm:$0xff]
    %v8947 = vld [vmem:[%s10 + $0x28] sm:$0xff]
    %v8948 = vld [vmem:[%s10 + $0x30] sm:$0xff]
    %v8949 = vld [vmem:[%s10 + $0x38] sm:$0xff]
    %v8950 = vld [vmem:[%s10 + $0x40] sm:$0xff]
    %v8951 = vld [vmem:[%s10 + $0x48] sm:$0xff]
    %v8952 = vld [vmem:[%s10 + $0x50] sm:$0xff]
    %v8953 = vld [vmem:[%s10 + $0x58] sm:$0xff]
    %v8954 = vld [vmem:[%s10 + $0x60] sm:$0xff]
    %v8955 = vld [vmem:[%s10 + $0x68] sm:$0xff]
    %v8956 = vld [vmem:[%s10 + $0x70] sm:$0xff]
    %v8957 = vld [vmem:[%s10 + $0x78] sm:$0xff]
    %v8958 = vld [vmem:[%s11] sm:$0x1]
    %v8960 = vperm.slane %v8958, 0
    %8962 = vmatpush.msra.mxu0 %v8957
    %8963 = vmatpush.msra.mxu0 %v8956
    %8964 = vmatpush.msra.mxu0 %v8955
    %8965 = vmatpush.msra.mxu0 %v8954
    %8966 = vmatpush.msra.mxu0 %v8953
    %8967 = vmatpush.msra.mxu0 %v8952
    %8968 = vmatpush.msra.mxu0 %v8951
    %8969 = vmatpush.msra.mxu0 %v8950
    %8970 = vmatpush.msra.mxu0 %v8949
    %8971 = vmatpush.msra.mxu0 %v8948
    %8972 = vmatpush.msra.mxu0 %v8947
    %8973 = vmatpush.msra.mxu0 %v8946
    %8974 = vmatpush.msra.mxu0 %v8945
    %8975 = vmatpush.msra.mxu0 %v8944
    %8976 = vmatpush.msra.mxu0 %v8943
    %8977 = vmatpush.msra.mxu0 %v8942
    %8978 = vmatmul.f32.gmra.mxu0 %v8941
    %v8979 = vpop.f32.mrf.mxu0
    %v8980 = vadd.f32 %v8960, %v8979
    %8981 = vdwg.mxu0
    %vm8982 = vcmask 58368
    %v8983 = vsel %vm8982, %v8980, -inf
    %8984 = vmax.xlane.f32.xlu0 %v8983
    %v8985 = vpop.xlane.xlu0 %8984
    %v8986 = vsub.f32 %v8980, %v8985
    %v8987 = vmul.f32 %v8986, 1.442695
    %v8988 = vpow.pop %v8987
    %v8989 = vsel %vm8982, %v8988, 0.0
    %8990 = vadd.xlane.f32.xlu0 %v8989
    %v8991 = vpop.xlane.xlu0 %8990
    %v8992 = vlog2.pop %v8991
    %v8993 = vmul.f32 %v8992, 0.6931472
    %v8994 = vsub.f32 %v8986, %v8993
    %8995 = vst.msk [vmem:[#allocation9] sm:$0x3] %vm8982, %v8994
    // Predicated region
    $region62: #{cnn_lstm_forward.1} parent=1 // pred_check
      _
    $region63: #{cnn_lstm_forward.1} parent=1 // pred_check_branch
      %8997 = sbr.rel (0) target = $region65
    $region64: #{cnn_lstm_forward.1} parent=1 // pred_region
      %8999 = vsyncadd [#allocation4], 0
      %s9001 = sshll.u32 [#allocation9], 4
      %s9002 = int_to_ptr.vmem [resolvable:$true] %s9001
      %s9003 = sshll.u32 %s12, 4
      %s9004 = int_to_ptr.hbm [resolvable:$true] %s9003
      %9006 = dma.vmem_to_hbm [thread:$0]  %s9002, 32, %s9004, [#allocation4]
    $region65: #{cnn_lstm_forward.1} parent=1 // pred_fallthru
      _
    // Predicated region
    $region66: #{cnn_lstm_forward.1} parent=1 // pred_check
      _
    $region67: #{cnn_lstm_forward.1} parent=1 // pred_check_branch
      %9008 = sbr.rel (0) target = $region69
    $region68: #{cnn_lstm_forward.1} parent=1 // pred_region
      %9010 = dma.done [#allocation4], 32
    $region69: #{cnn_lstm_forward.1} parent=1 // pred_fallthru
      _
    %9011 = vsyncpa [#allocation3], 1
    %9012 = vsyncpa [#allocation4], 1
    %9013 = vsyncpa [#allocation5], 1
    %9014 = vsyncpa [#allocation7], 1

</llo_original>
